<compile_context>
chip_gen: v5e
topology: v5e:2x2
jax: 0.10.0
libtpu: 0.0.40
codegen_flags: <defaults>
</compile_context>

<pallas_src>
import functools

import jax
import jax.numpy as jnp
from jax.experimental import pallas as pl
from jax.experimental.pallas import tpu as pltpu


HIDDEN = 200
N_DIM = 3
N_HIDDEN_LAYERS = 5  # -> 5 Linear layers total: 3->H, H->H, H->H, H->H, H->1


def _round_up(a, b):
    return ((a + b - 1) // b) * b


def _mlp_kernel(x_ref,
                w0_ref, b0_ref,
                w1_ref, b1_ref,
                w2_ref, b2_ref,
                w3_ref, b3_ref,
                w4_ref, b4_ref,
                o_ref):
    """Full MLP forward for one tile of points, entirely in VMEM.

    Feature-major layout:
      x_ref:  (N_DIM, TN)  f32     -- points on the lane axis
      w0_ref: (H, N_DIM)   f32     -- PyTorch nn.Linear layout
      w1..w3: (H, H)       bf16    -- hidden weights, bf16 MXU operands
      w4_ref: (H, 1)       f32     -- output weight as a column (VPU/XLU path)
      bK_ref: (out_K, 1)   f32
      o_ref:  (1, TN)      f32     -- lane-dense output block
    """
    x = x_ref[...]

    # Layer 0: Linear(3 -> H) + ReLU as 3 VPU broadcast FMAs
    # (K=3 would waste a full MXU pass; VPU has slack here).
    w0 = w0_ref[...]
    h = b0_ref[...] + w0[:, 0:1] * x[0:1, :]
    for d in range(1, N_DIM):
        h = h + w0[:, d:d + 1] * x[d:d + 1, :]
    h = jnp.maximum(h, 0.0)

    # Layers 1..3: Linear(H -> H) + ReLU on the MXU.
    # bf16 operands, f32 accumulation; hidden dim on sublanes.
    for w_ref, b_ref in ((w1_ref, b1_ref), (w2_ref, b2_ref), (w3_ref, b3_ref)):
        h = jnp.dot(w_ref[...], h.astype(jnp.bfloat16),
                    preferred_element_type=jnp.float32) + b_ref[...]
        h = jnp.maximum(h, 0.0)

    # Layer 4: Linear(H -> 1) + Sigmoid, kept OFF the MXU (M=1 would be padded
    # to a full MXU pass).  VPU multiply + XLU sublane reduction instead.
    logits = jnp.sum(w4_ref[...] * h, axis=0, keepdims=True) + b4_ref[...]

    # Sigmoid via EUP exp + EUP approximate reciprocal (both off the VPU slot).
    o_ref[...] = pl.reciprocal(1.0 + jnp.exp(-logits), approx=True).astype(o_ref.dtype)


@functools.partial(jax.jit, static_argnames=("tile_n",))
def continuous_occupancy_map_forward(x, params, *, tile_n=None):
    """x: (N, N_DIM) float32 points -> (N, 1) occupancy probability in [0, 1]."""
    n, d = x.shape
    assert d == N_DIM

    if tile_n is None:
        # >= 2 grid programs whenever n allows it (v7x has 2 TensorCores),
        # tiles a multiple of 512 lanes, capped at 4096 (h is ~3.3 MB there).
        tile_n = min(4096, _round_up(pl.cdiv(n, 2), 512))

    n_pad = pl.cdiv(n, tile_n) * tile_n

    # Feature-major: (N_DIM, N), pad point axis up to a multiple of tile_n.
    # With allow_input_fusion below, XLA may fuse this transpose/pad into the
    # pallas_call input instead of a separate HBM round trip.
    xT = x.T
    if n_pad != n:
        xT = jnp.pad(xT, ((0, 0), (0, n_pad - n)))

    ws = params["weights"]  # list of (out, in) matrices (PyTorch layout), f32
    bs = params["biases"]   # list of (out, 1) column vectors, f32

    n_layers = len(ws)
    flat_params = []
    weight_specs = []
    for i, (w, b) in enumerate(zip(ws, bs)):
        if i == 0:
            w_k = w                                   # (H, 3) f32, VPU path
        elif i == n_layers - 1:
            w_k = w.reshape(HIDDEN, 1)                # (H, 1) f32, VPU/XLU path
        else:
            w_k = w.astype(jnp.bfloat16)              # (H, H) bf16, MXU path
        flat_params.extend([w_k, b])
        # Full-array blocks, constant index_map -> fetched once, reused per tile.
        weight_specs.append(pl.BlockSpec(w_k.shape, lambda i: (0, 0)))
        weight_specs.append(pl.BlockSpec(b.shape, lambda i: (0, 0)))

    param_bytes = sum(int(p.size) * p.dtype.itemsize for p in flat_params)
    flops = int(n_pad) * (2 * N_DIM * HIDDEN + 3 * 2 * HIDDEN * HIDDEN + 2 * HIDDEN)
    cost = pl.CostEstimate(
        flops=flops,
        transcendentals=2 * int(n_pad),  # exp + reciprocal per point
        bytes_accessed=int(n_pad) * (N_DIM + 1) * 4 + param_bytes,
    )

    out = pl.pallas_call(
        _mlp_kernel,
        out_shape=jax.ShapeDtypeStruct((1, n_pad), jnp.float32),
        grid_spec=pltpu.PrefetchScalarGridSpec(
            num_scalar_prefetch=0,
            grid=(n_pad // tile_n,),
            in_specs=[pl.BlockSpec((N_DIM, tile_n), lambda i: (0, i))] + weight_specs,
            out_specs=pl.BlockSpec((1, tile_n), lambda i: (0, i)),
        ),
        compiler_params=pltpu.CompilerParams(
            dimension_semantics=("parallel",),
            # Allow XLA to fuse the transpose/pad producer of the point input.
            allow_input_fusion=[True] + [False] * len(flat_params),
        ),
        cost_estimate=cost,
    )(xT, *flat_params)

    # (1, n_pad) -> (n, 1)
    return out[:, :n].T


def init_params(key, hidden_size=HIDDEN, n_hidden_layers=N_HIDDEN_LAYERS,
                n_dimension=N_DIM):
    """PyTorch-style nn.Linear default init: U[-1/sqrt(fan_in), +1/sqrt(fan_in)].

    Weights are stored in PyTorch layout (out_features, in_features); biases
    as (out_features, 1) column vectors (feature-major kernel layout).
    """
    dims = []
    for i in range(n_hidden_layers):
        if i == 0:
            dims.append((n_dimension, hidden_size))
        elif i == n_hidden_layers - 1:
            dims.append((hidden_size, 1))
        else:
            dims.append((hidden_size, hidden_size))

    weights, biases = [], []
    for fan_in, fan_out in dims:
        key, kw, kb = jax.random.split(key, 3)
        bound = 1.0 / (float(fan_in) ** 0.5)
        w = jax.random.uniform(kw, (fan_out, fan_in), jnp.float32, -bound, bound)
        b = jax.random.uniform(kb, (fan_out, 1), jnp.float32, -bound, bound)
        weights.append(w)
        biases.append(b)
    return {"weights": weights, "biases": biases}


def reference_forward(x, params):
    """Plain-JAX f32 reference matching the PyTorch module (x @ W^T + b)."""
    h = x
    n_layers = len(params["weights"])
    for i, (w, b) in enumerate(zip(params["weights"], params["biases"])):
        h = h @ w.T + b.T
        if i < n_layers - 1:
            h = jnp.maximum(h, 0.0)
        else:
            h = 1.0 / (1.0 + jnp.exp(-h))
    return h


if __name__ == "__main__":
    key = jax.random.PRNGKey(0)
    key, kx = jax.random.split(key)

    # 2000 query points in 3-D space: auto tile picks tile_n=1024 -> a 2-step
    # parallel grid (both v7x TensorCores busy) and exercises padding (2048).
    n_points = 2000
    x = jax.random.normal(kx, (n_points, N_DIM), jnp.float32)

    params = init_params(key)

    out = continuous_occupancy_map_forward(x, params)
    out = jax.block_until_ready(out)

    ref = reference_forward(x, params)
    assert out.shape == (n_points, 1), out.shape
    assert bool(jnp.all(jnp.isfinite(out)))
    # Tolerance relaxed to 5e-3 for the bf16 MXU operand path (f32 accumulation).
    max_err = float(jnp.max(jnp.abs(out - ref)))
    assert max_err < 5e-3, max_err

    print("KERNEL_OK")
</pallas_src>

<mosaic_0001>
module attributes {stable_mosaic.version = 11 : i64} {
  func.func @_mlp_kernel(%arg0: i32, %arg1: memref<3x1024xf32, #tpu.memory_space<vmem>>, %arg2: memref<200x3xf32, #tpu.memory_space<vmem>>, %arg3: memref<200x1xf32, #tpu.memory_space<vmem>>, %arg4: memref<200x200xbf16, #tpu.memory_space<vmem>>, %arg5: memref<200x1xf32, #tpu.memory_space<vmem>>, %arg6: memref<200x200xbf16, #tpu.memory_space<vmem>>, %arg7: memref<200x1xf32, #tpu.memory_space<vmem>>, %arg8: memref<200x200xbf16, #tpu.memory_space<vmem>>, %arg9: memref<200x1xf32, #tpu.memory_space<vmem>>, %arg10: memref<200x1xf32, #tpu.memory_space<vmem>>, %arg11: memref<1x1xf32, #tpu.memory_space<vmem>>, %arg12: memref<1x1024xf32, #tpu.memory_space<vmem>>) attributes {dimension_semantics = [#tpu.dimension_semantics<parallel>], iteration_bounds = array<i64: 2>, scalar_prefetch = 0 : i64, scratch_operands = 0 : i64, tpu.core_type = #tpu.core_type<tc>, window_params = [{transform_indices = @transform_0, window_bounds = array<i64: 3, 1024>}, {pipeline_mode = #tpu.pipeline_mode<synchronous>, transform_indices = @transform_1, window_bounds = array<i64: 200, 3>}, {pipeline_mode = #tpu.pipeline_mode<synchronous>, transform_indices = @transform_2, window_bounds = array<i64: 200, 1>}, {pipeline_mode = #tpu.pipeline_mode<synchronous>, transform_indices = @transform_3, window_bounds = array<i64: 200, 200>}, {pipeline_mode = #tpu.pipeline_mode<synchronous>, transform_indices = @transform_4, window_bounds = array<i64: 200, 1>}, {pipeline_mode = #tpu.pipeline_mode<synchronous>, transform_indices = @transform_5, window_bounds = array<i64: 200, 200>}, {pipeline_mode = #tpu.pipeline_mode<synchronous>, transform_indices = @transform_6, window_bounds = array<i64: 200, 1>}, {pipeline_mode = #tpu.pipeline_mode<synchronous>, transform_indices = @transform_7, window_bounds = array<i64: 200, 200>}, {pipeline_mode = #tpu.pipeline_mode<synchronous>, transform_indices = @transform_8, window_bounds = array<i64: 200, 1>}, {pipeline_mode = #tpu.pipeline_mode<synchronous>, transform_indices = @transform_9, window_bounds = array<i64: 200, 1>}, {pipeline_mode = #tpu.pipeline_mode<synchronous>, transform_indices = @transform_10, window_bounds = array<i64: 1, 1>}, {transform_indices = @transform_11, window_bounds = array<i64: 1, 1024>}]} {
    %c0 = arith.constant 0 : index
    %c0_0 = arith.constant 0 : index
    %0 = vector.load %arg1[%c0, %c0_0] : memref<3x1024xf32, #tpu.memory_space<vmem>>, vector<3x1024xf32>
    %c0_1 = arith.constant 0 : index
    %c0_2 = arith.constant 0 : index
    %1 = vector.load %arg2[%c0_1, %c0_2] : memref<200x3xf32, #tpu.memory_space<vmem>>, vector<200x3xf32>
    %c0_3 = arith.constant 0 : index
    %c0_4 = arith.constant 0 : index
    %2 = vector.load %arg3[%c0_3, %c0_4] : memref<200x1xf32, #tpu.memory_space<vmem>>, vector<200x1xf32>
    %3 = vector.extract_strided_slice %1 {offsets = [0, 0], sizes = [200, 1], strides = [1, 1]} : vector<200x3xf32> to vector<200x1xf32>
    %4 = vector.extract_strided_slice %0 {offsets = [0, 0], sizes = [1, 1024], strides = [1, 1]} : vector<3x1024xf32> to vector<1x1024xf32>
    %5 = vector.broadcast %3 : vector<200x1xf32> to vector<200x1024xf32>
    %6 = vector.broadcast %4 : vector<1x1024xf32> to vector<200x1024xf32>
    %7 = arith.mulf %5, %6 : vector<200x1024xf32>
    %8 = vector.broadcast %2 : vector<200x1xf32> to vector<200x1024xf32>
    %9 = arith.addf %8, %7 : vector<200x1024xf32>
    %10 = vector.extract_strided_slice %1 {offsets = [0, 1], sizes = [200, 1], strides = [1, 1]} : vector<200x3xf32> to vector<200x1xf32>
    %11 = vector.extract_strided_slice %0 {offsets = [1, 0], sizes = [1, 1024], strides = [1, 1]} : vector<3x1024xf32> to vector<1x1024xf32>
    %12 = vector.broadcast %10 : vector<200x1xf32> to vector<200x1024xf32>
    %13 = vector.broadcast %11 : vector<1x1024xf32> to vector<200x1024xf32>
    %14 = arith.mulf %12, %13 : vector<200x1024xf32>
    %15 = arith.addf %9, %14 : vector<200x1024xf32>
    %16 = vector.extract_strided_slice %1 {offsets = [0, 2], sizes = [200, 1], strides = [1, 1]} : vector<200x3xf32> to vector<200x1xf32>
    %17 = vector.extract_strided_slice %0 {offsets = [2, 0], sizes = [1, 1024], strides = [1, 1]} : vector<3x1024xf32> to vector<1x1024xf32>
    %18 = vector.broadcast %16 : vector<200x1xf32> to vector<200x1024xf32>
    %19 = vector.broadcast %17 : vector<1x1024xf32> to vector<200x1024xf32>
    %20 = arith.mulf %18, %19 : vector<200x1024xf32>
    %21 = arith.addf %15, %20 : vector<200x1024xf32>
    %cst = arith.constant 0.000000e+00 : f32
    %22 = vector.broadcast %cst : f32 to vector<200x1024xf32>
    %23 = arith.maximumf %21, %22 : vector<200x1024xf32>
    %c0_5 = arith.constant 0 : index
    %c0_6 = arith.constant 0 : index
    %24 = vector.load %arg4[%c0_5, %c0_6] : memref<200x200xbf16, #tpu.memory_space<vmem>>, vector<200x200xbf16>
    %25 = arith.truncf %23 : vector<200x1024xf32> to vector<200x1024xbf16>
    %cst_7 = arith.constant dense<0.000000e+00> : vector<200x1024xf32>
    %26 = tpu.matmul %24, %25, %cst_7 {dimension_numbers = #tpu.dot_dimension_numbers<[1], [0], [0], [1], [0, 0, 1, 1], [], []>} : vector<200x200xbf16>, vector<200x1024xbf16>, vector<200x1024xf32> -> vector<200x1024xf32>
    %c0_8 = arith.constant 0 : index
    %c0_9 = arith.constant 0 : index
    %27 = vector.load %arg5[%c0_8, %c0_9] : memref<200x1xf32, #tpu.memory_space<vmem>>, vector<200x1xf32>
    %28 = vector.broadcast %27 : vector<200x1xf32> to vector<200x1024xf32>
    %29 = arith.addf %26, %28 : vector<200x1024xf32>
    %cst_10 = arith.constant 0.000000e+00 : f32
    %30 = vector.broadcast %cst_10 : f32 to vector<200x1024xf32>
    %31 = arith.maximumf %29, %30 : vector<200x1024xf32>
    %c0_11 = arith.constant 0 : index
    %c0_12 = arith.constant 0 : index
    %32 = vector.load %arg6[%c0_11, %c0_12] : memref<200x200xbf16, #tpu.memory_space<vmem>>, vector<200x200xbf16>
    %33 = arith.truncf %31 : vector<200x1024xf32> to vector<200x1024xbf16>
    %cst_13 = arith.constant dense<0.000000e+00> : vector<200x1024xf32>
    %34 = tpu.matmul %32, %33, %cst_13 {dimension_numbers = #tpu.dot_dimension_numbers<[1], [0], [0], [1], [0, 0, 1, 1], [], []>} : vector<200x200xbf16>, vector<200x1024xbf16>, vector<200x1024xf32> -> vector<200x1024xf32>
    %c0_14 = arith.constant 0 : index
    %c0_15 = arith.constant 0 : index
    %35 = vector.load %arg7[%c0_14, %c0_15] : memref<200x1xf32, #tpu.memory_space<vmem>>, vector<200x1xf32>
    %36 = vector.broadcast %35 : vector<200x1xf32> to vector<200x1024xf32>
    %37 = arith.addf %34, %36 : vector<200x1024xf32>
    %cst_16 = arith.constant 0.000000e+00 : f32
    %38 = vector.broadcast %cst_16 : f32 to vector<200x1024xf32>
    %39 = arith.maximumf %37, %38 : vector<200x1024xf32>
    %c0_17 = arith.constant 0 : index
    %c0_18 = arith.constant 0 : index
    %40 = vector.load %arg8[%c0_17, %c0_18] : memref<200x200xbf16, #tpu.memory_space<vmem>>, vector<200x200xbf16>
    %41 = arith.truncf %39 : vector<200x1024xf32> to vector<200x1024xbf16>
    %cst_19 = arith.constant dense<0.000000e+00> : vector<200x1024xf32>
    %42 = tpu.matmul %40, %41, %cst_19 {dimension_numbers = #tpu.dot_dimension_numbers<[1], [0], [0], [1], [0, 0, 1, 1], [], []>} : vector<200x200xbf16>, vector<200x1024xbf16>, vector<200x1024xf32> -> vector<200x1024xf32>
    %c0_20 = arith.constant 0 : index
    %c0_21 = arith.constant 0 : index
    %43 = vector.load %arg9[%c0_20, %c0_21] : memref<200x1xf32, #tpu.memory_space<vmem>>, vector<200x1xf32>
    %44 = vector.broadcast %43 : vector<200x1xf32> to vector<200x1024xf32>
    %45 = arith.addf %42, %44 : vector<200x1024xf32>
    %cst_22 = arith.constant 0.000000e+00 : f32
    %46 = vector.broadcast %cst_22 : f32 to vector<200x1024xf32>
    %47 = arith.maximumf %45, %46 : vector<200x1024xf32>
    %c0_23 = arith.constant 0 : index
    %c0_24 = arith.constant 0 : index
    %48 = vector.load %arg10[%c0_23, %c0_24] : memref<200x1xf32, #tpu.memory_space<vmem>>, vector<200x1xf32>
    %49 = vector.broadcast %48 : vector<200x1xf32> to vector<200x1024xf32>
    %50 = arith.mulf %49, %47 : vector<200x1024xf32>
    %cst_25 = arith.constant dense<0.000000e+00> : vector<1024xf32>
    %51 = vector.multi_reduction <add>, %50, %cst_25 [0] : vector<200x1024xf32> to vector<1024xf32>
    %52 = vector.shape_cast %51 : vector<1024xf32> to vector<1x1024xf32>
    %c0_26 = arith.constant 0 : index
    %c0_27 = arith.constant 0 : index
    %53 = vector.load %arg11[%c0_26, %c0_27] : memref<1x1xf32, #tpu.memory_space<vmem>>, vector<1x1xf32>
    %54 = vector.broadcast %53 : vector<1x1xf32> to vector<1x1024xf32>
    %55 = arith.addf %52, %54 : vector<1x1024xf32>
    %cst_28 = arith.constant 0.000000e+00 : f32
    %56 = vector.broadcast %cst_28 : f32 to vector<1x1024xf32>
    %57 = arith.subf %56, %55 : vector<1x1024xf32>
    %58 = math.exp %57 : vector<1x1024xf32>
    %cst_29 = arith.constant 1.000000e+00 : f32
    %59 = vector.broadcast %cst_29 : f32 to vector<1x1024xf32>
    %60 = arith.addf %59, %58 : vector<1x1024xf32>
    %61 = tpu.reciprocal %60 {approx = true} : vector<1x1024xf32> -> vector<1x1024xf32>
    %c0_30 = arith.constant 0 : index
    %c0_31 = arith.constant 0 : index
    %62 = vector.load %arg12[%c0_30, %c0_31] : memref<1x1024xf32, #tpu.memory_space<vmem>>, vector<1x1024xf32>
    tpu.vector_store %arg12[%c0_30, %c0_31], %61 {strides = array<i32>} : memref<1x1024xf32, #tpu.memory_space<vmem>>, vector<1x1024xf32>,
    return
  }
  func.func @transform_0(%arg0: i32) -> (i32, i32) {
    %c0_i32 = arith.constant 0 : i32
    %c0_i32_0 = arith.constant 0 : i32
    return %c0_i32, %arg0 : i32, i32
  }
  func.func @transform_1(%arg0: i32) -> (i32, i32) {
    %c0_i32 = arith.constant 0 : i32
    %c0_i32_0 = arith.constant 0 : i32
    %c0_i32_1 = arith.constant 0 : i32
    return %c0_i32, %c0_i32_0 : i32, i32
  }
  func.func @transform_2(%arg0: i32) -> (i32, i32) {
    %c0_i32 = arith.constant 0 : i32
    %c0_i32_0 = arith.constant 0 : i32
    %c0_i32_1 = arith.constant 0 : i32
    return %c0_i32, %c0_i32_0 : i32, i32
  }
  func.func @transform_3(%arg0: i32) -> (i32, i32) {
    %c0_i32 = arith.constant 0 : i32
    %c0_i32_0 = arith.constant 0 : i32
    %c0_i32_1 = arith.constant 0 : i32
    return %c0_i32, %c0_i32_0 : i32, i32
  }
  func.func @transform_4(%arg0: i32) -> (i32, i32) {
    %c0_i32 = arith.constant 0 : i32
    %c0_i32_0 = arith.constant 0 : i32
    %c0_i32_1 = arith.constant 0 : i32
    return %c0_i32, %c0_i32_0 : i32, i32
  }
  func.func @transform_5(%arg0: i32) -> (i32, i32) {
    %c0_i32 = arith.constant 0 : i32
    %c0_i32_0 = arith.constant 0 : i32
    %c0_i32_1 = arith.constant 0 : i32
    return %c0_i32, %c0_i32_0 : i32, i32
  }
  func.func @transform_6(%arg0: i32) -> (i32, i32) {
    %c0_i32 = arith.constant 0 : i32
    %c0_i32_0 = arith.constant 0 : i32
    %c0_i32_1 = arith.constant 0 : i32
    return %c0_i32, %c0_i32_0 : i32, i32
  }
  func.func @transform_7(%arg0: i32) -> (i32, i32) {
    %c0_i32 = arith.constant 0 : i32
    %c0_i32_0 = arith.constant 0 : i32
    %c0_i32_1 = arith.constant 0 : i32
    return %c0_i32, %c0_i32_0 : i32, i32
  }
  func.func @transform_8(%arg0: i32) -> (i32, i32) {
    %c0_i32 = arith.constant 0 : i32
    %c0_i32_0 = arith.constant 0 : i32
    %c0_i32_1 = arith.constant 0 : i32
    return %c0_i32, %c0_i32_0 : i32, i32
  }
  func.func @transform_9(%arg0: i32) -> (i32, i32) {
    %c0_i32 = arith.constant 0 : i32
    %c0_i32_0 = arith.constant 0 : i32
    %c0_i32_1 = arith.constant 0 : i32
    return %c0_i32, %c0_i32_0 : i32, i32
  }
  func.func @transform_10(%arg0: i32) -> (i32, i32) {
    %c0_i32 = arith.constant 0 : i32
    %c0_i32_0 = arith.constant 0 : i32
    %c0_i32_1 = arith.constant 0 : i32
    return %c0_i32, %c0_i32_0 : i32, i32
  }
  func.func @transform_11(%arg0: i32) -> (i32, i32) {
    %c0_i32 = arith.constant 0 : i32
    %c0_i32_0 = arith.constant 0 : i32
    return %c0_i32, %arg0 : i32, i32
  }
}

</mosaic_0001>

<llo_original>
// kernel: continuous_occupancy_map_forward.2
$region0: #{continuous_occupancy_map_forward.2}
  #allocation0 [shape = 'u32[]', space=smem, size = 0x4, offset = 0x4, fixed_abs, tag = 'smem constant byte address 0x4 - core index']
  #allocation1 [shape = 'u32[72,128]{1,0:T(1,128)}', space=vmem, size = 0x9000, scoped, tag = 'internal scratch']
  #allocation2 [shape = 'u32[2048]{0}', space=vmem, size = 0x2000, scoped, tag = 'scoped memory for continuous_occupancy_map_forward.2']
  #allocation3 [shape = 'u32[2048]{0}', space=vmem, size = 0x2000, scoped, tag = 'scoped memory for continuous_occupancy_map_forward.2']
  #allocation4 [shape = 'u32[2048]{0}', space=vmem, size = 0x2000, scoped, tag = 'scoped memory for continuous_occupancy_map_forward.2']
  #allocation5 [shape = 'u32[2048]{0}', space=vmem, size = 0x2000, scoped, tag = 'scoped memory for continuous_occupancy_map_forward.2']
  #allocation6 [shape = 'u32[2048]{0}', space=vmem, size = 0x2000, scoped, tag = 'scoped memory for continuous_occupancy_map_forward.2']
  #allocation7 [shape = 'f32[1,1]{1,0:T(1,128)S(1)}', space=vmem, size = 0x200, scoped, tag = 'scoped memory for continuous_occupancy_map_forward.2']
  %s0 = inlined_call_operand.vmem [shape: f32[200,3], index: 0, kind: input, shape index: {}]
  %s1 = inlined_call_operand.vmem [shape: f32[200,1], index: 1, kind: input, shape index: {}]
  %s2 = inlined_call_operand.vmem [shape: bf16[200,200], index: 2, kind: input, shape index: {}]
  %s3 = inlined_call_operand.vmem [shape: f32[200,1], index: 3, kind: input, shape index: {}]
  %s4 = inlined_call_operand.vmem [shape: bf16[200,200], index: 4, kind: input, shape index: {}]
  %s5 = inlined_call_operand.vmem [shape: f32[200,1], index: 5, kind: input, shape index: {}]
  %s6 = inlined_call_operand.vmem [shape: bf16[200,200], index: 6, kind: input, shape index: {}]
  %s7 = inlined_call_operand.vmem [shape: f32[200,1], index: 7, kind: input, shape index: {}]
  %s8 = inlined_call_operand.vmem [shape: f32[200,1], index: 8, kind: input, shape index: {}]
  %s9 = inlined_call_operand.<no memory space> [shape: f32[1,1], index: 9, kind: input, shape index: {}]
  %s10 = inlined_call_operand.vmem [shape: f32[3,2000], index: 10, kind: input, shape index: {}]
  %s11 = inlined_call_operand.<no memory space> [shape: f32[], index: 11, kind: input, shape index: {}]
  %s12 = inlined_call_operand.vmem [shape: f32[1,2048], index: 12, kind: output, shape index: {}]
  %s13 = sld [smem:[#allocation0]]
  $region77: #{continuous_occupancy_map_forward.2} parent=0
    _
  %s15 = ssub.s32 1, %s13
  %s16 = scalar_select 0, %s15, %s13
  %v17 = vstv %s11
  %v18 = vstv %s9
  %19 = vst [vmem:[#allocation7] sm:$0x1] %v18
  loop: start=0, step=1, limit=4
  $region2: #{continuous_occupancy_map_forward.2} parent=0 // loop_pre_header
    _
  $region3: #{continuous_occupancy_map_forward.2} parent=0 // loop_header
    %s21 = sphi 0, %s25
    %p22 = scmp.ge.s32.totalorder %s21, 4
    %s31 = sphi 0, %s33
    %s34 = sphi 0, %s31
    %s35 = sphi 0, %s34
    %s51 = sphi 0, %s35
    %s55 = sphi 0, %s55
    %s57 = sphi 0, %s55
    %s58 = sphi 0, %s57
    %s72 = sphi 0, %s58
    %s76 = sphi 0, %s76
    %s78 = sphi 0, %s76
    %s79 = sphi 0, %s78
    %s93 = sphi 0, %s79
    %s97 = sphi 0, %s97
    %s99 = sphi 0, %s97
    %s100 = sphi 0, %s99
    %s114 = sphi 0, %s100
    %s118 = sphi 0, %s118
    %s120 = sphi 0, %s118
    %s121 = sphi 0, %s120
    %s135 = sphi 0, %s121
    %s139 = sphi 0, %s139
    %s141 = sphi 0, %s139
    %s142 = sphi 0, %s141
    %s156 = sphi 0, %s142
    %s160 = sphi 0, %s160
    %s162 = sphi 0, %s160
    %s163 = sphi 0, %s162
    %s177 = sphi 0, %s163
    %s181 = sphi 0, %s181
    %s183 = sphi 0, %s181
    %s184 = sphi 0, %s183
    %s198 = sphi 0, %s184
    %s202 = sphi 0, %s202
    %s204 = sphi 0, %s202
    %s205 = sphi 0, %s204
    %s219 = sphi 0, %s205
    %s223 = sphi 0, %s223
    %s225 = sphi 0, %s223
    %s226 = sphi 0, %s225
    %s240 = sphi 0, %s226
    %s244 = sphi 0, %s244
    %s246 = sphi 0, %s244
    %s247 = sphi 0, %s246
    %s261 = sphi 0, %s247
    %s267 = sphi 0, %s269
    %s270 = sphi 0, %s267
    %s271 = sphi 0, %s270
    %s287 = sphi 0, %s271
  $region4: #{continuous_occupancy_map_forward.2} parent=0 // loop_header_branch
    %24 = sbr.rel (%p22) target = $region8
  $region5: #{continuous_occupancy_map_forward.2} parent=0 // loop_body
    %s26 = ssub.s32 %s21, 1
    %s27 = ssub.s32 %s21, 2
    %s28 = sadd.s32 %s21, 1
    %s29 = ssub.s32 %s21, %s28
    %p30 = scmp.eq.s32.totalorder %s29, 0
    %s32 = sadd.s32 %s31, 1
    %s33 = scalar_select %p30, %s31, %s32
    %p36 = pneg %p30
    %p37 = scmp.eq.s32.totalorder %s21, 1
    %p38 = por %p36, %p37
    %p39 = scmp.ne.s32.totalorder %s31, %s34
    %p40 = scmp.eq.s32.totalorder %s21, 0
    %p41 = por %p39, %p40
    %p42 = scmp.ne.s32.totalorder %s31, %s34
    %p43 = scmp.eq.s32.totalorder %s26, 1
    %p44 = por %p42, %p43
    %p45 = scmp.ne.s32.totalorder %s34, %s35
    %p46 = scmp.eq.s32.totalorder %s26, 0
    %p47 = por %p45, %p46
    %p48 = scmp.ne.s32.totalorder %s34, %s35
    %p49 = scmp.eq.s32.totalorder %s27, 1
    %p50 = por %p48, %p49
    %p52 = scmp.ne.s32.totalorder %s35, %s51
    %p53 = scmp.eq.s32.totalorder %s27, 0
    %p54 = por %p52, %p53
    %s56 = sadd.s32 %s55, 1
    %p59 = scmp.eq.s32.totalorder %s21, 1
    %p60 = scmp.ne.s32.totalorder %s55, %s57
    %p61 = scmp.eq.s32.totalorder %s21, 0
    %p62 = por %p60, %p61
    %p63 = scmp.ne.s32.totalorder %s55, %s57
    %p64 = scmp.eq.s32.totalorder %s26, 1
    %p65 = por %p63, %p64
    %p66 = scmp.ne.s32.totalorder %s57, %s58
    %p67 = scmp.eq.s32.totalorder %s26, 0
    %p68 = por %p66, %p67
    %p69 = scmp.ne.s32.totalorder %s57, %s58
    %p70 = scmp.eq.s32.totalorder %s27, 1
    %p71 = por %p69, %p70
    %p73 = scmp.ne.s32.totalorder %s58, %s72
    %p74 = scmp.eq.s32.totalorder %s27, 0
    %p75 = por %p73, %p74
    %s77 = sadd.s32 %s76, 1
    %p80 = scmp.eq.s32.totalorder %s21, 1
    %p81 = scmp.ne.s32.totalorder %s76, %s78
    %p82 = scmp.eq.s32.totalorder %s21, 0
    %p83 = por %p81, %p82
    %p84 = scmp.ne.s32.totalorder %s76, %s78
    %p85 = scmp.eq.s32.totalorder %s26, 1
    %p86 = por %p84, %p85
    %p87 = scmp.ne.s32.totalorder %s78, %s79
    %p88 = scmp.eq.s32.totalorder %s26, 0
    %p89 = por %p87, %p88
    %p90 = scmp.ne.s32.totalorder %s78, %s79
    %p91 = scmp.eq.s32.totalorder %s27, 1
    %p92 = por %p90, %p91
    %p94 = scmp.ne.s32.totalorder %s79, %s93
    %p95 = scmp.eq.s32.totalorder %s27, 0
    %p96 = por %p94, %p95
    %s98 = sadd.s32 %s97, 1
    %p101 = scmp.eq.s32.totalorder %s21, 1
    %p102 = scmp.ne.s32.totalorder %s97, %s99
    %p103 = scmp.eq.s32.totalorder %s21, 0
    %p104 = por %p102, %p103
    %p105 = scmp.ne.s32.totalorder %s97, %s99
    %p106 = scmp.eq.s32.totalorder %s26, 1
    %p107 = por %p105, %p106
    %p108 = scmp.ne.s32.totalorder %s99, %s100
    %p109 = scmp.eq.s32.totalorder %s26, 0
    %p110 = por %p108, %p109
    %p111 = scmp.ne.s32.totalorder %s99, %s100
    %p112 = scmp.eq.s32.totalorder %s27, 1
    %p113 = por %p111, %p112
    %p115 = scmp.ne.s32.totalorder %s100, %s114
    %p116 = scmp.eq.s32.totalorder %s27, 0
    %p117 = por %p115, %p116
    %s119 = sadd.s32 %s118, 1
    %p122 = scmp.eq.s32.totalorder %s21, 1
    %p123 = scmp.ne.s32.totalorder %s118, %s120
    %p124 = scmp.eq.s32.totalorder %s21, 0
    %p125 = por %p123, %p124
    %p126 = scmp.ne.s32.totalorder %s118, %s120
    %p127 = scmp.eq.s32.totalorder %s26, 1
    %p128 = por %p126, %p127
    %p129 = scmp.ne.s32.totalorder %s120, %s121
    %p130 = scmp.eq.s32.totalorder %s26, 0
    %p131 = por %p129, %p130
    %p132 = scmp.ne.s32.totalorder %s120, %s121
    %p133 = scmp.eq.s32.totalorder %s27, 1
    %p134 = por %p132, %p133
    %p136 = scmp.ne.s32.totalorder %s121, %s135
    %p137 = scmp.eq.s32.totalorder %s27, 0
    %p138 = por %p136, %p137
    %s140 = sadd.s32 %s139, 1
    %p143 = scmp.eq.s32.totalorder %s21, 1
    %p144 = scmp.ne.s32.totalorder %s139, %s141
    %p145 = scmp.eq.s32.totalorder %s21, 0
    %p146 = por %p144, %p145
    %p147 = scmp.ne.s32.totalorder %s139, %s141
    %p148 = scmp.eq.s32.totalorder %s26, 1
    %p149 = por %p147, %p148
    %p150 = scmp.ne.s32.totalorder %s141, %s142
    %p151 = scmp.eq.s32.totalorder %s26, 0
    %p152 = por %p150, %p151
    %p153 = scmp.ne.s32.totalorder %s141, %s142
    %p154 = scmp.eq.s32.totalorder %s27, 1
    %p155 = por %p153, %p154
    %p157 = scmp.ne.s32.totalorder %s142, %s156
    %p158 = scmp.eq.s32.totalorder %s27, 0
    %p159 = por %p157, %p158
    %s161 = sadd.s32 %s160, 1
    %p164 = scmp.eq.s32.totalorder %s21, 1
    %p165 = scmp.ne.s32.totalorder %s160, %s162
    %p166 = scmp.eq.s32.totalorder %s21, 0
    %p167 = por %p165, %p166
    %p168 = scmp.ne.s32.totalorder %s160, %s162
    %p169 = scmp.eq.s32.totalorder %s26, 1
    %p170 = por %p168, %p169
    %p171 = scmp.ne.s32.totalorder %s162, %s163
    %p172 = scmp.eq.s32.totalorder %s26, 0
    %p173 = por %p171, %p172
    %p174 = scmp.ne.s32.totalorder %s162, %s163
    %p175 = scmp.eq.s32.totalorder %s27, 1
    %p176 = por %p174, %p175
    %p178 = scmp.ne.s32.totalorder %s163, %s177
    %p179 = scmp.eq.s32.totalorder %s27, 0
    %p180 = por %p178, %p179
    %s182 = sadd.s32 %s181, 1
    %p185 = scmp.eq.s32.totalorder %s21, 1
    %p186 = scmp.ne.s32.totalorder %s181, %s183
    %p187 = scmp.eq.s32.totalorder %s21, 0
    %p188 = por %p186, %p187
    %p189 = scmp.ne.s32.totalorder %s181, %s183
    %p190 = scmp.eq.s32.totalorder %s26, 1
    %p191 = por %p189, %p190
    %p192 = scmp.ne.s32.totalorder %s183, %s184
    %p193 = scmp.eq.s32.totalorder %s26, 0
    %p194 = por %p192, %p193
    %p195 = scmp.ne.s32.totalorder %s183, %s184
    %p196 = scmp.eq.s32.totalorder %s27, 1
    %p197 = por %p195, %p196
    %p199 = scmp.ne.s32.totalorder %s184, %s198
    %p200 = scmp.eq.s32.totalorder %s27, 0
    %p201 = por %p199, %p200
    %s203 = sadd.s32 %s202, 1
    %p206 = scmp.eq.s32.totalorder %s21, 1
    %p207 = scmp.ne.s32.totalorder %s202, %s204
    %p208 = scmp.eq.s32.totalorder %s21, 0
    %p209 = por %p207, %p208
    %p210 = scmp.ne.s32.totalorder %s202, %s204
    %p211 = scmp.eq.s32.totalorder %s26, 1
    %p212 = por %p210, %p211
    %p213 = scmp.ne.s32.totalorder %s204, %s205
    %p214 = scmp.eq.s32.totalorder %s26, 0
    %p215 = por %p213, %p214
    %p216 = scmp.ne.s32.totalorder %s204, %s205
    %p217 = scmp.eq.s32.totalorder %s27, 1
    %p218 = por %p216, %p217
    %p220 = scmp.ne.s32.totalorder %s205, %s219
    %p221 = scmp.eq.s32.totalorder %s27, 0
    %p222 = por %p220, %p221
    %s224 = sadd.s32 %s223, 1
    %p227 = scmp.eq.s32.totalorder %s21, 1
    %p228 = scmp.ne.s32.totalorder %s223, %s225
    %p229 = scmp.eq.s32.totalorder %s21, 0
    %p230 = por %p228, %p229
    %p231 = scmp.ne.s32.totalorder %s223, %s225
    %p232 = scmp.eq.s32.totalorder %s26, 1
    %p233 = por %p231, %p232
    %p234 = scmp.ne.s32.totalorder %s225, %s226
    %p235 = scmp.eq.s32.totalorder %s26, 0
    %p236 = por %p234, %p235
    %p237 = scmp.ne.s32.totalorder %s225, %s226
    %p238 = scmp.eq.s32.totalorder %s27, 1
    %p239 = por %p237, %p238
    %p241 = scmp.ne.s32.totalorder %s226, %s240
    %p242 = scmp.eq.s32.totalorder %s27, 0
    %p243 = por %p241, %p242
    %s245 = sadd.s32 %s244, 1
    %p248 = scmp.eq.s32.totalorder %s21, 1
    %p249 = scmp.ne.s32.totalorder %s244, %s246
    %p250 = scmp.eq.s32.totalorder %s21, 0
    %p251 = por %p249, %p250
    %p252 = scmp.ne.s32.totalorder %s244, %s246
    %p253 = scmp.eq.s32.totalorder %s26, 1
    %p254 = por %p252, %p253
    %p255 = scmp.ne.s32.totalorder %s246, %s247
    %p256 = scmp.eq.s32.totalorder %s26, 0
    %p257 = por %p255, %p256
    %p258 = scmp.ne.s32.totalorder %s246, %s247
    %p259 = scmp.eq.s32.totalorder %s27, 1
    %p260 = por %p258, %p259
    %p262 = scmp.ne.s32.totalorder %s247, %s261
    %p263 = scmp.eq.s32.totalorder %s27, 0
    %p264 = por %p262, %p263
    %s265 = ssub.s32 %s21, %s28
    %p266 = scmp.eq.s32.totalorder %s265, 0
    %s268 = sadd.s32 %s267, 1
    %s269 = scalar_select %p266, %s267, %s268
    %p272 = pneg %p266
    %p273 = scmp.eq.s32.totalorder %s21, 1
    %p274 = por %p272, %p273
    %p275 = scmp.ne.s32.totalorder %s267, %s270
    %p276 = scmp.eq.s32.totalorder %s21, 0
    %p277 = por %p275, %p276
    %p278 = scmp.ne.s32.totalorder %s267, %s270
    %p279 = scmp.eq.s32.totalorder %s26, 1
    %p280 = por %p278, %p279
    %p281 = scmp.ne.s32.totalorder %s270, %s271
    %p282 = scmp.eq.s32.totalorder %s26, 0
    %p283 = por %p281, %p282
    %p284 = scmp.ne.s32.totalorder %s270, %s271
    %p285 = scmp.eq.s32.totalorder %s27, 1
    %p286 = por %p284, %p285
    %p288 = scmp.ne.s32.totalorder %s271, %s287
    %p289 = scmp.eq.s32.totalorder %s27, 0
    %p290 = por %p288, %p289
    %p291 = scmp.le.s32.totalorder 1, %s21
    %p292 = scmp.lt.s32.totalorder %s21, 3
    %p293 = pnand %p291, %p292
    %p294 = pneg %p293
    // Predicated region
    $region9: #{continuous_occupancy_map_forward.2} parent=5 // pred_check
      _
    $region10: #{continuous_occupancy_map_forward.2} parent=5 // pred_check_branch
      %296 = sbr.rel (%p293) target = $region12
    $region11: #{continuous_occupancy_map_forward.2} parent=5 // pred_region
      %s297 = ssub.s32 %s21, 1
      // Predicated region
      $region13: #{continuous_occupancy_map_forward.2} parent=11 // pred_check
        %p298 = pneg %p68
      $region14: #{continuous_occupancy_map_forward.2} parent=11 // pred_check_branch
        %300 = sbr.rel (%p298) target = $region16
      $region15: #{continuous_occupancy_map_forward.2} parent=11 // pred_region
        _
      $region16: #{continuous_occupancy_map_forward.2} parent=11 // pred_fallthru
        _
      // Predicated region
      $region17: #{continuous_occupancy_map_forward.2} parent=11 // pred_check
        %p301 = pneg %p89
      $region18: #{continuous_occupancy_map_forward.2} parent=11 // pred_check_branch
        %303 = sbr.rel (%p301) target = $region20
      $region19: #{continuous_occupancy_map_forward.2} parent=11 // pred_region
        _
      $region20: #{continuous_occupancy_map_forward.2} parent=11 // pred_fallthru
        _
      // Predicated region
      $region21: #{continuous_occupancy_map_forward.2} parent=11 // pred_check
        %p304 = pneg %p110
      $region22: #{continuous_occupancy_map_forward.2} parent=11 // pred_check_branch
        %306 = sbr.rel (%p304) target = $region24
      $region23: #{continuous_occupancy_map_forward.2} parent=11 // pred_region
        _
      $region24: #{continuous_occupancy_map_forward.2} parent=11 // pred_fallthru
        _
      // Predicated region
      $region25: #{continuous_occupancy_map_forward.2} parent=11 // pred_check
        %p307 = pneg %p131
      $region26: #{continuous_occupancy_map_forward.2} parent=11 // pred_check_branch
        %309 = sbr.rel (%p307) target = $region28
      $region27: #{continuous_occupancy_map_forward.2} parent=11 // pred_region
        _
      $region28: #{continuous_occupancy_map_forward.2} parent=11 // pred_fallthru
        _
      // Predicated region
      $region29: #{continuous_occupancy_map_forward.2} parent=11 // pred_check
        %p310 = pneg %p152
      $region30: #{continuous_occupancy_map_forward.2} parent=11 // pred_check_branch
        %312 = sbr.rel (%p310) target = $region32
      $region31: #{continuous_occupancy_map_forward.2} parent=11 // pred_region
        _
      $region32: #{continuous_occupancy_map_forward.2} parent=11 // pred_fallthru
        _
      // Predicated region
      $region33: #{continuous_occupancy_map_forward.2} parent=11 // pred_check
        %p313 = pneg %p173
      $region34: #{continuous_occupancy_map_forward.2} parent=11 // pred_check_branch
        %315 = sbr.rel (%p313) target = $region36
      $region35: #{continuous_occupancy_map_forward.2} parent=11 // pred_region
        _
      $region36: #{continuous_occupancy_map_forward.2} parent=11 // pred_fallthru
        _
      // Predicated region
      $region37: #{continuous_occupancy_map_forward.2} parent=11 // pred_check
        %p316 = pneg %p194
      $region38: #{continuous_occupancy_map_forward.2} parent=11 // pred_check_branch
        %318 = sbr.rel (%p316) target = $region40
      $region39: #{continuous_occupancy_map_forward.2} parent=11 // pred_region
        _
      $region40: #{continuous_occupancy_map_forward.2} parent=11 // pred_fallthru
        _
      // Predicated region
      $region41: #{continuous_occupancy_map_forward.2} parent=11 // pred_check
        %p319 = pneg %p215
      $region42: #{continuous_occupancy_map_forward.2} parent=11 // pred_check_branch
        %321 = sbr.rel (%p319) target = $region44
      $region43: #{continuous_occupancy_map_forward.2} parent=11 // pred_region
        _
      $region44: #{continuous_occupancy_map_forward.2} parent=11 // pred_fallthru
        _
      // Predicated region
      $region45: #{continuous_occupancy_map_forward.2} parent=11 // pred_check
        %p322 = pneg %p236
      $region46: #{continuous_occupancy_map_forward.2} parent=11 // pred_check_branch
        %324 = sbr.rel (%p322) target = $region48
      $region47: #{continuous_occupancy_map_forward.2} parent=11 // pred_region
        _
      $region48: #{continuous_occupancy_map_forward.2} parent=11 // pred_fallthru
        _
      // Predicated region
      $region49: #{continuous_occupancy_map_forward.2} parent=11 // pred_check
        %p325 = pneg %p257
      $region50: #{continuous_occupancy_map_forward.2} parent=11 // pred_check_branch
        %327 = sbr.rel (%p325) target = $region52
      $region51: #{continuous_occupancy_map_forward.2} parent=11 // pred_region
        _
      $region52: #{continuous_occupancy_map_forward.2} parent=11 // pred_fallthru
        _
    $region12: #{continuous_occupancy_map_forward.2} parent=5 // pred_fallthru
      _
    %p328 = scmp.lt.s32.totalorder %s21, 2
    // Predicated region
    $region53: #{continuous_occupancy_map_forward.2} parent=5 // pred_check
      %p329 = pneg %p328
    $region54: #{continuous_occupancy_map_forward.2} parent=5 // pred_check_branch
      %331 = sbr.rel (%p329) target = $region56
    $region55: #{continuous_occupancy_map_forward.2} parent=5 // pred_region
      // Predicated region
      $region57: #{continuous_occupancy_map_forward.2} parent=55 // pred_check
        %p332 = pneg %p41
      $region58: #{continuous_occupancy_map_forward.2} parent=55 // pred_check_branch
        %334 = sbr.rel (%p332) target = $region60
      $region59: #{continuous_occupancy_map_forward.2} parent=55 // pred_region
        %s335 = smul.u32 8, %s21
        %s336 = ssub.s32 16, %s335
        %p337 = scmp.lt.s32.totalorder %s336, 8
        %s338 = scalar_select %p337, %s336, 8
        %s339 = smul.u32 4, %s338
        %p340 = scmp.lt.s32.totalorder %s335, 15
        %s341 = scalar_select %p340, %s335, 15
        %s342 = smul.addr %s341, 4
        %s343 = scalar_lea.vmem %s10, %s342
        %s344 = smul.u32 8, %s21
        %s345 = ssub.s32 16, %s344
        %p346 = scmp.lt.s32.totalorder %s345, 8
        %s347 = scalar_select %p346, %s345, 8
        %s348 = smul.u32 4, %s347
      $region60: #{continuous_occupancy_map_forward.2} parent=55 // pred_fallthru
        _
    $region56: #{continuous_occupancy_map_forward.2} parent=5 // pred_fallthru
      _
    %p349 = scmp.le.s32.totalorder 1, %s21
    %p350 = scmp.lt.s32.totalorder %s21, 3
    %p351 = pnand %p349, %p350
    %p352 = pneg %p351
    // Predicated region
    $region61: #{continuous_occupancy_map_forward.2} parent=5 // pred_check
      _
    $region62: #{continuous_occupancy_map_forward.2} parent=5 // pred_check_branch
      %354 = sbr.rel (%p351) target = $region64
    $region63: #{continuous_occupancy_map_forward.2} parent=5 // pred_region
      #allocation8 [shape = 'u8[16384]{0}', space=vmem, size = 0x4000, dematerialized = true, scoped, tag = 'FusionAdapter Buffer %fusion.1 = f32[3,2048]{1,0:T(4,128)} fusion(%param_10.1, %param_11), kind=kLoop, calls=%fused_computation.1.clone, metadata={op_name="jit(continuous_occupancy_map_forward)/jit(_pad)/pad" stack_frame_id=8}']
      %s355 = ssub.s32 %s21, 1
      %s356 = smul.u32 8, %s26
      %s357 = ssub.s32 16, %s356
      %p358 = scmp.lt.s32.totalorder %s357, 8
      %s359 = scalar_select %p358, %s357, 8
      %s360 = smul.u32 4, %s359
      %p361 = scmp.lt.s32.totalorder %s356, 15
      %s362 = scalar_select %p361, %s356, 15
      %s363 = smul.addr %s362, 4
      %s364 = scalar_lea.vmem %s10, %s363
      %p365 = pneg %p47
      %p366 = pneg %p44
      %p367 = pneg %p68
      %p368 = pneg %p65
      %p369 = pneg %p89
      %p370 = pneg %p86
      %p371 = pneg %p110
      %p372 = pneg %p107
      %p373 = pneg %p131
      %p374 = pneg %p128
      %p375 = pneg %p152
      %p376 = pneg %p149
      %p377 = pneg %p173
      %p378 = pneg %p170
      %p379 = pneg %p194
      %p380 = pneg %p191
      %p381 = pneg %p215
      %p382 = pneg %p212
      %p383 = pneg %p236
      %p384 = pneg %p233
      %p385 = pneg %p257
      %p386 = pneg %p254
      %p387 = pneg %p283
      %p388 = pneg %p280
      %s389 = smul.u32 8, %s26
      %p390 = scmp.lt.s32.totalorder %s389, 15
      %s391 = scalar_select %p390, %s389, 15
      %s392 = scalar_lea.vmem %s12, %s391
      %s393 = smul.u32 8, %s26
      %s394 = ssub.s32 16, %s393
      %p395 = scmp.lt.s32.totalorder %s394, 8
      %s396 = scalar_select %p395, %s394, 8
      %s397 = smul.u32 4, %s396
      %p398 = scmp.lt.s32.totalorder %s393, 15
      %s399 = scalar_select %p398, %s393, 15
      %s400 = smul.addr %s399, 4
      %s401 = scalar_lea.vmem %s10, %s400
      %s402 = smul.u32 8, %s26
      %s403 = ssub.s32 16, %s402
      %p404 = scmp.lt.s32.totalorder %s403, 8
      %s405 = scalar_select %p404, %s403, 8
      %s406 = smul.u32 4, %s405
      %s407 = smul.u32 8, %s26
      %p408 = scmp.lt.s32.totalorder %s407, 15
      %s409 = scalar_select %p408, %s407, 15
      %s410 = scalar_lea.vmem %s12, %s409
      %s411 = smul.u32 8, %s26
      %v412 = vld [vmem:[%s401] sm:$0x7]
      %v413 = vlaneseq
      %v414 = vshrl.u32 %v413, 7
      %vm416 = vcmp.lt.s32.totalorder %v414, 3
      %v417 = vsel %vm416, %v412, %v17
      %s418 = smul.addr %s402, 128
      %v419 = vlaneseq
      %v420 = vand.u32 %v419, 127
      %v421 = vstv %s418
      %v422 = vadd.s32 %v420, %v421
      %vm423 = vcmp.lt.s32.totalorder %v422, 2000
      %v424 = vsel %vm423, %v417, %v17
      %s426 = ssub.s32 16, 1
      %427 = vst [vmem:[#allocation8] sm:%s426] %v424
      %s428 = scalar_lea.vmem %s401, 4
      %v429 = vld [vmem:[%s428] sm:$0x7]
      %v430 = vlaneseq
      %v431 = vshrl.u32 %v430, 7
      %vm433 = vcmp.lt.s32.totalorder %v431, 3
      %v434 = vsel %vm433, %v429, %v17
      %s435 = sadd.s32 %s402, 1
      %s436 = smul.addr %s435, 128
      %v437 = vlaneseq
      %v438 = vand.u32 %v437, 127
      %v439 = vstv %s436
      %v440 = vadd.s32 %v438, %v439
      %vm441 = vcmp.lt.s32.totalorder %v440, 2000
      %v442 = vsel %vm441, %v434, %v17
      %s443 = scalar_lea.vmem [#allocation8], 4
      %s445 = ssub.s32 16, 1
      %446 = vst [vmem:[%s443] sm:%s445] %v442
      %s447 = scalar_lea.vmem %s401, 8
      %v448 = vld [vmem:[%s447] sm:$0x7]
      %v449 = vlaneseq
      %v450 = vshrl.u32 %v449, 7
      %vm452 = vcmp.lt.s32.totalorder %v450, 3
      %v453 = vsel %vm452, %v448, %v17
      %s454 = sadd.s32 %s402, 2
      %s455 = smul.addr %s454, 128
      %v456 = vlaneseq
      %v457 = vand.u32 %v456, 127
      %v458 = vstv %s455
      %v459 = vadd.s32 %v457, %v458
      %vm460 = vcmp.lt.s32.totalorder %v459, 2000
      %v461 = vsel %vm460, %v453, %v17
      %s462 = scalar_lea.vmem [#allocation8], 8
      %s464 = ssub.s32 16, 1
      %465 = vst [vmem:[%s462] sm:%s464] %v461
      %s466 = scalar_lea.vmem %s401, 12
      %v467 = vld [vmem:[%s466] sm:$0x7]
      %v468 = vlaneseq
      %v469 = vshrl.u32 %v468, 7
      %vm471 = vcmp.lt.s32.totalorder %v469, 3
      %v472 = vsel %vm471, %v467, %v17
      %s473 = sadd.s32 %s402, 3
      %s474 = smul.addr %s473, 128
      %v475 = vlaneseq
      %v476 = vand.u32 %v475, 127
      %v477 = vstv %s474
      %v478 = vadd.s32 %v476, %v477
      %vm479 = vcmp.lt.s32.totalorder %v478, 2000
      %v480 = vsel %vm479, %v472, %v17
      %s481 = scalar_lea.vmem [#allocation8], 12
      %s483 = ssub.s32 16, 1
      %484 = vst [vmem:[%s481] sm:%s483] %v480
      %s485 = scalar_lea.vmem %s401, 16
      %v486 = vld [vmem:[%s485] sm:$0x7]
      %v487 = vlaneseq
      %v488 = vshrl.u32 %v487, 7
      %vm490 = vcmp.lt.s32.totalorder %v488, 3
      %v491 = vsel %vm490, %v486, %v17
      %s492 = sadd.s32 %s402, 4
      %s493 = smul.addr %s492, 128
      %v494 = vlaneseq
      %v495 = vand.u32 %v494, 127
      %v496 = vstv %s493
      %v497 = vadd.s32 %v495, %v496
      %vm498 = vcmp.lt.s32.totalorder %v497, 2000
      %v499 = vsel %vm498, %v491, %v17
      %s500 = scalar_lea.vmem [#allocation8], 16
      %s502 = ssub.s32 16, 1
      %503 = vst [vmem:[%s500] sm:%s502] %v499
      %s504 = scalar_lea.vmem %s401, 20
      %v505 = vld [vmem:[%s504] sm:$0x7]
      %v506 = vlaneseq
      %v507 = vshrl.u32 %v506, 7
      %vm509 = vcmp.lt.s32.totalorder %v507, 3
      %v510 = vsel %vm509, %v505, %v17
      %s511 = sadd.s32 %s402, 5
      %s512 = smul.addr %s511, 128
      %v513 = vlaneseq
      %v514 = vand.u32 %v513, 127
      %v515 = vstv %s512
      %v516 = vadd.s32 %v514, %v515
      %vm517 = vcmp.lt.s32.totalorder %v516, 2000
      %v518 = vsel %vm517, %v510, %v17
      %s519 = scalar_lea.vmem [#allocation8], 20
      %s521 = ssub.s32 16, 1
      %522 = vst [vmem:[%s519] sm:%s521] %v518
      %s523 = scalar_lea.vmem %s401, 24
      %v524 = vld [vmem:[%s523] sm:$0x7]
      %v525 = vlaneseq
      %v526 = vshrl.u32 %v525, 7
      %vm528 = vcmp.lt.s32.totalorder %v526, 3
      %v529 = vsel %vm528, %v524, %v17
      %s530 = sadd.s32 %s402, 6
      %s531 = smul.addr %s530, 128
      %v532 = vlaneseq
      %v533 = vand.u32 %v532, 127
      %v534 = vstv %s531
      %v535 = vadd.s32 %v533, %v534
      %vm536 = vcmp.lt.s32.totalorder %v535, 2000
      %v537 = vsel %vm536, %v529, %v17
      %s538 = scalar_lea.vmem [#allocation8], 24
      %s540 = ssub.s32 16, 1
      %541 = vst [vmem:[%s538] sm:%s540] %v537
      %s542 = scalar_lea.vmem %s401, 28
      %s543 = sadd.s32 %s402, 7
      %s544 = ssub.s32 15, %s543
      %p545 = scmp.lt.s32.totalorder %s544, 0
      %s546 = scalar_select %p545, 0, 255
      %s547 = sand.u32 15, %s546
      %s548 = sand.u32 7, %s547
      %v549 = vld [vmem:[%s542] sm:%s548]
      %s550 = sadd.s32 %s402, 7
      %s551 = ssub.s32 15, %s550
      %v552 = vstv %s551
      %vm553 = vcmp.lt.s32.totalorder %v552, 0
      %v554 = vsel %vm553, %v17, %v549
      %v555 = vlaneseq
      %v556 = vshrl.u32 %v555, 7
      %vm558 = vcmp.lt.s32.totalorder %v556, 3
      %v559 = vsel %vm558, %v554, %v17
      %s560 = sadd.s32 %s402, 7
      %s561 = smul.addr %s560, 128
      %v562 = vlaneseq
      %v563 = vand.u32 %v562, 127
      %v564 = vstv %s561
      %v565 = vadd.s32 %v563, %v564
      %vm566 = vcmp.lt.s32.totalorder %v565, 2000
      %v567 = vsel %vm566, %v559, %v17
      %s568 = scalar_lea.vmem [#allocation8], 28
      %s570 = ssub.s32 16, 1
      %571 = vst [vmem:[%s568] sm:%s570] %v567
      %v573 = vld [vmem:[#allocation8] sm:$0x77]
      %v574 = vld [vmem:[#allocation8 + $0x8] sm:$0x77]
      %v575 = vld [vmem:[#allocation8 + $0x10] sm:$0x77]
      %v576 = vld [vmem:[#allocation8 + $0x18] sm:$0x77]
      %v577 = vld [vmem:[%s0] sm:$0xff]
      %v578 = vld [vmem:[%s0 + $0x8] sm:$0xff]
      %v579 = vld [vmem:[%s0 + $0x10] sm:$0xff]
      %v580 = vld [vmem:[%s0 + $0x18] sm:$0xff]
      %v581 = vld [vmem:[%s0 + $0x20] sm:$0xff]
      %v582 = vld [vmem:[%s0 + $0x28] sm:$0xff]
      %v583 = vld [vmem:[%s0 + $0x30] sm:$0xff]
      %v584 = vld [vmem:[%s0 + $0x38] sm:$0xff]
      %v585 = vld [vmem:[%s0 + $0x40] sm:$0xff]
      %v586 = vld [vmem:[%s0 + $0x48] sm:$0xff]
      %v587 = vld [vmem:[%s0 + $0x50] sm:$0xff]
      %v588 = vld [vmem:[%s0 + $0x58] sm:$0xff]
      %v589 = vld [vmem:[%s0 + $0x60] sm:$0xff]
      %v590 = vld [vmem:[%s0 + $0x68] sm:$0xff]
      %v591 = vld [vmem:[%s0 + $0x70] sm:$0xff]
      %v592 = vld [vmem:[%s0 + $0x78] sm:$0xff]
      %v593 = vld [vmem:[%s0 + $0x80] sm:$0xff]
      %v594 = vld [vmem:[%s0 + $0x88] sm:$0xff]
      %v595 = vld [vmem:[%s0 + $0x90] sm:$0xff]
      %v596 = vld [vmem:[%s0 + $0x98] sm:$0xff]
      %v597 = vld [vmem:[%s0 + $0xa0] sm:$0xff]
      %v598 = vld [vmem:[%s0 + $0xa8] sm:$0xff]
      %v599 = vld [vmem:[%s0 + $0xb0] sm:$0xff]
      %v600 = vld [vmem:[%s0 + $0xb8] sm:$0xff]
      %v601 = vld [vmem:[%s0 + $0xc0] sm:$0xff]
      %v602 = vld [vmem:[%s1] sm:$0xff]
      %v603 = vld [vmem:[%s1 + $0x8] sm:$0xff]
      %v604 = vld [vmem:[%s1 + $0x10] sm:$0xff]
      %v605 = vld [vmem:[%s1 + $0x18] sm:$0xff]
      %v606 = vld [vmem:[%s1 + $0x20] sm:$0xff]
      %v607 = vld [vmem:[%s1 + $0x28] sm:$0xff]
      %v608 = vld [vmem:[%s1 + $0x30] sm:$0xff]
      %v609 = vld [vmem:[%s1 + $0x38] sm:$0xff]
      %v610 = vld [vmem:[%s1 + $0x40] sm:$0xff]
      %v611 = vld [vmem:[%s1 + $0x48] sm:$0xff]
      %v612 = vld [vmem:[%s1 + $0x50] sm:$0xff]
      %v613 = vld [vmem:[%s1 + $0x58] sm:$0xff]
      %v614 = vld [vmem:[%s1 + $0x60] sm:$0xff]
      %v615 = vld [vmem:[%s1 + $0x68] sm:$0xff]
      %v616 = vld [vmem:[%s1 + $0x70] sm:$0xff]
      %v617 = vld [vmem:[%s1 + $0x78] sm:$0xff]
      %v618 = vld [vmem:[%s1 + $0x80] sm:$0xff]
      %v619 = vld [vmem:[%s1 + $0x88] sm:$0xff]
      %v620 = vld [vmem:[%s1 + $0x90] sm:$0xff]
      %v621 = vld [vmem:[%s1 + $0x98] sm:$0xff]
      %v622 = vld [vmem:[%s1 + $0xa0] sm:$0xff]
      %v623 = vld [vmem:[%s1 + $0xa8] sm:$0xff]
      %v624 = vld [vmem:[%s1 + $0xb0] sm:$0xff]
      %v625 = vld [vmem:[%s1 + $0xb8] sm:$0xff]
      %v626 = vld [vmem:[%s1 + $0xc0] sm:$0xff]
      %628 = vset.pattern.permute.xlu0 0
      %629 = vperm.xlu0 %628, %v577
      %v630 = vpop.permute.xlu0 %629
      %633 = vset.pattern.permute.xlu0 0
      %634 = vperm.xlu0 %633, %v578
      %v635 = vpop.permute.xlu0 %634
      %638 = vset.pattern.permute.xlu0 0
      %639 = vperm.xlu0 %638, %v579
      %v640 = vpop.permute.xlu0 %639
      %643 = vset.pattern.permute.xlu0 0
      %644 = vperm.xlu0 %643, %v580
      %v645 = vpop.permute.xlu0 %644
      %648 = vset.pattern.permute.xlu0 0
      %649 = vperm.xlu0 %648, %v581
      %v650 = vpop.permute.xlu0 %649
      %653 = vset.pattern.permute.xlu0 0
      %654 = vperm.xlu0 %653, %v582
      %v655 = vpop.permute.xlu0 %654
      %658 = vset.pattern.permute.xlu0 0
      %659 = vperm.xlu0 %658, %v583
      %v660 = vpop.permute.xlu0 %659
      %663 = vset.pattern.permute.xlu0 0
      %664 = vperm.xlu0 %663, %v584
      %v665 = vpop.permute.xlu0 %664
      %668 = vset.pattern.permute.xlu0 0
      %669 = vperm.xlu0 %668, %v585
      %v670 = vpop.permute.xlu0 %669
      %673 = vset.pattern.permute.xlu0 0
      %674 = vperm.xlu0 %673, %v586
      %v675 = vpop.permute.xlu0 %674
      %678 = vset.pattern.permute.xlu0 0
      %679 = vperm.xlu0 %678, %v587
      %v680 = vpop.permute.xlu0 %679
      %683 = vset.pattern.permute.xlu0 0
      %684 = vperm.xlu0 %683, %v588
      %v685 = vpop.permute.xlu0 %684
      %688 = vset.pattern.permute.xlu0 0
      %689 = vperm.xlu0 %688, %v589
      %v690 = vpop.permute.xlu0 %689
      %693 = vset.pattern.permute.xlu0 0
      %694 = vperm.xlu0 %693, %v590
      %v695 = vpop.permute.xlu0 %694
      %698 = vset.pattern.permute.xlu0 0
      %699 = vperm.xlu0 %698, %v591
      %v700 = vpop.permute.xlu0 %699
      %703 = vset.pattern.permute.xlu0 0
      %704 = vperm.xlu0 %703, %v592
      %v705 = vpop.permute.xlu0 %704
      %708 = vset.pattern.permute.xlu0 0
      %709 = vperm.xlu0 %708, %v593
      %v710 = vpop.permute.xlu0 %709
      %713 = vset.pattern.permute.xlu0 0
      %714 = vperm.xlu0 %713, %v594
      %v715 = vpop.permute.xlu0 %714
      %718 = vset.pattern.permute.xlu0 0
      %719 = vperm.xlu0 %718, %v595
      %v720 = vpop.permute.xlu0 %719
      %723 = vset.pattern.permute.xlu0 0
      %724 = vperm.xlu0 %723, %v596
      %v725 = vpop.permute.xlu0 %724
      %728 = vset.pattern.permute.xlu0 0
      %729 = vperm.xlu0 %728, %v597
      %v730 = vpop.permute.xlu0 %729
      %733 = vset.pattern.permute.xlu0 0
      %734 = vperm.xlu0 %733, %v598
      %v735 = vpop.permute.xlu0 %734
      %738 = vset.pattern.permute.xlu0 0
      %739 = vperm.xlu0 %738, %v599
      %v740 = vpop.permute.xlu0 %739
      %743 = vset.pattern.permute.xlu0 0
      %744 = vperm.xlu0 %743, %v600
      %v745 = vpop.permute.xlu0 %744
      %748 = vset.pattern.permute.xlu0 0
      %749 = vperm.xlu0 %748, %v601
      %v750 = vpop.permute.xlu0 %749
      %v756 = vperm.slane %v573, 0
      %v757 = vperm.slane %v573, 4
      %v758 = vperm.slane %v574, 0
      %v759 = vperm.slane %v574, 4
      %v760 = vperm.slane %v575, 0
      %v761 = vperm.slane %v575, 4
      %v762 = vperm.slane %v576, 0
      %v763 = vperm.slane %v576, 4
      %v772 = vperm.slane %v756, 0
      %v773 = vperm.slane %v757, 0
      %v774 = vperm.slane %v758, 0
      %v775 = vperm.slane %v759, 0
      %v776 = vperm.slane %v760, 0
      %v777 = vperm.slane %v761, 0
      %v778 = vperm.slane %v762, 0
      %v779 = vperm.slane %v763, 0
      %v780 = vmul.f32 %v630, %v772
      %v781 = vmul.f32 %v630, %v773
      %v782 = vmul.f32 %v630, %v774
      %v783 = vmul.f32 %v630, %v775
      %v784 = vmul.f32 %v630, %v776
      %v785 = vmul.f32 %v630, %v777
      %v786 = vmul.f32 %v630, %v778
      %v787 = vmul.f32 %v630, %v779
      %v788 = vmul.f32 %v635, %v772
      %v789 = vmul.f32 %v635, %v773
      %v790 = vmul.f32 %v635, %v774
      %v791 = vmul.f32 %v635, %v775
      %v792 = vmul.f32 %v635, %v776
      %v793 = vmul.f32 %v635, %v777
      %v794 = vmul.f32 %v635, %v778
      %v795 = vmul.f32 %v635, %v779
      %v796 = vmul.f32 %v640, %v772
      %v797 = vmul.f32 %v640, %v773
      %v798 = vmul.f32 %v640, %v774
      %v799 = vmul.f32 %v640, %v775
      %v800 = vmul.f32 %v640, %v776
      %v801 = vmul.f32 %v640, %v777
      %v802 = vmul.f32 %v640, %v778
      %v803 = vmul.f32 %v640, %v779
      %v804 = vmul.f32 %v645, %v772
      %v805 = vmul.f32 %v645, %v773
      %v806 = vmul.f32 %v645, %v774
      %v807 = vmul.f32 %v645, %v775
      %v808 = vmul.f32 %v645, %v776
      %v809 = vmul.f32 %v645, %v777
      %v810 = vmul.f32 %v645, %v778
      %v811 = vmul.f32 %v645, %v779
      %v812 = vmul.f32 %v650, %v772
      %v813 = vmul.f32 %v650, %v773
      %v814 = vmul.f32 %v650, %v774
      %v815 = vmul.f32 %v650, %v775
      %v816 = vmul.f32 %v650, %v776
      %v817 = vmul.f32 %v650, %v777
      %v818 = vmul.f32 %v650, %v778
      %v819 = vmul.f32 %v650, %v779
      %v820 = vmul.f32 %v655, %v772
      %v821 = vmul.f32 %v655, %v773
      %v822 = vmul.f32 %v655, %v774
      %v823 = vmul.f32 %v655, %v775
      %v824 = vmul.f32 %v655, %v776
      %v825 = vmul.f32 %v655, %v777
      %v826 = vmul.f32 %v655, %v778
      %v827 = vmul.f32 %v655, %v779
      %v828 = vmul.f32 %v660, %v772
      %v829 = vmul.f32 %v660, %v773
      %v830 = vmul.f32 %v660, %v774
      %v831 = vmul.f32 %v660, %v775
      %v832 = vmul.f32 %v660, %v776
      %v833 = vmul.f32 %v660, %v777
      %v834 = vmul.f32 %v660, %v778
      %v835 = vmul.f32 %v660, %v779
      %v836 = vmul.f32 %v665, %v772
      %v837 = vmul.f32 %v665, %v773
      %v838 = vmul.f32 %v665, %v774
      %v839 = vmul.f32 %v665, %v775
      %v840 = vmul.f32 %v665, %v776
      %v841 = vmul.f32 %v665, %v777
      %v842 = vmul.f32 %v665, %v778
      %v843 = vmul.f32 %v665, %v779
      %v844 = vmul.f32 %v670, %v772
      %v845 = vmul.f32 %v670, %v773
      %v846 = vmul.f32 %v670, %v774
      %v847 = vmul.f32 %v670, %v775
      %v848 = vmul.f32 %v670, %v776
      %v849 = vmul.f32 %v670, %v777
      %v850 = vmul.f32 %v670, %v778
      %v851 = vmul.f32 %v670, %v779
      %v852 = vmul.f32 %v675, %v772
      %v853 = vmul.f32 %v675, %v773
      %v854 = vmul.f32 %v675, %v774
      %v855 = vmul.f32 %v675, %v775
      %v856 = vmul.f32 %v675, %v776
      %v857 = vmul.f32 %v675, %v777
      %v858 = vmul.f32 %v675, %v778
      %v859 = vmul.f32 %v675, %v779
      %v860 = vmul.f32 %v680, %v772
      %v861 = vmul.f32 %v680, %v773
      %v862 = vmul.f32 %v680, %v774
      %v863 = vmul.f32 %v680, %v775
      %v864 = vmul.f32 %v680, %v776
      %v865 = vmul.f32 %v680, %v777
      %v866 = vmul.f32 %v680, %v778
      %v867 = vmul.f32 %v680, %v779
      %v868 = vmul.f32 %v685, %v772
      %v869 = vmul.f32 %v685, %v773
      %v870 = vmul.f32 %v685, %v774
      %v871 = vmul.f32 %v685, %v775
      %v872 = vmul.f32 %v685, %v776
      %v873 = vmul.f32 %v685, %v777
      %v874 = vmul.f32 %v685, %v778
      %v875 = vmul.f32 %v685, %v779
      %v876 = vmul.f32 %v690, %v772
      %v877 = vmul.f32 %v690, %v773
      %v878 = vmul.f32 %v690, %v774
      %v879 = vmul.f32 %v690, %v775
      %v880 = vmul.f32 %v690, %v776
      %v881 = vmul.f32 %v690, %v777
      %v882 = vmul.f32 %v690, %v778
      %v883 = vmul.f32 %v690, %v779
      %v884 = vmul.f32 %v695, %v772
      %v885 = vmul.f32 %v695, %v773
      %v886 = vmul.f32 %v695, %v774
      %v887 = vmul.f32 %v695, %v775
      %v888 = vmul.f32 %v695, %v776
      %v889 = vmul.f32 %v695, %v777
      %v890 = vmul.f32 %v695, %v778
      %v891 = vmul.f32 %v695, %v779
      %v892 = vmul.f32 %v700, %v772
      %v893 = vmul.f32 %v700, %v773
      %v894 = vmul.f32 %v700, %v774
      %v895 = vmul.f32 %v700, %v775
      %v896 = vmul.f32 %v700, %v776
      %v897 = vmul.f32 %v700, %v777
      %v898 = vmul.f32 %v700, %v778
      %v899 = vmul.f32 %v700, %v779
      %v900 = vmul.f32 %v705, %v772
      %v901 = vmul.f32 %v705, %v773
      %v902 = vmul.f32 %v705, %v774
      %v903 = vmul.f32 %v705, %v775
      %v904 = vmul.f32 %v705, %v776
      %v905 = vmul.f32 %v705, %v777
      %v906 = vmul.f32 %v705, %v778
      %v907 = vmul.f32 %v705, %v779
      %v908 = vmul.f32 %v710, %v772
      %v909 = vmul.f32 %v710, %v773
      %v910 = vmul.f32 %v710, %v774
      %v911 = vmul.f32 %v710, %v775
      %v912 = vmul.f32 %v710, %v776
      %v913 = vmul.f32 %v710, %v777
      %v914 = vmul.f32 %v710, %v778
      %v915 = vmul.f32 %v710, %v779
      %v916 = vmul.f32 %v715, %v772
      %v917 = vmul.f32 %v715, %v773
      %v918 = vmul.f32 %v715, %v774
      %v919 = vmul.f32 %v715, %v775
      %v920 = vmul.f32 %v715, %v776
      %v921 = vmul.f32 %v715, %v777
      %v922 = vmul.f32 %v715, %v778
      %v923 = vmul.f32 %v715, %v779
      %v924 = vmul.f32 %v720, %v772
      %v925 = vmul.f32 %v720, %v773
      %v926 = vmul.f32 %v720, %v774
      %v927 = vmul.f32 %v720, %v775
      %v928 = vmul.f32 %v720, %v776
      %v929 = vmul.f32 %v720, %v777
      %v930 = vmul.f32 %v720, %v778
      %v931 = vmul.f32 %v720, %v779
      %v932 = vmul.f32 %v725, %v772
      %v933 = vmul.f32 %v725, %v773
      %v934 = vmul.f32 %v725, %v774
      %v935 = vmul.f32 %v725, %v775
      %v936 = vmul.f32 %v725, %v776
      %v937 = vmul.f32 %v725, %v777
      %v938 = vmul.f32 %v725, %v778
      %v939 = vmul.f32 %v725, %v779
      %v940 = vmul.f32 %v730, %v772
      %v941 = vmul.f32 %v730, %v773
      %v942 = vmul.f32 %v730, %v774
      %v943 = vmul.f32 %v730, %v775
      %v944 = vmul.f32 %v730, %v776
      %v945 = vmul.f32 %v730, %v777
      %v946 = vmul.f32 %v730, %v778
      %v947 = vmul.f32 %v730, %v779
      %v948 = vmul.f32 %v735, %v772
      %v949 = vmul.f32 %v735, %v773
      %v950 = vmul.f32 %v735, %v774
      %v951 = vmul.f32 %v735, %v775
      %v952 = vmul.f32 %v735, %v776
      %v953 = vmul.f32 %v735, %v777
      %v954 = vmul.f32 %v735, %v778
      %v955 = vmul.f32 %v735, %v779
      %v956 = vmul.f32 %v740, %v772
      %v957 = vmul.f32 %v740, %v773
      %v958 = vmul.f32 %v740, %v774
      %v959 = vmul.f32 %v740, %v775
      %v960 = vmul.f32 %v740, %v776
      %v961 = vmul.f32 %v740, %v777
      %v962 = vmul.f32 %v740, %v778
      %v963 = vmul.f32 %v740, %v779
      %v964 = vmul.f32 %v745, %v772
      %v965 = vmul.f32 %v745, %v773
      %v966 = vmul.f32 %v745, %v774
      %v967 = vmul.f32 %v745, %v775
      %v968 = vmul.f32 %v745, %v776
      %v969 = vmul.f32 %v745, %v777
      %v970 = vmul.f32 %v745, %v778
      %v971 = vmul.f32 %v745, %v779
      %v972 = vmul.f32 %v750, %v772
      %v973 = vmul.f32 %v750, %v773
      %v974 = vmul.f32 %v750, %v774
      %v975 = vmul.f32 %v750, %v775
      %v976 = vmul.f32 %v750, %v776
      %v977 = vmul.f32 %v750, %v777
      %v978 = vmul.f32 %v750, %v778
      %v979 = vmul.f32 %v750, %v779
      %981 = vset.pattern.permute.xlu0 0
      %982 = vperm.xlu0 %981, %v602
      %v983 = vpop.permute.xlu0 %982
      %986 = vset.pattern.permute.xlu0 0
      %987 = vperm.xlu0 %986, %v603
      %v988 = vpop.permute.xlu0 %987
      %991 = vset.pattern.permute.xlu0 0
      %992 = vperm.xlu0 %991, %v604
      %v993 = vpop.permute.xlu0 %992
      %996 = vset.pattern.permute.xlu0 0
      %997 = vperm.xlu0 %996, %v605
      %v998 = vpop.permute.xlu0 %997
      %1001 = vset.pattern.permute.xlu0 0
      %1002 = vperm.xlu0 %1001, %v606
      %v1003 = vpop.permute.xlu0 %1002
      %1006 = vset.pattern.permute.xlu0 0
      %1007 = vperm.xlu0 %1006, %v607
      %v1008 = vpop.permute.xlu0 %1007
      %1011 = vset.pattern.permute.xlu0 0
      %1012 = vperm.xlu0 %1011, %v608
      %v1013 = vpop.permute.xlu0 %1012
      %1016 = vset.pattern.permute.xlu0 0
      %1017 = vperm.xlu0 %1016, %v609
      %v1018 = vpop.permute.xlu0 %1017
      %1021 = vset.pattern.permute.xlu0 0
      %1022 = vperm.xlu0 %1021, %v610
      %v1023 = vpop.permute.xlu0 %1022
      %1026 = vset.pattern.permute.xlu0 0
      %1027 = vperm.xlu0 %1026, %v611
      %v1028 = vpop.permute.xlu0 %1027
      %1031 = vset.pattern.permute.xlu0 0
      %1032 = vperm.xlu0 %1031, %v612
      %v1033 = vpop.permute.xlu0 %1032
      %1036 = vset.pattern.permute.xlu0 0
      %1037 = vperm.xlu0 %1036, %v613
      %v1038 = vpop.permute.xlu0 %1037
      %1041 = vset.pattern.permute.xlu0 0
      %1042 = vperm.xlu0 %1041, %v614
      %v1043 = vpop.permute.xlu0 %1042
      %1046 = vset.pattern.permute.xlu0 0
      %1047 = vperm.xlu0 %1046, %v615
      %v1048 = vpop.permute.xlu0 %1047
      %1051 = vset.pattern.permute.xlu0 0
      %1052 = vperm.xlu0 %1051, %v616
      %v1053 = vpop.permute.xlu0 %1052
      %1056 = vset.pattern.permute.xlu0 0
      %1057 = vperm.xlu0 %1056, %v617
      %v1058 = vpop.permute.xlu0 %1057
      %1061 = vset.pattern.permute.xlu0 0
      %1062 = vperm.xlu0 %1061, %v618
      %v1063 = vpop.permute.xlu0 %1062
      %1066 = vset.pattern.permute.xlu0 0
      %1067 = vperm.xlu0 %1066, %v619
      %v1068 = vpop.permute.xlu0 %1067
      %1071 = vset.pattern.permute.xlu0 0
      %1072 = vperm.xlu0 %1071, %v620
      %v1073 = vpop.permute.xlu0 %1072
      %1076 = vset.pattern.permute.xlu0 0
      %1077 = vperm.xlu0 %1076, %v621
      %v1078 = vpop.permute.xlu0 %1077
      %1081 = vset.pattern.permute.xlu0 0
      %1082 = vperm.xlu0 %1081, %v622
      %v1083 = vpop.permute.xlu0 %1082
      %1086 = vset.pattern.permute.xlu0 0
      %1087 = vperm.xlu0 %1086, %v623
      %v1088 = vpop.permute.xlu0 %1087
      %1091 = vset.pattern.permute.xlu0 0
      %1092 = vperm.xlu0 %1091, %v624
      %v1093 = vpop.permute.xlu0 %1092
      %1096 = vset.pattern.permute.xlu0 0
      %1097 = vperm.xlu0 %1096, %v625
      %v1098 = vpop.permute.xlu0 %1097
      %1101 = vset.pattern.permute.xlu0 0
      %1102 = vperm.xlu0 %1101, %v626
      %v1103 = vpop.permute.xlu0 %1102
      %v1105 = vadd.f32 %v983, %v780
      %v1106 = vadd.f32 %v983, %v781
      %v1107 = vadd.f32 %v983, %v782
      %v1108 = vadd.f32 %v983, %v783
      %v1109 = vadd.f32 %v983, %v784
      %v1110 = vadd.f32 %v983, %v785
      %v1111 = vadd.f32 %v983, %v786
      %v1112 = vadd.f32 %v983, %v787
      %v1113 = vadd.f32 %v988, %v788
      %v1114 = vadd.f32 %v988, %v789
      %v1115 = vadd.f32 %v988, %v790
      %v1116 = vadd.f32 %v988, %v791
      %v1117 = vadd.f32 %v988, %v792
      %v1118 = vadd.f32 %v988, %v793
      %v1119 = vadd.f32 %v988, %v794
      %v1120 = vadd.f32 %v988, %v795
      %v1121 = vadd.f32 %v993, %v796
      %v1122 = vadd.f32 %v993, %v797
      %v1123 = vadd.f32 %v993, %v798
      %v1124 = vadd.f32 %v993, %v799
      %v1125 = vadd.f32 %v993, %v800
      %v1126 = vadd.f32 %v993, %v801
      %v1127 = vadd.f32 %v993, %v802
      %v1128 = vadd.f32 %v993, %v803
      %v1129 = vadd.f32 %v998, %v804
      %v1130 = vadd.f32 %v998, %v805
      %v1131 = vadd.f32 %v998, %v806
      %v1132 = vadd.f32 %v998, %v807
      %v1133 = vadd.f32 %v998, %v808
      %v1134 = vadd.f32 %v998, %v809
      %v1135 = vadd.f32 %v998, %v810
      %v1136 = vadd.f32 %v998, %v811
      %v1137 = vadd.f32 %v1003, %v812
      %v1138 = vadd.f32 %v1003, %v813
      %v1139 = vadd.f32 %v1003, %v814
      %v1140 = vadd.f32 %v1003, %v815
      %v1141 = vadd.f32 %v1003, %v816
      %v1142 = vadd.f32 %v1003, %v817
      %v1143 = vadd.f32 %v1003, %v818
      %v1144 = vadd.f32 %v1003, %v819
      %v1145 = vadd.f32 %v1008, %v820
      %v1146 = vadd.f32 %v1008, %v821
      %v1147 = vadd.f32 %v1008, %v822
      %v1148 = vadd.f32 %v1008, %v823
      %v1149 = vadd.f32 %v1008, %v824
      %v1150 = vadd.f32 %v1008, %v825
      %v1151 = vadd.f32 %v1008, %v826
      %v1152 = vadd.f32 %v1008, %v827
      %v1153 = vadd.f32 %v1013, %v828
      %v1154 = vadd.f32 %v1013, %v829
      %v1155 = vadd.f32 %v1013, %v830
      %v1156 = vadd.f32 %v1013, %v831
      %v1157 = vadd.f32 %v1013, %v832
      %v1158 = vadd.f32 %v1013, %v833
      %v1159 = vadd.f32 %v1013, %v834
      %v1160 = vadd.f32 %v1013, %v835
      %v1161 = vadd.f32 %v1018, %v836
      %v1162 = vadd.f32 %v1018, %v837
      %v1163 = vadd.f32 %v1018, %v838
      %v1164 = vadd.f32 %v1018, %v839
      %v1165 = vadd.f32 %v1018, %v840
      %v1166 = vadd.f32 %v1018, %v841
      %v1167 = vadd.f32 %v1018, %v842
      %v1168 = vadd.f32 %v1018, %v843
      %v1169 = vadd.f32 %v1023, %v844
      %v1170 = vadd.f32 %v1023, %v845
      %v1171 = vadd.f32 %v1023, %v846
      %v1172 = vadd.f32 %v1023, %v847
      %v1173 = vadd.f32 %v1023, %v848
      %v1174 = vadd.f32 %v1023, %v849
      %v1175 = vadd.f32 %v1023, %v850
      %v1176 = vadd.f32 %v1023, %v851
      %v1177 = vadd.f32 %v1028, %v852
      %v1178 = vadd.f32 %v1028, %v853
      %v1179 = vadd.f32 %v1028, %v854
      %v1180 = vadd.f32 %v1028, %v855
      %v1181 = vadd.f32 %v1028, %v856
      %v1182 = vadd.f32 %v1028, %v857
      %v1183 = vadd.f32 %v1028, %v858
      %v1184 = vadd.f32 %v1028, %v859
      %v1185 = vadd.f32 %v1033, %v860
      %v1186 = vadd.f32 %v1033, %v861
      %v1187 = vadd.f32 %v1033, %v862
      %v1188 = vadd.f32 %v1033, %v863
      %v1189 = vadd.f32 %v1033, %v864
      %v1190 = vadd.f32 %v1033, %v865
      %v1191 = vadd.f32 %v1033, %v866
      %v1192 = vadd.f32 %v1033, %v867
      %v1193 = vadd.f32 %v1038, %v868
      %v1194 = vadd.f32 %v1038, %v869
      %v1195 = vadd.f32 %v1038, %v870
      %v1196 = vadd.f32 %v1038, %v871
      %v1197 = vadd.f32 %v1038, %v872
      %v1198 = vadd.f32 %v1038, %v873
      %v1199 = vadd.f32 %v1038, %v874
      %v1200 = vadd.f32 %v1038, %v875
      %v1201 = vadd.f32 %v1043, %v876
      %v1202 = vadd.f32 %v1043, %v877
      %v1203 = vadd.f32 %v1043, %v878
      %v1204 = vadd.f32 %v1043, %v879
      %v1205 = vadd.f32 %v1043, %v880
      %v1206 = vadd.f32 %v1043, %v881
      %v1207 = vadd.f32 %v1043, %v882
      %v1208 = vadd.f32 %v1043, %v883
      %v1209 = vadd.f32 %v1048, %v884
      %v1210 = vadd.f32 %v1048, %v885
      %v1211 = vadd.f32 %v1048, %v886
      %v1212 = vadd.f32 %v1048, %v887
      %v1213 = vadd.f32 %v1048, %v888
      %v1214 = vadd.f32 %v1048, %v889
      %v1215 = vadd.f32 %v1048, %v890
      %v1216 = vadd.f32 %v1048, %v891
      %v1217 = vadd.f32 %v1053, %v892
      %v1218 = vadd.f32 %v1053, %v893
      %v1219 = vadd.f32 %v1053, %v894
      %v1220 = vadd.f32 %v1053, %v895
      %v1221 = vadd.f32 %v1053, %v896
      %v1222 = vadd.f32 %v1053, %v897
      %v1223 = vadd.f32 %v1053, %v898
      %v1224 = vadd.f32 %v1053, %v899
      %v1225 = vadd.f32 %v1058, %v900
      %v1226 = vadd.f32 %v1058, %v901
      %v1227 = vadd.f32 %v1058, %v902
      %v1228 = vadd.f32 %v1058, %v903
      %v1229 = vadd.f32 %v1058, %v904
      %v1230 = vadd.f32 %v1058, %v905
      %v1231 = vadd.f32 %v1058, %v906
      %v1232 = vadd.f32 %v1058, %v907
      %v1233 = vadd.f32 %v1063, %v908
      %v1234 = vadd.f32 %v1063, %v909
      %v1235 = vadd.f32 %v1063, %v910
      %v1236 = vadd.f32 %v1063, %v911
      %v1237 = vadd.f32 %v1063, %v912
      %v1238 = vadd.f32 %v1063, %v913
      %v1239 = vadd.f32 %v1063, %v914
      %v1240 = vadd.f32 %v1063, %v915
      %v1241 = vadd.f32 %v1068, %v916
      %v1242 = vadd.f32 %v1068, %v917
      %v1243 = vadd.f32 %v1068, %v918
      %v1244 = vadd.f32 %v1068, %v919
      %v1245 = vadd.f32 %v1068, %v920
      %v1246 = vadd.f32 %v1068, %v921
      %v1247 = vadd.f32 %v1068, %v922
      %v1248 = vadd.f32 %v1068, %v923
      %v1249 = vadd.f32 %v1073, %v924
      %v1250 = vadd.f32 %v1073, %v925
      %v1251 = vadd.f32 %v1073, %v926
      %v1252 = vadd.f32 %v1073, %v927
      %v1253 = vadd.f32 %v1073, %v928
      %v1254 = vadd.f32 %v1073, %v929
      %v1255 = vadd.f32 %v1073, %v930
      %v1256 = vadd.f32 %v1073, %v931
      %v1257 = vadd.f32 %v1078, %v932
      %v1258 = vadd.f32 %v1078, %v933
      %v1259 = vadd.f32 %v1078, %v934
      %v1260 = vadd.f32 %v1078, %v935
      %v1261 = vadd.f32 %v1078, %v936
      %v1262 = vadd.f32 %v1078, %v937
      %v1263 = vadd.f32 %v1078, %v938
      %v1264 = vadd.f32 %v1078, %v939
      %v1265 = vadd.f32 %v1083, %v940
      %v1266 = vadd.f32 %v1083, %v941
      %v1267 = vadd.f32 %v1083, %v942
      %v1268 = vadd.f32 %v1083, %v943
      %v1269 = vadd.f32 %v1083, %v944
      %v1270 = vadd.f32 %v1083, %v945
      %v1271 = vadd.f32 %v1083, %v946
      %v1272 = vadd.f32 %v1083, %v947
      %v1273 = vadd.f32 %v1088, %v948
      %v1274 = vadd.f32 %v1088, %v949
      %v1275 = vadd.f32 %v1088, %v950
      %v1276 = vadd.f32 %v1088, %v951
      %v1277 = vadd.f32 %v1088, %v952
      %v1278 = vadd.f32 %v1088, %v953
      %v1279 = vadd.f32 %v1088, %v954
      %v1280 = vadd.f32 %v1088, %v955
      %v1281 = vadd.f32 %v1093, %v956
      %v1282 = vadd.f32 %v1093, %v957
      %v1283 = vadd.f32 %v1093, %v958
      %v1284 = vadd.f32 %v1093, %v959
      %v1285 = vadd.f32 %v1093, %v960
      %v1286 = vadd.f32 %v1093, %v961
      %v1287 = vadd.f32 %v1093, %v962
      %v1288 = vadd.f32 %v1093, %v963
      %v1289 = vadd.f32 %v1098, %v964
      %v1290 = vadd.f32 %v1098, %v965
      %v1291 = vadd.f32 %v1098, %v966
      %v1292 = vadd.f32 %v1098, %v967
      %v1293 = vadd.f32 %v1098, %v968
      %v1294 = vadd.f32 %v1098, %v969
      %v1295 = vadd.f32 %v1098, %v970
      %v1296 = vadd.f32 %v1098, %v971
      %v1297 = vadd.f32 %v1103, %v972
      %v1298 = vadd.f32 %v1103, %v973
      %v1299 = vadd.f32 %v1103, %v974
      %v1300 = vadd.f32 %v1103, %v975
      %v1301 = vadd.f32 %v1103, %v976
      %v1302 = vadd.f32 %v1103, %v977
      %v1303 = vadd.f32 %v1103, %v978
      %v1304 = vadd.f32 %v1103, %v979
      %1305 = vset.pattern.permute.xlu0 1
      %1306 = vperm.xlu0 %1305, %v577
      %v1307 = vpop.permute.xlu0 %1306
      %1309 = vset.pattern.permute.xlu0 1
      %1310 = vperm.xlu0 %1309, %v578
      %v1311 = vpop.permute.xlu0 %1310
      %1313 = vset.pattern.permute.xlu0 1
      %1314 = vperm.xlu0 %1313, %v579
      %v1315 = vpop.permute.xlu0 %1314
      %1317 = vset.pattern.permute.xlu0 1
      %1318 = vperm.xlu0 %1317, %v580
      %v1319 = vpop.permute.xlu0 %1318
      %1321 = vset.pattern.permute.xlu0 1
      %1322 = vperm.xlu0 %1321, %v581
      %v1323 = vpop.permute.xlu0 %1322
      %1325 = vset.pattern.permute.xlu0 1
      %1326 = vperm.xlu0 %1325, %v582
      %v1327 = vpop.permute.xlu0 %1326
      %1329 = vset.pattern.permute.xlu0 1
      %1330 = vperm.xlu0 %1329, %v583
      %v1331 = vpop.permute.xlu0 %1330
      %1333 = vset.pattern.permute.xlu0 1
      %1334 = vperm.xlu0 %1333, %v584
      %v1335 = vpop.permute.xlu0 %1334
      %1337 = vset.pattern.permute.xlu0 1
      %1338 = vperm.xlu0 %1337, %v585
      %v1339 = vpop.permute.xlu0 %1338
      %1341 = vset.pattern.permute.xlu0 1
      %1342 = vperm.xlu0 %1341, %v586
      %v1343 = vpop.permute.xlu0 %1342
      %1345 = vset.pattern.permute.xlu0 1
      %1346 = vperm.xlu0 %1345, %v587
      %v1347 = vpop.permute.xlu0 %1346
      %1349 = vset.pattern.permute.xlu0 1
      %1350 = vperm.xlu0 %1349, %v588
      %v1351 = vpop.permute.xlu0 %1350
      %1353 = vset.pattern.permute.xlu0 1
      %1354 = vperm.xlu0 %1353, %v589
      %v1355 = vpop.permute.xlu0 %1354
      %1357 = vset.pattern.permute.xlu0 1
      %1358 = vperm.xlu0 %1357, %v590
      %v1359 = vpop.permute.xlu0 %1358
      %1361 = vset.pattern.permute.xlu0 1
      %1362 = vperm.xlu0 %1361, %v591
      %v1363 = vpop.permute.xlu0 %1362
      %1365 = vset.pattern.permute.xlu0 1
      %1366 = vperm.xlu0 %1365, %v592
      %v1367 = vpop.permute.xlu0 %1366
      %1369 = vset.pattern.permute.xlu0 1
      %1370 = vperm.xlu0 %1369, %v593
      %v1371 = vpop.permute.xlu0 %1370
      %1373 = vset.pattern.permute.xlu0 1
      %1374 = vperm.xlu0 %1373, %v594
      %v1375 = vpop.permute.xlu0 %1374
      %1377 = vset.pattern.permute.xlu0 1
      %1378 = vperm.xlu0 %1377, %v595
      %v1379 = vpop.permute.xlu0 %1378
      %1381 = vset.pattern.permute.xlu0 1
      %1382 = vperm.xlu0 %1381, %v596
      %v1383 = vpop.permute.xlu0 %1382
      %1385 = vset.pattern.permute.xlu0 1
      %1386 = vperm.xlu0 %1385, %v597
      %v1387 = vpop.permute.xlu0 %1386
      %1389 = vset.pattern.permute.xlu0 1
      %1390 = vperm.xlu0 %1389, %v598
      %v1391 = vpop.permute.xlu0 %1390
      %1393 = vset.pattern.permute.xlu0 1
      %1394 = vperm.xlu0 %1393, %v599
      %v1395 = vpop.permute.xlu0 %1394
      %1397 = vset.pattern.permute.xlu0 1
      %1398 = vperm.xlu0 %1397, %v600
      %v1399 = vpop.permute.xlu0 %1398
      %1401 = vset.pattern.permute.xlu0 1
      %1402 = vperm.xlu0 %1401, %v601
      %v1403 = vpop.permute.xlu0 %1402
      %v1405 = vperm.slane %v573, 1
      %v1406 = vperm.slane %v573, 5
      %v1407 = vperm.slane %v574, 1
      %v1408 = vperm.slane %v574, 5
      %v1409 = vperm.slane %v575, 1
      %v1410 = vperm.slane %v575, 5
      %v1411 = vperm.slane %v576, 1
      %v1412 = vperm.slane %v576, 5
      %v1421 = vperm.slane %v1405, 1
      %v1422 = vperm.slane %v1406, 1
      %v1423 = vperm.slane %v1407, 1
      %v1424 = vperm.slane %v1408, 1
      %v1425 = vperm.slane %v1409, 1
      %v1426 = vperm.slane %v1410, 1
      %v1427 = vperm.slane %v1411, 1
      %v1428 = vperm.slane %v1412, 1
      %v1429 = vmul.f32 %v1307, %v1421
      %v1430 = vmul.f32 %v1307, %v1422
      %v1431 = vmul.f32 %v1307, %v1423
      %v1432 = vmul.f32 %v1307, %v1424
      %v1433 = vmul.f32 %v1307, %v1425
      %v1434 = vmul.f32 %v1307, %v1426
      %v1435 = vmul.f32 %v1307, %v1427
      %v1436 = vmul.f32 %v1307, %v1428
      %v1437 = vmul.f32 %v1311, %v1421
      %v1438 = vmul.f32 %v1311, %v1422
      %v1439 = vmul.f32 %v1311, %v1423
      %v1440 = vmul.f32 %v1311, %v1424
      %v1441 = vmul.f32 %v1311, %v1425
      %v1442 = vmul.f32 %v1311, %v1426
      %v1443 = vmul.f32 %v1311, %v1427
      %v1444 = vmul.f32 %v1311, %v1428
      %v1445 = vmul.f32 %v1315, %v1421
      %v1446 = vmul.f32 %v1315, %v1422
      %v1447 = vmul.f32 %v1315, %v1423
      %v1448 = vmul.f32 %v1315, %v1424
      %v1449 = vmul.f32 %v1315, %v1425
      %v1450 = vmul.f32 %v1315, %v1426
      %v1451 = vmul.f32 %v1315, %v1427
      %v1452 = vmul.f32 %v1315, %v1428
      %v1453 = vmul.f32 %v1319, %v1421
      %v1454 = vmul.f32 %v1319, %v1422
      %v1455 = vmul.f32 %v1319, %v1423
      %v1456 = vmul.f32 %v1319, %v1424
      %v1457 = vmul.f32 %v1319, %v1425
      %v1458 = vmul.f32 %v1319, %v1426
      %v1459 = vmul.f32 %v1319, %v1427
      %v1460 = vmul.f32 %v1319, %v1428
      %v1461 = vmul.f32 %v1323, %v1421
      %v1462 = vmul.f32 %v1323, %v1422
      %v1463 = vmul.f32 %v1323, %v1423
      %v1464 = vmul.f32 %v1323, %v1424
      %v1465 = vmul.f32 %v1323, %v1425
      %v1466 = vmul.f32 %v1323, %v1426
      %v1467 = vmul.f32 %v1323, %v1427
      %v1468 = vmul.f32 %v1323, %v1428
      %v1469 = vmul.f32 %v1327, %v1421
      %v1470 = vmul.f32 %v1327, %v1422
      %v1471 = vmul.f32 %v1327, %v1423
      %v1472 = vmul.f32 %v1327, %v1424
      %v1473 = vmul.f32 %v1327, %v1425
      %v1474 = vmul.f32 %v1327, %v1426
      %v1475 = vmul.f32 %v1327, %v1427
      %v1476 = vmul.f32 %v1327, %v1428
      %v1477 = vmul.f32 %v1331, %v1421
      %v1478 = vmul.f32 %v1331, %v1422
      %v1479 = vmul.f32 %v1331, %v1423
      %v1480 = vmul.f32 %v1331, %v1424
      %v1481 = vmul.f32 %v1331, %v1425
      %v1482 = vmul.f32 %v1331, %v1426
      %v1483 = vmul.f32 %v1331, %v1427
      %v1484 = vmul.f32 %v1331, %v1428
      %v1485 = vmul.f32 %v1335, %v1421
      %v1486 = vmul.f32 %v1335, %v1422
      %v1487 = vmul.f32 %v1335, %v1423
      %v1488 = vmul.f32 %v1335, %v1424
      %v1489 = vmul.f32 %v1335, %v1425
      %v1490 = vmul.f32 %v1335, %v1426
      %v1491 = vmul.f32 %v1335, %v1427
      %v1492 = vmul.f32 %v1335, %v1428
      %v1493 = vmul.f32 %v1339, %v1421
      %v1494 = vmul.f32 %v1339, %v1422
      %v1495 = vmul.f32 %v1339, %v1423
      %v1496 = vmul.f32 %v1339, %v1424
      %v1497 = vmul.f32 %v1339, %v1425
      %v1498 = vmul.f32 %v1339, %v1426
      %v1499 = vmul.f32 %v1339, %v1427
      %v1500 = vmul.f32 %v1339, %v1428
      %v1501 = vmul.f32 %v1343, %v1421
      %v1502 = vmul.f32 %v1343, %v1422
      %v1503 = vmul.f32 %v1343, %v1423
      %v1504 = vmul.f32 %v1343, %v1424
      %v1505 = vmul.f32 %v1343, %v1425
      %v1506 = vmul.f32 %v1343, %v1426
      %v1507 = vmul.f32 %v1343, %v1427
      %v1508 = vmul.f32 %v1343, %v1428
      %v1509 = vmul.f32 %v1347, %v1421
      %v1510 = vmul.f32 %v1347, %v1422
      %v1511 = vmul.f32 %v1347, %v1423
      %v1512 = vmul.f32 %v1347, %v1424
      %v1513 = vmul.f32 %v1347, %v1425
      %v1514 = vmul.f32 %v1347, %v1426
      %v1515 = vmul.f32 %v1347, %v1427
      %v1516 = vmul.f32 %v1347, %v1428
      %v1517 = vmul.f32 %v1351, %v1421
      %v1518 = vmul.f32 %v1351, %v1422
      %v1519 = vmul.f32 %v1351, %v1423
      %v1520 = vmul.f32 %v1351, %v1424
      %v1521 = vmul.f32 %v1351, %v1425
      %v1522 = vmul.f32 %v1351, %v1426
      %v1523 = vmul.f32 %v1351, %v1427
      %v1524 = vmul.f32 %v1351, %v1428
      %v1525 = vmul.f32 %v1355, %v1421
      %v1526 = vmul.f32 %v1355, %v1422
      %v1527 = vmul.f32 %v1355, %v1423
      %v1528 = vmul.f32 %v1355, %v1424
      %v1529 = vmul.f32 %v1355, %v1425
      %v1530 = vmul.f32 %v1355, %v1426
      %v1531 = vmul.f32 %v1355, %v1427
      %v1532 = vmul.f32 %v1355, %v1428
      %v1533 = vmul.f32 %v1359, %v1421
      %v1534 = vmul.f32 %v1359, %v1422
      %v1535 = vmul.f32 %v1359, %v1423
      %v1536 = vmul.f32 %v1359, %v1424
      %v1537 = vmul.f32 %v1359, %v1425
      %v1538 = vmul.f32 %v1359, %v1426
      %v1539 = vmul.f32 %v1359, %v1427
      %v1540 = vmul.f32 %v1359, %v1428
      %v1541 = vmul.f32 %v1363, %v1421
      %v1542 = vmul.f32 %v1363, %v1422
      %v1543 = vmul.f32 %v1363, %v1423
      %v1544 = vmul.f32 %v1363, %v1424
      %v1545 = vmul.f32 %v1363, %v1425
      %v1546 = vmul.f32 %v1363, %v1426
      %v1547 = vmul.f32 %v1363, %v1427
      %v1548 = vmul.f32 %v1363, %v1428
      %v1549 = vmul.f32 %v1367, %v1421
      %v1550 = vmul.f32 %v1367, %v1422
      %v1551 = vmul.f32 %v1367, %v1423
      %v1552 = vmul.f32 %v1367, %v1424
      %v1553 = vmul.f32 %v1367, %v1425
      %v1554 = vmul.f32 %v1367, %v1426
      %v1555 = vmul.f32 %v1367, %v1427
      %v1556 = vmul.f32 %v1367, %v1428
      %v1557 = vmul.f32 %v1371, %v1421
      %v1558 = vmul.f32 %v1371, %v1422
      %v1559 = vmul.f32 %v1371, %v1423
      %v1560 = vmul.f32 %v1371, %v1424
      %v1561 = vmul.f32 %v1371, %v1425
      %v1562 = vmul.f32 %v1371, %v1426
      %v1563 = vmul.f32 %v1371, %v1427
      %v1564 = vmul.f32 %v1371, %v1428
      %v1565 = vmul.f32 %v1375, %v1421
      %v1566 = vmul.f32 %v1375, %v1422
      %v1567 = vmul.f32 %v1375, %v1423
      %v1568 = vmul.f32 %v1375, %v1424
      %v1569 = vmul.f32 %v1375, %v1425
      %v1570 = vmul.f32 %v1375, %v1426
      %v1571 = vmul.f32 %v1375, %v1427
      %v1572 = vmul.f32 %v1375, %v1428
      %v1573 = vmul.f32 %v1379, %v1421
      %v1574 = vmul.f32 %v1379, %v1422
      %v1575 = vmul.f32 %v1379, %v1423
      %v1576 = vmul.f32 %v1379, %v1424
      %v1577 = vmul.f32 %v1379, %v1425
      %v1578 = vmul.f32 %v1379, %v1426
      %v1579 = vmul.f32 %v1379, %v1427
      %v1580 = vmul.f32 %v1379, %v1428
      %v1581 = vmul.f32 %v1383, %v1421
      %v1582 = vmul.f32 %v1383, %v1422
      %v1583 = vmul.f32 %v1383, %v1423
      %v1584 = vmul.f32 %v1383, %v1424
      %v1585 = vmul.f32 %v1383, %v1425
      %v1586 = vmul.f32 %v1383, %v1426
      %v1587 = vmul.f32 %v1383, %v1427
      %v1588 = vmul.f32 %v1383, %v1428
      %v1589 = vmul.f32 %v1387, %v1421
      %v1590 = vmul.f32 %v1387, %v1422
      %v1591 = vmul.f32 %v1387, %v1423
      %v1592 = vmul.f32 %v1387, %v1424
      %v1593 = vmul.f32 %v1387, %v1425
      %v1594 = vmul.f32 %v1387, %v1426
      %v1595 = vmul.f32 %v1387, %v1427
      %v1596 = vmul.f32 %v1387, %v1428
      %v1597 = vmul.f32 %v1391, %v1421
      %v1598 = vmul.f32 %v1391, %v1422
      %v1599 = vmul.f32 %v1391, %v1423
      %v1600 = vmul.f32 %v1391, %v1424
      %v1601 = vmul.f32 %v1391, %v1425
      %v1602 = vmul.f32 %v1391, %v1426
      %v1603 = vmul.f32 %v1391, %v1427
      %v1604 = vmul.f32 %v1391, %v1428
      %v1605 = vmul.f32 %v1395, %v1421
      %v1606 = vmul.f32 %v1395, %v1422
      %v1607 = vmul.f32 %v1395, %v1423
      %v1608 = vmul.f32 %v1395, %v1424
      %v1609 = vmul.f32 %v1395, %v1425
      %v1610 = vmul.f32 %v1395, %v1426
      %v1611 = vmul.f32 %v1395, %v1427
      %v1612 = vmul.f32 %v1395, %v1428
      %v1613 = vmul.f32 %v1399, %v1421
      %v1614 = vmul.f32 %v1399, %v1422
      %v1615 = vmul.f32 %v1399, %v1423
      %v1616 = vmul.f32 %v1399, %v1424
      %v1617 = vmul.f32 %v1399, %v1425
      %v1618 = vmul.f32 %v1399, %v1426
      %v1619 = vmul.f32 %v1399, %v1427
      %v1620 = vmul.f32 %v1399, %v1428
      %v1621 = vmul.f32 %v1403, %v1421
      %v1622 = vmul.f32 %v1403, %v1422
      %v1623 = vmul.f32 %v1403, %v1423
      %v1624 = vmul.f32 %v1403, %v1424
      %v1625 = vmul.f32 %v1403, %v1425
      %v1626 = vmul.f32 %v1403, %v1426
      %v1627 = vmul.f32 %v1403, %v1427
      %v1628 = vmul.f32 %v1403, %v1428
      %v1629 = vadd.f32 %v1105, %v1429
      %v1630 = vadd.f32 %v1106, %v1430
      %v1631 = vadd.f32 %v1107, %v1431
      %v1632 = vadd.f32 %v1108, %v1432
      %v1633 = vadd.f32 %v1109, %v1433
      %v1634 = vadd.f32 %v1110, %v1434
      %v1635 = vadd.f32 %v1111, %v1435
      %v1636 = vadd.f32 %v1112, %v1436
      %v1637 = vadd.f32 %v1113, %v1437
      %v1638 = vadd.f32 %v1114, %v1438
      %v1639 = vadd.f32 %v1115, %v1439
      %v1640 = vadd.f32 %v1116, %v1440
      %v1641 = vadd.f32 %v1117, %v1441
      %v1642 = vadd.f32 %v1118, %v1442
      %v1643 = vadd.f32 %v1119, %v1443
      %v1644 = vadd.f32 %v1120, %v1444
      %v1645 = vadd.f32 %v1121, %v1445
      %v1646 = vadd.f32 %v1122, %v1446
      %v1647 = vadd.f32 %v1123, %v1447
      %v1648 = vadd.f32 %v1124, %v1448
      %v1649 = vadd.f32 %v1125, %v1449
      %v1650 = vadd.f32 %v1126, %v1450
      %v1651 = vadd.f32 %v1127, %v1451
      %v1652 = vadd.f32 %v1128, %v1452
      %v1653 = vadd.f32 %v1129, %v1453
      %v1654 = vadd.f32 %v1130, %v1454
      %v1655 = vadd.f32 %v1131, %v1455
      %v1656 = vadd.f32 %v1132, %v1456
      %v1657 = vadd.f32 %v1133, %v1457
      %v1658 = vadd.f32 %v1134, %v1458
      %v1659 = vadd.f32 %v1135, %v1459
      %v1660 = vadd.f32 %v1136, %v1460
      %v1661 = vadd.f32 %v1137, %v1461
      %v1662 = vadd.f32 %v1138, %v1462
      %v1663 = vadd.f32 %v1139, %v1463
      %v1664 = vadd.f32 %v1140, %v1464
      %v1665 = vadd.f32 %v1141, %v1465
      %v1666 = vadd.f32 %v1142, %v1466
      %v1667 = vadd.f32 %v1143, %v1467
      %v1668 = vadd.f32 %v1144, %v1468
      %v1669 = vadd.f32 %v1145, %v1469
      %v1670 = vadd.f32 %v1146, %v1470
      %v1671 = vadd.f32 %v1147, %v1471
      %v1672 = vadd.f32 %v1148, %v1472
      %v1673 = vadd.f32 %v1149, %v1473
      %v1674 = vadd.f32 %v1150, %v1474
      %v1675 = vadd.f32 %v1151, %v1475
      %v1676 = vadd.f32 %v1152, %v1476
      %v1677 = vadd.f32 %v1153, %v1477
      %v1678 = vadd.f32 %v1154, %v1478
      %v1679 = vadd.f32 %v1155, %v1479
      %v1680 = vadd.f32 %v1156, %v1480
      %v1681 = vadd.f32 %v1157, %v1481
      %v1682 = vadd.f32 %v1158, %v1482
      %v1683 = vadd.f32 %v1159, %v1483
      %v1684 = vadd.f32 %v1160, %v1484
      %v1685 = vadd.f32 %v1161, %v1485
      %v1686 = vadd.f32 %v1162, %v1486
      %v1687 = vadd.f32 %v1163, %v1487
      %v1688 = vadd.f32 %v1164, %v1488
      %v1689 = vadd.f32 %v1165, %v1489
      %v1690 = vadd.f32 %v1166, %v1490
      %v1691 = vadd.f32 %v1167, %v1491
      %v1692 = vadd.f32 %v1168, %v1492
      %v1693 = vadd.f32 %v1169, %v1493
      %v1694 = vadd.f32 %v1170, %v1494
      %v1695 = vadd.f32 %v1171, %v1495
      %v1696 = vadd.f32 %v1172, %v1496
      %v1697 = vadd.f32 %v1173, %v1497
      %v1698 = vadd.f32 %v1174, %v1498
      %v1699 = vadd.f32 %v1175, %v1499
      %v1700 = vadd.f32 %v1176, %v1500
      %v1701 = vadd.f32 %v1177, %v1501
      %v1702 = vadd.f32 %v1178, %v1502
      %v1703 = vadd.f32 %v1179, %v1503
      %v1704 = vadd.f32 %v1180, %v1504
      %v1705 = vadd.f32 %v1181, %v1505
      %v1706 = vadd.f32 %v1182, %v1506
      %v1707 = vadd.f32 %v1183, %v1507
      %v1708 = vadd.f32 %v1184, %v1508
      %v1709 = vadd.f32 %v1185, %v1509
      %v1710 = vadd.f32 %v1186, %v1510
      %v1711 = vadd.f32 %v1187, %v1511
      %v1712 = vadd.f32 %v1188, %v1512
      %v1713 = vadd.f32 %v1189, %v1513
      %v1714 = vadd.f32 %v1190, %v1514
      %v1715 = vadd.f32 %v1191, %v1515
      %v1716 = vadd.f32 %v1192, %v1516
      %v1717 = vadd.f32 %v1193, %v1517
      %v1718 = vadd.f32 %v1194, %v1518
      %v1719 = vadd.f32 %v1195, %v1519
      %v1720 = vadd.f32 %v1196, %v1520
      %v1721 = vadd.f32 %v1197, %v1521
      %v1722 = vadd.f32 %v1198, %v1522
      %v1723 = vadd.f32 %v1199, %v1523
      %v1724 = vadd.f32 %v1200, %v1524
      %v1725 = vadd.f32 %v1201, %v1525
      %v1726 = vadd.f32 %v1202, %v1526
      %v1727 = vadd.f32 %v1203, %v1527
      %v1728 = vadd.f32 %v1204, %v1528
      %v1729 = vadd.f32 %v1205, %v1529
      %v1730 = vadd.f32 %v1206, %v1530
      %v1731 = vadd.f32 %v1207, %v1531
      %v1732 = vadd.f32 %v1208, %v1532
      %v1733 = vadd.f32 %v1209, %v1533
      %v1734 = vadd.f32 %v1210, %v1534
      %v1735 = vadd.f32 %v1211, %v1535
      %v1736 = vadd.f32 %v1212, %v1536
      %v1737 = vadd.f32 %v1213, %v1537
      %v1738 = vadd.f32 %v1214, %v1538
      %v1739 = vadd.f32 %v1215, %v1539
      %v1740 = vadd.f32 %v1216, %v1540
      %v1741 = vadd.f32 %v1217, %v1541
      %v1742 = vadd.f32 %v1218, %v1542
      %v1743 = vadd.f32 %v1219, %v1543
      %v1744 = vadd.f32 %v1220, %v1544
      %v1745 = vadd.f32 %v1221, %v1545
      %v1746 = vadd.f32 %v1222, %v1546
      %v1747 = vadd.f32 %v1223, %v1547
      %v1748 = vadd.f32 %v1224, %v1548
      %v1749 = vadd.f32 %v1225, %v1549
      %v1750 = vadd.f32 %v1226, %v1550
      %v1751 = vadd.f32 %v1227, %v1551
      %v1752 = vadd.f32 %v1228, %v1552
      %v1753 = vadd.f32 %v1229, %v1553
      %v1754 = vadd.f32 %v1230, %v1554
      %v1755 = vadd.f32 %v1231, %v1555
      %v1756 = vadd.f32 %v1232, %v1556
      %v1757 = vadd.f32 %v1233, %v1557
      %v1758 = vadd.f32 %v1234, %v1558
      %v1759 = vadd.f32 %v1235, %v1559
      %v1760 = vadd.f32 %v1236, %v1560
      %v1761 = vadd.f32 %v1237, %v1561
      %v1762 = vadd.f32 %v1238, %v1562
      %v1763 = vadd.f32 %v1239, %v1563
      %v1764 = vadd.f32 %v1240, %v1564
      %v1765 = vadd.f32 %v1241, %v1565
      %v1766 = vadd.f32 %v1242, %v1566
      %v1767 = vadd.f32 %v1243, %v1567
      %v1768 = vadd.f32 %v1244, %v1568
      %v1769 = vadd.f32 %v1245, %v1569
      %v1770 = vadd.f32 %v1246, %v1570
      %v1771 = vadd.f32 %v1247, %v1571
      %v1772 = vadd.f32 %v1248, %v1572
      %v1773 = vadd.f32 %v1249, %v1573
      %v1774 = vadd.f32 %v1250, %v1574
      %v1775 = vadd.f32 %v1251, %v1575
      %v1776 = vadd.f32 %v1252, %v1576
      %v1777 = vadd.f32 %v1253, %v1577
      %v1778 = vadd.f32 %v1254, %v1578
      %v1779 = vadd.f32 %v1255, %v1579
      %v1780 = vadd.f32 %v1256, %v1580
      %v1781 = vadd.f32 %v1257, %v1581
      %v1782 = vadd.f32 %v1258, %v1582
      %v1783 = vadd.f32 %v1259, %v1583
      %v1784 = vadd.f32 %v1260, %v1584
      %v1785 = vadd.f32 %v1261, %v1585
      %v1786 = vadd.f32 %v1262, %v1586
      %v1787 = vadd.f32 %v1263, %v1587
      %v1788 = vadd.f32 %v1264, %v1588
      %v1789 = vadd.f32 %v1265, %v1589
      %v1790 = vadd.f32 %v1266, %v1590
      %v1791 = vadd.f32 %v1267, %v1591
      %v1792 = vadd.f32 %v1268, %v1592
      %v1793 = vadd.f32 %v1269, %v1593
      %v1794 = vadd.f32 %v1270, %v1594
      %v1795 = vadd.f32 %v1271, %v1595
      %v1796 = vadd.f32 %v1272, %v1596
      %v1797 = vadd.f32 %v1273, %v1597
      %v1798 = vadd.f32 %v1274, %v1598
      %v1799 = vadd.f32 %v1275, %v1599
      %v1800 = vadd.f32 %v1276, %v1600
      %v1801 = vadd.f32 %v1277, %v1601
      %v1802 = vadd.f32 %v1278, %v1602
      %v1803 = vadd.f32 %v1279, %v1603
      %v1804 = vadd.f32 %v1280, %v1604
      %v1805 = vadd.f32 %v1281, %v1605
      %v1806 = vadd.f32 %v1282, %v1606
      %v1807 = vadd.f32 %v1283, %v1607
      %v1808 = vadd.f32 %v1284, %v1608
      %v1809 = vadd.f32 %v1285, %v1609
      %v1810 = vadd.f32 %v1286, %v1610
      %v1811 = vadd.f32 %v1287, %v1611
      %v1812 = vadd.f32 %v1288, %v1612
      %v1813 = vadd.f32 %v1289, %v1613
      %v1814 = vadd.f32 %v1290, %v1614
      %v1815 = vadd.f32 %v1291, %v1615
      %v1816 = vadd.f32 %v1292, %v1616
      %v1817 = vadd.f32 %v1293, %v1617
      %v1818 = vadd.f32 %v1294, %v1618
      %v1819 = vadd.f32 %v1295, %v1619
      %v1820 = vadd.f32 %v1296, %v1620
      %v1821 = vadd.f32 %v1297, %v1621
      %v1822 = vadd.f32 %v1298, %v1622
      %v1823 = vadd.f32 %v1299, %v1623
      %v1824 = vadd.f32 %v1300, %v1624
      %v1825 = vadd.f32 %v1301, %v1625
      %v1826 = vadd.f32 %v1302, %v1626
      %v1827 = vadd.f32 %v1303, %v1627
      %v1828 = vadd.f32 %v1304, %v1628
      %1829 = vset.pattern.permute.xlu0 2
      %1830 = vperm.xlu0 %1829, %v577
      %v1831 = vpop.permute.xlu0 %1830
      %1833 = vset.pattern.permute.xlu0 2
      %1834 = vperm.xlu0 %1833, %v578
      %v1835 = vpop.permute.xlu0 %1834
      %1837 = vset.pattern.permute.xlu0 2
      %1838 = vperm.xlu0 %1837, %v579
      %v1839 = vpop.permute.xlu0 %1838
      %1841 = vset.pattern.permute.xlu0 2
      %1842 = vperm.xlu0 %1841, %v580
      %v1843 = vpop.permute.xlu0 %1842
      %1845 = vset.pattern.permute.xlu0 2
      %1846 = vperm.xlu0 %1845, %v581
      %v1847 = vpop.permute.xlu0 %1846
      %1849 = vset.pattern.permute.xlu0 2
      %1850 = vperm.xlu0 %1849, %v582
      %v1851 = vpop.permute.xlu0 %1850
      %1853 = vset.pattern.permute.xlu0 2
      %1854 = vperm.xlu0 %1853, %v583
      %v1855 = vpop.permute.xlu0 %1854
      %1857 = vset.pattern.permute.xlu0 2
      %1858 = vperm.xlu0 %1857, %v584
      %v1859 = vpop.permute.xlu0 %1858
      %1861 = vset.pattern.permute.xlu0 2
      %1862 = vperm.xlu0 %1861, %v585
      %v1863 = vpop.permute.xlu0 %1862
      %1865 = vset.pattern.permute.xlu0 2
      %1866 = vperm.xlu0 %1865, %v586
      %v1867 = vpop.permute.xlu0 %1866
      %1869 = vset.pattern.permute.xlu0 2
      %1870 = vperm.xlu0 %1869, %v587
      %v1871 = vpop.permute.xlu0 %1870
      %1873 = vset.pattern.permute.xlu0 2
      %1874 = vperm.xlu0 %1873, %v588
      %v1875 = vpop.permute.xlu0 %1874
      %1877 = vset.pattern.permute.xlu0 2
      %1878 = vperm.xlu0 %1877, %v589
      %v1879 = vpop.permute.xlu0 %1878
      %1881 = vset.pattern.permute.xlu0 2
      %1882 = vperm.xlu0 %1881, %v590
      %v1883 = vpop.permute.xlu0 %1882
      %1885 = vset.pattern.permute.xlu0 2
      %1886 = vperm.xlu0 %1885, %v591
      %v1887 = vpop.permute.xlu0 %1886
      %1889 = vset.pattern.permute.xlu0 2
      %1890 = vperm.xlu0 %1889, %v592
      %v1891 = vpop.permute.xlu0 %1890
      %1893 = vset.pattern.permute.xlu0 2
      %1894 = vperm.xlu0 %1893, %v593
      %v1895 = vpop.permute.xlu0 %1894
      %1897 = vset.pattern.permute.xlu0 2
      %1898 = vperm.xlu0 %1897, %v594
      %v1899 = vpop.permute.xlu0 %1898
      %1901 = vset.pattern.permute.xlu0 2
      %1902 = vperm.xlu0 %1901, %v595
      %v1903 = vpop.permute.xlu0 %1902
      %1905 = vset.pattern.permute.xlu0 2
      %1906 = vperm.xlu0 %1905, %v596
      %v1907 = vpop.permute.xlu0 %1906
      %1909 = vset.pattern.permute.xlu0 2
      %1910 = vperm.xlu0 %1909, %v597
      %v1911 = vpop.permute.xlu0 %1910
      %1913 = vset.pattern.permute.xlu0 2
      %1914 = vperm.xlu0 %1913, %v598
      %v1915 = vpop.permute.xlu0 %1914
      %1917 = vset.pattern.permute.xlu0 2
      %1918 = vperm.xlu0 %1917, %v599
      %v1919 = vpop.permute.xlu0 %1918
      %1921 = vset.pattern.permute.xlu0 2
      %1922 = vperm.xlu0 %1921, %v600
      %v1923 = vpop.permute.xlu0 %1922
      %1925 = vset.pattern.permute.xlu0 2
      %1926 = vperm.xlu0 %1925, %v601
      %v1927 = vpop.permute.xlu0 %1926
      %v1929 = vperm.slane %v573, 2
      %v1930 = vperm.slane %v573, 6
      %v1931 = vperm.slane %v574, 2
      %v1932 = vperm.slane %v574, 6
      %v1933 = vperm.slane %v575, 2
      %v1934 = vperm.slane %v575, 6
      %v1935 = vperm.slane %v576, 2
      %v1936 = vperm.slane %v576, 6
      %v1945 = vperm.slane %v1929, 2
      %v1946 = vperm.slane %v1930, 2
      %v1947 = vperm.slane %v1931, 2
      %v1948 = vperm.slane %v1932, 2
      %v1949 = vperm.slane %v1933, 2
      %v1950 = vperm.slane %v1934, 2
      %v1951 = vperm.slane %v1935, 2
      %v1952 = vperm.slane %v1936, 2
      %v1953 = vmul.f32 %v1831, %v1945
      %v1954 = vmul.f32 %v1831, %v1946
      %v1955 = vmul.f32 %v1831, %v1947
      %v1956 = vmul.f32 %v1831, %v1948
      %v1957 = vmul.f32 %v1831, %v1949
      %v1958 = vmul.f32 %v1831, %v1950
      %v1959 = vmul.f32 %v1831, %v1951
      %v1960 = vmul.f32 %v1831, %v1952
      %v1961 = vmul.f32 %v1835, %v1945
      %v1962 = vmul.f32 %v1835, %v1946
      %v1963 = vmul.f32 %v1835, %v1947
      %v1964 = vmul.f32 %v1835, %v1948
      %v1965 = vmul.f32 %v1835, %v1949
      %v1966 = vmul.f32 %v1835, %v1950
      %v1967 = vmul.f32 %v1835, %v1951
      %v1968 = vmul.f32 %v1835, %v1952
      %v1969 = vmul.f32 %v1839, %v1945
      %v1970 = vmul.f32 %v1839, %v1946
      %v1971 = vmul.f32 %v1839, %v1947
      %v1972 = vmul.f32 %v1839, %v1948
      %v1973 = vmul.f32 %v1839, %v1949
      %v1974 = vmul.f32 %v1839, %v1950
      %v1975 = vmul.f32 %v1839, %v1951
      %v1976 = vmul.f32 %v1839, %v1952
      %v1977 = vmul.f32 %v1843, %v1945
      %v1978 = vmul.f32 %v1843, %v1946
      %v1979 = vmul.f32 %v1843, %v1947
      %v1980 = vmul.f32 %v1843, %v1948
      %v1981 = vmul.f32 %v1843, %v1949
      %v1982 = vmul.f32 %v1843, %v1950
      %v1983 = vmul.f32 %v1843, %v1951
      %v1984 = vmul.f32 %v1843, %v1952
      %v1985 = vmul.f32 %v1847, %v1945
      %v1986 = vmul.f32 %v1847, %v1946
      %v1987 = vmul.f32 %v1847, %v1947
      %v1988 = vmul.f32 %v1847, %v1948
      %v1989 = vmul.f32 %v1847, %v1949
      %v1990 = vmul.f32 %v1847, %v1950
      %v1991 = vmul.f32 %v1847, %v1951
      %v1992 = vmul.f32 %v1847, %v1952
      %v1993 = vmul.f32 %v1851, %v1945
      %v1994 = vmul.f32 %v1851, %v1946
      %v1995 = vmul.f32 %v1851, %v1947
      %v1996 = vmul.f32 %v1851, %v1948
      %v1997 = vmul.f32 %v1851, %v1949
      %v1998 = vmul.f32 %v1851, %v1950
      %v1999 = vmul.f32 %v1851, %v1951
      %v2000 = vmul.f32 %v1851, %v1952
      %v2001 = vmul.f32 %v1855, %v1945
      %v2002 = vmul.f32 %v1855, %v1946
      %v2003 = vmul.f32 %v1855, %v1947
      %v2004 = vmul.f32 %v1855, %v1948
      %v2005 = vmul.f32 %v1855, %v1949
      %v2006 = vmul.f32 %v1855, %v1950
      %v2007 = vmul.f32 %v1855, %v1951
      %v2008 = vmul.f32 %v1855, %v1952
      %v2009 = vmul.f32 %v1859, %v1945
      %v2010 = vmul.f32 %v1859, %v1946
      %v2011 = vmul.f32 %v1859, %v1947
      %v2012 = vmul.f32 %v1859, %v1948
      %v2013 = vmul.f32 %v1859, %v1949
      %v2014 = vmul.f32 %v1859, %v1950
      %v2015 = vmul.f32 %v1859, %v1951
      %v2016 = vmul.f32 %v1859, %v1952
      %v2017 = vmul.f32 %v1863, %v1945
      %v2018 = vmul.f32 %v1863, %v1946
      %v2019 = vmul.f32 %v1863, %v1947
      %v2020 = vmul.f32 %v1863, %v1948
      %v2021 = vmul.f32 %v1863, %v1949
      %v2022 = vmul.f32 %v1863, %v1950
      %v2023 = vmul.f32 %v1863, %v1951
      %v2024 = vmul.f32 %v1863, %v1952
      %v2025 = vmul.f32 %v1867, %v1945
      %v2026 = vmul.f32 %v1867, %v1946
      %v2027 = vmul.f32 %v1867, %v1947
      %v2028 = vmul.f32 %v1867, %v1948
      %v2029 = vmul.f32 %v1867, %v1949
      %v2030 = vmul.f32 %v1867, %v1950
      %v2031 = vmul.f32 %v1867, %v1951
      %v2032 = vmul.f32 %v1867, %v1952
      %v2033 = vmul.f32 %v1871, %v1945
      %v2034 = vmul.f32 %v1871, %v1946
      %v2035 = vmul.f32 %v1871, %v1947
      %v2036 = vmul.f32 %v1871, %v1948
      %v2037 = vmul.f32 %v1871, %v1949
      %v2038 = vmul.f32 %v1871, %v1950
      %v2039 = vmul.f32 %v1871, %v1951
      %v2040 = vmul.f32 %v1871, %v1952
      %v2041 = vmul.f32 %v1875, %v1945
      %v2042 = vmul.f32 %v1875, %v1946
      %v2043 = vmul.f32 %v1875, %v1947
      %v2044 = vmul.f32 %v1875, %v1948
      %v2045 = vmul.f32 %v1875, %v1949
      %v2046 = vmul.f32 %v1875, %v1950
      %v2047 = vmul.f32 %v1875, %v1951
      %v2048 = vmul.f32 %v1875, %v1952
      %v2049 = vmul.f32 %v1879, %v1945
      %v2050 = vmul.f32 %v1879, %v1946
      %v2051 = vmul.f32 %v1879, %v1947
      %v2052 = vmul.f32 %v1879, %v1948
      %v2053 = vmul.f32 %v1879, %v1949
      %v2054 = vmul.f32 %v1879, %v1950
      %v2055 = vmul.f32 %v1879, %v1951
      %v2056 = vmul.f32 %v1879, %v1952
      %v2057 = vmul.f32 %v1883, %v1945
      %v2058 = vmul.f32 %v1883, %v1946
      %v2059 = vmul.f32 %v1883, %v1947
      %v2060 = vmul.f32 %v1883, %v1948
      %v2061 = vmul.f32 %v1883, %v1949
      %v2062 = vmul.f32 %v1883, %v1950
      %v2063 = vmul.f32 %v1883, %v1951
      %v2064 = vmul.f32 %v1883, %v1952
      %v2065 = vmul.f32 %v1887, %v1945
      %v2066 = vmul.f32 %v1887, %v1946
      %v2067 = vmul.f32 %v1887, %v1947
      %v2068 = vmul.f32 %v1887, %v1948
      %v2069 = vmul.f32 %v1887, %v1949
      %v2070 = vmul.f32 %v1887, %v1950
      %v2071 = vmul.f32 %v1887, %v1951
      %v2072 = vmul.f32 %v1887, %v1952
      %v2073 = vmul.f32 %v1891, %v1945
      %v2074 = vmul.f32 %v1891, %v1946
      %v2075 = vmul.f32 %v1891, %v1947
      %v2076 = vmul.f32 %v1891, %v1948
      %v2077 = vmul.f32 %v1891, %v1949
      %v2078 = vmul.f32 %v1891, %v1950
      %v2079 = vmul.f32 %v1891, %v1951
      %v2080 = vmul.f32 %v1891, %v1952
      %v2081 = vmul.f32 %v1895, %v1945
      %v2082 = vmul.f32 %v1895, %v1946
      %v2083 = vmul.f32 %v1895, %v1947
      %v2084 = vmul.f32 %v1895, %v1948
      %v2085 = vmul.f32 %v1895, %v1949
      %v2086 = vmul.f32 %v1895, %v1950
      %v2087 = vmul.f32 %v1895, %v1951
      %v2088 = vmul.f32 %v1895, %v1952
      %v2089 = vmul.f32 %v1899, %v1945
      %v2090 = vmul.f32 %v1899, %v1946
      %v2091 = vmul.f32 %v1899, %v1947
      %v2092 = vmul.f32 %v1899, %v1948
      %v2093 = vmul.f32 %v1899, %v1949
      %v2094 = vmul.f32 %v1899, %v1950
      %v2095 = vmul.f32 %v1899, %v1951
      %v2096 = vmul.f32 %v1899, %v1952
      %v2097 = vmul.f32 %v1903, %v1945
      %v2098 = vmul.f32 %v1903, %v1946
      %v2099 = vmul.f32 %v1903, %v1947
      %v2100 = vmul.f32 %v1903, %v1948
      %v2101 = vmul.f32 %v1903, %v1949
      %v2102 = vmul.f32 %v1903, %v1950
      %v2103 = vmul.f32 %v1903, %v1951
      %v2104 = vmul.f32 %v1903, %v1952
      %v2105 = vmul.f32 %v1907, %v1945
      %v2106 = vmul.f32 %v1907, %v1946
      %v2107 = vmul.f32 %v1907, %v1947
      %v2108 = vmul.f32 %v1907, %v1948
      %v2109 = vmul.f32 %v1907, %v1949
      %v2110 = vmul.f32 %v1907, %v1950
      %v2111 = vmul.f32 %v1907, %v1951
      %v2112 = vmul.f32 %v1907, %v1952
      %v2113 = vmul.f32 %v1911, %v1945
      %v2114 = vmul.f32 %v1911, %v1946
      %v2115 = vmul.f32 %v1911, %v1947
      %v2116 = vmul.f32 %v1911, %v1948
      %v2117 = vmul.f32 %v1911, %v1949
      %v2118 = vmul.f32 %v1911, %v1950
      %v2119 = vmul.f32 %v1911, %v1951
      %v2120 = vmul.f32 %v1911, %v1952
      %v2121 = vmul.f32 %v1915, %v1945
      %v2122 = vmul.f32 %v1915, %v1946
      %v2123 = vmul.f32 %v1915, %v1947
      %v2124 = vmul.f32 %v1915, %v1948
      %v2125 = vmul.f32 %v1915, %v1949
      %v2126 = vmul.f32 %v1915, %v1950
      %v2127 = vmul.f32 %v1915, %v1951
      %v2128 = vmul.f32 %v1915, %v1952
      %v2129 = vmul.f32 %v1919, %v1945
      %v2130 = vmul.f32 %v1919, %v1946
      %v2131 = vmul.f32 %v1919, %v1947
      %v2132 = vmul.f32 %v1919, %v1948
      %v2133 = vmul.f32 %v1919, %v1949
      %v2134 = vmul.f32 %v1919, %v1950
      %v2135 = vmul.f32 %v1919, %v1951
      %v2136 = vmul.f32 %v1919, %v1952
      %v2137 = vmul.f32 %v1923, %v1945
      %v2138 = vmul.f32 %v1923, %v1946
      %v2139 = vmul.f32 %v1923, %v1947
      %v2140 = vmul.f32 %v1923, %v1948
      %v2141 = vmul.f32 %v1923, %v1949
      %v2142 = vmul.f32 %v1923, %v1950
      %v2143 = vmul.f32 %v1923, %v1951
      %v2144 = vmul.f32 %v1923, %v1952
      %v2145 = vmul.f32 %v1927, %v1945
      %v2146 = vmul.f32 %v1927, %v1946
      %v2147 = vmul.f32 %v1927, %v1947
      %v2148 = vmul.f32 %v1927, %v1948
      %v2149 = vmul.f32 %v1927, %v1949
      %v2150 = vmul.f32 %v1927, %v1950
      %v2151 = vmul.f32 %v1927, %v1951
      %v2152 = vmul.f32 %v1927, %v1952
      %v2153 = vadd.f32 %v1629, %v1953
      %v2154 = vadd.f32 %v1630, %v1954
      %v2155 = vadd.f32 %v1631, %v1955
      %v2156 = vadd.f32 %v1632, %v1956
      %v2157 = vadd.f32 %v1633, %v1957
      %v2158 = vadd.f32 %v1634, %v1958
      %v2159 = vadd.f32 %v1635, %v1959
      %v2160 = vadd.f32 %v1636, %v1960
      %v2161 = vadd.f32 %v1637, %v1961
      %v2162 = vadd.f32 %v1638, %v1962
      %v2163 = vadd.f32 %v1639, %v1963
      %v2164 = vadd.f32 %v1640, %v1964
      %v2165 = vadd.f32 %v1641, %v1965
      %v2166 = vadd.f32 %v1642, %v1966
      %v2167 = vadd.f32 %v1643, %v1967
      %v2168 = vadd.f32 %v1644, %v1968
      %v2169 = vadd.f32 %v1645, %v1969
      %v2170 = vadd.f32 %v1646, %v1970
      %v2171 = vadd.f32 %v1647, %v1971
      %v2172 = vadd.f32 %v1648, %v1972
      %v2173 = vadd.f32 %v1649, %v1973
      %v2174 = vadd.f32 %v1650, %v1974
      %v2175 = vadd.f32 %v1651, %v1975
      %v2176 = vadd.f32 %v1652, %v1976
      %v2177 = vadd.f32 %v1653, %v1977
      %v2178 = vadd.f32 %v1654, %v1978
      %v2179 = vadd.f32 %v1655, %v1979
      %v2180 = vadd.f32 %v1656, %v1980
      %v2181 = vadd.f32 %v1657, %v1981
      %v2182 = vadd.f32 %v1658, %v1982
      %v2183 = vadd.f32 %v1659, %v1983
      %v2184 = vadd.f32 %v1660, %v1984
      %v2185 = vadd.f32 %v1661, %v1985
      %v2186 = vadd.f32 %v1662, %v1986
      %v2187 = vadd.f32 %v1663, %v1987
      %v2188 = vadd.f32 %v1664, %v1988
      %v2189 = vadd.f32 %v1665, %v1989
      %v2190 = vadd.f32 %v1666, %v1990
      %v2191 = vadd.f32 %v1667, %v1991
      %v2192 = vadd.f32 %v1668, %v1992
      %v2193 = vadd.f32 %v1669, %v1993
      %v2194 = vadd.f32 %v1670, %v1994
      %v2195 = vadd.f32 %v1671, %v1995
      %v2196 = vadd.f32 %v1672, %v1996
      %v2197 = vadd.f32 %v1673, %v1997
      %v2198 = vadd.f32 %v1674, %v1998
      %v2199 = vadd.f32 %v1675, %v1999
      %v2200 = vadd.f32 %v1676, %v2000
      %v2201 = vadd.f32 %v1677, %v2001
      %v2202 = vadd.f32 %v1678, %v2002
      %v2203 = vadd.f32 %v1679, %v2003
      %v2204 = vadd.f32 %v1680, %v2004
      %v2205 = vadd.f32 %v1681, %v2005
      %v2206 = vadd.f32 %v1682, %v2006
      %v2207 = vadd.f32 %v1683, %v2007
      %v2208 = vadd.f32 %v1684, %v2008
      %v2209 = vadd.f32 %v1685, %v2009
      %v2210 = vadd.f32 %v1686, %v2010
      %v2211 = vadd.f32 %v1687, %v2011
      %v2212 = vadd.f32 %v1688, %v2012
      %v2213 = vadd.f32 %v1689, %v2013
      %v2214 = vadd.f32 %v1690, %v2014
      %v2215 = vadd.f32 %v1691, %v2015
      %v2216 = vadd.f32 %v1692, %v2016
      %v2217 = vadd.f32 %v1693, %v2017
      %v2218 = vadd.f32 %v1694, %v2018
      %v2219 = vadd.f32 %v1695, %v2019
      %v2220 = vadd.f32 %v1696, %v2020
      %v2221 = vadd.f32 %v1697, %v2021
      %v2222 = vadd.f32 %v1698, %v2022
      %v2223 = vadd.f32 %v1699, %v2023
      %v2224 = vadd.f32 %v1700, %v2024
      %v2225 = vadd.f32 %v1701, %v2025
      %v2226 = vadd.f32 %v1702, %v2026
      %v2227 = vadd.f32 %v1703, %v2027
      %v2228 = vadd.f32 %v1704, %v2028
      %v2229 = vadd.f32 %v1705, %v2029
      %v2230 = vadd.f32 %v1706, %v2030
      %v2231 = vadd.f32 %v1707, %v2031
      %v2232 = vadd.f32 %v1708, %v2032
      %v2233 = vadd.f32 %v1709, %v2033
      %v2234 = vadd.f32 %v1710, %v2034
      %v2235 = vadd.f32 %v1711, %v2035
      %v2236 = vadd.f32 %v1712, %v2036
      %v2237 = vadd.f32 %v1713, %v2037
      %v2238 = vadd.f32 %v1714, %v2038
      %v2239 = vadd.f32 %v1715, %v2039
      %v2240 = vadd.f32 %v1716, %v2040
      %v2241 = vadd.f32 %v1717, %v2041
      %v2242 = vadd.f32 %v1718, %v2042
      %v2243 = vadd.f32 %v1719, %v2043
      %v2244 = vadd.f32 %v1720, %v2044
      %v2245 = vadd.f32 %v1721, %v2045
      %v2246 = vadd.f32 %v1722, %v2046
      %v2247 = vadd.f32 %v1723, %v2047
      %v2248 = vadd.f32 %v1724, %v2048
      %v2249 = vadd.f32 %v1725, %v2049
      %v2250 = vadd.f32 %v1726, %v2050
      %v2251 = vadd.f32 %v1727, %v2051
      %v2252 = vadd.f32 %v1728, %v2052
      %v2253 = vadd.f32 %v1729, %v2053
      %v2254 = vadd.f32 %v1730, %v2054
      %v2255 = vadd.f32 %v1731, %v2055
      %v2256 = vadd.f32 %v1732, %v2056
      %v2257 = vadd.f32 %v1733, %v2057
      %v2258 = vadd.f32 %v1734, %v2058
      %v2259 = vadd.f32 %v1735, %v2059
      %v2260 = vadd.f32 %v1736, %v2060
      %v2261 = vadd.f32 %v1737, %v2061
      %v2262 = vadd.f32 %v1738, %v2062
      %v2263 = vadd.f32 %v1739, %v2063
      %v2264 = vadd.f32 %v1740, %v2064
      %v2265 = vadd.f32 %v1741, %v2065
      %v2266 = vadd.f32 %v1742, %v2066
      %v2267 = vadd.f32 %v1743, %v2067
      %v2268 = vadd.f32 %v1744, %v2068
      %v2269 = vadd.f32 %v1745, %v2069
      %v2270 = vadd.f32 %v1746, %v2070
      %v2271 = vadd.f32 %v1747, %v2071
      %v2272 = vadd.f32 %v1748, %v2072
      %v2273 = vadd.f32 %v1749, %v2073
      %v2274 = vadd.f32 %v1750, %v2074
      %v2275 = vadd.f32 %v1751, %v2075
      %v2276 = vadd.f32 %v1752, %v2076
      %v2277 = vadd.f32 %v1753, %v2077
      %v2278 = vadd.f32 %v1754, %v2078
      %v2279 = vadd.f32 %v1755, %v2079
      %v2280 = vadd.f32 %v1756, %v2080
      %v2281 = vadd.f32 %v1757, %v2081
      %v2282 = vadd.f32 %v1758, %v2082
      %v2283 = vadd.f32 %v1759, %v2083
      %v2284 = vadd.f32 %v1760, %v2084
      %v2285 = vadd.f32 %v1761, %v2085
      %v2286 = vadd.f32 %v1762, %v2086
      %v2287 = vadd.f32 %v1763, %v2087
      %v2288 = vadd.f32 %v1764, %v2088
      %v2289 = vadd.f32 %v1765, %v2089
      %v2290 = vadd.f32 %v1766, %v2090
      %v2291 = vadd.f32 %v1767, %v2091
      %v2292 = vadd.f32 %v1768, %v2092
      %v2293 = vadd.f32 %v1769, %v2093
      %v2294 = vadd.f32 %v1770, %v2094
      %v2295 = vadd.f32 %v1771, %v2095
      %v2296 = vadd.f32 %v1772, %v2096
      %v2297 = vadd.f32 %v1773, %v2097
      %v2298 = vadd.f32 %v1774, %v2098
      %v2299 = vadd.f32 %v1775, %v2099
      %v2300 = vadd.f32 %v1776, %v2100
      %v2301 = vadd.f32 %v1777, %v2101
      %v2302 = vadd.f32 %v1778, %v2102
      %v2303 = vadd.f32 %v1779, %v2103
      %v2304 = vadd.f32 %v1780, %v2104
      %v2305 = vadd.f32 %v1781, %v2105
      %v2306 = vadd.f32 %v1782, %v2106
      %v2307 = vadd.f32 %v1783, %v2107
      %v2308 = vadd.f32 %v1784, %v2108
      %v2309 = vadd.f32 %v1785, %v2109
      %v2310 = vadd.f32 %v1786, %v2110
      %v2311 = vadd.f32 %v1787, %v2111
      %v2312 = vadd.f32 %v1788, %v2112
      %v2313 = vadd.f32 %v1789, %v2113
      %v2314 = vadd.f32 %v1790, %v2114
      %v2315 = vadd.f32 %v1791, %v2115
      %v2316 = vadd.f32 %v1792, %v2116
      %v2317 = vadd.f32 %v1793, %v2117
      %v2318 = vadd.f32 %v1794, %v2118
      %v2319 = vadd.f32 %v1795, %v2119
      %v2320 = vadd.f32 %v1796, %v2120
      %v2321 = vadd.f32 %v1797, %v2121
      %v2322 = vadd.f32 %v1798, %v2122
      %v2323 = vadd.f32 %v1799, %v2123
      %v2324 = vadd.f32 %v1800, %v2124
      %v2325 = vadd.f32 %v1801, %v2125
      %v2326 = vadd.f32 %v1802, %v2126
      %v2327 = vadd.f32 %v1803, %v2127
      %v2328 = vadd.f32 %v1804, %v2128
      %v2329 = vadd.f32 %v1805, %v2129
      %v2330 = vadd.f32 %v1806, %v2130
      %v2331 = vadd.f32 %v1807, %v2131
      %v2332 = vadd.f32 %v1808, %v2132
      %v2333 = vadd.f32 %v1809, %v2133
      %v2334 = vadd.f32 %v1810, %v2134
      %v2335 = vadd.f32 %v1811, %v2135
      %v2336 = vadd.f32 %v1812, %v2136
      %v2337 = vadd.f32 %v1813, %v2137
      %v2338 = vadd.f32 %v1814, %v2138
      %v2339 = vadd.f32 %v1815, %v2139
      %v2340 = vadd.f32 %v1816, %v2140
      %v2341 = vadd.f32 %v1817, %v2141
      %v2342 = vadd.f32 %v1818, %v2142
      %v2343 = vadd.f32 %v1819, %v2143
      %v2344 = vadd.f32 %v1820, %v2144
      %v2345 = vadd.f32 %v1821, %v2145
      %v2346 = vadd.f32 %v1822, %v2146
      %v2347 = vadd.f32 %v1823, %v2147
      %v2348 = vadd.f32 %v1824, %v2148
      %v2349 = vadd.f32 %v1825, %v2149
      %v2350 = vadd.f32 %v1826, %v2150
      %v2351 = vadd.f32 %v1827, %v2151
      %v2352 = vadd.f32 %v1828, %v2152
      %v2353 = vmax.f32 %v2153, 0.0
      %v2354 = vmax.f32 %v2154, 0.0
      %v2355 = vmax.f32 %v2155, 0.0
      %v2356 = vmax.f32 %v2156, 0.0
      %v2357 = vmax.f32 %v2157, 0.0
      %v2358 = vmax.f32 %v2158, 0.0
      %v2359 = vmax.f32 %v2159, 0.0
      %v2360 = vmax.f32 %v2160, 0.0
      %v2361 = vmax.f32 %v2161, 0.0
      %v2362 = vmax.f32 %v2162, 0.0
      %v2363 = vmax.f32 %v2163, 0.0
      %v2364 = vmax.f32 %v2164, 0.0
      %v2365 = vmax.f32 %v2165, 0.0
      %v2366 = vmax.f32 %v2166, 0.0
      %v2367 = vmax.f32 %v2167, 0.0
      %v2368 = vmax.f32 %v2168, 0.0
      %v2369 = vmax.f32 %v2169, 0.0
      %v2370 = vmax.f32 %v2170, 0.0
      %v2371 = vmax.f32 %v2171, 0.0
      %v2372 = vmax.f32 %v2172, 0.0
      %v2373 = vmax.f32 %v2173, 0.0
      %v2374 = vmax.f32 %v2174, 0.0
      %v2375 = vmax.f32 %v2175, 0.0
      %v2376 = vmax.f32 %v2176, 0.0
      %v2377 = vmax.f32 %v2177, 0.0
      %v2378 = vmax.f32 %v2178, 0.0
      %v2379 = vmax.f32 %v2179, 0.0
      %v2380 = vmax.f32 %v2180, 0.0
      %v2381 = vmax.f32 %v2181, 0.0
      %v2382 = vmax.f32 %v2182, 0.0
      %v2383 = vmax.f32 %v2183, 0.0
      %v2384 = vmax.f32 %v2184, 0.0
      %v2385 = vmax.f32 %v2185, 0.0
      %v2386 = vmax.f32 %v2186, 0.0
      %v2387 = vmax.f32 %v2187, 0.0
      %v2388 = vmax.f32 %v2188, 0.0
      %v2389 = vmax.f32 %v2189, 0.0
      %v2390 = vmax.f32 %v2190, 0.0
      %v2391 = vmax.f32 %v2191, 0.0
      %v2392 = vmax.f32 %v2192, 0.0
      %v2393 = vmax.f32 %v2193, 0.0
      %v2394 = vmax.f32 %v2194, 0.0
      %v2395 = vmax.f32 %v2195, 0.0
      %v2396 = vmax.f32 %v2196, 0.0
      %v2397 = vmax.f32 %v2197, 0.0
      %v2398 = vmax.f32 %v2198, 0.0
      %v2399 = vmax.f32 %v2199, 0.0
      %v2400 = vmax.f32 %v2200, 0.0
      %v2401 = vmax.f32 %v2201, 0.0
      %v2402 = vmax.f32 %v2202, 0.0
      %v2403 = vmax.f32 %v2203, 0.0
      %v2404 = vmax.f32 %v2204, 0.0
      %v2405 = vmax.f32 %v2205, 0.0
      %v2406 = vmax.f32 %v2206, 0.0
      %v2407 = vmax.f32 %v2207, 0.0
      %v2408 = vmax.f32 %v2208, 0.0
      %v2409 = vmax.f32 %v2209, 0.0
      %v2410 = vmax.f32 %v2210, 0.0
      %v2411 = vmax.f32 %v2211, 0.0
      %v2412 = vmax.f32 %v2212, 0.0
      %v2413 = vmax.f32 %v2213, 0.0
      %v2414 = vmax.f32 %v2214, 0.0
      %v2415 = vmax.f32 %v2215, 0.0
      %v2416 = vmax.f32 %v2216, 0.0
      %v2417 = vmax.f32 %v2217, 0.0
      %v2418 = vmax.f32 %v2218, 0.0
      %v2419 = vmax.f32 %v2219, 0.0
      %v2420 = vmax.f32 %v2220, 0.0
      %v2421 = vmax.f32 %v2221, 0.0
      %v2422 = vmax.f32 %v2222, 0.0
      %v2423 = vmax.f32 %v2223, 0.0
      %v2424 = vmax.f32 %v2224, 0.0
      %v2425 = vmax.f32 %v2225, 0.0
      %v2426 = vmax.f32 %v2226, 0.0
      %v2427 = vmax.f32 %v2227, 0.0
      %v2428 = vmax.f32 %v2228, 0.0
      %v2429 = vmax.f32 %v2229, 0.0
      %v2430 = vmax.f32 %v2230, 0.0
      %v2431 = vmax.f32 %v2231, 0.0
      %v2432 = vmax.f32 %v2232, 0.0
      %v2433 = vmax.f32 %v2233, 0.0
      %v2434 = vmax.f32 %v2234, 0.0
      %v2435 = vmax.f32 %v2235, 0.0
      %v2436 = vmax.f32 %v2236, 0.0
      %v2437 = vmax.f32 %v2237, 0.0
      %v2438 = vmax.f32 %v2238, 0.0
      %v2439 = vmax.f32 %v2239, 0.0
      %v2440 = vmax.f32 %v2240, 0.0
      %v2441 = vmax.f32 %v2241, 0.0
      %v2442 = vmax.f32 %v2242, 0.0
      %v2443 = vmax.f32 %v2243, 0.0
      %v2444 = vmax.f32 %v2244, 0.0
      %v2445 = vmax.f32 %v2245, 0.0
      %v2446 = vmax.f32 %v2246, 0.0
      %v2447 = vmax.f32 %v2247, 0.0
      %v2448 = vmax.f32 %v2248, 0.0
      %v2449 = vmax.f32 %v2249, 0.0
      %v2450 = vmax.f32 %v2250, 0.0
      %v2451 = vmax.f32 %v2251, 0.0
      %v2452 = vmax.f32 %v2252, 0.0
      %v2453 = vmax.f32 %v2253, 0.0
      %v2454 = vmax.f32 %v2254, 0.0
      %v2455 = vmax.f32 %v2255, 0.0
      %v2456 = vmax.f32 %v2256, 0.0
      %v2457 = vmax.f32 %v2257, 0.0
      %v2458 = vmax.f32 %v2258, 0.0
      %v2459 = vmax.f32 %v2259, 0.0
      %v2460 = vmax.f32 %v2260, 0.0
      %v2461 = vmax.f32 %v2261, 0.0
      %v2462 = vmax.f32 %v2262, 0.0
      %v2463 = vmax.f32 %v2263, 0.0
      %v2464 = vmax.f32 %v2264, 0.0
      %v2465 = vmax.f32 %v2265, 0.0
      %v2466 = vmax.f32 %v2266, 0.0
      %v2467 = vmax.f32 %v2267, 0.0
      %v2468 = vmax.f32 %v2268, 0.0
      %v2469 = vmax.f32 %v2269, 0.0
      %v2470 = vmax.f32 %v2270, 0.0
      %v2471 = vmax.f32 %v2271, 0.0
      %v2472 = vmax.f32 %v2272, 0.0
      %v2473 = vmax.f32 %v2273, 0.0
      %v2474 = vmax.f32 %v2274, 0.0
      %v2475 = vmax.f32 %v2275, 0.0
      %v2476 = vmax.f32 %v2276, 0.0
      %v2477 = vmax.f32 %v2277, 0.0
      %v2478 = vmax.f32 %v2278, 0.0
      %v2479 = vmax.f32 %v2279, 0.0
      %v2480 = vmax.f32 %v2280, 0.0
      %v2481 = vmax.f32 %v2281, 0.0
      %v2482 = vmax.f32 %v2282, 0.0
      %v2483 = vmax.f32 %v2283, 0.0
      %v2484 = vmax.f32 %v2284, 0.0
      %v2485 = vmax.f32 %v2285, 0.0
      %v2486 = vmax.f32 %v2286, 0.0
      %v2487 = vmax.f32 %v2287, 0.0
      %v2488 = vmax.f32 %v2288, 0.0
      %v2489 = vmax.f32 %v2289, 0.0
      %v2490 = vmax.f32 %v2290, 0.0
      %v2491 = vmax.f32 %v2291, 0.0
      %v2492 = vmax.f32 %v2292, 0.0
      %v2493 = vmax.f32 %v2293, 0.0
      %v2494 = vmax.f32 %v2294, 0.0
      %v2495 = vmax.f32 %v2295, 0.0
      %v2496 = vmax.f32 %v2296, 0.0
      %v2497 = vmax.f32 %v2297, 0.0
      %v2498 = vmax.f32 %v2298, 0.0
      %v2499 = vmax.f32 %v2299, 0.0
      %v2500 = vmax.f32 %v2300, 0.0
      %v2501 = vmax.f32 %v2301, 0.0
      %v2502 = vmax.f32 %v2302, 0.0
      %v2503 = vmax.f32 %v2303, 0.0
      %v2504 = vmax.f32 %v2304, 0.0
      %v2505 = vmax.f32 %v2305, 0.0
      %v2506 = vmax.f32 %v2306, 0.0
      %v2507 = vmax.f32 %v2307, 0.0
      %v2508 = vmax.f32 %v2308, 0.0
      %v2509 = vmax.f32 %v2309, 0.0
      %v2510 = vmax.f32 %v2310, 0.0
      %v2511 = vmax.f32 %v2311, 0.0
      %v2512 = vmax.f32 %v2312, 0.0
      %v2513 = vmax.f32 %v2313, 0.0
      %v2514 = vmax.f32 %v2314, 0.0
      %v2515 = vmax.f32 %v2315, 0.0
      %v2516 = vmax.f32 %v2316, 0.0
      %v2517 = vmax.f32 %v2317, 0.0
      %v2518 = vmax.f32 %v2318, 0.0
      %v2519 = vmax.f32 %v2319, 0.0
      %v2520 = vmax.f32 %v2320, 0.0
      %v2521 = vmax.f32 %v2321, 0.0
      %v2522 = vmax.f32 %v2322, 0.0
      %v2523 = vmax.f32 %v2323, 0.0
      %v2524 = vmax.f32 %v2324, 0.0
      %v2525 = vmax.f32 %v2325, 0.0
      %v2526 = vmax.f32 %v2326, 0.0
      %v2527 = vmax.f32 %v2327, 0.0
      %v2528 = vmax.f32 %v2328, 0.0
      %v2529 = vmax.f32 %v2329, 0.0
      %v2530 = vmax.f32 %v2330, 0.0
      %v2531 = vmax.f32 %v2331, 0.0
      %v2532 = vmax.f32 %v2332, 0.0
      %v2533 = vmax.f32 %v2333, 0.0
      %v2534 = vmax.f32 %v2334, 0.0
      %v2535 = vmax.f32 %v2335, 0.0
      %v2536 = vmax.f32 %v2336, 0.0
      %v2537 = vmax.f32 %v2337, 0.0
      %v2538 = vmax.f32 %v2338, 0.0
      %v2539 = vmax.f32 %v2339, 0.0
      %v2540 = vmax.f32 %v2340, 0.0
      %v2541 = vmax.f32 %v2341, 0.0
      %v2542 = vmax.f32 %v2342, 0.0
      %v2543 = vmax.f32 %v2343, 0.0
      %v2544 = vmax.f32 %v2344, 0.0
      %v2545 = vmax.f32 %v2345, 0.0
      %v2546 = vmax.f32 %v2346, 0.0
      %v2547 = vmax.f32 %v2347, 0.0
      %v2548 = vmax.f32 %v2348, 0.0
      %v2549 = vmax.f32 %v2349, 0.0
      %v2550 = vmax.f32 %v2350, 0.0
      %v2551 = vmax.f32 %v2351, 0.0
      %v2552 = vmax.f32 %v2352, 0.0
      %v2553 = vld [vmem:[%s2] sm:$0xff]
      %v2554 = vld [vmem:[%s2 + $0x8] sm:$0xff]
      %v2555 = vld [vmem:[%s2 + $0x10] sm:$0xff]
      %v2556 = vld [vmem:[%s2 + $0x18] sm:$0xff]
      %v2557 = vld [vmem:[%s2 + $0x20] sm:$0xff]
      %v2558 = vld [vmem:[%s2 + $0x28] sm:$0xff]
      %v2559 = vld [vmem:[%s2 + $0x30] sm:$0xff]
      %v2560 = vld [vmem:[%s2 + $0x38] sm:$0xff]
      %v2561 = vld [vmem:[%s2 + $0x40] sm:$0xff]
      %v2562 = vld [vmem:[%s2 + $0x48] sm:$0xff]
      %v2563 = vld [vmem:[%s2 + $0x50] sm:$0xff]
      %v2564 = vld [vmem:[%s2 + $0x58] sm:$0xff]
      %v2565 = vld [vmem:[%s2 + $0x60] sm:$0xff]
      %v2566 = vld [vmem:[%s2 + $0x68] sm:$0xff]
      %v2567 = vld [vmem:[%s2 + $0x70] sm:$0xff]
      %v2568 = vld [vmem:[%s2 + $0x78] sm:$0xff]
      %v2569 = vld [vmem:[%s2 + $0x80] sm:$0xff]
      %v2570 = vld [vmem:[%s2 + $0x88] sm:$0xff]
      %v2571 = vld [vmem:[%s2 + $0x90] sm:$0xff]
      %v2572 = vld [vmem:[%s2 + $0x98] sm:$0xff]
      %v2573 = vld [vmem:[%s2 + $0xa0] sm:$0xff]
      %v2574 = vld [vmem:[%s2 + $0xa8] sm:$0xff]
      %v2575 = vld [vmem:[%s2 + $0xb0] sm:$0xff]
      %v2576 = vld [vmem:[%s2 + $0xb8] sm:$0xff]
      %v2577 = vld [vmem:[%s2 + $0xc0] sm:$0xff]
      %v2578 = vpack.c.bf16 %v2361, %v2353
      %v2579 = vpack.c.bf16 %v2362, %v2354
      %v2580 = vpack.c.bf16 %v2363, %v2355
      %v2581 = vpack.c.bf16 %v2364, %v2356
      %v2582 = vpack.c.bf16 %v2365, %v2357
      %v2583 = vpack.c.bf16 %v2366, %v2358
      %v2584 = vpack.c.bf16 %v2367, %v2359
      %v2585 = vpack.c.bf16 %v2368, %v2360
      %v2586 = vpack.c.bf16 %v2377, %v2369
      %v2587 = vpack.c.bf16 %v2378, %v2370
      %v2588 = vpack.c.bf16 %v2379, %v2371
      %v2589 = vpack.c.bf16 %v2380, %v2372
      %v2590 = vpack.c.bf16 %v2381, %v2373
      %v2591 = vpack.c.bf16 %v2382, %v2374
      %v2592 = vpack.c.bf16 %v2383, %v2375
      %v2593 = vpack.c.bf16 %v2384, %v2376
      %v2594 = vpack.c.bf16 %v2393, %v2385
      %v2595 = vpack.c.bf16 %v2394, %v2386
      %v2596 = vpack.c.bf16 %v2395, %v2387
      %v2597 = vpack.c.bf16 %v2396, %v2388
      %v2598 = vpack.c.bf16 %v2397, %v2389
      %v2599 = vpack.c.bf16 %v2398, %v2390
      %v2600 = vpack.c.bf16 %v2399, %v2391
      %v2601 = vpack.c.bf16 %v2400, %v2392
      %v2602 = vpack.c.bf16 %v2409, %v2401
      %v2603 = vpack.c.bf16 %v2410, %v2402
      %v2604 = vpack.c.bf16 %v2411, %v2403
      %v2605 = vpack.c.bf16 %v2412, %v2404
      %v2606 = vpack.c.bf16 %v2413, %v2405
      %v2607 = vpack.c.bf16 %v2414, %v2406
      %v2608 = vpack.c.bf16 %v2415, %v2407
      %v2609 = vpack.c.bf16 %v2416, %v2408
      %v2610 = vpack.c.bf16 %v2425, %v2417
      %v2611 = vpack.c.bf16 %v2426, %v2418
      %v2612 = vpack.c.bf16 %v2427, %v2419
      %v2613 = vpack.c.bf16 %v2428, %v2420
      %v2614 = vpack.c.bf16 %v2429, %v2421
      %v2615 = vpack.c.bf16 %v2430, %v2422
      %v2616 = vpack.c.bf16 %v2431, %v2423
      %v2617 = vpack.c.bf16 %v2432, %v2424
      %v2618 = vpack.c.bf16 %v2441, %v2433
      %v2619 = vpack.c.bf16 %v2442, %v2434
      %v2620 = vpack.c.bf16 %v2443, %v2435
      %v2621 = vpack.c.bf16 %v2444, %v2436
      %v2622 = vpack.c.bf16 %v2445, %v2437
      %v2623 = vpack.c.bf16 %v2446, %v2438
      %v2624 = vpack.c.bf16 %v2447, %v2439
      %v2625 = vpack.c.bf16 %v2448, %v2440
      %v2626 = vpack.c.bf16 %v2457, %v2449
      %v2627 = vpack.c.bf16 %v2458, %v2450
      %v2628 = vpack.c.bf16 %v2459, %v2451
      %v2629 = vpack.c.bf16 %v2460, %v2452
      %v2630 = vpack.c.bf16 %v2461, %v2453
      %v2631 = vpack.c.bf16 %v2462, %v2454
      %v2632 = vpack.c.bf16 %v2463, %v2455
      %v2633 = vpack.c.bf16 %v2464, %v2456
      %v2634 = vpack.c.bf16 %v2473, %v2465
      %v2635 = vpack.c.bf16 %v2474, %v2466
      %v2636 = vpack.c.bf16 %v2475, %v2467
      %v2637 = vpack.c.bf16 %v2476, %v2468
      %v2638 = vpack.c.bf16 %v2477, %v2469
      %v2639 = vpack.c.bf16 %v2478, %v2470
      %v2640 = vpack.c.bf16 %v2479, %v2471
      %v2641 = vpack.c.bf16 %v2480, %v2472
      %v2642 = vpack.c.bf16 %v2489, %v2481
      %v2643 = vpack.c.bf16 %v2490, %v2482
      %v2644 = vpack.c.bf16 %v2491, %v2483
      %v2645 = vpack.c.bf16 %v2492, %v2484
      %v2646 = vpack.c.bf16 %v2493, %v2485
      %v2647 = vpack.c.bf16 %v2494, %v2486
      %v2648 = vpack.c.bf16 %v2495, %v2487
      %v2649 = vpack.c.bf16 %v2496, %v2488
      %v2650 = vpack.c.bf16 %v2505, %v2497
      %v2651 = vpack.c.bf16 %v2506, %v2498
      %v2652 = vpack.c.bf16 %v2507, %v2499
      %v2653 = vpack.c.bf16 %v2508, %v2500
      %v2654 = vpack.c.bf16 %v2509, %v2501
      %v2655 = vpack.c.bf16 %v2510, %v2502
      %v2656 = vpack.c.bf16 %v2511, %v2503
      %v2657 = vpack.c.bf16 %v2512, %v2504
      %v2658 = vpack.c.bf16 %v2521, %v2513
      %v2659 = vpack.c.bf16 %v2522, %v2514
      %v2660 = vpack.c.bf16 %v2523, %v2515
      %v2661 = vpack.c.bf16 %v2524, %v2516
      %v2662 = vpack.c.bf16 %v2525, %v2517
      %v2663 = vpack.c.bf16 %v2526, %v2518
      %v2664 = vpack.c.bf16 %v2527, %v2519
      %v2665 = vpack.c.bf16 %v2528, %v2520
      %v2666 = vpack.c.bf16 %v2537, %v2529
      %v2667 = vpack.c.bf16 %v2538, %v2530
      %v2668 = vpack.c.bf16 %v2539, %v2531
      %v2669 = vpack.c.bf16 %v2540, %v2532
      %v2670 = vpack.c.bf16 %v2541, %v2533
      %v2671 = vpack.c.bf16 %v2542, %v2534
      %v2672 = vpack.c.bf16 %v2543, %v2535
      %v2673 = vpack.c.bf16 %v2544, %v2536
      %v2674 = vpack.c.bf16 %v2545, %v2545
      %v2675 = vpack.c.bf16 %v2546, %v2546
      %v2676 = vpack.c.bf16 %v2547, %v2547
      %v2677 = vpack.c.bf16 %v2548, %v2548
      %v2678 = vpack.c.bf16 %v2549, %v2549
      %v2679 = vpack.c.bf16 %v2550, %v2550
      %v2680 = vpack.c.bf16 %v2551, %v2551
      %v2681 = vpack.c.bf16 %v2552, %v2552
      %v2682 = vld [vmem:[%s3] sm:$0xff]
      %v2683 = vld [vmem:[%s3 + $0x8] sm:$0xff]
      %v2684 = vld [vmem:[%s3 + $0x10] sm:$0xff]
      %v2685 = vld [vmem:[%s3 + $0x18] sm:$0xff]
      %v2686 = vld [vmem:[%s3 + $0x20] sm:$0xff]
      %v2687 = vld [vmem:[%s3 + $0x28] sm:$0xff]
      %v2688 = vld [vmem:[%s3 + $0x30] sm:$0xff]
      %v2689 = vld [vmem:[%s3 + $0x38] sm:$0xff]
      %v2690 = vld [vmem:[%s3 + $0x40] sm:$0xff]
      %v2691 = vld [vmem:[%s3 + $0x48] sm:$0xff]
      %v2692 = vld [vmem:[%s3 + $0x50] sm:$0xff]
      %v2693 = vld [vmem:[%s3 + $0x58] sm:$0xff]
      %v2694 = vld [vmem:[%s3 + $0x60] sm:$0xff]
      %v2695 = vld [vmem:[%s3 + $0x68] sm:$0xff]
      %v2696 = vld [vmem:[%s3 + $0x70] sm:$0xff]
      %v2697 = vld [vmem:[%s3 + $0x78] sm:$0xff]
      %v2698 = vld [vmem:[%s3 + $0x80] sm:$0xff]
      %v2699 = vld [vmem:[%s3 + $0x88] sm:$0xff]
      %v2700 = vld [vmem:[%s3 + $0x90] sm:$0xff]
      %v2701 = vld [vmem:[%s3 + $0x98] sm:$0xff]
      %v2702 = vld [vmem:[%s3 + $0xa0] sm:$0xff]
      %v2703 = vld [vmem:[%s3 + $0xa8] sm:$0xff]
      %v2704 = vld [vmem:[%s3 + $0xb0] sm:$0xff]
      %v2705 = vld [vmem:[%s3 + $0xb8] sm:$0xff]
      %v2706 = vld [vmem:[%s3 + $0xc0] sm:$0xff]
      %2708 = vset.pattern.permute.xlu0 0
      %2709 = vperm.xlu0 %2708, %v2682
      %v2710 = vpop.permute.xlu0 %2709
      %2713 = vset.pattern.permute.xlu0 0
      %2714 = vperm.xlu0 %2713, %v2683
      %v2715 = vpop.permute.xlu0 %2714
      %2718 = vset.pattern.permute.xlu0 0
      %2719 = vperm.xlu0 %2718, %v2684
      %v2720 = vpop.permute.xlu0 %2719
      %2723 = vset.pattern.permute.xlu0 0
      %2724 = vperm.xlu0 %2723, %v2685
      %v2725 = vpop.permute.xlu0 %2724
      %2728 = vset.pattern.permute.xlu0 0
      %2729 = vperm.xlu0 %2728, %v2686
      %v2730 = vpop.permute.xlu0 %2729
      %2733 = vset.pattern.permute.xlu0 0
      %2734 = vperm.xlu0 %2733, %v2687
      %v2735 = vpop.permute.xlu0 %2734
      %2738 = vset.pattern.permute.xlu0 0
      %2739 = vperm.xlu0 %2738, %v2688
      %v2740 = vpop.permute.xlu0 %2739
      %2743 = vset.pattern.permute.xlu0 0
      %2744 = vperm.xlu0 %2743, %v2689
      %v2745 = vpop.permute.xlu0 %2744
      %2748 = vset.pattern.permute.xlu0 0
      %2749 = vperm.xlu0 %2748, %v2690
      %v2750 = vpop.permute.xlu0 %2749
      %2753 = vset.pattern.permute.xlu0 0
      %2754 = vperm.xlu0 %2753, %v2691
      %v2755 = vpop.permute.xlu0 %2754
      %2758 = vset.pattern.permute.xlu0 0
      %2759 = vperm.xlu0 %2758, %v2692
      %v2760 = vpop.permute.xlu0 %2759
      %2763 = vset.pattern.permute.xlu0 0
      %2764 = vperm.xlu0 %2763, %v2693
      %v2765 = vpop.permute.xlu0 %2764
      %2768 = vset.pattern.permute.xlu0 0
      %2769 = vperm.xlu0 %2768, %v2694
      %v2770 = vpop.permute.xlu0 %2769
      %2773 = vset.pattern.permute.xlu0 0
      %2774 = vperm.xlu0 %2773, %v2695
      %v2775 = vpop.permute.xlu0 %2774
      %2778 = vset.pattern.permute.xlu0 0
      %2779 = vperm.xlu0 %2778, %v2696
      %v2780 = vpop.permute.xlu0 %2779
      %2783 = vset.pattern.permute.xlu0 0
      %2784 = vperm.xlu0 %2783, %v2697
      %v2785 = vpop.permute.xlu0 %2784
      %2788 = vset.pattern.permute.xlu0 0
      %2789 = vperm.xlu0 %2788, %v2698
      %v2790 = vpop.permute.xlu0 %2789
      %2793 = vset.pattern.permute.xlu0 0
      %2794 = vperm.xlu0 %2793, %v2699
      %v2795 = vpop.permute.xlu0 %2794
      %2798 = vset.pattern.permute.xlu0 0
      %2799 = vperm.xlu0 %2798, %v2700
      %v2800 = vpop.permute.xlu0 %2799
      %2803 = vset.pattern.permute.xlu0 0
      %2804 = vperm.xlu0 %2803, %v2701
      %v2805 = vpop.permute.xlu0 %2804
      %2808 = vset.pattern.permute.xlu0 0
      %2809 = vperm.xlu0 %2808, %v2702
      %v2810 = vpop.permute.xlu0 %2809
      %2813 = vset.pattern.permute.xlu0 0
      %2814 = vperm.xlu0 %2813, %v2703
      %v2815 = vpop.permute.xlu0 %2814
      %2818 = vset.pattern.permute.xlu0 0
      %2819 = vperm.xlu0 %2818, %v2704
      %v2820 = vpop.permute.xlu0 %2819
      %2823 = vset.pattern.permute.xlu0 0
      %2824 = vperm.xlu0 %2823, %v2705
      %v2825 = vpop.permute.xlu0 %2824
      %2828 = vset.pattern.permute.xlu0 0
      %2829 = vperm.xlu0 %2828, %v2706
      %v2830 = vpop.permute.xlu0 %2829
      %v2857 = vunpack.c.l.b16 %v2553
      %v2858 = vunpack.c.h.b16 %v2553
      %v2859 = vunpack.c.l.b16 %v2554
      %v2860 = vunpack.c.h.b16 %v2554
      %v2861 = vunpack.c.l.b16 %v2555
      %v2862 = vunpack.c.h.b16 %v2555
      %v2863 = vunpack.c.l.b16 %v2556
      %v2864 = vunpack.c.h.b16 %v2556
      %v2865 = vunpack.c.l.b16 %v2557
      %v2866 = vunpack.c.h.b16 %v2557
      %v2867 = vunpack.c.l.b16 %v2558
      %v2868 = vunpack.c.h.b16 %v2558
      %v2869 = vunpack.c.l.b16 %v2559
      %v2870 = vunpack.c.h.b16 %v2559
      %v2871 = vunpack.c.l.b16 %v2560
      %v2872 = vunpack.c.h.b16 %v2560
      %v2873 = vunpack.c.l.b16 %v2561
      %v2874 = vunpack.c.h.b16 %v2561
      %v2875 = vunpack.c.l.b16 %v2562
      %v2876 = vunpack.c.h.b16 %v2562
      %v2877 = vunpack.c.l.b16 %v2563
      %v2878 = vunpack.c.h.b16 %v2563
      %v2879 = vunpack.c.l.b16 %v2564
      %v2880 = vunpack.c.h.b16 %v2564
      %v2881 = vunpack.c.l.b16 %v2565
      %v2882 = vunpack.c.h.b16 %v2565
      %v2883 = vunpack.c.l.b16 %v2566
      %v2884 = vunpack.c.h.b16 %v2566
      %v2885 = vunpack.c.l.b16 %v2567
      %v2886 = vunpack.c.h.b16 %v2567
      %v2887 = vunpack.c.l.b16 %v2568
      %v2888 = vunpack.c.h.b16 %v2568
      %v2889 = vunpack.c.l.b16 %v2569
      %v2890 = vunpack.c.h.b16 %v2569
      %v2891 = vunpack.c.l.b16 %v2570
      %v2892 = vunpack.c.h.b16 %v2570
      %v2893 = vunpack.c.l.b16 %v2571
      %v2894 = vunpack.c.h.b16 %v2571
      %v2895 = vunpack.c.l.b16 %v2572
      %v2896 = vunpack.c.h.b16 %v2572
      %v2897 = vunpack.c.l.b16 %v2573
      %v2898 = vunpack.c.h.b16 %v2573
      %v2899 = vunpack.c.l.b16 %v2574
      %v2900 = vunpack.c.h.b16 %v2574
      %v2901 = vunpack.c.l.b16 %v2575
      %v2902 = vunpack.c.h.b16 %v2575
      %v2903 = vunpack.c.l.b16 %v2576
      %v2904 = vunpack.c.h.b16 %v2576
      %v2905 = vunpack.c.l.b16 %v2577
      %v2906 = vunpack.c.h.b16 %v2577
      %v2907 = vpack.c.b16 %v2859, %v2857
      %v2908 = vpack.c.b16 %v2860, %v2858
      %v2909 = vpack.c.b16 %v2863, %v2861
      %v2910 = vpack.c.b16 %v2864, %v2862
      %v2911 = vpack.c.b16 %v2867, %v2865
      %v2912 = vpack.c.b16 %v2868, %v2866
      %v2913 = vpack.c.b16 %v2871, %v2869
      %v2914 = vpack.c.b16 %v2872, %v2870
      %v2915 = vpack.c.b16 %v2875, %v2873
      %v2916 = vpack.c.b16 %v2876, %v2874
      %v2917 = vpack.c.b16 %v2879, %v2877
      %v2918 = vpack.c.b16 %v2880, %v2878
      %v2919 = vpack.c.b16 %v2883, %v2881
      %v2920 = vpack.c.b16 %v2884, %v2882
      %v2921 = vpack.c.b16 %v2887, %v2885
      %v2922 = vpack.c.b16 %v2888, %v2886
      %v2923 = vpack.c.b16 %v2891, %v2889
      %v2924 = vpack.c.b16 %v2892, %v2890
      %v2925 = vpack.c.b16 %v2895, %v2893
      %v2926 = vpack.c.b16 %v2896, %v2894
      %v2927 = vpack.c.b16 %v2899, %v2897
      %v2928 = vpack.c.b16 %v2900, %v2898
      %v2929 = vpack.c.b16 %v2903, %v2901
      %v2930 = vpack.c.b16 %v2904, %v2902
      %v2931 = vpack.c.b16 %v2905, %v2905
      %v2932 = vpack.c.b16 %v2906, %v2906
      %vm2946 = vcmask 588800
      %v2948 = vsel %vm2946, %v2908, 0
      %v2951 = vsel %vm2946, %v2910, 0
      %v2954 = vsel %vm2946, %v2912, 0
      %v2957 = vsel %vm2946, %v2914, 0
      %v2960 = vsel %vm2946, %v2916, 0
      %v2963 = vsel %vm2946, %v2918, 0
      %v2966 = vsel %vm2946, %v2920, 0
      %v2969 = vsel %vm2946, %v2922, 0
      %v2972 = vsel %vm2946, %v2924, 0
      %v2975 = vsel %vm2946, %v2926, 0
      %v2978 = vsel %vm2946, %v2928, 0
      %v2981 = vsel %vm2946, %v2930, 0
      %v2984 = vsel %vm2946, %v2932, 0
      %vm2986 = vcmask 1043456
      %v2988 = vsel %vm2986, %v2674, 0
      %v2991 = vsel %vm2986, %v2675, 0
      %v2994 = vsel %vm2986, %v2676, 0
      %v2997 = vsel %vm2986, %v2677, 0
      %v3000 = vsel %vm2986, %v2678, 0
      %v3003 = vsel %vm2986, %v2679, 0
      %v3006 = vsel %vm2986, %v2680, 0
      %v3009 = vsel %vm2986, %v2681, 0
      %3011 = vmatpush.bf16.msra.mxu0 %v2634
      %3012 = vmatpush.bf16.msra.mxu0 %v2626
      %3013 = vmatpush.bf16.msra.mxu0 %v2618
      %3014 = vmatpush.bf16.msra.mxu0 %v2610
      %3015 = vmatpush.bf16.msra.mxu0 %v2602
      %3016 = vmatpush.bf16.msra.mxu0 %v2594
      %3017 = vmatpush.bf16.msra.mxu0 %v2586
      %3018 = vmatpush.bf16.msra.mxu0 %v2578
      %3019 = vmatmul.bf16.gmra.mxu0 %v2907
      %v3020 = vpop.f32.mrf.mxu0
      %v3021 = vadd.f32 %v2710, %v3020
      %v3022 = vpop.f32.mrf.mxu0
      %v3023 = vadd.f32 %v2715, %v3022
      %3024 = vmatmul.bf16.gmra.mxu0 %v2909
      %v3025 = vpop.f32.mrf.mxu0
      %v3026 = vadd.f32 %v2720, %v3025
      %v3027 = vpop.f32.mrf.mxu0
      %v3028 = vadd.f32 %v2725, %v3027
      %3029 = vmatmul.bf16.gmra.mxu0 %v2911
      %v3030 = vpop.f32.mrf.mxu0
      %v3031 = vadd.f32 %v2730, %v3030
      %v3032 = vpop.f32.mrf.mxu0
      %v3033 = vadd.f32 %v2735, %v3032
      %3034 = vmatmul.bf16.gmra.mxu0 %v2913
      %v3035 = vpop.f32.mrf.mxu0
      %v3036 = vadd.f32 %v2740, %v3035
      %v3037 = vpop.f32.mrf.mxu0
      %v3038 = vadd.f32 %v2745, %v3037
      %3039 = vmatmul.bf16.gmra.mxu0 %v2915
      %v3040 = vpop.f32.mrf.mxu0
      %v3041 = vadd.f32 %v2750, %v3040
      %v3042 = vpop.f32.mrf.mxu0
      %v3043 = vadd.f32 %v2755, %v3042
      %3044 = vmatmul.bf16.gmra.mxu0 %v2917
      %v3045 = vpop.f32.mrf.mxu0
      %v3046 = vadd.f32 %v2760, %v3045
      %v3047 = vpop.f32.mrf.mxu0
      %v3048 = vadd.f32 %v2765, %v3047
      %3049 = vmatmul.bf16.gmra.mxu0 %v2919
      %v3050 = vpop.f32.mrf.mxu0
      %v3051 = vadd.f32 %v2770, %v3050
      %v3052 = vpop.f32.mrf.mxu0
      %v3053 = vadd.f32 %v2775, %v3052
      %3054 = vmatmul.bf16.gmra.mxu0 %v2921
      %v3055 = vpop.f32.mrf.mxu0
      %v3056 = vadd.f32 %v2780, %v3055
      %v3057 = vpop.f32.mrf.mxu0
      %v3058 = vadd.f32 %v2785, %v3057
      %3059 = vmatmul.bf16.gmra.mxu0 %v2923
      %v3060 = vpop.f32.mrf.mxu0
      %v3061 = vadd.f32 %v2790, %v3060
      %v3062 = vpop.f32.mrf.mxu0
      %v3063 = vadd.f32 %v2795, %v3062
      %3064 = vmatmul.bf16.gmra.mxu0 %v2925
      %v3065 = vpop.f32.mrf.mxu0
      %v3066 = vadd.f32 %v2800, %v3065
      %v3067 = vpop.f32.mrf.mxu0
      %v3068 = vadd.f32 %v2805, %v3067
      %3069 = vmatmul.bf16.gmra.mxu0 %v2927
      %v3070 = vpop.f32.mrf.mxu0
      %v3071 = vadd.f32 %v2810, %v3070
      %v3072 = vpop.f32.mrf.mxu0
      %v3073 = vadd.f32 %v2815, %v3072
      %3074 = vmatmul.bf16.gmra.mxu0 %v2929
      %v3075 = vpop.f32.mrf.mxu0
      %v3076 = vadd.f32 %v2820, %v3075
      %v3077 = vpop.f32.mrf.mxu0
      %v3078 = vadd.f32 %v2825, %v3077
      %3079 = vmatmul.bf16.gmra.mxu0 %v2931
      %v3080 = vpop.f32.mrf.mxu0
      %v3081 = vadd.f32 %v2830, %v3080
      %v3082 = vpop.f32.mrf.mxu0
      %3083 = vdwg.mxu0
      %3084 = vmatpush.bf16.msra.mxu0 0
      %3085 = vmatpush.bf16.msra.mxu0 0
      %3086 = vmatpush.bf16.msra.mxu0 0
      %3087 = vmatpush.bf16.msra.mxu0 %v2988
      %3088 = vmatpush.bf16.msra.mxu0 %v2666
      %3089 = vmatpush.bf16.msra.mxu0 %v2658
      %3090 = vmatpush.bf16.msra.mxu0 %v2650
      %3091 = vmatpush.bf16.msra.mxu0 %v2642
      %3092 = vmatmul.bf16.gmra.mxu0 %v2948
      %v3093 = vpop.f32.mrf.mxu0
      %v3094 = vadd.f32 %v3021, %v3093
      %v3095 = vpop.f32.mrf.mxu0
      %v3096 = vadd.f32 %v3023, %v3095
      %3097 = vmatmul.bf16.gmra.mxu0 %v2951
      %v3098 = vpop.f32.mrf.mxu0
      %v3099 = vadd.f32 %v3026, %v3098
      %v3100 = vpop.f32.mrf.mxu0
      %v3101 = vadd.f32 %v3028, %v3100
      %3102 = vmatmul.bf16.gmra.mxu0 %v2954
      %v3103 = vpop.f32.mrf.mxu0
      %v3104 = vadd.f32 %v3031, %v3103
      %v3105 = vpop.f32.mrf.mxu0
      %v3106 = vadd.f32 %v3033, %v3105
      %3107 = vmatmul.bf16.gmra.mxu0 %v2957
      %v3108 = vpop.f32.mrf.mxu0
      %v3109 = vadd.f32 %v3036, %v3108
      %v3110 = vpop.f32.mrf.mxu0
      %v3111 = vadd.f32 %v3038, %v3110
      %3112 = vmatmul.bf16.gmra.mxu0 %v2960
      %v3113 = vpop.f32.mrf.mxu0
      %v3114 = vadd.f32 %v3041, %v3113
      %v3115 = vpop.f32.mrf.mxu0
      %v3116 = vadd.f32 %v3043, %v3115
      %3117 = vmatmul.bf16.gmra.mxu0 %v2963
      %v3118 = vpop.f32.mrf.mxu0
      %v3119 = vadd.f32 %v3046, %v3118
      %v3120 = vpop.f32.mrf.mxu0
      %v3121 = vadd.f32 %v3048, %v3120
      %3122 = vmatmul.bf16.gmra.mxu0 %v2966
      %v3123 = vpop.f32.mrf.mxu0
      %v3124 = vadd.f32 %v3051, %v3123
      %v3125 = vpop.f32.mrf.mxu0
      %v3126 = vadd.f32 %v3053, %v3125
      %3127 = vmatmul.bf16.gmra.mxu0 %v2969
      %v3128 = vpop.f32.mrf.mxu0
      %v3129 = vadd.f32 %v3056, %v3128
      %v3130 = vpop.f32.mrf.mxu0
      %v3131 = vadd.f32 %v3058, %v3130
      %3132 = vmatmul.bf16.gmra.mxu0 %v2972
      %v3133 = vpop.f32.mrf.mxu0
      %v3134 = vadd.f32 %v3061, %v3133
      %v3135 = vpop.f32.mrf.mxu0
      %v3136 = vadd.f32 %v3063, %v3135
      %3137 = vmatmul.bf16.gmra.mxu0 %v2975
      %v3138 = vpop.f32.mrf.mxu0
      %v3139 = vadd.f32 %v3066, %v3138
      %v3140 = vpop.f32.mrf.mxu0
      %v3141 = vadd.f32 %v3068, %v3140
      %3142 = vmatmul.bf16.gmra.mxu0 %v2978
      %v3143 = vpop.f32.mrf.mxu0
      %v3144 = vadd.f32 %v3071, %v3143
      %v3145 = vpop.f32.mrf.mxu0
      %v3146 = vadd.f32 %v3073, %v3145
      %3147 = vmatmul.bf16.gmra.mxu0 %v2981
      %v3148 = vpop.f32.mrf.mxu0
      %v3149 = vadd.f32 %v3076, %v3148
      %v3150 = vpop.f32.mrf.mxu0
      %v3151 = vadd.f32 %v3078, %v3150
      %3152 = vmatmul.bf16.gmra.mxu0 %v2984
      %v3153 = vpop.f32.mrf.mxu0
      %v3154 = vadd.f32 %v3081, %v3153
      %v3155 = vpop.f32.mrf.mxu0
      %3156 = vdwg.mxu0
      %3157 = vmatpush.bf16.msra.mxu0 %v2635
      %3158 = vmatpush.bf16.msra.mxu0 %v2627
      %3159 = vmatpush.bf16.msra.mxu0 %v2619
      %3160 = vmatpush.bf16.msra.mxu0 %v2611
      %3161 = vmatpush.bf16.msra.mxu0 %v2603
      %3162 = vmatpush.bf16.msra.mxu0 %v2595
      %3163 = vmatpush.bf16.msra.mxu0 %v2587
      %3164 = vmatpush.bf16.msra.mxu0 %v2579
      %3165 = vmatmul.bf16.gmra.mxu0 %v2907
      %v3166 = vpop.f32.mrf.mxu0
      %v3167 = vadd.f32 %v2710, %v3166
      %v3168 = vpop.f32.mrf.mxu0
      %v3169 = vadd.f32 %v2715, %v3168
      %3170 = vmatmul.bf16.gmra.mxu0 %v2909
      %v3171 = vpop.f32.mrf.mxu0
      %v3172 = vadd.f32 %v2720, %v3171
      %v3173 = vpop.f32.mrf.mxu0
      %v3174 = vadd.f32 %v2725, %v3173
      %3175 = vmatmul.bf16.gmra.mxu0 %v2911
      %v3176 = vpop.f32.mrf.mxu0
      %v3177 = vadd.f32 %v2730, %v3176
      %v3178 = vpop.f32.mrf.mxu0
      %v3179 = vadd.f32 %v2735, %v3178
      %3180 = vmatmul.bf16.gmra.mxu0 %v2913
      %v3181 = vpop.f32.mrf.mxu0
      %v3182 = vadd.f32 %v2740, %v3181
      %v3183 = vpop.f32.mrf.mxu0
      %v3184 = vadd.f32 %v2745, %v3183
      %3185 = vmatmul.bf16.gmra.mxu0 %v2915
      %v3186 = vpop.f32.mrf.mxu0
      %v3187 = vadd.f32 %v2750, %v3186
      %v3188 = vpop.f32.mrf.mxu0
      %v3189 = vadd.f32 %v2755, %v3188
      %3190 = vmatmul.bf16.gmra.mxu0 %v2917
      %v3191 = vpop.f32.mrf.mxu0
      %v3192 = vadd.f32 %v2760, %v3191
      %v3193 = vpop.f32.mrf.mxu0
      %v3194 = vadd.f32 %v2765, %v3193
      %3195 = vmatmul.bf16.gmra.mxu0 %v2919
      %v3196 = vpop.f32.mrf.mxu0
      %v3197 = vadd.f32 %v2770, %v3196
      %v3198 = vpop.f32.mrf.mxu0
      %v3199 = vadd.f32 %v2775, %v3198
      %3200 = vmatmul.bf16.gmra.mxu0 %v2921
      %v3201 = vpop.f32.mrf.mxu0
      %v3202 = vadd.f32 %v2780, %v3201
      %v3203 = vpop.f32.mrf.mxu0
      %v3204 = vadd.f32 %v2785, %v3203
      %3205 = vmatmul.bf16.gmra.mxu0 %v2923
      %v3206 = vpop.f32.mrf.mxu0
      %v3207 = vadd.f32 %v2790, %v3206
      %v3208 = vpop.f32.mrf.mxu0
      %v3209 = vadd.f32 %v2795, %v3208
      %3210 = vmatmul.bf16.gmra.mxu0 %v2925
      %v3211 = vpop.f32.mrf.mxu0
      %v3212 = vadd.f32 %v2800, %v3211
      %v3213 = vpop.f32.mrf.mxu0
      %v3214 = vadd.f32 %v2805, %v3213
      %3215 = vmatmul.bf16.gmra.mxu0 %v2927
      %v3216 = vpop.f32.mrf.mxu0
      %v3217 = vadd.f32 %v2810, %v3216
      %v3218 = vpop.f32.mrf.mxu0
      %v3219 = vadd.f32 %v2815, %v3218
      %3220 = vmatmul.bf16.gmra.mxu0 %v2929
      %v3221 = vpop.f32.mrf.mxu0
      %v3222 = vadd.f32 %v2820, %v3221
      %v3223 = vpop.f32.mrf.mxu0
      %v3224 = vadd.f32 %v2825, %v3223
      %3225 = vmatmul.bf16.gmra.mxu0 %v2931
      %v3226 = vpop.f32.mrf.mxu0
      %v3227 = vadd.f32 %v2830, %v3226
      %v3228 = vpop.f32.mrf.mxu0
      %3229 = vdwg.mxu0
      %3230 = vmatpush.bf16.msra.mxu0 0
      %3231 = vmatpush.bf16.msra.mxu0 0
      %3232 = vmatpush.bf16.msra.mxu0 0
      %3233 = vmatpush.bf16.msra.mxu0 %v2991
      %3234 = vmatpush.bf16.msra.mxu0 %v2667
      %3235 = vmatpush.bf16.msra.mxu0 %v2659
      %3236 = vmatpush.bf16.msra.mxu0 %v2651
      %3237 = vmatpush.bf16.msra.mxu0 %v2643
      %3238 = vmatmul.bf16.gmra.mxu0 %v2948
      %v3239 = vpop.f32.mrf.mxu0
      %v3240 = vadd.f32 %v3167, %v3239
      %v3241 = vpop.f32.mrf.mxu0
      %v3242 = vadd.f32 %v3169, %v3241
      %3243 = vmatmul.bf16.gmra.mxu0 %v2951
      %v3244 = vpop.f32.mrf.mxu0
      %v3245 = vadd.f32 %v3172, %v3244
      %v3246 = vpop.f32.mrf.mxu0
      %v3247 = vadd.f32 %v3174, %v3246
      %3248 = vmatmul.bf16.gmra.mxu0 %v2954
      %v3249 = vpop.f32.mrf.mxu0
      %v3250 = vadd.f32 %v3177, %v3249
      %v3251 = vpop.f32.mrf.mxu0
      %v3252 = vadd.f32 %v3179, %v3251
      %3253 = vmatmul.bf16.gmra.mxu0 %v2957
      %v3254 = vpop.f32.mrf.mxu0
      %v3255 = vadd.f32 %v3182, %v3254
      %v3256 = vpop.f32.mrf.mxu0
      %v3257 = vadd.f32 %v3184, %v3256
      %3258 = vmatmul.bf16.gmra.mxu0 %v2960
      %v3259 = vpop.f32.mrf.mxu0
      %v3260 = vadd.f32 %v3187, %v3259
      %v3261 = vpop.f32.mrf.mxu0
      %v3262 = vadd.f32 %v3189, %v3261
      %3263 = vmatmul.bf16.gmra.mxu0 %v2963
      %v3264 = vpop.f32.mrf.mxu0
      %v3265 = vadd.f32 %v3192, %v3264
      %v3266 = vpop.f32.mrf.mxu0
      %v3267 = vadd.f32 %v3194, %v3266
      %3268 = vmatmul.bf16.gmra.mxu0 %v2966
      %v3269 = vpop.f32.mrf.mxu0
      %v3270 = vadd.f32 %v3197, %v3269
      %v3271 = vpop.f32.mrf.mxu0
      %v3272 = vadd.f32 %v3199, %v3271
      %3273 = vmatmul.bf16.gmra.mxu0 %v2969
      %v3274 = vpop.f32.mrf.mxu0
      %v3275 = vadd.f32 %v3202, %v3274
      %v3276 = vpop.f32.mrf.mxu0
      %v3277 = vadd.f32 %v3204, %v3276
      %3278 = vmatmul.bf16.gmra.mxu0 %v2972
      %v3279 = vpop.f32.mrf.mxu0
      %v3280 = vadd.f32 %v3207, %v3279
      %v3281 = vpop.f32.mrf.mxu0
      %v3282 = vadd.f32 %v3209, %v3281
      %3283 = vmatmul.bf16.gmra.mxu0 %v2975
      %v3284 = vpop.f32.mrf.mxu0
      %v3285 = vadd.f32 %v3212, %v3284
      %v3286 = vpop.f32.mrf.mxu0
      %v3287 = vadd.f32 %v3214, %v3286
      %3288 = vmatmul.bf16.gmra.mxu0 %v2978
      %v3289 = vpop.f32.mrf.mxu0
      %v3290 = vadd.f32 %v3217, %v3289
      %v3291 = vpop.f32.mrf.mxu0
      %v3292 = vadd.f32 %v3219, %v3291
      %3293 = vmatmul.bf16.gmra.mxu0 %v2981
      %v3294 = vpop.f32.mrf.mxu0
      %v3295 = vadd.f32 %v3222, %v3294
      %v3296 = vpop.f32.mrf.mxu0
      %v3297 = vadd.f32 %v3224, %v3296
      %3298 = vmatmul.bf16.gmra.mxu0 %v2984
      %v3299 = vpop.f32.mrf.mxu0
      %v3300 = vadd.f32 %v3227, %v3299
      %v3301 = vpop.f32.mrf.mxu0
      %3302 = vdwg.mxu0
      %3303 = vmatpush.bf16.msra.mxu0 %v2636
      %3304 = vmatpush.bf16.msra.mxu0 %v2628
      %3305 = vmatpush.bf16.msra.mxu0 %v2620
      %3306 = vmatpush.bf16.msra.mxu0 %v2612
      %3307 = vmatpush.bf16.msra.mxu0 %v2604
      %3308 = vmatpush.bf16.msra.mxu0 %v2596
      %3309 = vmatpush.bf16.msra.mxu0 %v2588
      %3310 = vmatpush.bf16.msra.mxu0 %v2580
      %3311 = vmatmul.bf16.gmra.mxu0 %v2907
      %v3312 = vpop.f32.mrf.mxu0
      %v3313 = vadd.f32 %v2710, %v3312
      %v3314 = vpop.f32.mrf.mxu0
      %v3315 = vadd.f32 %v2715, %v3314
      %3316 = vmatmul.bf16.gmra.mxu0 %v2909
      %v3317 = vpop.f32.mrf.mxu0
      %v3318 = vadd.f32 %v2720, %v3317
      %v3319 = vpop.f32.mrf.mxu0
      %v3320 = vadd.f32 %v2725, %v3319
      %3321 = vmatmul.bf16.gmra.mxu0 %v2911
      %v3322 = vpop.f32.mrf.mxu0
      %v3323 = vadd.f32 %v2730, %v3322
      %v3324 = vpop.f32.mrf.mxu0
      %v3325 = vadd.f32 %v2735, %v3324
      %3326 = vmatmul.bf16.gmra.mxu0 %v2913
      %v3327 = vpop.f32.mrf.mxu0
      %v3328 = vadd.f32 %v2740, %v3327
      %v3329 = vpop.f32.mrf.mxu0
      %v3330 = vadd.f32 %v2745, %v3329
      %3331 = vmatmul.bf16.gmra.mxu0 %v2915
      %v3332 = vpop.f32.mrf.mxu0
      %v3333 = vadd.f32 %v2750, %v3332
      %v3334 = vpop.f32.mrf.mxu0
      %v3335 = vadd.f32 %v2755, %v3334
      %3336 = vmatmul.bf16.gmra.mxu0 %v2917
      %v3337 = vpop.f32.mrf.mxu0
      %v3338 = vadd.f32 %v2760, %v3337
      %v3339 = vpop.f32.mrf.mxu0
      %v3340 = vadd.f32 %v2765, %v3339
      %3341 = vmatmul.bf16.gmra.mxu0 %v2919
      %v3342 = vpop.f32.mrf.mxu0
      %v3343 = vadd.f32 %v2770, %v3342
      %v3344 = vpop.f32.mrf.mxu0
      %v3345 = vadd.f32 %v2775, %v3344
      %3346 = vmatmul.bf16.gmra.mxu0 %v2921
      %v3347 = vpop.f32.mrf.mxu0
      %v3348 = vadd.f32 %v2780, %v3347
      %v3349 = vpop.f32.mrf.mxu0
      %v3350 = vadd.f32 %v2785, %v3349
      %3351 = vmatmul.bf16.gmra.mxu0 %v2923
      %v3352 = vpop.f32.mrf.mxu0
      %v3353 = vadd.f32 %v2790, %v3352
      %v3354 = vpop.f32.mrf.mxu0
      %v3355 = vadd.f32 %v2795, %v3354
      %3356 = vmatmul.bf16.gmra.mxu0 %v2925
      %v3357 = vpop.f32.mrf.mxu0
      %v3358 = vadd.f32 %v2800, %v3357
      %v3359 = vpop.f32.mrf.mxu0
      %v3360 = vadd.f32 %v2805, %v3359
      %3361 = vmatmul.bf16.gmra.mxu0 %v2927
      %v3362 = vpop.f32.mrf.mxu0
      %v3363 = vadd.f32 %v2810, %v3362
      %v3364 = vpop.f32.mrf.mxu0
      %v3365 = vadd.f32 %v2815, %v3364
      %3366 = vmatmul.bf16.gmra.mxu0 %v2929
      %v3367 = vpop.f32.mrf.mxu0
      %v3368 = vadd.f32 %v2820, %v3367
      %v3369 = vpop.f32.mrf.mxu0
      %v3370 = vadd.f32 %v2825, %v3369
      %3371 = vmatmul.bf16.gmra.mxu0 %v2931
      %v3372 = vpop.f32.mrf.mxu0
      %v3373 = vadd.f32 %v2830, %v3372
      %v3374 = vpop.f32.mrf.mxu0
      %3375 = vdwg.mxu0
      %3376 = vmatpush.bf16.msra.mxu0 0
      %3377 = vmatpush.bf16.msra.mxu0 0
      %3378 = vmatpush.bf16.msra.mxu0 0
      %3379 = vmatpush.bf16.msra.mxu0 %v2994
      %3380 = vmatpush.bf16.msra.mxu0 %v2668
      %3381 = vmatpush.bf16.msra.mxu0 %v2660
      %3382 = vmatpush.bf16.msra.mxu0 %v2652
      %3383 = vmatpush.bf16.msra.mxu0 %v2644
      %3384 = vmatmul.bf16.gmra.mxu0 %v2948
      %v3385 = vpop.f32.mrf.mxu0
      %v3386 = vadd.f32 %v3313, %v3385
      %v3387 = vpop.f32.mrf.mxu0
      %v3388 = vadd.f32 %v3315, %v3387
      %3389 = vmatmul.bf16.gmra.mxu0 %v2951
      %v3390 = vpop.f32.mrf.mxu0
      %v3391 = vadd.f32 %v3318, %v3390
      %v3392 = vpop.f32.mrf.mxu0
      %v3393 = vadd.f32 %v3320, %v3392
      %3394 = vmatmul.bf16.gmra.mxu0 %v2954
      %v3395 = vpop.f32.mrf.mxu0
      %v3396 = vadd.f32 %v3323, %v3395
      %v3397 = vpop.f32.mrf.mxu0
      %v3398 = vadd.f32 %v3325, %v3397
      %3399 = vmatmul.bf16.gmra.mxu0 %v2957
      %v3400 = vpop.f32.mrf.mxu0
      %v3401 = vadd.f32 %v3328, %v3400
      %v3402 = vpop.f32.mrf.mxu0
      %v3403 = vadd.f32 %v3330, %v3402
      %3404 = vmatmul.bf16.gmra.mxu0 %v2960
      %v3405 = vpop.f32.mrf.mxu0
      %v3406 = vadd.f32 %v3333, %v3405
      %v3407 = vpop.f32.mrf.mxu0
      %v3408 = vadd.f32 %v3335, %v3407
      %3409 = vmatmul.bf16.gmra.mxu0 %v2963
      %v3410 = vpop.f32.mrf.mxu0
      %v3411 = vadd.f32 %v3338, %v3410
      %v3412 = vpop.f32.mrf.mxu0
      %v3413 = vadd.f32 %v3340, %v3412
      %3414 = vmatmul.bf16.gmra.mxu0 %v2966
      %v3415 = vpop.f32.mrf.mxu0
      %v3416 = vadd.f32 %v3343, %v3415
      %v3417 = vpop.f32.mrf.mxu0
      %v3418 = vadd.f32 %v3345, %v3417
      %3419 = vmatmul.bf16.gmra.mxu0 %v2969
      %v3420 = vpop.f32.mrf.mxu0
      %v3421 = vadd.f32 %v3348, %v3420
      %v3422 = vpop.f32.mrf.mxu0
      %v3423 = vadd.f32 %v3350, %v3422
      %3424 = vmatmul.bf16.gmra.mxu0 %v2972
      %v3425 = vpop.f32.mrf.mxu0
      %v3426 = vadd.f32 %v3353, %v3425
      %v3427 = vpop.f32.mrf.mxu0
      %v3428 = vadd.f32 %v3355, %v3427
      %3429 = vmatmul.bf16.gmra.mxu0 %v2975
      %v3430 = vpop.f32.mrf.mxu0
      %v3431 = vadd.f32 %v3358, %v3430
      %v3432 = vpop.f32.mrf.mxu0
      %v3433 = vadd.f32 %v3360, %v3432
      %3434 = vmatmul.bf16.gmra.mxu0 %v2978
      %v3435 = vpop.f32.mrf.mxu0
      %v3436 = vadd.f32 %v3363, %v3435
      %v3437 = vpop.f32.mrf.mxu0
      %v3438 = vadd.f32 %v3365, %v3437
      %3439 = vmatmul.bf16.gmra.mxu0 %v2981
      %v3440 = vpop.f32.mrf.mxu0
      %v3441 = vadd.f32 %v3368, %v3440
      %v3442 = vpop.f32.mrf.mxu0
      %v3443 = vadd.f32 %v3370, %v3442
      %3444 = vmatmul.bf16.gmra.mxu0 %v2984
      %v3445 = vpop.f32.mrf.mxu0
      %v3446 = vadd.f32 %v3373, %v3445
      %v3447 = vpop.f32.mrf.mxu0
      %3448 = vdwg.mxu0
      %3449 = vmatpush.bf16.msra.mxu0 %v2637
      %3450 = vmatpush.bf16.msra.mxu0 %v2629
      %3451 = vmatpush.bf16.msra.mxu0 %v2621
      %3452 = vmatpush.bf16.msra.mxu0 %v2613
      %3453 = vmatpush.bf16.msra.mxu0 %v2605
      %3454 = vmatpush.bf16.msra.mxu0 %v2597
      %3455 = vmatpush.bf16.msra.mxu0 %v2589
      %3456 = vmatpush.bf16.msra.mxu0 %v2581
      %3457 = vmatmul.bf16.gmra.mxu0 %v2907
      %v3458 = vpop.f32.mrf.mxu0
      %v3459 = vadd.f32 %v2710, %v3458
      %v3460 = vpop.f32.mrf.mxu0
      %v3461 = vadd.f32 %v2715, %v3460
      %3462 = vmatmul.bf16.gmra.mxu0 %v2909
      %v3463 = vpop.f32.mrf.mxu0
      %v3464 = vadd.f32 %v2720, %v3463
      %v3465 = vpop.f32.mrf.mxu0
      %v3466 = vadd.f32 %v2725, %v3465
      %3467 = vmatmul.bf16.gmra.mxu0 %v2911
      %v3468 = vpop.f32.mrf.mxu0
      %v3469 = vadd.f32 %v2730, %v3468
      %v3470 = vpop.f32.mrf.mxu0
      %v3471 = vadd.f32 %v2735, %v3470
      %3472 = vmatmul.bf16.gmra.mxu0 %v2913
      %v3473 = vpop.f32.mrf.mxu0
      %v3474 = vadd.f32 %v2740, %v3473
      %v3475 = vpop.f32.mrf.mxu0
      %v3476 = vadd.f32 %v2745, %v3475
      %3477 = vmatmul.bf16.gmra.mxu0 %v2915
      %v3478 = vpop.f32.mrf.mxu0
      %v3479 = vadd.f32 %v2750, %v3478
      %v3480 = vpop.f32.mrf.mxu0
      %v3481 = vadd.f32 %v2755, %v3480
      %3482 = vmatmul.bf16.gmra.mxu0 %v2917
      %v3483 = vpop.f32.mrf.mxu0
      %v3484 = vadd.f32 %v2760, %v3483
      %v3485 = vpop.f32.mrf.mxu0
      %v3486 = vadd.f32 %v2765, %v3485
      %3487 = vmatmul.bf16.gmra.mxu0 %v2919
      %v3488 = vpop.f32.mrf.mxu0
      %v3489 = vadd.f32 %v2770, %v3488
      %v3490 = vpop.f32.mrf.mxu0
      %v3491 = vadd.f32 %v2775, %v3490
      %3492 = vmatmul.bf16.gmra.mxu0 %v2921
      %v3493 = vpop.f32.mrf.mxu0
      %v3494 = vadd.f32 %v2780, %v3493
      %v3495 = vpop.f32.mrf.mxu0
      %v3496 = vadd.f32 %v2785, %v3495
      %3497 = vmatmul.bf16.gmra.mxu0 %v2923
      %v3498 = vpop.f32.mrf.mxu0
      %v3499 = vadd.f32 %v2790, %v3498
      %v3500 = vpop.f32.mrf.mxu0
      %v3501 = vadd.f32 %v2795, %v3500
      %3502 = vmatmul.bf16.gmra.mxu0 %v2925
      %v3503 = vpop.f32.mrf.mxu0
      %v3504 = vadd.f32 %v2800, %v3503
      %v3505 = vpop.f32.mrf.mxu0
      %v3506 = vadd.f32 %v2805, %v3505
      %3507 = vmatmul.bf16.gmra.mxu0 %v2927
      %v3508 = vpop.f32.mrf.mxu0
      %v3509 = vadd.f32 %v2810, %v3508
      %v3510 = vpop.f32.mrf.mxu0
      %v3511 = vadd.f32 %v2815, %v3510
      %3512 = vmatmul.bf16.gmra.mxu0 %v2929
      %v3513 = vpop.f32.mrf.mxu0
      %v3514 = vadd.f32 %v2820, %v3513
      %v3515 = vpop.f32.mrf.mxu0
      %v3516 = vadd.f32 %v2825, %v3515
      %3517 = vmatmul.bf16.gmra.mxu0 %v2931
      %v3518 = vpop.f32.mrf.mxu0
      %v3519 = vadd.f32 %v2830, %v3518
      %v3520 = vpop.f32.mrf.mxu0
      %3521 = vdwg.mxu0
      %3522 = vmatpush.bf16.msra.mxu0 0
      %3523 = vmatpush.bf16.msra.mxu0 0
      %3524 = vmatpush.bf16.msra.mxu0 0
      %3525 = vmatpush.bf16.msra.mxu0 %v2997
      %3526 = vmatpush.bf16.msra.mxu0 %v2669
      %3527 = vmatpush.bf16.msra.mxu0 %v2661
      %3528 = vmatpush.bf16.msra.mxu0 %v2653
      %3529 = vmatpush.bf16.msra.mxu0 %v2645
      %3530 = vmatmul.bf16.gmra.mxu0 %v2948
      %v3531 = vpop.f32.mrf.mxu0
      %v3532 = vadd.f32 %v3459, %v3531
      %v3533 = vpop.f32.mrf.mxu0
      %v3534 = vadd.f32 %v3461, %v3533
      %3535 = vmatmul.bf16.gmra.mxu0 %v2951
      %v3536 = vpop.f32.mrf.mxu0
      %v3537 = vadd.f32 %v3464, %v3536
      %v3538 = vpop.f32.mrf.mxu0
      %v3539 = vadd.f32 %v3466, %v3538
      %3540 = vmatmul.bf16.gmra.mxu0 %v2954
      %v3541 = vpop.f32.mrf.mxu0
      %v3542 = vadd.f32 %v3469, %v3541
      %v3543 = vpop.f32.mrf.mxu0
      %v3544 = vadd.f32 %v3471, %v3543
      %3545 = vmatmul.bf16.gmra.mxu0 %v2957
      %v3546 = vpop.f32.mrf.mxu0
      %v3547 = vadd.f32 %v3474, %v3546
      %v3548 = vpop.f32.mrf.mxu0
      %v3549 = vadd.f32 %v3476, %v3548
      %3550 = vmatmul.bf16.gmra.mxu0 %v2960
      %v3551 = vpop.f32.mrf.mxu0
      %v3552 = vadd.f32 %v3479, %v3551
      %v3553 = vpop.f32.mrf.mxu0
      %v3554 = vadd.f32 %v3481, %v3553
      %3555 = vmatmul.bf16.gmra.mxu0 %v2963
      %v3556 = vpop.f32.mrf.mxu0
      %v3557 = vadd.f32 %v3484, %v3556
      %v3558 = vpop.f32.mrf.mxu0
      %v3559 = vadd.f32 %v3486, %v3558
      %3560 = vmatmul.bf16.gmra.mxu0 %v2966
      %v3561 = vpop.f32.mrf.mxu0
      %v3562 = vadd.f32 %v3489, %v3561
      %v3563 = vpop.f32.mrf.mxu0
      %v3564 = vadd.f32 %v3491, %v3563
      %3565 = vmatmul.bf16.gmra.mxu0 %v2969
      %v3566 = vpop.f32.mrf.mxu0
      %v3567 = vadd.f32 %v3494, %v3566
      %v3568 = vpop.f32.mrf.mxu0
      %v3569 = vadd.f32 %v3496, %v3568
      %3570 = vmatmul.bf16.gmra.mxu0 %v2972
      %v3571 = vpop.f32.mrf.mxu0
      %v3572 = vadd.f32 %v3499, %v3571
      %v3573 = vpop.f32.mrf.mxu0
      %v3574 = vadd.f32 %v3501, %v3573
      %3575 = vmatmul.bf16.gmra.mxu0 %v2975
      %v3576 = vpop.f32.mrf.mxu0
      %v3577 = vadd.f32 %v3504, %v3576
      %v3578 = vpop.f32.mrf.mxu0
      %v3579 = vadd.f32 %v3506, %v3578
      %3580 = vmatmul.bf16.gmra.mxu0 %v2978
      %v3581 = vpop.f32.mrf.mxu0
      %v3582 = vadd.f32 %v3509, %v3581
      %v3583 = vpop.f32.mrf.mxu0
      %v3584 = vadd.f32 %v3511, %v3583
      %3585 = vmatmul.bf16.gmra.mxu0 %v2981
      %v3586 = vpop.f32.mrf.mxu0
      %v3587 = vadd.f32 %v3514, %v3586
      %v3588 = vpop.f32.mrf.mxu0
      %v3589 = vadd.f32 %v3516, %v3588
      %3590 = vmatmul.bf16.gmra.mxu0 %v2984
      %v3591 = vpop.f32.mrf.mxu0
      %v3592 = vadd.f32 %v3519, %v3591
      %v3593 = vpop.f32.mrf.mxu0
      %3594 = vdwg.mxu0
      %3595 = vmatpush.bf16.msra.mxu0 %v2638
      %3596 = vmatpush.bf16.msra.mxu0 %v2630
      %3597 = vmatpush.bf16.msra.mxu0 %v2622
      %3598 = vmatpush.bf16.msra.mxu0 %v2614
      %3599 = vmatpush.bf16.msra.mxu0 %v2606
      %3600 = vmatpush.bf16.msra.mxu0 %v2598
      %3601 = vmatpush.bf16.msra.mxu0 %v2590
      %3602 = vmatpush.bf16.msra.mxu0 %v2582
      %3603 = vmatmul.bf16.gmra.mxu0 %v2907
      %v3604 = vpop.f32.mrf.mxu0
      %v3605 = vadd.f32 %v2710, %v3604
      %v3606 = vpop.f32.mrf.mxu0
      %v3607 = vadd.f32 %v2715, %v3606
      %3608 = vmatmul.bf16.gmra.mxu0 %v2909
      %v3609 = vpop.f32.mrf.mxu0
      %v3610 = vadd.f32 %v2720, %v3609
      %v3611 = vpop.f32.mrf.mxu0
      %v3612 = vadd.f32 %v2725, %v3611
      %3613 = vmatmul.bf16.gmra.mxu0 %v2911
      %v3614 = vpop.f32.mrf.mxu0
      %v3615 = vadd.f32 %v2730, %v3614
      %v3616 = vpop.f32.mrf.mxu0
      %v3617 = vadd.f32 %v2735, %v3616
      %3618 = vmatmul.bf16.gmra.mxu0 %v2913
      %v3619 = vpop.f32.mrf.mxu0
      %v3620 = vadd.f32 %v2740, %v3619
      %v3621 = vpop.f32.mrf.mxu0
      %v3622 = vadd.f32 %v2745, %v3621
      %3623 = vmatmul.bf16.gmra.mxu0 %v2915
      %v3624 = vpop.f32.mrf.mxu0
      %v3625 = vadd.f32 %v2750, %v3624
      %v3626 = vpop.f32.mrf.mxu0
      %v3627 = vadd.f32 %v2755, %v3626
      %3628 = vmatmul.bf16.gmra.mxu0 %v2917
      %v3629 = vpop.f32.mrf.mxu0
      %v3630 = vadd.f32 %v2760, %v3629
      %v3631 = vpop.f32.mrf.mxu0
      %v3632 = vadd.f32 %v2765, %v3631
      %3633 = vmatmul.bf16.gmra.mxu0 %v2919
      %v3634 = vpop.f32.mrf.mxu0
      %v3635 = vadd.f32 %v2770, %v3634
      %v3636 = vpop.f32.mrf.mxu0
      %v3637 = vadd.f32 %v2775, %v3636
      %3638 = vmatmul.bf16.gmra.mxu0 %v2921
      %v3639 = vpop.f32.mrf.mxu0
      %v3640 = vadd.f32 %v2780, %v3639
      %v3641 = vpop.f32.mrf.mxu0
      %v3642 = vadd.f32 %v2785, %v3641
      %3643 = vmatmul.bf16.gmra.mxu0 %v2923
      %v3644 = vpop.f32.mrf.mxu0
      %v3645 = vadd.f32 %v2790, %v3644
      %v3646 = vpop.f32.mrf.mxu0
      %v3647 = vadd.f32 %v2795, %v3646
      %3648 = vmatmul.bf16.gmra.mxu0 %v2925
      %v3649 = vpop.f32.mrf.mxu0
      %v3650 = vadd.f32 %v2800, %v3649
      %v3651 = vpop.f32.mrf.mxu0
      %v3652 = vadd.f32 %v2805, %v3651
      %3653 = vmatmul.bf16.gmra.mxu0 %v2927
      %v3654 = vpop.f32.mrf.mxu0
      %v3655 = vadd.f32 %v2810, %v3654
      %v3656 = vpop.f32.mrf.mxu0
      %v3657 = vadd.f32 %v2815, %v3656
      %3658 = vmatmul.bf16.gmra.mxu0 %v2929
      %v3659 = vpop.f32.mrf.mxu0
      %v3660 = vadd.f32 %v2820, %v3659
      %v3661 = vpop.f32.mrf.mxu0
      %v3662 = vadd.f32 %v2825, %v3661
      %3663 = vmatmul.bf16.gmra.mxu0 %v2931
      %v3664 = vpop.f32.mrf.mxu0
      %v3665 = vadd.f32 %v2830, %v3664
      %v3666 = vpop.f32.mrf.mxu0
      %3667 = vdwg.mxu0
      %3668 = vmatpush.bf16.msra.mxu0 0
      %3669 = vmatpush.bf16.msra.mxu0 0
      %3670 = vmatpush.bf16.msra.mxu0 0
      %3671 = vmatpush.bf16.msra.mxu0 %v3000
      %3672 = vmatpush.bf16.msra.mxu0 %v2670
      %3673 = vmatpush.bf16.msra.mxu0 %v2662
      %3674 = vmatpush.bf16.msra.mxu0 %v2654
      %3675 = vmatpush.bf16.msra.mxu0 %v2646
      %3676 = vmatmul.bf16.gmra.mxu0 %v2948
      %v3677 = vpop.f32.mrf.mxu0
      %v3678 = vadd.f32 %v3605, %v3677
      %v3679 = vpop.f32.mrf.mxu0
      %v3680 = vadd.f32 %v3607, %v3679
      %3681 = vmatmul.bf16.gmra.mxu0 %v2951
      %v3682 = vpop.f32.mrf.mxu0
      %v3683 = vadd.f32 %v3610, %v3682
      %v3684 = vpop.f32.mrf.mxu0
      %v3685 = vadd.f32 %v3612, %v3684
      %3686 = vmatmul.bf16.gmra.mxu0 %v2954
      %v3687 = vpop.f32.mrf.mxu0
      %v3688 = vadd.f32 %v3615, %v3687
      %v3689 = vpop.f32.mrf.mxu0
      %v3690 = vadd.f32 %v3617, %v3689
      %3691 = vmatmul.bf16.gmra.mxu0 %v2957
      %v3692 = vpop.f32.mrf.mxu0
      %v3693 = vadd.f32 %v3620, %v3692
      %v3694 = vpop.f32.mrf.mxu0
      %v3695 = vadd.f32 %v3622, %v3694
      %3696 = vmatmul.bf16.gmra.mxu0 %v2960
      %v3697 = vpop.f32.mrf.mxu0
      %v3698 = vadd.f32 %v3625, %v3697
      %v3699 = vpop.f32.mrf.mxu0
      %v3700 = vadd.f32 %v3627, %v3699
      %3701 = vmatmul.bf16.gmra.mxu0 %v2963
      %v3702 = vpop.f32.mrf.mxu0
      %v3703 = vadd.f32 %v3630, %v3702
      %v3704 = vpop.f32.mrf.mxu0
      %v3705 = vadd.f32 %v3632, %v3704
      %3706 = vmatmul.bf16.gmra.mxu0 %v2966
      %v3707 = vpop.f32.mrf.mxu0
      %v3708 = vadd.f32 %v3635, %v3707
      %v3709 = vpop.f32.mrf.mxu0
      %v3710 = vadd.f32 %v3637, %v3709
      %3711 = vmatmul.bf16.gmra.mxu0 %v2969
      %v3712 = vpop.f32.mrf.mxu0
      %v3713 = vadd.f32 %v3640, %v3712
      %v3714 = vpop.f32.mrf.mxu0
      %v3715 = vadd.f32 %v3642, %v3714
      %3716 = vmatmul.bf16.gmra.mxu0 %v2972
      %v3717 = vpop.f32.mrf.mxu0
      %v3718 = vadd.f32 %v3645, %v3717
      %v3719 = vpop.f32.mrf.mxu0
      %v3720 = vadd.f32 %v3647, %v3719
      %3721 = vmatmul.bf16.gmra.mxu0 %v2975
      %v3722 = vpop.f32.mrf.mxu0
      %v3723 = vadd.f32 %v3650, %v3722
      %v3724 = vpop.f32.mrf.mxu0
      %v3725 = vadd.f32 %v3652, %v3724
      %3726 = vmatmul.bf16.gmra.mxu0 %v2978
      %v3727 = vpop.f32.mrf.mxu0
      %v3728 = vadd.f32 %v3655, %v3727
      %v3729 = vpop.f32.mrf.mxu0
      %v3730 = vadd.f32 %v3657, %v3729
      %3731 = vmatmul.bf16.gmra.mxu0 %v2981
      %v3732 = vpop.f32.mrf.mxu0
      %v3733 = vadd.f32 %v3660, %v3732
      %v3734 = vpop.f32.mrf.mxu0
      %v3735 = vadd.f32 %v3662, %v3734
      %3736 = vmatmul.bf16.gmra.mxu0 %v2984
      %v3737 = vpop.f32.mrf.mxu0
      %v3738 = vadd.f32 %v3665, %v3737
      %v3739 = vpop.f32.mrf.mxu0
      %3740 = vdwg.mxu0
      %3741 = vmatpush.bf16.msra.mxu0 %v2639
      %3742 = vmatpush.bf16.msra.mxu0 %v2631
      %3743 = vmatpush.bf16.msra.mxu0 %v2623
      %3744 = vmatpush.bf16.msra.mxu0 %v2615
      %3745 = vmatpush.bf16.msra.mxu0 %v2607
      %3746 = vmatpush.bf16.msra.mxu0 %v2599
      %3747 = vmatpush.bf16.msra.mxu0 %v2591
      %3748 = vmatpush.bf16.msra.mxu0 %v2583
      %3749 = vmatmul.bf16.gmra.mxu0 %v2907
      %v3750 = vpop.f32.mrf.mxu0
      %v3751 = vadd.f32 %v2710, %v3750
      %v3752 = vpop.f32.mrf.mxu0
      %v3753 = vadd.f32 %v2715, %v3752
      %3754 = vmatmul.bf16.gmra.mxu0 %v2909
      %v3755 = vpop.f32.mrf.mxu0
      %v3756 = vadd.f32 %v2720, %v3755
      %v3757 = vpop.f32.mrf.mxu0
      %v3758 = vadd.f32 %v2725, %v3757
      %3759 = vmatmul.bf16.gmra.mxu0 %v2911
      %v3760 = vpop.f32.mrf.mxu0
      %v3761 = vadd.f32 %v2730, %v3760
      %v3762 = vpop.f32.mrf.mxu0
      %v3763 = vadd.f32 %v2735, %v3762
      %3764 = vmatmul.bf16.gmra.mxu0 %v2913
      %v3765 = vpop.f32.mrf.mxu0
      %v3766 = vadd.f32 %v2740, %v3765
      %v3767 = vpop.f32.mrf.mxu0
      %v3768 = vadd.f32 %v2745, %v3767
      %3769 = vmatmul.bf16.gmra.mxu0 %v2915
      %v3770 = vpop.f32.mrf.mxu0
      %v3771 = vadd.f32 %v2750, %v3770
      %v3772 = vpop.f32.mrf.mxu0
      %v3773 = vadd.f32 %v2755, %v3772
      %3774 = vmatmul.bf16.gmra.mxu0 %v2917
      %v3775 = vpop.f32.mrf.mxu0
      %v3776 = vadd.f32 %v2760, %v3775
      %v3777 = vpop.f32.mrf.mxu0
      %v3778 = vadd.f32 %v2765, %v3777
      %3779 = vmatmul.bf16.gmra.mxu0 %v2919
      %v3780 = vpop.f32.mrf.mxu0
      %v3781 = vadd.f32 %v2770, %v3780
      %v3782 = vpop.f32.mrf.mxu0
      %v3783 = vadd.f32 %v2775, %v3782
      %3784 = vmatmul.bf16.gmra.mxu0 %v2921
      %v3785 = vpop.f32.mrf.mxu0
      %v3786 = vadd.f32 %v2780, %v3785
      %v3787 = vpop.f32.mrf.mxu0
      %v3788 = vadd.f32 %v2785, %v3787
      %3789 = vmatmul.bf16.gmra.mxu0 %v2923
      %v3790 = vpop.f32.mrf.mxu0
      %v3791 = vadd.f32 %v2790, %v3790
      %v3792 = vpop.f32.mrf.mxu0
      %v3793 = vadd.f32 %v2795, %v3792
      %3794 = vmatmul.bf16.gmra.mxu0 %v2925
      %v3795 = vpop.f32.mrf.mxu0
      %v3796 = vadd.f32 %v2800, %v3795
      %v3797 = vpop.f32.mrf.mxu0
      %v3798 = vadd.f32 %v2805, %v3797
      %3799 = vmatmul.bf16.gmra.mxu0 %v2927
      %v3800 = vpop.f32.mrf.mxu0
      %v3801 = vadd.f32 %v2810, %v3800
      %v3802 = vpop.f32.mrf.mxu0
      %v3803 = vadd.f32 %v2815, %v3802
      %3804 = vmatmul.bf16.gmra.mxu0 %v2929
      %v3805 = vpop.f32.mrf.mxu0
      %v3806 = vadd.f32 %v2820, %v3805
      %v3807 = vpop.f32.mrf.mxu0
      %v3808 = vadd.f32 %v2825, %v3807
      %3809 = vmatmul.bf16.gmra.mxu0 %v2931
      %v3810 = vpop.f32.mrf.mxu0
      %v3811 = vadd.f32 %v2830, %v3810
      %v3812 = vpop.f32.mrf.mxu0
      %3813 = vdwg.mxu0
      %3814 = vmatpush.bf16.msra.mxu0 0
      %3815 = vmatpush.bf16.msra.mxu0 0
      %3816 = vmatpush.bf16.msra.mxu0 0
      %3817 = vmatpush.bf16.msra.mxu0 %v3003
      %3818 = vmatpush.bf16.msra.mxu0 %v2671
      %3819 = vmatpush.bf16.msra.mxu0 %v2663
      %3820 = vmatpush.bf16.msra.mxu0 %v2655
      %3821 = vmatpush.bf16.msra.mxu0 %v2647
      %3822 = vmatmul.bf16.gmra.mxu0 %v2948
      %v3823 = vpop.f32.mrf.mxu0
      %v3824 = vadd.f32 %v3751, %v3823
      %v3825 = vpop.f32.mrf.mxu0
      %v3826 = vadd.f32 %v3753, %v3825
      %3827 = vmatmul.bf16.gmra.mxu0 %v2951
      %v3828 = vpop.f32.mrf.mxu0
      %v3829 = vadd.f32 %v3756, %v3828
      %v3830 = vpop.f32.mrf.mxu0
      %v3831 = vadd.f32 %v3758, %v3830
      %3832 = vmatmul.bf16.gmra.mxu0 %v2954
      %v3833 = vpop.f32.mrf.mxu0
      %v3834 = vadd.f32 %v3761, %v3833
      %v3835 = vpop.f32.mrf.mxu0
      %v3836 = vadd.f32 %v3763, %v3835
      %3837 = vmatmul.bf16.gmra.mxu0 %v2957
      %v3838 = vpop.f32.mrf.mxu0
      %v3839 = vadd.f32 %v3766, %v3838
      %v3840 = vpop.f32.mrf.mxu0
      %v3841 = vadd.f32 %v3768, %v3840
      %3842 = vmatmul.bf16.gmra.mxu0 %v2960
      %v3843 = vpop.f32.mrf.mxu0
      %v3844 = vadd.f32 %v3771, %v3843
      %v3845 = vpop.f32.mrf.mxu0
      %v3846 = vadd.f32 %v3773, %v3845
      %3847 = vmatmul.bf16.gmra.mxu0 %v2963
      %v3848 = vpop.f32.mrf.mxu0
      %v3849 = vadd.f32 %v3776, %v3848
      %v3850 = vpop.f32.mrf.mxu0
      %v3851 = vadd.f32 %v3778, %v3850
      %3852 = vmatmul.bf16.gmra.mxu0 %v2966
      %v3853 = vpop.f32.mrf.mxu0
      %v3854 = vadd.f32 %v3781, %v3853
      %v3855 = vpop.f32.mrf.mxu0
      %v3856 = vadd.f32 %v3783, %v3855
      %3857 = vmatmul.bf16.gmra.mxu0 %v2969
      %v3858 = vpop.f32.mrf.mxu0
      %v3859 = vadd.f32 %v3786, %v3858
      %v3860 = vpop.f32.mrf.mxu0
      %v3861 = vadd.f32 %v3788, %v3860
      %3862 = vmatmul.bf16.gmra.mxu0 %v2972
      %v3863 = vpop.f32.mrf.mxu0
      %v3864 = vadd.f32 %v3791, %v3863
      %v3865 = vpop.f32.mrf.mxu0
      %v3866 = vadd.f32 %v3793, %v3865
      %3867 = vmatmul.bf16.gmra.mxu0 %v2975
      %v3868 = vpop.f32.mrf.mxu0
      %v3869 = vadd.f32 %v3796, %v3868
      %v3870 = vpop.f32.mrf.mxu0
      %v3871 = vadd.f32 %v3798, %v3870
      %3872 = vmatmul.bf16.gmra.mxu0 %v2978
      %v3873 = vpop.f32.mrf.mxu0
      %v3874 = vadd.f32 %v3801, %v3873
      %v3875 = vpop.f32.mrf.mxu0
      %v3876 = vadd.f32 %v3803, %v3875
      %3877 = vmatmul.bf16.gmra.mxu0 %v2981
      %v3878 = vpop.f32.mrf.mxu0
      %v3879 = vadd.f32 %v3806, %v3878
      %v3880 = vpop.f32.mrf.mxu0
      %v3881 = vadd.f32 %v3808, %v3880
      %3882 = vmatmul.bf16.gmra.mxu0 %v2984
      %v3883 = vpop.f32.mrf.mxu0
      %v3884 = vadd.f32 %v3811, %v3883
      %v3885 = vpop.f32.mrf.mxu0
      %3886 = vdwg.mxu0
      %3887 = vmatpush.bf16.msra.mxu0 %v2640
      %3888 = vmatpush.bf16.msra.mxu0 %v2632
      %3889 = vmatpush.bf16.msra.mxu0 %v2624
      %3890 = vmatpush.bf16.msra.mxu0 %v2616
      %3891 = vmatpush.bf16.msra.mxu0 %v2608
      %3892 = vmatpush.bf16.msra.mxu0 %v2600
      %3893 = vmatpush.bf16.msra.mxu0 %v2592
      %3894 = vmatpush.bf16.msra.mxu0 %v2584
      %3895 = vmatmul.bf16.gmra.mxu0 %v2907
      %v3896 = vpop.f32.mrf.mxu0
      %v3897 = vadd.f32 %v2710, %v3896
      %v3898 = vpop.f32.mrf.mxu0
      %v3899 = vadd.f32 %v2715, %v3898
      %3900 = vmatmul.bf16.gmra.mxu0 %v2909
      %v3901 = vpop.f32.mrf.mxu0
      %v3902 = vadd.f32 %v2720, %v3901
      %v3903 = vpop.f32.mrf.mxu0
      %v3904 = vadd.f32 %v2725, %v3903
      %3905 = vmatmul.bf16.gmra.mxu0 %v2911
      %v3906 = vpop.f32.mrf.mxu0
      %v3907 = vadd.f32 %v2730, %v3906
      %v3908 = vpop.f32.mrf.mxu0
      %v3909 = vadd.f32 %v2735, %v3908
      %3910 = vmatmul.bf16.gmra.mxu0 %v2913
      %v3911 = vpop.f32.mrf.mxu0
      %v3912 = vadd.f32 %v2740, %v3911
      %v3913 = vpop.f32.mrf.mxu0
      %v3914 = vadd.f32 %v2745, %v3913
      %3915 = vmatmul.bf16.gmra.mxu0 %v2915
      %v3916 = vpop.f32.mrf.mxu0
      %v3917 = vadd.f32 %v2750, %v3916
      %v3918 = vpop.f32.mrf.mxu0
      %v3919 = vadd.f32 %v2755, %v3918
      %3920 = vmatmul.bf16.gmra.mxu0 %v2917
      %v3921 = vpop.f32.mrf.mxu0
      %v3922 = vadd.f32 %v2760, %v3921
      %v3923 = vpop.f32.mrf.mxu0
      %v3924 = vadd.f32 %v2765, %v3923
      %3925 = vmatmul.bf16.gmra.mxu0 %v2919
      %v3926 = vpop.f32.mrf.mxu0
      %v3927 = vadd.f32 %v2770, %v3926
      %v3928 = vpop.f32.mrf.mxu0
      %v3929 = vadd.f32 %v2775, %v3928
      %3930 = vmatmul.bf16.gmra.mxu0 %v2921
      %v3931 = vpop.f32.mrf.mxu0
      %v3932 = vadd.f32 %v2780, %v3931
      %v3933 = vpop.f32.mrf.mxu0
      %v3934 = vadd.f32 %v2785, %v3933
      %3935 = vmatmul.bf16.gmra.mxu0 %v2923
      %v3936 = vpop.f32.mrf.mxu0
      %v3937 = vadd.f32 %v2790, %v3936
      %v3938 = vpop.f32.mrf.mxu0
      %v3939 = vadd.f32 %v2795, %v3938
      %3940 = vmatmul.bf16.gmra.mxu0 %v2925
      %v3941 = vpop.f32.mrf.mxu0
      %v3942 = vadd.f32 %v2800, %v3941
      %v3943 = vpop.f32.mrf.mxu0
      %v3944 = vadd.f32 %v2805, %v3943
      %3945 = vmatmul.bf16.gmra.mxu0 %v2927
      %v3946 = vpop.f32.mrf.mxu0
      %v3947 = vadd.f32 %v2810, %v3946
      %v3948 = vpop.f32.mrf.mxu0
      %v3949 = vadd.f32 %v2815, %v3948
      %3950 = vmatmul.bf16.gmra.mxu0 %v2929
      %v3951 = vpop.f32.mrf.mxu0
      %v3952 = vadd.f32 %v2820, %v3951
      %v3953 = vpop.f32.mrf.mxu0
      %v3954 = vadd.f32 %v2825, %v3953
      %3955 = vmatmul.bf16.gmra.mxu0 %v2931
      %v3956 = vpop.f32.mrf.mxu0
      %v3957 = vadd.f32 %v2830, %v3956
      %v3958 = vpop.f32.mrf.mxu0
      %3959 = vdwg.mxu0
      %3960 = vmatpush.bf16.msra.mxu0 0
      %3961 = vmatpush.bf16.msra.mxu0 0
      %3962 = vmatpush.bf16.msra.mxu0 0
      %3963 = vmatpush.bf16.msra.mxu0 %v3006
      %3964 = vmatpush.bf16.msra.mxu0 %v2672
      %3965 = vmatpush.bf16.msra.mxu0 %v2664
      %3966 = vmatpush.bf16.msra.mxu0 %v2656
      %3967 = vmatpush.bf16.msra.mxu0 %v2648
      %3968 = vmatmul.bf16.gmra.mxu0 %v2948
      %v3969 = vpop.f32.mrf.mxu0
      %v3970 = vadd.f32 %v3897, %v3969
      %v3971 = vpop.f32.mrf.mxu0
      %v3972 = vadd.f32 %v3899, %v3971
      %3973 = vmatmul.bf16.gmra.mxu0 %v2951
      %v3974 = vpop.f32.mrf.mxu0
      %v3975 = vadd.f32 %v3902, %v3974
      %v3976 = vpop.f32.mrf.mxu0
      %v3977 = vadd.f32 %v3904, %v3976
      %3978 = vmatmul.bf16.gmra.mxu0 %v2954
      %v3979 = vpop.f32.mrf.mxu0
      %v3980 = vadd.f32 %v3907, %v3979
      %v3981 = vpop.f32.mrf.mxu0
      %v3982 = vadd.f32 %v3909, %v3981
      %3983 = vmatmul.bf16.gmra.mxu0 %v2957
      %v3984 = vpop.f32.mrf.mxu0
      %v3985 = vadd.f32 %v3912, %v3984
      %v3986 = vpop.f32.mrf.mxu0
      %v3987 = vadd.f32 %v3914, %v3986
      %3988 = vmatmul.bf16.gmra.mxu0 %v2960
      %v3989 = vpop.f32.mrf.mxu0
      %v3990 = vadd.f32 %v3917, %v3989
      %v3991 = vpop.f32.mrf.mxu0
      %v3992 = vadd.f32 %v3919, %v3991
      %3993 = vmatmul.bf16.gmra.mxu0 %v2963
      %v3994 = vpop.f32.mrf.mxu0
      %v3995 = vadd.f32 %v3922, %v3994
      %v3996 = vpop.f32.mrf.mxu0
      %v3997 = vadd.f32 %v3924, %v3996
      %3998 = vmatmul.bf16.gmra.mxu0 %v2966
      %v3999 = vpop.f32.mrf.mxu0
      %v4000 = vadd.f32 %v3927, %v3999
      %v4001 = vpop.f32.mrf.mxu0
      %v4002 = vadd.f32 %v3929, %v4001
      %4003 = vmatmul.bf16.gmra.mxu0 %v2969
      %v4004 = vpop.f32.mrf.mxu0
      %v4005 = vadd.f32 %v3932, %v4004
      %v4006 = vpop.f32.mrf.mxu0
      %v4007 = vadd.f32 %v3934, %v4006
      %4008 = vmatmul.bf16.gmra.mxu0 %v2972
      %v4009 = vpop.f32.mrf.mxu0
      %v4010 = vadd.f32 %v3937, %v4009
      %v4011 = vpop.f32.mrf.mxu0
      %v4012 = vadd.f32 %v3939, %v4011
      %4013 = vmatmul.bf16.gmra.mxu0 %v2975
      %v4014 = vpop.f32.mrf.mxu0
      %v4015 = vadd.f32 %v3942, %v4014
      %v4016 = vpop.f32.mrf.mxu0
      %v4017 = vadd.f32 %v3944, %v4016
      %4018 = vmatmul.bf16.gmra.mxu0 %v2978
      %v4019 = vpop.f32.mrf.mxu0
      %v4020 = vadd.f32 %v3947, %v4019
      %v4021 = vpop.f32.mrf.mxu0
      %v4022 = vadd.f32 %v3949, %v4021
      %4023 = vmatmul.bf16.gmra.mxu0 %v2981
      %v4024 = vpop.f32.mrf.mxu0
      %v4025 = vadd.f32 %v3952, %v4024
      %v4026 = vpop.f32.mrf.mxu0
      %v4027 = vadd.f32 %v3954, %v4026
      %4028 = vmatmul.bf16.gmra.mxu0 %v2984
      %v4029 = vpop.f32.mrf.mxu0
      %v4030 = vadd.f32 %v3957, %v4029
      %v4031 = vpop.f32.mrf.mxu0
      %4032 = vdwg.mxu0
      %4033 = vmatpush.bf16.msra.mxu0 %v2641
      %4034 = vmatpush.bf16.msra.mxu0 %v2633
      %4035 = vmatpush.bf16.msra.mxu0 %v2625
      %4036 = vmatpush.bf16.msra.mxu0 %v2617
      %4037 = vmatpush.bf16.msra.mxu0 %v2609
      %4038 = vmatpush.bf16.msra.mxu0 %v2601
      %4039 = vmatpush.bf16.msra.mxu0 %v2593
      %4040 = vmatpush.bf16.msra.mxu0 %v2585
      %4041 = vmatmul.bf16.gmra.mxu0 %v2907
      %v4042 = vpop.f32.mrf.mxu0
      %v4043 = vadd.f32 %v2710, %v4042
      %v4044 = vpop.f32.mrf.mxu0
      %v4045 = vadd.f32 %v2715, %v4044
      %4046 = vmatmul.bf16.gmra.mxu0 %v2909
      %v4047 = vpop.f32.mrf.mxu0
      %v4048 = vadd.f32 %v2720, %v4047
      %v4049 = vpop.f32.mrf.mxu0
      %v4050 = vadd.f32 %v2725, %v4049
      %4051 = vmatmul.bf16.gmra.mxu0 %v2911
      %v4052 = vpop.f32.mrf.mxu0
      %v4053 = vadd.f32 %v2730, %v4052
      %v4054 = vpop.f32.mrf.mxu0
      %v4055 = vadd.f32 %v2735, %v4054
      %4056 = vmatmul.bf16.gmra.mxu0 %v2913
      %v4057 = vpop.f32.mrf.mxu0
      %v4058 = vadd.f32 %v2740, %v4057
      %v4059 = vpop.f32.mrf.mxu0
      %v4060 = vadd.f32 %v2745, %v4059
      %4061 = vmatmul.bf16.gmra.mxu0 %v2915
      %v4062 = vpop.f32.mrf.mxu0
      %v4063 = vadd.f32 %v2750, %v4062
      %v4064 = vpop.f32.mrf.mxu0
      %v4065 = vadd.f32 %v2755, %v4064
      %4066 = vmatmul.bf16.gmra.mxu0 %v2917
      %v4067 = vpop.f32.mrf.mxu0
      %v4068 = vadd.f32 %v2760, %v4067
      %v4069 = vpop.f32.mrf.mxu0
      %v4070 = vadd.f32 %v2765, %v4069
      %4071 = vmatmul.bf16.gmra.mxu0 %v2919
      %v4072 = vpop.f32.mrf.mxu0
      %v4073 = vadd.f32 %v2770, %v4072
      %v4074 = vpop.f32.mrf.mxu0
      %v4075 = vadd.f32 %v2775, %v4074
      %4076 = vmatmul.bf16.gmra.mxu0 %v2921
      %v4077 = vpop.f32.mrf.mxu0
      %v4078 = vadd.f32 %v2780, %v4077
      %v4079 = vpop.f32.mrf.mxu0
      %v4080 = vadd.f32 %v2785, %v4079
      %4081 = vmatmul.bf16.gmra.mxu0 %v2923
      %v4082 = vpop.f32.mrf.mxu0
      %v4083 = vadd.f32 %v2790, %v4082
      %v4084 = vpop.f32.mrf.mxu0
      %v4085 = vadd.f32 %v2795, %v4084
      %4086 = vmatmul.bf16.gmra.mxu0 %v2925
      %v4087 = vpop.f32.mrf.mxu0
      %v4088 = vadd.f32 %v2800, %v4087
      %v4089 = vpop.f32.mrf.mxu0
      %v4090 = vadd.f32 %v2805, %v4089
      %4091 = vmatmul.bf16.gmra.mxu0 %v2927
      %v4092 = vpop.f32.mrf.mxu0
      %v4093 = vadd.f32 %v2810, %v4092
      %v4094 = vpop.f32.mrf.mxu0
      %v4095 = vadd.f32 %v2815, %v4094
      %4096 = vmatmul.bf16.gmra.mxu0 %v2929
      %v4097 = vpop.f32.mrf.mxu0
      %v4098 = vadd.f32 %v2820, %v4097
      %v4099 = vpop.f32.mrf.mxu0
      %v4100 = vadd.f32 %v2825, %v4099
      %4101 = vmatmul.bf16.gmra.mxu0 %v2931
      %v4102 = vpop.f32.mrf.mxu0
      %v4103 = vadd.f32 %v2830, %v4102
      %v4104 = vpop.f32.mrf.mxu0
      %4105 = vdwg.mxu0
      %4106 = vmatpush.bf16.msra.mxu0 0
      %4107 = vmatpush.bf16.msra.mxu0 0
      %4108 = vmatpush.bf16.msra.mxu0 0
      %4109 = vmatpush.bf16.msra.mxu0 %v3009
      %4110 = vmatpush.bf16.msra.mxu0 %v2673
      %4111 = vmatpush.bf16.msra.mxu0 %v2665
      %4112 = vmatpush.bf16.msra.mxu0 %v2657
      %4113 = vmatpush.bf16.msra.mxu0 %v2649
      %4114 = vmatmul.bf16.gmra.mxu0 %v2948
      %v4115 = vpop.f32.mrf.mxu0
      %v4116 = vadd.f32 %v4043, %v4115
      %v4117 = vpop.f32.mrf.mxu0
      %v4118 = vadd.f32 %v4045, %v4117
      %4119 = vmatmul.bf16.gmra.mxu0 %v2951
      %v4120 = vpop.f32.mrf.mxu0
      %v4121 = vadd.f32 %v4048, %v4120
      %v4122 = vpop.f32.mrf.mxu0
      %v4123 = vadd.f32 %v4050, %v4122
      %4124 = vmatmul.bf16.gmra.mxu0 %v2954
      %v4125 = vpop.f32.mrf.mxu0
      %v4126 = vadd.f32 %v4053, %v4125
      %v4127 = vpop.f32.mrf.mxu0
      %v4128 = vadd.f32 %v4055, %v4127
      %4129 = vmatmul.bf16.gmra.mxu0 %v2957
      %v4130 = vpop.f32.mrf.mxu0
      %v4131 = vadd.f32 %v4058, %v4130
      %v4132 = vpop.f32.mrf.mxu0
      %v4133 = vadd.f32 %v4060, %v4132
      %4134 = vmatmul.bf16.gmra.mxu0 %v2960
      %v4135 = vpop.f32.mrf.mxu0
      %v4136 = vadd.f32 %v4063, %v4135
      %v4137 = vpop.f32.mrf.mxu0
      %v4138 = vadd.f32 %v4065, %v4137
      %4139 = vmatmul.bf16.gmra.mxu0 %v2963
      %v4140 = vpop.f32.mrf.mxu0
      %v4141 = vadd.f32 %v4068, %v4140
      %v4142 = vpop.f32.mrf.mxu0
      %v4143 = vadd.f32 %v4070, %v4142
      %4144 = vmatmul.bf16.gmra.mxu0 %v2966
      %v4145 = vpop.f32.mrf.mxu0
      %v4146 = vadd.f32 %v4073, %v4145
      %v4147 = vpop.f32.mrf.mxu0
      %v4148 = vadd.f32 %v4075, %v4147
      %4149 = vmatmul.bf16.gmra.mxu0 %v2969
      %v4150 = vpop.f32.mrf.mxu0
      %v4151 = vadd.f32 %v4078, %v4150
      %v4152 = vpop.f32.mrf.mxu0
      %v4153 = vadd.f32 %v4080, %v4152
      %4154 = vmatmul.bf16.gmra.mxu0 %v2972
      %v4155 = vpop.f32.mrf.mxu0
      %v4156 = vadd.f32 %v4083, %v4155
      %v4157 = vpop.f32.mrf.mxu0
      %v4158 = vadd.f32 %v4085, %v4157
      %4159 = vmatmul.bf16.gmra.mxu0 %v2975
      %v4160 = vpop.f32.mrf.mxu0
      %v4161 = vadd.f32 %v4088, %v4160
      %v4162 = vpop.f32.mrf.mxu0
      %v4163 = vadd.f32 %v4090, %v4162
      %4164 = vmatmul.bf16.gmra.mxu0 %v2978
      %v4165 = vpop.f32.mrf.mxu0
      %v4166 = vadd.f32 %v4093, %v4165
      %v4167 = vpop.f32.mrf.mxu0
      %v4168 = vadd.f32 %v4095, %v4167
      %4169 = vmatmul.bf16.gmra.mxu0 %v2981
      %v4170 = vpop.f32.mrf.mxu0
      %v4171 = vadd.f32 %v4098, %v4170
      %v4172 = vpop.f32.mrf.mxu0
      %v4173 = vadd.f32 %v4100, %v4172
      %4174 = vmatmul.bf16.gmra.mxu0 %v2984
      %v4175 = vpop.f32.mrf.mxu0
      %v4176 = vadd.f32 %v4103, %v4175
      %v4177 = vpop.f32.mrf.mxu0
      %4178 = vdwg.mxu0
      %v4179 = vmax.f32 %v3094, 0.0
      %v4180 = vmax.f32 %v3240, 0.0
      %v4181 = vmax.f32 %v3386, 0.0
      %v4182 = vmax.f32 %v3532, 0.0
      %v4183 = vmax.f32 %v3678, 0.0
      %v4184 = vmax.f32 %v3824, 0.0
      %v4185 = vmax.f32 %v3970, 0.0
      %v4186 = vmax.f32 %v4116, 0.0
      %v4187 = vmax.f32 %v3096, 0.0
      %v4188 = vmax.f32 %v3242, 0.0
      %v4189 = vmax.f32 %v3388, 0.0
      %v4190 = vmax.f32 %v3534, 0.0
      %v4191 = vmax.f32 %v3680, 0.0
      %v4192 = vmax.f32 %v3826, 0.0
      %v4193 = vmax.f32 %v3972, 0.0
      %v4194 = vmax.f32 %v4118, 0.0
      %v4195 = vmax.f32 %v3099, 0.0
      %v4196 = vmax.f32 %v3245, 0.0
      %v4197 = vmax.f32 %v3391, 0.0
      %v4198 = vmax.f32 %v3537, 0.0
      %v4199 = vmax.f32 %v3683, 0.0
      %v4200 = vmax.f32 %v3829, 0.0
      %v4201 = vmax.f32 %v3975, 0.0
      %v4202 = vmax.f32 %v4121, 0.0
      %v4203 = vmax.f32 %v3101, 0.0
      %v4204 = vmax.f32 %v3247, 0.0
      %v4205 = vmax.f32 %v3393, 0.0
      %v4206 = vmax.f32 %v3539, 0.0
      %v4207 = vmax.f32 %v3685, 0.0
      %v4208 = vmax.f32 %v3831, 0.0
      %v4209 = vmax.f32 %v3977, 0.0
      %v4210 = vmax.f32 %v4123, 0.0
      %v4211 = vmax.f32 %v3104, 0.0
      %v4212 = vmax.f32 %v3250, 0.0
      %v4213 = vmax.f32 %v3396, 0.0
      %v4214 = vmax.f32 %v3542, 0.0
      %v4215 = vmax.f32 %v3688, 0.0
      %v4216 = vmax.f32 %v3834, 0.0
      %v4217 = vmax.f32 %v3980, 0.0
      %v4218 = vmax.f32 %v4126, 0.0
      %v4219 = vmax.f32 %v3106, 0.0
      %v4220 = vmax.f32 %v3252, 0.0
      %v4221 = vmax.f32 %v3398, 0.0
      %v4222 = vmax.f32 %v3544, 0.0
      %v4223 = vmax.f32 %v3690, 0.0
      %v4224 = vmax.f32 %v3836, 0.0
      %v4225 = vmax.f32 %v3982, 0.0
      %v4226 = vmax.f32 %v4128, 0.0
      %v4227 = vmax.f32 %v3109, 0.0
      %v4228 = vmax.f32 %v3255, 0.0
      %v4229 = vmax.f32 %v3401, 0.0
      %v4230 = vmax.f32 %v3547, 0.0
      %v4231 = vmax.f32 %v3693, 0.0
      %v4232 = vmax.f32 %v3839, 0.0
      %v4233 = vmax.f32 %v3985, 0.0
      %v4234 = vmax.f32 %v4131, 0.0
      %v4235 = vmax.f32 %v3111, 0.0
      %v4236 = vmax.f32 %v3257, 0.0
      %v4237 = vmax.f32 %v3403, 0.0
      %v4238 = vmax.f32 %v3549, 0.0
      %v4239 = vmax.f32 %v3695, 0.0
      %v4240 = vmax.f32 %v3841, 0.0
      %v4241 = vmax.f32 %v3987, 0.0
      %v4242 = vmax.f32 %v4133, 0.0
      %v4243 = vmax.f32 %v3114, 0.0
      %v4244 = vmax.f32 %v3260, 0.0
      %v4245 = vmax.f32 %v3406, 0.0
      %v4246 = vmax.f32 %v3552, 0.0
      %v4247 = vmax.f32 %v3698, 0.0
      %v4248 = vmax.f32 %v3844, 0.0
      %v4249 = vmax.f32 %v3990, 0.0
      %v4250 = vmax.f32 %v4136, 0.0
      %v4251 = vmax.f32 %v3116, 0.0
      %v4252 = vmax.f32 %v3262, 0.0
      %v4253 = vmax.f32 %v3408, 0.0
      %v4254 = vmax.f32 %v3554, 0.0
      %v4255 = vmax.f32 %v3700, 0.0
      %v4256 = vmax.f32 %v3846, 0.0
      %v4257 = vmax.f32 %v3992, 0.0
      %v4258 = vmax.f32 %v4138, 0.0
      %v4259 = vmax.f32 %v3119, 0.0
      %v4260 = vmax.f32 %v3265, 0.0
      %v4261 = vmax.f32 %v3411, 0.0
      %v4262 = vmax.f32 %v3557, 0.0
      %v4263 = vmax.f32 %v3703, 0.0
      %v4264 = vmax.f32 %v3849, 0.0
      %v4265 = vmax.f32 %v3995, 0.0
      %v4266 = vmax.f32 %v4141, 0.0
      %v4267 = vmax.f32 %v3121, 0.0
      %v4268 = vmax.f32 %v3267, 0.0
      %v4269 = vmax.f32 %v3413, 0.0
      %v4270 = vmax.f32 %v3559, 0.0
      %v4271 = vmax.f32 %v3705, 0.0
      %v4272 = vmax.f32 %v3851, 0.0
      %v4273 = vmax.f32 %v3997, 0.0
      %v4274 = vmax.f32 %v4143, 0.0
      %v4275 = vmax.f32 %v3124, 0.0
      %v4276 = vmax.f32 %v3270, 0.0
      %v4277 = vmax.f32 %v3416, 0.0
      %v4278 = vmax.f32 %v3562, 0.0
      %v4279 = vmax.f32 %v3708, 0.0
      %v4280 = vmax.f32 %v3854, 0.0
      %v4281 = vmax.f32 %v4000, 0.0
      %v4282 = vmax.f32 %v4146, 0.0
      %v4283 = vmax.f32 %v3126, 0.0
      %v4284 = vmax.f32 %v3272, 0.0
      %v4285 = vmax.f32 %v3418, 0.0
      %v4286 = vmax.f32 %v3564, 0.0
      %v4287 = vmax.f32 %v3710, 0.0
      %v4288 = vmax.f32 %v3856, 0.0
      %v4289 = vmax.f32 %v4002, 0.0
      %v4290 = vmax.f32 %v4148, 0.0
      %v4291 = vmax.f32 %v3129, 0.0
      %v4292 = vmax.f32 %v3275, 0.0
      %v4293 = vmax.f32 %v3421, 0.0
      %v4294 = vmax.f32 %v3567, 0.0
      %v4295 = vmax.f32 %v3713, 0.0
      %v4296 = vmax.f32 %v3859, 0.0
      %v4297 = vmax.f32 %v4005, 0.0
      %v4298 = vmax.f32 %v4151, 0.0
      %v4299 = vmax.f32 %v3131, 0.0
      %v4300 = vmax.f32 %v3277, 0.0
      %v4301 = vmax.f32 %v3423, 0.0
      %v4302 = vmax.f32 %v3569, 0.0
      %v4303 = vmax.f32 %v3715, 0.0
      %v4304 = vmax.f32 %v3861, 0.0
      %v4305 = vmax.f32 %v4007, 0.0
      %v4306 = vmax.f32 %v4153, 0.0
      %v4307 = vmax.f32 %v3134, 0.0
      %v4308 = vmax.f32 %v3280, 0.0
      %v4309 = vmax.f32 %v3426, 0.0
      %v4310 = vmax.f32 %v3572, 0.0
      %v4311 = vmax.f32 %v3718, 0.0
      %v4312 = vmax.f32 %v3864, 0.0
      %v4313 = vmax.f32 %v4010, 0.0
      %v4314 = vmax.f32 %v4156, 0.0
      %v4315 = vmax.f32 %v3136, 0.0
      %v4316 = vmax.f32 %v3282, 0.0
      %v4317 = vmax.f32 %v3428, 0.0
      %v4318 = vmax.f32 %v3574, 0.0
      %v4319 = vmax.f32 %v3720, 0.0
      %v4320 = vmax.f32 %v3866, 0.0
      %v4321 = vmax.f32 %v4012, 0.0
      %v4322 = vmax.f32 %v4158, 0.0
      %v4323 = vmax.f32 %v3139, 0.0
      %v4324 = vmax.f32 %v3285, 0.0
      %v4325 = vmax.f32 %v3431, 0.0
      %v4326 = vmax.f32 %v3577, 0.0
      %v4327 = vmax.f32 %v3723, 0.0
      %v4328 = vmax.f32 %v3869, 0.0
      %v4329 = vmax.f32 %v4015, 0.0
      %v4330 = vmax.f32 %v4161, 0.0
      %v4331 = vmax.f32 %v3141, 0.0
      %v4332 = vmax.f32 %v3287, 0.0
      %v4333 = vmax.f32 %v3433, 0.0
      %v4334 = vmax.f32 %v3579, 0.0
      %v4335 = vmax.f32 %v3725, 0.0
      %v4336 = vmax.f32 %v3871, 0.0
      %v4337 = vmax.f32 %v4017, 0.0
      %v4338 = vmax.f32 %v4163, 0.0
      %v4339 = vmax.f32 %v3144, 0.0
      %v4340 = vmax.f32 %v3290, 0.0
      %v4341 = vmax.f32 %v3436, 0.0
      %v4342 = vmax.f32 %v3582, 0.0
      %v4343 = vmax.f32 %v3728, 0.0
      %v4344 = vmax.f32 %v3874, 0.0
      %v4345 = vmax.f32 %v4020, 0.0
      %v4346 = vmax.f32 %v4166, 0.0
      %v4347 = vmax.f32 %v3146, 0.0
      %v4348 = vmax.f32 %v3292, 0.0
      %v4349 = vmax.f32 %v3438, 0.0
      %v4350 = vmax.f32 %v3584, 0.0
      %v4351 = vmax.f32 %v3730, 0.0
      %v4352 = vmax.f32 %v3876, 0.0
      %v4353 = vmax.f32 %v4022, 0.0
      %v4354 = vmax.f32 %v4168, 0.0
      %v4355 = vmax.f32 %v3149, 0.0
      %v4356 = vmax.f32 %v3295, 0.0
      %v4357 = vmax.f32 %v3441, 0.0
      %v4358 = vmax.f32 %v3587, 0.0
      %v4359 = vmax.f32 %v3733, 0.0
      %v4360 = vmax.f32 %v3879, 0.0
      %v4361 = vmax.f32 %v4025, 0.0
      %v4362 = vmax.f32 %v4171, 0.0
      %v4363 = vmax.f32 %v3151, 0.0
      %v4364 = vmax.f32 %v3297, 0.0
      %v4365 = vmax.f32 %v3443, 0.0
      %v4366 = vmax.f32 %v3589, 0.0
      %v4367 = vmax.f32 %v3735, 0.0
      %v4368 = vmax.f32 %v3881, 0.0
      %v4369 = vmax.f32 %v4027, 0.0
      %v4370 = vmax.f32 %v4173, 0.0
      %v4371 = vmax.f32 %v3154, 0.0
      %v4372 = vmax.f32 %v3300, 0.0
      %v4373 = vmax.f32 %v3446, 0.0
      %v4374 = vmax.f32 %v3592, 0.0
      %v4375 = vmax.f32 %v3738, 0.0
      %v4376 = vmax.f32 %v3884, 0.0
      %v4377 = vmax.f32 %v4030, 0.0
      %v4378 = vmax.f32 %v4176, 0.0
      %v4379 = vld [vmem:[%s4] sm:$0xff]
      %v4380 = vld [vmem:[%s4 + $0x8] sm:$0xff]
      %v4381 = vld [vmem:[%s4 + $0x10] sm:$0xff]
      %v4382 = vld [vmem:[%s4 + $0x18] sm:$0xff]
      %v4383 = vld [vmem:[%s4 + $0x20] sm:$0xff]
      %v4384 = vld [vmem:[%s4 + $0x28] sm:$0xff]
      %v4385 = vld [vmem:[%s4 + $0x30] sm:$0xff]
      %v4386 = vld [vmem:[%s4 + $0x38] sm:$0xff]
      %v4387 = vld [vmem:[%s4 + $0x40] sm:$0xff]
      %v4388 = vld [vmem:[%s4 + $0x48] sm:$0xff]
      %v4389 = vld [vmem:[%s4 + $0x50] sm:$0xff]
      %v4390 = vld [vmem:[%s4 + $0x58] sm:$0xff]
      %v4391 = vld [vmem:[%s4 + $0x60] sm:$0xff]
      %v4392 = vld [vmem:[%s4 + $0x68] sm:$0xff]
      %v4393 = vld [vmem:[%s4 + $0x70] sm:$0xff]
      %v4394 = vld [vmem:[%s4 + $0x78] sm:$0xff]
      %v4395 = vld [vmem:[%s4 + $0x80] sm:$0xff]
      %v4396 = vld [vmem:[%s4 + $0x88] sm:$0xff]
      %v4397 = vld [vmem:[%s4 + $0x90] sm:$0xff]
      %v4398 = vld [vmem:[%s4 + $0x98] sm:$0xff]
      %v4399 = vld [vmem:[%s4 + $0xa0] sm:$0xff]
      %v4400 = vld [vmem:[%s4 + $0xa8] sm:$0xff]
      %v4401 = vld [vmem:[%s4 + $0xb0] sm:$0xff]
      %v4402 = vld [vmem:[%s4 + $0xb8] sm:$0xff]
      %v4403 = vld [vmem:[%s4 + $0xc0] sm:$0xff]
      %v4404 = vpack.c.bf16 %v4187, %v4179
      %v4405 = vpack.c.bf16 %v4188, %v4180
      %v4406 = vpack.c.bf16 %v4189, %v4181
      %v4407 = vpack.c.bf16 %v4190, %v4182
      %v4408 = vpack.c.bf16 %v4191, %v4183
      %v4409 = vpack.c.bf16 %v4192, %v4184
      %v4410 = vpack.c.bf16 %v4193, %v4185
      %v4411 = vpack.c.bf16 %v4194, %v4186
      %v4412 = vpack.c.bf16 %v4203, %v4195
      %v4413 = vpack.c.bf16 %v4204, %v4196
      %v4414 = vpack.c.bf16 %v4205, %v4197
      %v4415 = vpack.c.bf16 %v4206, %v4198
      %v4416 = vpack.c.bf16 %v4207, %v4199
      %v4417 = vpack.c.bf16 %v4208, %v4200
      %v4418 = vpack.c.bf16 %v4209, %v4201
      %v4419 = vpack.c.bf16 %v4210, %v4202
      %v4420 = vpack.c.bf16 %v4219, %v4211
      %v4421 = vpack.c.bf16 %v4220, %v4212
      %v4422 = vpack.c.bf16 %v4221, %v4213
      %v4423 = vpack.c.bf16 %v4222, %v4214
      %v4424 = vpack.c.bf16 %v4223, %v4215
      %v4425 = vpack.c.bf16 %v4224, %v4216
      %v4426 = vpack.c.bf16 %v4225, %v4217
      %v4427 = vpack.c.bf16 %v4226, %v4218
      %v4428 = vpack.c.bf16 %v4235, %v4227
      %v4429 = vpack.c.bf16 %v4236, %v4228
      %v4430 = vpack.c.bf16 %v4237, %v4229
      %v4431 = vpack.c.bf16 %v4238, %v4230
      %v4432 = vpack.c.bf16 %v4239, %v4231
      %v4433 = vpack.c.bf16 %v4240, %v4232
      %v4434 = vpack.c.bf16 %v4241, %v4233
      %v4435 = vpack.c.bf16 %v4242, %v4234
      %v4436 = vpack.c.bf16 %v4251, %v4243
      %v4437 = vpack.c.bf16 %v4252, %v4244
      %v4438 = vpack.c.bf16 %v4253, %v4245
      %v4439 = vpack.c.bf16 %v4254, %v4246
      %v4440 = vpack.c.bf16 %v4255, %v4247
      %v4441 = vpack.c.bf16 %v4256, %v4248
      %v4442 = vpack.c.bf16 %v4257, %v4249
      %v4443 = vpack.c.bf16 %v4258, %v4250
      %v4444 = vpack.c.bf16 %v4267, %v4259
      %v4445 = vpack.c.bf16 %v4268, %v4260
      %v4446 = vpack.c.bf16 %v4269, %v4261
      %v4447 = vpack.c.bf16 %v4270, %v4262
      %v4448 = vpack.c.bf16 %v4271, %v4263
      %v4449 = vpack.c.bf16 %v4272, %v4264
      %v4450 = vpack.c.bf16 %v4273, %v4265
      %v4451 = vpack.c.bf16 %v4274, %v4266
      %v4452 = vpack.c.bf16 %v4283, %v4275
      %v4453 = vpack.c.bf16 %v4284, %v4276
      %v4454 = vpack.c.bf16 %v4285, %v4277
      %v4455 = vpack.c.bf16 %v4286, %v4278
      %v4456 = vpack.c.bf16 %v4287, %v4279
      %v4457 = vpack.c.bf16 %v4288, %v4280
      %v4458 = vpack.c.bf16 %v4289, %v4281
      %v4459 = vpack.c.bf16 %v4290, %v4282
      %v4460 = vpack.c.bf16 %v4299, %v4291
      %v4461 = vpack.c.bf16 %v4300, %v4292
      %v4462 = vpack.c.bf16 %v4301, %v4293
      %v4463 = vpack.c.bf16 %v4302, %v4294
      %v4464 = vpack.c.bf16 %v4303, %v4295
      %v4465 = vpack.c.bf16 %v4304, %v4296
      %v4466 = vpack.c.bf16 %v4305, %v4297
      %v4467 = vpack.c.bf16 %v4306, %v4298
      %v4468 = vpack.c.bf16 %v4315, %v4307
      %v4469 = vpack.c.bf16 %v4316, %v4308
      %v4470 = vpack.c.bf16 %v4317, %v4309
      %v4471 = vpack.c.bf16 %v4318, %v4310
      %v4472 = vpack.c.bf16 %v4319, %v4311
      %v4473 = vpack.c.bf16 %v4320, %v4312
      %v4474 = vpack.c.bf16 %v4321, %v4313
      %v4475 = vpack.c.bf16 %v4322, %v4314
      %v4476 = vpack.c.bf16 %v4331, %v4323
      %v4477 = vpack.c.bf16 %v4332, %v4324
      %v4478 = vpack.c.bf16 %v4333, %v4325
      %v4479 = vpack.c.bf16 %v4334, %v4326
      %v4480 = vpack.c.bf16 %v4335, %v4327
      %v4481 = vpack.c.bf16 %v4336, %v4328
      %v4482 = vpack.c.bf16 %v4337, %v4329
      %v4483 = vpack.c.bf16 %v4338, %v4330
      %v4484 = vpack.c.bf16 %v4347, %v4339
      %v4485 = vpack.c.bf16 %v4348, %v4340
      %v4486 = vpack.c.bf16 %v4349, %v4341
      %v4487 = vpack.c.bf16 %v4350, %v4342
      %v4488 = vpack.c.bf16 %v4351, %v4343
      %v4489 = vpack.c.bf16 %v4352, %v4344
      %v4490 = vpack.c.bf16 %v4353, %v4345
      %v4491 = vpack.c.bf16 %v4354, %v4346
      %v4492 = vpack.c.bf16 %v4363, %v4355
      %v4493 = vpack.c.bf16 %v4364, %v4356
      %v4494 = vpack.c.bf16 %v4365, %v4357
      %v4495 = vpack.c.bf16 %v4366, %v4358
      %v4496 = vpack.c.bf16 %v4367, %v4359
      %v4497 = vpack.c.bf16 %v4368, %v4360
      %v4498 = vpack.c.bf16 %v4369, %v4361
      %v4499 = vpack.c.bf16 %v4370, %v4362
      %v4500 = vpack.c.bf16 %v4371, %v4371
      %v4501 = vpack.c.bf16 %v4372, %v4372
      %v4502 = vpack.c.bf16 %v4373, %v4373
      %v4503 = vpack.c.bf16 %v4374, %v4374
      %v4504 = vpack.c.bf16 %v4375, %v4375
      %v4505 = vpack.c.bf16 %v4376, %v4376
      %v4506 = vpack.c.bf16 %v4377, %v4377
      %v4507 = vpack.c.bf16 %v4378, %v4378
      %v4508 = vld [vmem:[%s5] sm:$0xff]
      %v4509 = vld [vmem:[%s5 + $0x8] sm:$0xff]
      %v4510 = vld [vmem:[%s5 + $0x10] sm:$0xff]
      %v4511 = vld [vmem:[%s5 + $0x18] sm:$0xff]
      %v4512 = vld [vmem:[%s5 + $0x20] sm:$0xff]
      %v4513 = vld [vmem:[%s5 + $0x28] sm:$0xff]
      %v4514 = vld [vmem:[%s5 + $0x30] sm:$0xff]
      %v4515 = vld [vmem:[%s5 + $0x38] sm:$0xff]
      %v4516 = vld [vmem:[%s5 + $0x40] sm:$0xff]
      %v4517 = vld [vmem:[%s5 + $0x48] sm:$0xff]
      %v4518 = vld [vmem:[%s5 + $0x50] sm:$0xff]
      %v4519 = vld [vmem:[%s5 + $0x58] sm:$0xff]
      %v4520 = vld [vmem:[%s5 + $0x60] sm:$0xff]
      %v4521 = vld [vmem:[%s5 + $0x68] sm:$0xff]
      %v4522 = vld [vmem:[%s5 + $0x70] sm:$0xff]
      %v4523 = vld [vmem:[%s5 + $0x78] sm:$0xff]
      %v4524 = vld [vmem:[%s5 + $0x80] sm:$0xff]
      %v4525 = vld [vmem:[%s5 + $0x88] sm:$0xff]
      %v4526 = vld [vmem:[%s5 + $0x90] sm:$0xff]
      %v4527 = vld [vmem:[%s5 + $0x98] sm:$0xff]
      %v4528 = vld [vmem:[%s5 + $0xa0] sm:$0xff]
      %v4529 = vld [vmem:[%s5 + $0xa8] sm:$0xff]
      %v4530 = vld [vmem:[%s5 + $0xb0] sm:$0xff]
      %v4531 = vld [vmem:[%s5 + $0xb8] sm:$0xff]
      %v4532 = vld [vmem:[%s5 + $0xc0] sm:$0xff]
      %4534 = vset.pattern.permute.xlu0 0
      %4535 = vperm.xlu0 %4534, %v4508
      %v4536 = vpop.permute.xlu0 %4535
      %4539 = vset.pattern.permute.xlu0 0
      %4540 = vperm.xlu0 %4539, %v4509
      %v4541 = vpop.permute.xlu0 %4540
      %4544 = vset.pattern.permute.xlu0 0
      %4545 = vperm.xlu0 %4544, %v4510
      %v4546 = vpop.permute.xlu0 %4545
      %4549 = vset.pattern.permute.xlu0 0
      %4550 = vperm.xlu0 %4549, %v4511
      %v4551 = vpop.permute.xlu0 %4550
      %4554 = vset.pattern.permute.xlu0 0
      %4555 = vperm.xlu0 %4554, %v4512
      %v4556 = vpop.permute.xlu0 %4555
      %4559 = vset.pattern.permute.xlu0 0
      %4560 = vperm.xlu0 %4559, %v4513
      %v4561 = vpop.permute.xlu0 %4560
      %4564 = vset.pattern.permute.xlu0 0
      %4565 = vperm.xlu0 %4564, %v4514
      %v4566 = vpop.permute.xlu0 %4565
      %4569 = vset.pattern.permute.xlu0 0
      %4570 = vperm.xlu0 %4569, %v4515
      %v4571 = vpop.permute.xlu0 %4570
      %4574 = vset.pattern.permute.xlu0 0
      %4575 = vperm.xlu0 %4574, %v4516
      %v4576 = vpop.permute.xlu0 %4575
      %4579 = vset.pattern.permute.xlu0 0
      %4580 = vperm.xlu0 %4579, %v4517
      %v4581 = vpop.permute.xlu0 %4580
      %4584 = vset.pattern.permute.xlu0 0
      %4585 = vperm.xlu0 %4584, %v4518
      %v4586 = vpop.permute.xlu0 %4585
      %4589 = vset.pattern.permute.xlu0 0
      %4590 = vperm.xlu0 %4589, %v4519
      %v4591 = vpop.permute.xlu0 %4590
      %4594 = vset.pattern.permute.xlu0 0
      %4595 = vperm.xlu0 %4594, %v4520
      %v4596 = vpop.permute.xlu0 %4595
      %4599 = vset.pattern.permute.xlu0 0
      %4600 = vperm.xlu0 %4599, %v4521
      %v4601 = vpop.permute.xlu0 %4600
      %4604 = vset.pattern.permute.xlu0 0
      %4605 = vperm.xlu0 %4604, %v4522
      %v4606 = vpop.permute.xlu0 %4605
      %4609 = vset.pattern.permute.xlu0 0
      %4610 = vperm.xlu0 %4609, %v4523
      %v4611 = vpop.permute.xlu0 %4610
      %4614 = vset.pattern.permute.xlu0 0
      %4615 = vperm.xlu0 %4614, %v4524
      %v4616 = vpop.permute.xlu0 %4615
      %4619 = vset.pattern.permute.xlu0 0
      %4620 = vperm.xlu0 %4619, %v4525
      %v4621 = vpop.permute.xlu0 %4620
      %4624 = vset.pattern.permute.xlu0 0
      %4625 = vperm.xlu0 %4624, %v4526
      %v4626 = vpop.permute.xlu0 %4625
      %4629 = vset.pattern.permute.xlu0 0
      %4630 = vperm.xlu0 %4629, %v4527
      %v4631 = vpop.permute.xlu0 %4630
      %4634 = vset.pattern.permute.xlu0 0
      %4635 = vperm.xlu0 %4634, %v4528
      %v4636 = vpop.permute.xlu0 %4635
      %4639 = vset.pattern.permute.xlu0 0
      %4640 = vperm.xlu0 %4639, %v4529
      %v4641 = vpop.permute.xlu0 %4640
      %4644 = vset.pattern.permute.xlu0 0
      %4645 = vperm.xlu0 %4644, %v4530
      %v4646 = vpop.permute.xlu0 %4645
      %4649 = vset.pattern.permute.xlu0 0
      %4650 = vperm.xlu0 %4649, %v4531
      %v4651 = vpop.permute.xlu0 %4650
      %4654 = vset.pattern.permute.xlu0 0
      %4655 = vperm.xlu0 %4654, %v4532
      %v4656 = vpop.permute.xlu0 %4655
      %v4683 = vunpack.c.l.b16 %v4379
      %v4684 = vunpack.c.h.b16 %v4379
      %v4685 = vunpack.c.l.b16 %v4380
      %v4686 = vunpack.c.h.b16 %v4380
      %v4687 = vunpack.c.l.b16 %v4381
      %v4688 = vunpack.c.h.b16 %v4381
      %v4689 = vunpack.c.l.b16 %v4382
      %v4690 = vunpack.c.h.b16 %v4382
      %v4691 = vunpack.c.l.b16 %v4383
      %v4692 = vunpack.c.h.b16 %v4383
      %v4693 = vunpack.c.l.b16 %v4384
      %v4694 = vunpack.c.h.b16 %v4384
      %v4695 = vunpack.c.l.b16 %v4385
      %v4696 = vunpack.c.h.b16 %v4385
      %v4697 = vunpack.c.l.b16 %v4386
      %v4698 = vunpack.c.h.b16 %v4386
      %v4699 = vunpack.c.l.b16 %v4387
      %v4700 = vunpack.c.h.b16 %v4387
      %v4701 = vunpack.c.l.b16 %v4388
      %v4702 = vunpack.c.h.b16 %v4388
      %v4703 = vunpack.c.l.b16 %v4389
      %v4704 = vunpack.c.h.b16 %v4389
      %v4705 = vunpack.c.l.b16 %v4390
      %v4706 = vunpack.c.h.b16 %v4390
      %v4707 = vunpack.c.l.b16 %v4391
      %v4708 = vunpack.c.h.b16 %v4391
      %v4709 = vunpack.c.l.b16 %v4392
      %v4710 = vunpack.c.h.b16 %v4392
      %v4711 = vunpack.c.l.b16 %v4393
      %v4712 = vunpack.c.h.b16 %v4393
      %v4713 = vunpack.c.l.b16 %v4394
      %v4714 = vunpack.c.h.b16 %v4394
      %v4715 = vunpack.c.l.b16 %v4395
      %v4716 = vunpack.c.h.b16 %v4395
      %v4717 = vunpack.c.l.b16 %v4396
      %v4718 = vunpack.c.h.b16 %v4396
      %v4719 = vunpack.c.l.b16 %v4397
      %v4720 = vunpack.c.h.b16 %v4397
      %v4721 = vunpack.c.l.b16 %v4398
      %v4722 = vunpack.c.h.b16 %v4398
      %v4723 = vunpack.c.l.b16 %v4399
      %v4724 = vunpack.c.h.b16 %v4399
      %v4725 = vunpack.c.l.b16 %v4400
      %v4726 = vunpack.c.h.b16 %v4400
      %v4727 = vunpack.c.l.b16 %v4401
      %v4728 = vunpack.c.h.b16 %v4401
      %v4729 = vunpack.c.l.b16 %v4402
      %v4730 = vunpack.c.h.b16 %v4402
      %v4731 = vunpack.c.l.b16 %v4403
      %v4732 = vunpack.c.h.b16 %v4403
      %v4733 = vpack.c.b16 %v4685, %v4683
      %v4734 = vpack.c.b16 %v4686, %v4684
      %v4735 = vpack.c.b16 %v4689, %v4687
      %v4736 = vpack.c.b16 %v4690, %v4688
      %v4737 = vpack.c.b16 %v4693, %v4691
      %v4738 = vpack.c.b16 %v4694, %v4692
      %v4739 = vpack.c.b16 %v4697, %v4695
      %v4740 = vpack.c.b16 %v4698, %v4696
      %v4741 = vpack.c.b16 %v4701, %v4699
      %v4742 = vpack.c.b16 %v4702, %v4700
      %v4743 = vpack.c.b16 %v4705, %v4703
      %v4744 = vpack.c.b16 %v4706, %v4704
      %v4745 = vpack.c.b16 %v4709, %v4707
      %v4746 = vpack.c.b16 %v4710, %v4708
      %v4747 = vpack.c.b16 %v4713, %v4711
      %v4748 = vpack.c.b16 %v4714, %v4712
      %v4749 = vpack.c.b16 %v4717, %v4715
      %v4750 = vpack.c.b16 %v4718, %v4716
      %v4751 = vpack.c.b16 %v4721, %v4719
      %v4752 = vpack.c.b16 %v4722, %v4720
      %v4753 = vpack.c.b16 %v4725, %v4723
      %v4754 = vpack.c.b16 %v4726, %v4724
      %v4755 = vpack.c.b16 %v4729, %v4727
      %v4756 = vpack.c.b16 %v4730, %v4728
      %v4757 = vpack.c.b16 %v4731, %v4731
      %v4758 = vpack.c.b16 %v4732, %v4732
      %v4773 = vsel %vm2946, %v4734, 0
      %v4776 = vsel %vm2946, %v4736, 0
      %v4779 = vsel %vm2946, %v4738, 0
      %v4782 = vsel %vm2946, %v4740, 0
      %v4785 = vsel %vm2946, %v4742, 0
      %v4788 = vsel %vm2946, %v4744, 0
      %v4791 = vsel %vm2946, %v4746, 0
      %v4794 = vsel %vm2946, %v4748, 0
      %v4797 = vsel %vm2946, %v4750, 0
      %v4800 = vsel %vm2946, %v4752, 0
      %v4803 = vsel %vm2946, %v4754, 0
      %v4806 = vsel %vm2946, %v4756, 0
      %v4809 = vsel %vm2946, %v4758, 0
      %v4812 = vsel %vm2986, %v4500, 0
      %v4815 = vsel %vm2986, %v4501, 0
      %v4818 = vsel %vm2986, %v4502, 0
      %v4821 = vsel %vm2986, %v4503, 0
      %v4824 = vsel %vm2986, %v4504, 0
      %v4827 = vsel %vm2986, %v4505, 0
      %v4830 = vsel %vm2986, %v4506, 0
      %v4833 = vsel %vm2986, %v4507, 0
      %4835 = vmatpush.bf16.msra.mxu0 %v4460
      %4836 = vmatpush.bf16.msra.mxu0 %v4452
      %4837 = vmatpush.bf16.msra.mxu0 %v4444
      %4838 = vmatpush.bf16.msra.mxu0 %v4436
      %4839 = vmatpush.bf16.msra.mxu0 %v4428
      %4840 = vmatpush.bf16.msra.mxu0 %v4420
      %4841 = vmatpush.bf16.msra.mxu0 %v4412
      %4842 = vmatpush.bf16.msra.mxu0 %v4404
      %4843 = vmatmul.bf16.gmra.mxu0 %v4733
      %v4844 = vpop.f32.mrf.mxu0
      %v4845 = vadd.f32 %v4536, %v4844
      %v4846 = vpop.f32.mrf.mxu0
      %v4847 = vadd.f32 %v4541, %v4846
      %4848 = vmatmul.bf16.gmra.mxu0 %v4735
      %v4849 = vpop.f32.mrf.mxu0
      %v4850 = vadd.f32 %v4546, %v4849
      %v4851 = vpop.f32.mrf.mxu0
      %v4852 = vadd.f32 %v4551, %v4851
      %4853 = vmatmul.bf16.gmra.mxu0 %v4737
      %v4854 = vpop.f32.mrf.mxu0
      %v4855 = vadd.f32 %v4556, %v4854
      %v4856 = vpop.f32.mrf.mxu0
      %v4857 = vadd.f32 %v4561, %v4856
      %4858 = vmatmul.bf16.gmra.mxu0 %v4739
      %v4859 = vpop.f32.mrf.mxu0
      %v4860 = vadd.f32 %v4566, %v4859
      %v4861 = vpop.f32.mrf.mxu0
      %v4862 = vadd.f32 %v4571, %v4861
      %4863 = vmatmul.bf16.gmra.mxu0 %v4741
      %v4864 = vpop.f32.mrf.mxu0
      %v4865 = vadd.f32 %v4576, %v4864
      %v4866 = vpop.f32.mrf.mxu0
      %v4867 = vadd.f32 %v4581, %v4866
      %4868 = vmatmul.bf16.gmra.mxu0 %v4743
      %v4869 = vpop.f32.mrf.mxu0
      %v4870 = vadd.f32 %v4586, %v4869
      %v4871 = vpop.f32.mrf.mxu0
      %v4872 = vadd.f32 %v4591, %v4871
      %4873 = vmatmul.bf16.gmra.mxu0 %v4745
      %v4874 = vpop.f32.mrf.mxu0
      %v4875 = vadd.f32 %v4596, %v4874
      %v4876 = vpop.f32.mrf.mxu0
      %v4877 = vadd.f32 %v4601, %v4876
      %4878 = vmatmul.bf16.gmra.mxu0 %v4747
      %v4879 = vpop.f32.mrf.mxu0
      %v4880 = vadd.f32 %v4606, %v4879
      %v4881 = vpop.f32.mrf.mxu0
      %v4882 = vadd.f32 %v4611, %v4881
      %4883 = vmatmul.bf16.gmra.mxu0 %v4749
      %v4884 = vpop.f32.mrf.mxu0
      %v4885 = vadd.f32 %v4616, %v4884
      %v4886 = vpop.f32.mrf.mxu0
      %v4887 = vadd.f32 %v4621, %v4886
      %4888 = vmatmul.bf16.gmra.mxu0 %v4751
      %v4889 = vpop.f32.mrf.mxu0
      %v4890 = vadd.f32 %v4626, %v4889
      %v4891 = vpop.f32.mrf.mxu0
      %v4892 = vadd.f32 %v4631, %v4891
      %4893 = vmatmul.bf16.gmra.mxu0 %v4753
      %v4894 = vpop.f32.mrf.mxu0
      %v4895 = vadd.f32 %v4636, %v4894
      %v4896 = vpop.f32.mrf.mxu0
      %v4897 = vadd.f32 %v4641, %v4896
      %4898 = vmatmul.bf16.gmra.mxu0 %v4755
      %v4899 = vpop.f32.mrf.mxu0
      %v4900 = vadd.f32 %v4646, %v4899
      %v4901 = vpop.f32.mrf.mxu0
      %v4902 = vadd.f32 %v4651, %v4901
      %4903 = vmatmul.bf16.gmra.mxu0 %v4757
      %v4904 = vpop.f32.mrf.mxu0
      %v4905 = vadd.f32 %v4656, %v4904
      %v4906 = vpop.f32.mrf.mxu0
      %4907 = vdwg.mxu0
      %4908 = vmatpush.bf16.msra.mxu0 0
      %4909 = vmatpush.bf16.msra.mxu0 0
      %4910 = vmatpush.bf16.msra.mxu0 0
      %4911 = vmatpush.bf16.msra.mxu0 %v4812
      %4912 = vmatpush.bf16.msra.mxu0 %v4492
      %4913 = vmatpush.bf16.msra.mxu0 %v4484
      %4914 = vmatpush.bf16.msra.mxu0 %v4476
      %4915 = vmatpush.bf16.msra.mxu0 %v4468
      %4916 = vmatmul.bf16.gmra.mxu0 %v4773
      %v4917 = vpop.f32.mrf.mxu0
      %v4918 = vadd.f32 %v4845, %v4917
      %v4919 = vpop.f32.mrf.mxu0
      %v4920 = vadd.f32 %v4847, %v4919
      %4921 = vmatmul.bf16.gmra.mxu0 %v4776
      %v4922 = vpop.f32.mrf.mxu0
      %v4923 = vadd.f32 %v4850, %v4922
      %v4924 = vpop.f32.mrf.mxu0
      %v4925 = vadd.f32 %v4852, %v4924
      %4926 = vmatmul.bf16.gmra.mxu0 %v4779
      %v4927 = vpop.f32.mrf.mxu0
      %v4928 = vadd.f32 %v4855, %v4927
      %v4929 = vpop.f32.mrf.mxu0
      %v4930 = vadd.f32 %v4857, %v4929
      %4931 = vmatmul.bf16.gmra.mxu0 %v4782
      %v4932 = vpop.f32.mrf.mxu0
      %v4933 = vadd.f32 %v4860, %v4932
      %v4934 = vpop.f32.mrf.mxu0
      %v4935 = vadd.f32 %v4862, %v4934
      %4936 = vmatmul.bf16.gmra.mxu0 %v4785
      %v4937 = vpop.f32.mrf.mxu0
      %v4938 = vadd.f32 %v4865, %v4937
      %v4939 = vpop.f32.mrf.mxu0
      %v4940 = vadd.f32 %v4867, %v4939
      %4941 = vmatmul.bf16.gmra.mxu0 %v4788
      %v4942 = vpop.f32.mrf.mxu0
      %v4943 = vadd.f32 %v4870, %v4942
      %v4944 = vpop.f32.mrf.mxu0
      %v4945 = vadd.f32 %v4872, %v4944
      %4946 = vmatmul.bf16.gmra.mxu0 %v4791
      %v4947 = vpop.f32.mrf.mxu0
      %v4948 = vadd.f32 %v4875, %v4947
      %v4949 = vpop.f32.mrf.mxu0
      %v4950 = vadd.f32 %v4877, %v4949
      %4951 = vmatmul.bf16.gmra.mxu0 %v4794
      %v4952 = vpop.f32.mrf.mxu0
      %v4953 = vadd.f32 %v4880, %v4952
      %v4954 = vpop.f32.mrf.mxu0
      %v4955 = vadd.f32 %v4882, %v4954
      %4956 = vmatmul.bf16.gmra.mxu0 %v4797
      %v4957 = vpop.f32.mrf.mxu0
      %v4958 = vadd.f32 %v4885, %v4957
      %v4959 = vpop.f32.mrf.mxu0
      %v4960 = vadd.f32 %v4887, %v4959
      %4961 = vmatmul.bf16.gmra.mxu0 %v4800
      %v4962 = vpop.f32.mrf.mxu0
      %v4963 = vadd.f32 %v4890, %v4962
      %v4964 = vpop.f32.mrf.mxu0
      %v4965 = vadd.f32 %v4892, %v4964
      %4966 = vmatmul.bf16.gmra.mxu0 %v4803
      %v4967 = vpop.f32.mrf.mxu0
      %v4968 = vadd.f32 %v4895, %v4967
      %v4969 = vpop.f32.mrf.mxu0
      %v4970 = vadd.f32 %v4897, %v4969
      %4971 = vmatmul.bf16.gmra.mxu0 %v4806
      %v4972 = vpop.f32.mrf.mxu0
      %v4973 = vadd.f32 %v4900, %v4972
      %v4974 = vpop.f32.mrf.mxu0
      %v4975 = vadd.f32 %v4902, %v4974
      %4976 = vmatmul.bf16.gmra.mxu0 %v4809
      %v4977 = vpop.f32.mrf.mxu0
      %v4978 = vadd.f32 %v4905, %v4977
      %v4979 = vpop.f32.mrf.mxu0
      %4980 = vdwg.mxu0
      %4981 = vmatpush.bf16.msra.mxu0 %v4461
      %4982 = vmatpush.bf16.msra.mxu0 %v4453
      %4983 = vmatpush.bf16.msra.mxu0 %v4445
      %4984 = vmatpush.bf16.msra.mxu0 %v4437
      %4985 = vmatpush.bf16.msra.mxu0 %v4429
      %4986 = vmatpush.bf16.msra.mxu0 %v4421
      %4987 = vmatpush.bf16.msra.mxu0 %v4413
      %4988 = vmatpush.bf16.msra.mxu0 %v4405
      %4989 = vmatmul.bf16.gmra.mxu0 %v4733
      %v4990 = vpop.f32.mrf.mxu0
      %v4991 = vadd.f32 %v4536, %v4990
      %v4992 = vpop.f32.mrf.mxu0
      %v4993 = vadd.f32 %v4541, %v4992
      %4994 = vmatmul.bf16.gmra.mxu0 %v4735
      %v4995 = vpop.f32.mrf.mxu0
      %v4996 = vadd.f32 %v4546, %v4995
      %v4997 = vpop.f32.mrf.mxu0
      %v4998 = vadd.f32 %v4551, %v4997
      %4999 = vmatmul.bf16.gmra.mxu0 %v4737
      %v5000 = vpop.f32.mrf.mxu0
      %v5001 = vadd.f32 %v4556, %v5000
      %v5002 = vpop.f32.mrf.mxu0
      %v5003 = vadd.f32 %v4561, %v5002
      %5004 = vmatmul.bf16.gmra.mxu0 %v4739
      %v5005 = vpop.f32.mrf.mxu0
      %v5006 = vadd.f32 %v4566, %v5005
      %v5007 = vpop.f32.mrf.mxu0
      %v5008 = vadd.f32 %v4571, %v5007
      %5009 = vmatmul.bf16.gmra.mxu0 %v4741
      %v5010 = vpop.f32.mrf.mxu0
      %v5011 = vadd.f32 %v4576, %v5010
      %v5012 = vpop.f32.mrf.mxu0
      %v5013 = vadd.f32 %v4581, %v5012
      %5014 = vmatmul.bf16.gmra.mxu0 %v4743
      %v5015 = vpop.f32.mrf.mxu0
      %v5016 = vadd.f32 %v4586, %v5015
      %v5017 = vpop.f32.mrf.mxu0
      %v5018 = vadd.f32 %v4591, %v5017
      %5019 = vmatmul.bf16.gmra.mxu0 %v4745
      %v5020 = vpop.f32.mrf.mxu0
      %v5021 = vadd.f32 %v4596, %v5020
      %v5022 = vpop.f32.mrf.mxu0
      %v5023 = vadd.f32 %v4601, %v5022
      %5024 = vmatmul.bf16.gmra.mxu0 %v4747
      %v5025 = vpop.f32.mrf.mxu0
      %v5026 = vadd.f32 %v4606, %v5025
      %v5027 = vpop.f32.mrf.mxu0
      %v5028 = vadd.f32 %v4611, %v5027
      %5029 = vmatmul.bf16.gmra.mxu0 %v4749
      %v5030 = vpop.f32.mrf.mxu0
      %v5031 = vadd.f32 %v4616, %v5030
      %v5032 = vpop.f32.mrf.mxu0
      %v5033 = vadd.f32 %v4621, %v5032
      %5034 = vmatmul.bf16.gmra.mxu0 %v4751
      %v5035 = vpop.f32.mrf.mxu0
      %v5036 = vadd.f32 %v4626, %v5035
      %v5037 = vpop.f32.mrf.mxu0
      %v5038 = vadd.f32 %v4631, %v5037
      %5039 = vmatmul.bf16.gmra.mxu0 %v4753
      %v5040 = vpop.f32.mrf.mxu0
      %v5041 = vadd.f32 %v4636, %v5040
      %v5042 = vpop.f32.mrf.mxu0
      %v5043 = vadd.f32 %v4641, %v5042
      %5044 = vmatmul.bf16.gmra.mxu0 %v4755
      %v5045 = vpop.f32.mrf.mxu0
      %v5046 = vadd.f32 %v4646, %v5045
      %v5047 = vpop.f32.mrf.mxu0
      %v5048 = vadd.f32 %v4651, %v5047
      %5049 = vmatmul.bf16.gmra.mxu0 %v4757
      %v5050 = vpop.f32.mrf.mxu0
      %v5051 = vadd.f32 %v4656, %v5050
      %v5052 = vpop.f32.mrf.mxu0
      %5053 = vdwg.mxu0
      %5054 = vmatpush.bf16.msra.mxu0 0
      %5055 = vmatpush.bf16.msra.mxu0 0
      %5056 = vmatpush.bf16.msra.mxu0 0
      %5057 = vmatpush.bf16.msra.mxu0 %v4815
      %5058 = vmatpush.bf16.msra.mxu0 %v4493
      %5059 = vmatpush.bf16.msra.mxu0 %v4485
      %5060 = vmatpush.bf16.msra.mxu0 %v4477
      %5061 = vmatpush.bf16.msra.mxu0 %v4469
      %5062 = vmatmul.bf16.gmra.mxu0 %v4773
      %v5063 = vpop.f32.mrf.mxu0
      %v5064 = vadd.f32 %v4991, %v5063
      %v5065 = vpop.f32.mrf.mxu0
      %v5066 = vadd.f32 %v4993, %v5065
      %5067 = vmatmul.bf16.gmra.mxu0 %v4776
      %v5068 = vpop.f32.mrf.mxu0
      %v5069 = vadd.f32 %v4996, %v5068
      %v5070 = vpop.f32.mrf.mxu0
      %v5071 = vadd.f32 %v4998, %v5070
      %5072 = vmatmul.bf16.gmra.mxu0 %v4779
      %v5073 = vpop.f32.mrf.mxu0
      %v5074 = vadd.f32 %v5001, %v5073
      %v5075 = vpop.f32.mrf.mxu0
      %v5076 = vadd.f32 %v5003, %v5075
      %5077 = vmatmul.bf16.gmra.mxu0 %v4782
      %v5078 = vpop.f32.mrf.mxu0
      %v5079 = vadd.f32 %v5006, %v5078
      %v5080 = vpop.f32.mrf.mxu0
      %v5081 = vadd.f32 %v5008, %v5080
      %5082 = vmatmul.bf16.gmra.mxu0 %v4785
      %v5083 = vpop.f32.mrf.mxu0
      %v5084 = vadd.f32 %v5011, %v5083
      %v5085 = vpop.f32.mrf.mxu0
      %v5086 = vadd.f32 %v5013, %v5085
      %5087 = vmatmul.bf16.gmra.mxu0 %v4788
      %v5088 = vpop.f32.mrf.mxu0
      %v5089 = vadd.f32 %v5016, %v5088
      %v5090 = vpop.f32.mrf.mxu0
      %v5091 = vadd.f32 %v5018, %v5090
      %5092 = vmatmul.bf16.gmra.mxu0 %v4791
      %v5093 = vpop.f32.mrf.mxu0
      %v5094 = vadd.f32 %v5021, %v5093
      %v5095 = vpop.f32.mrf.mxu0
      %v5096 = vadd.f32 %v5023, %v5095
      %5097 = vmatmul.bf16.gmra.mxu0 %v4794
      %v5098 = vpop.f32.mrf.mxu0
      %v5099 = vadd.f32 %v5026, %v5098
      %v5100 = vpop.f32.mrf.mxu0
      %v5101 = vadd.f32 %v5028, %v5100
      %5102 = vmatmul.bf16.gmra.mxu0 %v4797
      %v5103 = vpop.f32.mrf.mxu0
      %v5104 = vadd.f32 %v5031, %v5103
      %v5105 = vpop.f32.mrf.mxu0
      %v5106 = vadd.f32 %v5033, %v5105
      %5107 = vmatmul.bf16.gmra.mxu0 %v4800
      %v5108 = vpop.f32.mrf.mxu0
      %v5109 = vadd.f32 %v5036, %v5108
      %v5110 = vpop.f32.mrf.mxu0
      %v5111 = vadd.f32 %v5038, %v5110
      %5112 = vmatmul.bf16.gmra.mxu0 %v4803
      %v5113 = vpop.f32.mrf.mxu0
      %v5114 = vadd.f32 %v5041, %v5113
      %v5115 = vpop.f32.mrf.mxu0
      %v5116 = vadd.f32 %v5043, %v5115
      %5117 = vmatmul.bf16.gmra.mxu0 %v4806
      %v5118 = vpop.f32.mrf.mxu0
      %v5119 = vadd.f32 %v5046, %v5118
      %v5120 = vpop.f32.mrf.mxu0
      %v5121 = vadd.f32 %v5048, %v5120
      %5122 = vmatmul.bf16.gmra.mxu0 %v4809
      %v5123 = vpop.f32.mrf.mxu0
      %v5124 = vadd.f32 %v5051, %v5123
      %v5125 = vpop.f32.mrf.mxu0
      %5126 = vdwg.mxu0
      %5127 = vmatpush.bf16.msra.mxu0 %v4462
      %5128 = vmatpush.bf16.msra.mxu0 %v4454
      %5129 = vmatpush.bf16.msra.mxu0 %v4446
      %5130 = vmatpush.bf16.msra.mxu0 %v4438
      %5131 = vmatpush.bf16.msra.mxu0 %v4430
      %5132 = vmatpush.bf16.msra.mxu0 %v4422
      %5133 = vmatpush.bf16.msra.mxu0 %v4414
      %5134 = vmatpush.bf16.msra.mxu0 %v4406
      %5135 = vmatmul.bf16.gmra.mxu0 %v4733
      %v5136 = vpop.f32.mrf.mxu0
      %v5137 = vadd.f32 %v4536, %v5136
      %v5138 = vpop.f32.mrf.mxu0
      %v5139 = vadd.f32 %v4541, %v5138
      %5140 = vmatmul.bf16.gmra.mxu0 %v4735
      %v5141 = vpop.f32.mrf.mxu0
      %v5142 = vadd.f32 %v4546, %v5141
      %v5143 = vpop.f32.mrf.mxu0
      %v5144 = vadd.f32 %v4551, %v5143
      %5145 = vmatmul.bf16.gmra.mxu0 %v4737
      %v5146 = vpop.f32.mrf.mxu0
      %v5147 = vadd.f32 %v4556, %v5146
      %v5148 = vpop.f32.mrf.mxu0
      %v5149 = vadd.f32 %v4561, %v5148
      %5150 = vmatmul.bf16.gmra.mxu0 %v4739
      %v5151 = vpop.f32.mrf.mxu0
      %v5152 = vadd.f32 %v4566, %v5151
      %v5153 = vpop.f32.mrf.mxu0
      %v5154 = vadd.f32 %v4571, %v5153
      %5155 = vmatmul.bf16.gmra.mxu0 %v4741
      %v5156 = vpop.f32.mrf.mxu0
      %v5157 = vadd.f32 %v4576, %v5156
      %v5158 = vpop.f32.mrf.mxu0
      %v5159 = vadd.f32 %v4581, %v5158
      %5160 = vmatmul.bf16.gmra.mxu0 %v4743
      %v5161 = vpop.f32.mrf.mxu0
      %v5162 = vadd.f32 %v4586, %v5161
      %v5163 = vpop.f32.mrf.mxu0
      %v5164 = vadd.f32 %v4591, %v5163
      %5165 = vmatmul.bf16.gmra.mxu0 %v4745
      %v5166 = vpop.f32.mrf.mxu0
      %v5167 = vadd.f32 %v4596, %v5166
      %v5168 = vpop.f32.mrf.mxu0
      %v5169 = vadd.f32 %v4601, %v5168
      %5170 = vmatmul.bf16.gmra.mxu0 %v4747
      %v5171 = vpop.f32.mrf.mxu0
      %v5172 = vadd.f32 %v4606, %v5171
      %v5173 = vpop.f32.mrf.mxu0
      %v5174 = vadd.f32 %v4611, %v5173
      %5175 = vmatmul.bf16.gmra.mxu0 %v4749
      %v5176 = vpop.f32.mrf.mxu0
      %v5177 = vadd.f32 %v4616, %v5176
      %v5178 = vpop.f32.mrf.mxu0
      %v5179 = vadd.f32 %v4621, %v5178
      %5180 = vmatmul.bf16.gmra.mxu0 %v4751
      %v5181 = vpop.f32.mrf.mxu0
      %v5182 = vadd.f32 %v4626, %v5181
      %v5183 = vpop.f32.mrf.mxu0
      %v5184 = vadd.f32 %v4631, %v5183
      %5185 = vmatmul.bf16.gmra.mxu0 %v4753
      %v5186 = vpop.f32.mrf.mxu0
      %v5187 = vadd.f32 %v4636, %v5186
      %v5188 = vpop.f32.mrf.mxu0
      %v5189 = vadd.f32 %v4641, %v5188
      %5190 = vmatmul.bf16.gmra.mxu0 %v4755
      %v5191 = vpop.f32.mrf.mxu0
      %v5192 = vadd.f32 %v4646, %v5191
      %v5193 = vpop.f32.mrf.mxu0
      %v5194 = vadd.f32 %v4651, %v5193
      %5195 = vmatmul.bf16.gmra.mxu0 %v4757
      %v5196 = vpop.f32.mrf.mxu0
      %v5197 = vadd.f32 %v4656, %v5196
      %v5198 = vpop.f32.mrf.mxu0
      %5199 = vdwg.mxu0
      %5200 = vmatpush.bf16.msra.mxu0 0
      %5201 = vmatpush.bf16.msra.mxu0 0
      %5202 = vmatpush.bf16.msra.mxu0 0
      %5203 = vmatpush.bf16.msra.mxu0 %v4818
      %5204 = vmatpush.bf16.msra.mxu0 %v4494
      %5205 = vmatpush.bf16.msra.mxu0 %v4486
      %5206 = vmatpush.bf16.msra.mxu0 %v4478
      %5207 = vmatpush.bf16.msra.mxu0 %v4470
      %5208 = vmatmul.bf16.gmra.mxu0 %v4773
      %v5209 = vpop.f32.mrf.mxu0
      %v5210 = vadd.f32 %v5137, %v5209
      %v5211 = vpop.f32.mrf.mxu0
      %v5212 = vadd.f32 %v5139, %v5211
      %5213 = vmatmul.bf16.gmra.mxu0 %v4776
      %v5214 = vpop.f32.mrf.mxu0
      %v5215 = vadd.f32 %v5142, %v5214
      %v5216 = vpop.f32.mrf.mxu0
      %v5217 = vadd.f32 %v5144, %v5216
      %5218 = vmatmul.bf16.gmra.mxu0 %v4779
      %v5219 = vpop.f32.mrf.mxu0
      %v5220 = vadd.f32 %v5147, %v5219
      %v5221 = vpop.f32.mrf.mxu0
      %v5222 = vadd.f32 %v5149, %v5221
      %5223 = vmatmul.bf16.gmra.mxu0 %v4782
      %v5224 = vpop.f32.mrf.mxu0
      %v5225 = vadd.f32 %v5152, %v5224
      %v5226 = vpop.f32.mrf.mxu0
      %v5227 = vadd.f32 %v5154, %v5226
      %5228 = vmatmul.bf16.gmra.mxu0 %v4785
      %v5229 = vpop.f32.mrf.mxu0
      %v5230 = vadd.f32 %v5157, %v5229
      %v5231 = vpop.f32.mrf.mxu0
      %v5232 = vadd.f32 %v5159, %v5231
      %5233 = vmatmul.bf16.gmra.mxu0 %v4788
      %v5234 = vpop.f32.mrf.mxu0
      %v5235 = vadd.f32 %v5162, %v5234
      %v5236 = vpop.f32.mrf.mxu0
      %v5237 = vadd.f32 %v5164, %v5236
      %5238 = vmatmul.bf16.gmra.mxu0 %v4791
      %v5239 = vpop.f32.mrf.mxu0
      %v5240 = vadd.f32 %v5167, %v5239
      %v5241 = vpop.f32.mrf.mxu0
      %v5242 = vadd.f32 %v5169, %v5241
      %5243 = vmatmul.bf16.gmra.mxu0 %v4794
      %v5244 = vpop.f32.mrf.mxu0
      %v5245 = vadd.f32 %v5172, %v5244
      %v5246 = vpop.f32.mrf.mxu0
      %v5247 = vadd.f32 %v5174, %v5246
      %5248 = vmatmul.bf16.gmra.mxu0 %v4797
      %v5249 = vpop.f32.mrf.mxu0
      %v5250 = vadd.f32 %v5177, %v5249
      %v5251 = vpop.f32.mrf.mxu0
      %v5252 = vadd.f32 %v5179, %v5251
      %5253 = vmatmul.bf16.gmra.mxu0 %v4800
      %v5254 = vpop.f32.mrf.mxu0
      %v5255 = vadd.f32 %v5182, %v5254
      %v5256 = vpop.f32.mrf.mxu0
      %v5257 = vadd.f32 %v5184, %v5256
      %5258 = vmatmul.bf16.gmra.mxu0 %v4803
      %v5259 = vpop.f32.mrf.mxu0
      %v5260 = vadd.f32 %v5187, %v5259
      %v5261 = vpop.f32.mrf.mxu0
      %v5262 = vadd.f32 %v5189, %v5261
      %5263 = vmatmul.bf16.gmra.mxu0 %v4806
      %v5264 = vpop.f32.mrf.mxu0
      %v5265 = vadd.f32 %v5192, %v5264
      %v5266 = vpop.f32.mrf.mxu0
      %v5267 = vadd.f32 %v5194, %v5266
      %5268 = vmatmul.bf16.gmra.mxu0 %v4809
      %v5269 = vpop.f32.mrf.mxu0
      %v5270 = vadd.f32 %v5197, %v5269
      %v5271 = vpop.f32.mrf.mxu0
      %5272 = vdwg.mxu0
      %5273 = vmatpush.bf16.msra.mxu0 %v4463
      %5274 = vmatpush.bf16.msra.mxu0 %v4455
      %5275 = vmatpush.bf16.msra.mxu0 %v4447
      %5276 = vmatpush.bf16.msra.mxu0 %v4439
      %5277 = vmatpush.bf16.msra.mxu0 %v4431
      %5278 = vmatpush.bf16.msra.mxu0 %v4423
      %5279 = vmatpush.bf16.msra.mxu0 %v4415
      %5280 = vmatpush.bf16.msra.mxu0 %v4407
      %5281 = vmatmul.bf16.gmra.mxu0 %v4733
      %v5282 = vpop.f32.mrf.mxu0
      %v5283 = vadd.f32 %v4536, %v5282
      %v5284 = vpop.f32.mrf.mxu0
      %v5285 = vadd.f32 %v4541, %v5284
      %5286 = vmatmul.bf16.gmra.mxu0 %v4735
      %v5287 = vpop.f32.mrf.mxu0
      %v5288 = vadd.f32 %v4546, %v5287
      %v5289 = vpop.f32.mrf.mxu0
      %v5290 = vadd.f32 %v4551, %v5289
      %5291 = vmatmul.bf16.gmra.mxu0 %v4737
      %v5292 = vpop.f32.mrf.mxu0
      %v5293 = vadd.f32 %v4556, %v5292
      %v5294 = vpop.f32.mrf.mxu0
      %v5295 = vadd.f32 %v4561, %v5294
      %5296 = vmatmul.bf16.gmra.mxu0 %v4739
      %v5297 = vpop.f32.mrf.mxu0
      %v5298 = vadd.f32 %v4566, %v5297
      %v5299 = vpop.f32.mrf.mxu0
      %v5300 = vadd.f32 %v4571, %v5299
      %5301 = vmatmul.bf16.gmra.mxu0 %v4741
      %v5302 = vpop.f32.mrf.mxu0
      %v5303 = vadd.f32 %v4576, %v5302
      %v5304 = vpop.f32.mrf.mxu0
      %v5305 = vadd.f32 %v4581, %v5304
      %5306 = vmatmul.bf16.gmra.mxu0 %v4743
      %v5307 = vpop.f32.mrf.mxu0
      %v5308 = vadd.f32 %v4586, %v5307
      %v5309 = vpop.f32.mrf.mxu0
      %v5310 = vadd.f32 %v4591, %v5309
      %5311 = vmatmul.bf16.gmra.mxu0 %v4745
      %v5312 = vpop.f32.mrf.mxu0
      %v5313 = vadd.f32 %v4596, %v5312
      %v5314 = vpop.f32.mrf.mxu0
      %v5315 = vadd.f32 %v4601, %v5314
      %5316 = vmatmul.bf16.gmra.mxu0 %v4747
      %v5317 = vpop.f32.mrf.mxu0
      %v5318 = vadd.f32 %v4606, %v5317
      %v5319 = vpop.f32.mrf.mxu0
      %v5320 = vadd.f32 %v4611, %v5319
      %5321 = vmatmul.bf16.gmra.mxu0 %v4749
      %v5322 = vpop.f32.mrf.mxu0
      %v5323 = vadd.f32 %v4616, %v5322
      %v5324 = vpop.f32.mrf.mxu0
      %v5325 = vadd.f32 %v4621, %v5324
      %5326 = vmatmul.bf16.gmra.mxu0 %v4751
      %v5327 = vpop.f32.mrf.mxu0
      %v5328 = vadd.f32 %v4626, %v5327
      %v5329 = vpop.f32.mrf.mxu0
      %v5330 = vadd.f32 %v4631, %v5329
      %5331 = vmatmul.bf16.gmra.mxu0 %v4753
      %v5332 = vpop.f32.mrf.mxu0
      %v5333 = vadd.f32 %v4636, %v5332
      %v5334 = vpop.f32.mrf.mxu0
      %v5335 = vadd.f32 %v4641, %v5334
      %5336 = vmatmul.bf16.gmra.mxu0 %v4755
      %v5337 = vpop.f32.mrf.mxu0
      %v5338 = vadd.f32 %v4646, %v5337
      %v5339 = vpop.f32.mrf.mxu0
      %v5340 = vadd.f32 %v4651, %v5339
      %5341 = vmatmul.bf16.gmra.mxu0 %v4757
      %v5342 = vpop.f32.mrf.mxu0
      %v5343 = vadd.f32 %v4656, %v5342
      %v5344 = vpop.f32.mrf.mxu0
      %5345 = vdwg.mxu0
      %5346 = vmatpush.bf16.msra.mxu0 0
      %5347 = vmatpush.bf16.msra.mxu0 0
      %5348 = vmatpush.bf16.msra.mxu0 0
      %5349 = vmatpush.bf16.msra.mxu0 %v4821
      %5350 = vmatpush.bf16.msra.mxu0 %v4495
      %5351 = vmatpush.bf16.msra.mxu0 %v4487
      %5352 = vmatpush.bf16.msra.mxu0 %v4479
      %5353 = vmatpush.bf16.msra.mxu0 %v4471
      %5354 = vmatmul.bf16.gmra.mxu0 %v4773
      %v5355 = vpop.f32.mrf.mxu0
      %v5356 = vadd.f32 %v5283, %v5355
      %v5357 = vpop.f32.mrf.mxu0
      %v5358 = vadd.f32 %v5285, %v5357
      %5359 = vmatmul.bf16.gmra.mxu0 %v4776
      %v5360 = vpop.f32.mrf.mxu0
      %v5361 = vadd.f32 %v5288, %v5360
      %v5362 = vpop.f32.mrf.mxu0
      %v5363 = vadd.f32 %v5290, %v5362
      %5364 = vmatmul.bf16.gmra.mxu0 %v4779
      %v5365 = vpop.f32.mrf.mxu0
      %v5366 = vadd.f32 %v5293, %v5365
      %v5367 = vpop.f32.mrf.mxu0
      %v5368 = vadd.f32 %v5295, %v5367
      %5369 = vmatmul.bf16.gmra.mxu0 %v4782
      %v5370 = vpop.f32.mrf.mxu0
      %v5371 = vadd.f32 %v5298, %v5370
      %v5372 = vpop.f32.mrf.mxu0
      %v5373 = vadd.f32 %v5300, %v5372
      %5374 = vmatmul.bf16.gmra.mxu0 %v4785
      %v5375 = vpop.f32.mrf.mxu0
      %v5376 = vadd.f32 %v5303, %v5375
      %v5377 = vpop.f32.mrf.mxu0
      %v5378 = vadd.f32 %v5305, %v5377
      %5379 = vmatmul.bf16.gmra.mxu0 %v4788
      %v5380 = vpop.f32.mrf.mxu0
      %v5381 = vadd.f32 %v5308, %v5380
      %v5382 = vpop.f32.mrf.mxu0
      %v5383 = vadd.f32 %v5310, %v5382
      %5384 = vmatmul.bf16.gmra.mxu0 %v4791
      %v5385 = vpop.f32.mrf.mxu0
      %v5386 = vadd.f32 %v5313, %v5385
      %v5387 = vpop.f32.mrf.mxu0
      %v5388 = vadd.f32 %v5315, %v5387
      %5389 = vmatmul.bf16.gmra.mxu0 %v4794
      %v5390 = vpop.f32.mrf.mxu0
      %v5391 = vadd.f32 %v5318, %v5390
      %v5392 = vpop.f32.mrf.mxu0
      %v5393 = vadd.f32 %v5320, %v5392
      %5394 = vmatmul.bf16.gmra.mxu0 %v4797
      %v5395 = vpop.f32.mrf.mxu0
      %v5396 = vadd.f32 %v5323, %v5395
      %v5397 = vpop.f32.mrf.mxu0
      %v5398 = vadd.f32 %v5325, %v5397
      %5399 = vmatmul.bf16.gmra.mxu0 %v4800
      %v5400 = vpop.f32.mrf.mxu0
      %v5401 = vadd.f32 %v5328, %v5400
      %v5402 = vpop.f32.mrf.mxu0
      %v5403 = vadd.f32 %v5330, %v5402
      %5404 = vmatmul.bf16.gmra.mxu0 %v4803
      %v5405 = vpop.f32.mrf.mxu0
      %v5406 = vadd.f32 %v5333, %v5405
      %v5407 = vpop.f32.mrf.mxu0
      %v5408 = vadd.f32 %v5335, %v5407
      %5409 = vmatmul.bf16.gmra.mxu0 %v4806
      %v5410 = vpop.f32.mrf.mxu0
      %v5411 = vadd.f32 %v5338, %v5410
      %v5412 = vpop.f32.mrf.mxu0
      %v5413 = vadd.f32 %v5340, %v5412
      %5414 = vmatmul.bf16.gmra.mxu0 %v4809
      %v5415 = vpop.f32.mrf.mxu0
      %v5416 = vadd.f32 %v5343, %v5415
      %v5417 = vpop.f32.mrf.mxu0
      %5418 = vdwg.mxu0
      %5419 = vmatpush.bf16.msra.mxu0 %v4464
      %5420 = vmatpush.bf16.msra.mxu0 %v4456
      %5421 = vmatpush.bf16.msra.mxu0 %v4448
      %5422 = vmatpush.bf16.msra.mxu0 %v4440
      %5423 = vmatpush.bf16.msra.mxu0 %v4432
      %5424 = vmatpush.bf16.msra.mxu0 %v4424
      %5425 = vmatpush.bf16.msra.mxu0 %v4416
      %5426 = vmatpush.bf16.msra.mxu0 %v4408
      %5427 = vmatmul.bf16.gmra.mxu0 %v4733
      %v5428 = vpop.f32.mrf.mxu0
      %v5429 = vadd.f32 %v4536, %v5428
      %v5430 = vpop.f32.mrf.mxu0
      %v5431 = vadd.f32 %v4541, %v5430
      %5432 = vmatmul.bf16.gmra.mxu0 %v4735
      %v5433 = vpop.f32.mrf.mxu0
      %v5434 = vadd.f32 %v4546, %v5433
      %v5435 = vpop.f32.mrf.mxu0
      %v5436 = vadd.f32 %v4551, %v5435
      %5437 = vmatmul.bf16.gmra.mxu0 %v4737
      %v5438 = vpop.f32.mrf.mxu0
      %v5439 = vadd.f32 %v4556, %v5438
      %v5440 = vpop.f32.mrf.mxu0
      %v5441 = vadd.f32 %v4561, %v5440
      %5442 = vmatmul.bf16.gmra.mxu0 %v4739
      %v5443 = vpop.f32.mrf.mxu0
      %v5444 = vadd.f32 %v4566, %v5443
      %v5445 = vpop.f32.mrf.mxu0
      %v5446 = vadd.f32 %v4571, %v5445
      %5447 = vmatmul.bf16.gmra.mxu0 %v4741
      %v5448 = vpop.f32.mrf.mxu0
      %v5449 = vadd.f32 %v4576, %v5448
      %v5450 = vpop.f32.mrf.mxu0
      %v5451 = vadd.f32 %v4581, %v5450
      %5452 = vmatmul.bf16.gmra.mxu0 %v4743
      %v5453 = vpop.f32.mrf.mxu0
      %v5454 = vadd.f32 %v4586, %v5453
      %v5455 = vpop.f32.mrf.mxu0
      %v5456 = vadd.f32 %v4591, %v5455
      %5457 = vmatmul.bf16.gmra.mxu0 %v4745
      %v5458 = vpop.f32.mrf.mxu0
      %v5459 = vadd.f32 %v4596, %v5458
      %v5460 = vpop.f32.mrf.mxu0
      %v5461 = vadd.f32 %v4601, %v5460
      %5462 = vmatmul.bf16.gmra.mxu0 %v4747
      %v5463 = vpop.f32.mrf.mxu0
      %v5464 = vadd.f32 %v4606, %v5463
      %v5465 = vpop.f32.mrf.mxu0
      %v5466 = vadd.f32 %v4611, %v5465
      %5467 = vmatmul.bf16.gmra.mxu0 %v4749
      %v5468 = vpop.f32.mrf.mxu0
      %v5469 = vadd.f32 %v4616, %v5468
      %v5470 = vpop.f32.mrf.mxu0
      %v5471 = vadd.f32 %v4621, %v5470
      %5472 = vmatmul.bf16.gmra.mxu0 %v4751
      %v5473 = vpop.f32.mrf.mxu0
      %v5474 = vadd.f32 %v4626, %v5473
      %v5475 = vpop.f32.mrf.mxu0
      %v5476 = vadd.f32 %v4631, %v5475
      %5477 = vmatmul.bf16.gmra.mxu0 %v4753
      %v5478 = vpop.f32.mrf.mxu0
      %v5479 = vadd.f32 %v4636, %v5478
      %v5480 = vpop.f32.mrf.mxu0
      %v5481 = vadd.f32 %v4641, %v5480
      %5482 = vmatmul.bf16.gmra.mxu0 %v4755
      %v5483 = vpop.f32.mrf.mxu0
      %v5484 = vadd.f32 %v4646, %v5483
      %v5485 = vpop.f32.mrf.mxu0
      %v5486 = vadd.f32 %v4651, %v5485
      %5487 = vmatmul.bf16.gmra.mxu0 %v4757
      %v5488 = vpop.f32.mrf.mxu0
      %v5489 = vadd.f32 %v4656, %v5488
      %v5490 = vpop.f32.mrf.mxu0
      %5491 = vdwg.mxu0
      %5492 = vmatpush.bf16.msra.mxu0 0
      %5493 = vmatpush.bf16.msra.mxu0 0
      %5494 = vmatpush.bf16.msra.mxu0 0
      %5495 = vmatpush.bf16.msra.mxu0 %v4824
      %5496 = vmatpush.bf16.msra.mxu0 %v4496
      %5497 = vmatpush.bf16.msra.mxu0 %v4488
      %5498 = vmatpush.bf16.msra.mxu0 %v4480
      %5499 = vmatpush.bf16.msra.mxu0 %v4472
      %5500 = vmatmul.bf16.gmra.mxu0 %v4773
      %v5501 = vpop.f32.mrf.mxu0
      %v5502 = vadd.f32 %v5429, %v5501
      %v5503 = vpop.f32.mrf.mxu0
      %v5504 = vadd.f32 %v5431, %v5503
      %5505 = vmatmul.bf16.gmra.mxu0 %v4776
      %v5506 = vpop.f32.mrf.mxu0
      %v5507 = vadd.f32 %v5434, %v5506
      %v5508 = vpop.f32.mrf.mxu0
      %v5509 = vadd.f32 %v5436, %v5508
      %5510 = vmatmul.bf16.gmra.mxu0 %v4779
      %v5511 = vpop.f32.mrf.mxu0
      %v5512 = vadd.f32 %v5439, %v5511
      %v5513 = vpop.f32.mrf.mxu0
      %v5514 = vadd.f32 %v5441, %v5513
      %5515 = vmatmul.bf16.gmra.mxu0 %v4782
      %v5516 = vpop.f32.mrf.mxu0
      %v5517 = vadd.f32 %v5444, %v5516
      %v5518 = vpop.f32.mrf.mxu0
      %v5519 = vadd.f32 %v5446, %v5518
      %5520 = vmatmul.bf16.gmra.mxu0 %v4785
      %v5521 = vpop.f32.mrf.mxu0
      %v5522 = vadd.f32 %v5449, %v5521
      %v5523 = vpop.f32.mrf.mxu0
      %v5524 = vadd.f32 %v5451, %v5523
      %5525 = vmatmul.bf16.gmra.mxu0 %v4788
      %v5526 = vpop.f32.mrf.mxu0
      %v5527 = vadd.f32 %v5454, %v5526
      %v5528 = vpop.f32.mrf.mxu0
      %v5529 = vadd.f32 %v5456, %v5528
      %5530 = vmatmul.bf16.gmra.mxu0 %v4791
      %v5531 = vpop.f32.mrf.mxu0
      %v5532 = vadd.f32 %v5459, %v5531
      %v5533 = vpop.f32.mrf.mxu0
      %v5534 = vadd.f32 %v5461, %v5533
      %5535 = vmatmul.bf16.gmra.mxu0 %v4794
      %v5536 = vpop.f32.mrf.mxu0
      %v5537 = vadd.f32 %v5464, %v5536
      %v5538 = vpop.f32.mrf.mxu0
      %v5539 = vadd.f32 %v5466, %v5538
      %5540 = vmatmul.bf16.gmra.mxu0 %v4797
      %v5541 = vpop.f32.mrf.mxu0
      %v5542 = vadd.f32 %v5469, %v5541
      %v5543 = vpop.f32.mrf.mxu0
      %v5544 = vadd.f32 %v5471, %v5543
      %5545 = vmatmul.bf16.gmra.mxu0 %v4800
      %v5546 = vpop.f32.mrf.mxu0
      %v5547 = vadd.f32 %v5474, %v5546
      %v5548 = vpop.f32.mrf.mxu0
      %v5549 = vadd.f32 %v5476, %v5548
      %5550 = vmatmul.bf16.gmra.mxu0 %v4803
      %v5551 = vpop.f32.mrf.mxu0
      %v5552 = vadd.f32 %v5479, %v5551
      %v5553 = vpop.f32.mrf.mxu0
      %v5554 = vadd.f32 %v5481, %v5553
      %5555 = vmatmul.bf16.gmra.mxu0 %v4806
      %v5556 = vpop.f32.mrf.mxu0
      %v5557 = vadd.f32 %v5484, %v5556
      %v5558 = vpop.f32.mrf.mxu0
      %v5559 = vadd.f32 %v5486, %v5558
      %5560 = vmatmul.bf16.gmra.mxu0 %v4809
      %v5561 = vpop.f32.mrf.mxu0
      %v5562 = vadd.f32 %v5489, %v5561
      %v5563 = vpop.f32.mrf.mxu0
      %5564 = vdwg.mxu0
      %5565 = vmatpush.bf16.msra.mxu0 %v4465
      %5566 = vmatpush.bf16.msra.mxu0 %v4457
      %5567 = vmatpush.bf16.msra.mxu0 %v4449
      %5568 = vmatpush.bf16.msra.mxu0 %v4441
      %5569 = vmatpush.bf16.msra.mxu0 %v4433
      %5570 = vmatpush.bf16.msra.mxu0 %v4425
      %5571 = vmatpush.bf16.msra.mxu0 %v4417
      %5572 = vmatpush.bf16.msra.mxu0 %v4409
      %5573 = vmatmul.bf16.gmra.mxu0 %v4733
      %v5574 = vpop.f32.mrf.mxu0
      %v5575 = vadd.f32 %v4536, %v5574
      %v5576 = vpop.f32.mrf.mxu0
      %v5577 = vadd.f32 %v4541, %v5576
      %5578 = vmatmul.bf16.gmra.mxu0 %v4735
      %v5579 = vpop.f32.mrf.mxu0
      %v5580 = vadd.f32 %v4546, %v5579
      %v5581 = vpop.f32.mrf.mxu0
      %v5582 = vadd.f32 %v4551, %v5581
      %5583 = vmatmul.bf16.gmra.mxu0 %v4737
      %v5584 = vpop.f32.mrf.mxu0
      %v5585 = vadd.f32 %v4556, %v5584
      %v5586 = vpop.f32.mrf.mxu0
      %v5587 = vadd.f32 %v4561, %v5586
      %5588 = vmatmul.bf16.gmra.mxu0 %v4739
      %v5589 = vpop.f32.mrf.mxu0
      %v5590 = vadd.f32 %v4566, %v5589
      %v5591 = vpop.f32.mrf.mxu0
      %v5592 = vadd.f32 %v4571, %v5591
      %5593 = vmatmul.bf16.gmra.mxu0 %v4741
      %v5594 = vpop.f32.mrf.mxu0
      %v5595 = vadd.f32 %v4576, %v5594
      %v5596 = vpop.f32.mrf.mxu0
      %v5597 = vadd.f32 %v4581, %v5596
      %5598 = vmatmul.bf16.gmra.mxu0 %v4743
      %v5599 = vpop.f32.mrf.mxu0
      %v5600 = vadd.f32 %v4586, %v5599
      %v5601 = vpop.f32.mrf.mxu0
      %v5602 = vadd.f32 %v4591, %v5601
      %5603 = vmatmul.bf16.gmra.mxu0 %v4745
      %v5604 = vpop.f32.mrf.mxu0
      %v5605 = vadd.f32 %v4596, %v5604
      %v5606 = vpop.f32.mrf.mxu0
      %v5607 = vadd.f32 %v4601, %v5606
      %5608 = vmatmul.bf16.gmra.mxu0 %v4747
      %v5609 = vpop.f32.mrf.mxu0
      %v5610 = vadd.f32 %v4606, %v5609
      %v5611 = vpop.f32.mrf.mxu0
      %v5612 = vadd.f32 %v4611, %v5611
      %5613 = vmatmul.bf16.gmra.mxu0 %v4749
      %v5614 = vpop.f32.mrf.mxu0
      %v5615 = vadd.f32 %v4616, %v5614
      %v5616 = vpop.f32.mrf.mxu0
      %v5617 = vadd.f32 %v4621, %v5616
      %5618 = vmatmul.bf16.gmra.mxu0 %v4751
      %v5619 = vpop.f32.mrf.mxu0
      %v5620 = vadd.f32 %v4626, %v5619
      %v5621 = vpop.f32.mrf.mxu0
      %v5622 = vadd.f32 %v4631, %v5621
      %5623 = vmatmul.bf16.gmra.mxu0 %v4753
      %v5624 = vpop.f32.mrf.mxu0
      %v5625 = vadd.f32 %v4636, %v5624
      %v5626 = vpop.f32.mrf.mxu0
      %v5627 = vadd.f32 %v4641, %v5626
      %5628 = vmatmul.bf16.gmra.mxu0 %v4755
      %v5629 = vpop.f32.mrf.mxu0
      %v5630 = vadd.f32 %v4646, %v5629
      %v5631 = vpop.f32.mrf.mxu0
      %v5632 = vadd.f32 %v4651, %v5631
      %5633 = vmatmul.bf16.gmra.mxu0 %v4757
      %v5634 = vpop.f32.mrf.mxu0
      %v5635 = vadd.f32 %v4656, %v5634
      %v5636 = vpop.f32.mrf.mxu0
      %5637 = vdwg.mxu0
      %5638 = vmatpush.bf16.msra.mxu0 0
      %5639 = vmatpush.bf16.msra.mxu0 0
      %5640 = vmatpush.bf16.msra.mxu0 0
      %5641 = vmatpush.bf16.msra.mxu0 %v4827
      %5642 = vmatpush.bf16.msra.mxu0 %v4497
      %5643 = vmatpush.bf16.msra.mxu0 %v4489
      %5644 = vmatpush.bf16.msra.mxu0 %v4481
      %5645 = vmatpush.bf16.msra.mxu0 %v4473
      %5646 = vmatmul.bf16.gmra.mxu0 %v4773
      %v5647 = vpop.f32.mrf.mxu0
      %v5648 = vadd.f32 %v5575, %v5647
      %v5649 = vpop.f32.mrf.mxu0
      %v5650 = vadd.f32 %v5577, %v5649
      %5651 = vmatmul.bf16.gmra.mxu0 %v4776
      %v5652 = vpop.f32.mrf.mxu0
      %v5653 = vadd.f32 %v5580, %v5652
      %v5654 = vpop.f32.mrf.mxu0
      %v5655 = vadd.f32 %v5582, %v5654
      %5656 = vmatmul.bf16.gmra.mxu0 %v4779
      %v5657 = vpop.f32.mrf.mxu0
      %v5658 = vadd.f32 %v5585, %v5657
      %v5659 = vpop.f32.mrf.mxu0
      %v5660 = vadd.f32 %v5587, %v5659
      %5661 = vmatmul.bf16.gmra.mxu0 %v4782
      %v5662 = vpop.f32.mrf.mxu0
      %v5663 = vadd.f32 %v5590, %v5662
      %v5664 = vpop.f32.mrf.mxu0
      %v5665 = vadd.f32 %v5592, %v5664
      %5666 = vmatmul.bf16.gmra.mxu0 %v4785
      %v5667 = vpop.f32.mrf.mxu0
      %v5668 = vadd.f32 %v5595, %v5667
      %v5669 = vpop.f32.mrf.mxu0
      %v5670 = vadd.f32 %v5597, %v5669
      %5671 = vmatmul.bf16.gmra.mxu0 %v4788
      %v5672 = vpop.f32.mrf.mxu0
      %v5673 = vadd.f32 %v5600, %v5672
      %v5674 = vpop.f32.mrf.mxu0
      %v5675 = vadd.f32 %v5602, %v5674
      %5676 = vmatmul.bf16.gmra.mxu0 %v4791
      %v5677 = vpop.f32.mrf.mxu0
      %v5678 = vadd.f32 %v5605, %v5677
      %v5679 = vpop.f32.mrf.mxu0
      %v5680 = vadd.f32 %v5607, %v5679
      %5681 = vmatmul.bf16.gmra.mxu0 %v4794
      %v5682 = vpop.f32.mrf.mxu0
      %v5683 = vadd.f32 %v5610, %v5682
      %v5684 = vpop.f32.mrf.mxu0
      %v5685 = vadd.f32 %v5612, %v5684
      %5686 = vmatmul.bf16.gmra.mxu0 %v4797
      %v5687 = vpop.f32.mrf.mxu0
      %v5688 = vadd.f32 %v5615, %v5687
      %v5689 = vpop.f32.mrf.mxu0
      %v5690 = vadd.f32 %v5617, %v5689
      %5691 = vmatmul.bf16.gmra.mxu0 %v4800
      %v5692 = vpop.f32.mrf.mxu0
      %v5693 = vadd.f32 %v5620, %v5692
      %v5694 = vpop.f32.mrf.mxu0
      %v5695 = vadd.f32 %v5622, %v5694
      %5696 = vmatmul.bf16.gmra.mxu0 %v4803
      %v5697 = vpop.f32.mrf.mxu0
      %v5698 = vadd.f32 %v5625, %v5697
      %v5699 = vpop.f32.mrf.mxu0
      %v5700 = vadd.f32 %v5627, %v5699
      %5701 = vmatmul.bf16.gmra.mxu0 %v4806
      %v5702 = vpop.f32.mrf.mxu0
      %v5703 = vadd.f32 %v5630, %v5702
      %v5704 = vpop.f32.mrf.mxu0
      %v5705 = vadd.f32 %v5632, %v5704
      %5706 = vmatmul.bf16.gmra.mxu0 %v4809
      %v5707 = vpop.f32.mrf.mxu0
      %v5708 = vadd.f32 %v5635, %v5707
      %v5709 = vpop.f32.mrf.mxu0
      %5710 = vdwg.mxu0
      %5711 = vmatpush.bf16.msra.mxu0 %v4466
      %5712 = vmatpush.bf16.msra.mxu0 %v4458
      %5713 = vmatpush.bf16.msra.mxu0 %v4450
      %5714 = vmatpush.bf16.msra.mxu0 %v4442
      %5715 = vmatpush.bf16.msra.mxu0 %v4434
      %5716 = vmatpush.bf16.msra.mxu0 %v4426
      %5717 = vmatpush.bf16.msra.mxu0 %v4418
      %5718 = vmatpush.bf16.msra.mxu0 %v4410
      %5719 = vmatmul.bf16.gmra.mxu0 %v4733
      %v5720 = vpop.f32.mrf.mxu0
      %v5721 = vadd.f32 %v4536, %v5720
      %v5722 = vpop.f32.mrf.mxu0
      %v5723 = vadd.f32 %v4541, %v5722
      %5724 = vmatmul.bf16.gmra.mxu0 %v4735
      %v5725 = vpop.f32.mrf.mxu0
      %v5726 = vadd.f32 %v4546, %v5725
      %v5727 = vpop.f32.mrf.mxu0
      %v5728 = vadd.f32 %v4551, %v5727
      %5729 = vmatmul.bf16.gmra.mxu0 %v4737
      %v5730 = vpop.f32.mrf.mxu0
      %v5731 = vadd.f32 %v4556, %v5730
      %v5732 = vpop.f32.mrf.mxu0
      %v5733 = vadd.f32 %v4561, %v5732
      %5734 = vmatmul.bf16.gmra.mxu0 %v4739
      %v5735 = vpop.f32.mrf.mxu0
      %v5736 = vadd.f32 %v4566, %v5735
      %v5737 = vpop.f32.mrf.mxu0
      %v5738 = vadd.f32 %v4571, %v5737
      %5739 = vmatmul.bf16.gmra.mxu0 %v4741
      %v5740 = vpop.f32.mrf.mxu0
      %v5741 = vadd.f32 %v4576, %v5740
      %v5742 = vpop.f32.mrf.mxu0
      %v5743 = vadd.f32 %v4581, %v5742
      %5744 = vmatmul.bf16.gmra.mxu0 %v4743
      %v5745 = vpop.f32.mrf.mxu0
      %v5746 = vadd.f32 %v4586, %v5745
      %v5747 = vpop.f32.mrf.mxu0
      %v5748 = vadd.f32 %v4591, %v5747
      %5749 = vmatmul.bf16.gmra.mxu0 %v4745
      %v5750 = vpop.f32.mrf.mxu0
      %v5751 = vadd.f32 %v4596, %v5750
      %v5752 = vpop.f32.mrf.mxu0
      %v5753 = vadd.f32 %v4601, %v5752
      %5754 = vmatmul.bf16.gmra.mxu0 %v4747
      %v5755 = vpop.f32.mrf.mxu0
      %v5756 = vadd.f32 %v4606, %v5755
      %v5757 = vpop.f32.mrf.mxu0
      %v5758 = vadd.f32 %v4611, %v5757
      %5759 = vmatmul.bf16.gmra.mxu0 %v4749
      %v5760 = vpop.f32.mrf.mxu0
      %v5761 = vadd.f32 %v4616, %v5760
      %v5762 = vpop.f32.mrf.mxu0
      %v5763 = vadd.f32 %v4621, %v5762
      %5764 = vmatmul.bf16.gmra.mxu0 %v4751
      %v5765 = vpop.f32.mrf.mxu0
      %v5766 = vadd.f32 %v4626, %v5765
      %v5767 = vpop.f32.mrf.mxu0
      %v5768 = vadd.f32 %v4631, %v5767
      %5769 = vmatmul.bf16.gmra.mxu0 %v4753
      %v5770 = vpop.f32.mrf.mxu0
      %v5771 = vadd.f32 %v4636, %v5770
      %v5772 = vpop.f32.mrf.mxu0
      %v5773 = vadd.f32 %v4641, %v5772
      %5774 = vmatmul.bf16.gmra.mxu0 %v4755
      %v5775 = vpop.f32.mrf.mxu0
      %v5776 = vadd.f32 %v4646, %v5775
      %v5777 = vpop.f32.mrf.mxu0
      %v5778 = vadd.f32 %v4651, %v5777
      %5779 = vmatmul.bf16.gmra.mxu0 %v4757
      %v5780 = vpop.f32.mrf.mxu0
      %v5781 = vadd.f32 %v4656, %v5780
      %v5782 = vpop.f32.mrf.mxu0
      %5783 = vdwg.mxu0
      %5784 = vmatpush.bf16.msra.mxu0 0
      %5785 = vmatpush.bf16.msra.mxu0 0
      %5786 = vmatpush.bf16.msra.mxu0 0
      %5787 = vmatpush.bf16.msra.mxu0 %v4830
      %5788 = vmatpush.bf16.msra.mxu0 %v4498
      %5789 = vmatpush.bf16.msra.mxu0 %v4490
      %5790 = vmatpush.bf16.msra.mxu0 %v4482
      %5791 = vmatpush.bf16.msra.mxu0 %v4474
      %5792 = vmatmul.bf16.gmra.mxu0 %v4773
      %v5793 = vpop.f32.mrf.mxu0
      %v5794 = vadd.f32 %v5721, %v5793
      %v5795 = vpop.f32.mrf.mxu0
      %v5796 = vadd.f32 %v5723, %v5795
      %5797 = vmatmul.bf16.gmra.mxu0 %v4776
      %v5798 = vpop.f32.mrf.mxu0
      %v5799 = vadd.f32 %v5726, %v5798
      %v5800 = vpop.f32.mrf.mxu0
      %v5801 = vadd.f32 %v5728, %v5800
      %5802 = vmatmul.bf16.gmra.mxu0 %v4779
      %v5803 = vpop.f32.mrf.mxu0
      %v5804 = vadd.f32 %v5731, %v5803
      %v5805 = vpop.f32.mrf.mxu0
      %v5806 = vadd.f32 %v5733, %v5805
      %5807 = vmatmul.bf16.gmra.mxu0 %v4782
      %v5808 = vpop.f32.mrf.mxu0
      %v5809 = vadd.f32 %v5736, %v5808
      %v5810 = vpop.f32.mrf.mxu0
      %v5811 = vadd.f32 %v5738, %v5810
      %5812 = vmatmul.bf16.gmra.mxu0 %v4785
      %v5813 = vpop.f32.mrf.mxu0
      %v5814 = vadd.f32 %v5741, %v5813
      %v5815 = vpop.f32.mrf.mxu0
      %v5816 = vadd.f32 %v5743, %v5815
      %5817 = vmatmul.bf16.gmra.mxu0 %v4788
      %v5818 = vpop.f32.mrf.mxu0
      %v5819 = vadd.f32 %v5746, %v5818
      %v5820 = vpop.f32.mrf.mxu0
      %v5821 = vadd.f32 %v5748, %v5820
      %5822 = vmatmul.bf16.gmra.mxu0 %v4791
      %v5823 = vpop.f32.mrf.mxu0
      %v5824 = vadd.f32 %v5751, %v5823
      %v5825 = vpop.f32.mrf.mxu0
      %v5826 = vadd.f32 %v5753, %v5825
      %5827 = vmatmul.bf16.gmra.mxu0 %v4794
      %v5828 = vpop.f32.mrf.mxu0
      %v5829 = vadd.f32 %v5756, %v5828
      %v5830 = vpop.f32.mrf.mxu0
      %v5831 = vadd.f32 %v5758, %v5830
      %5832 = vmatmul.bf16.gmra.mxu0 %v4797
      %v5833 = vpop.f32.mrf.mxu0
      %v5834 = vadd.f32 %v5761, %v5833
      %v5835 = vpop.f32.mrf.mxu0
      %v5836 = vadd.f32 %v5763, %v5835
      %5837 = vmatmul.bf16.gmra.mxu0 %v4800
      %v5838 = vpop.f32.mrf.mxu0
      %v5839 = vadd.f32 %v5766, %v5838
      %v5840 = vpop.f32.mrf.mxu0
      %v5841 = vadd.f32 %v5768, %v5840
      %5842 = vmatmul.bf16.gmra.mxu0 %v4803
      %v5843 = vpop.f32.mrf.mxu0
      %v5844 = vadd.f32 %v5771, %v5843
      %v5845 = vpop.f32.mrf.mxu0
      %v5846 = vadd.f32 %v5773, %v5845
      %5847 = vmatmul.bf16.gmra.mxu0 %v4806
      %v5848 = vpop.f32.mrf.mxu0
      %v5849 = vadd.f32 %v5776, %v5848
      %v5850 = vpop.f32.mrf.mxu0
      %v5851 = vadd.f32 %v5778, %v5850
      %5852 = vmatmul.bf16.gmra.mxu0 %v4809
      %v5853 = vpop.f32.mrf.mxu0
      %v5854 = vadd.f32 %v5781, %v5853
      %v5855 = vpop.f32.mrf.mxu0
      %5856 = vdwg.mxu0
      %5857 = vmatpush.bf16.msra.mxu0 %v4467
      %5858 = vmatpush.bf16.msra.mxu0 %v4459
      %5859 = vmatpush.bf16.msra.mxu0 %v4451
      %5860 = vmatpush.bf16.msra.mxu0 %v4443
      %5861 = vmatpush.bf16.msra.mxu0 %v4435
      %5862 = vmatpush.bf16.msra.mxu0 %v4427
      %5863 = vmatpush.bf16.msra.mxu0 %v4419
      %5864 = vmatpush.bf16.msra.mxu0 %v4411
      %5865 = vmatmul.bf16.gmra.mxu0 %v4733
      %v5866 = vpop.f32.mrf.mxu0
      %v5867 = vadd.f32 %v4536, %v5866
      %v5868 = vpop.f32.mrf.mxu0
      %v5869 = vadd.f32 %v4541, %v5868
      %5870 = vmatmul.bf16.gmra.mxu0 %v4735
      %v5871 = vpop.f32.mrf.mxu0
      %v5872 = vadd.f32 %v4546, %v5871
      %v5873 = vpop.f32.mrf.mxu0
      %v5874 = vadd.f32 %v4551, %v5873
      %5875 = vmatmul.bf16.gmra.mxu0 %v4737
      %v5876 = vpop.f32.mrf.mxu0
      %v5877 = vadd.f32 %v4556, %v5876
      %v5878 = vpop.f32.mrf.mxu0
      %v5879 = vadd.f32 %v4561, %v5878
      %5880 = vmatmul.bf16.gmra.mxu0 %v4739
      %v5881 = vpop.f32.mrf.mxu0
      %v5882 = vadd.f32 %v4566, %v5881
      %v5883 = vpop.f32.mrf.mxu0
      %v5884 = vadd.f32 %v4571, %v5883
      %5885 = vmatmul.bf16.gmra.mxu0 %v4741
      %v5886 = vpop.f32.mrf.mxu0
      %v5887 = vadd.f32 %v4576, %v5886
      %v5888 = vpop.f32.mrf.mxu0
      %v5889 = vadd.f32 %v4581, %v5888
      %5890 = vmatmul.bf16.gmra.mxu0 %v4743
      %v5891 = vpop.f32.mrf.mxu0
      %v5892 = vadd.f32 %v4586, %v5891
      %v5893 = vpop.f32.mrf.mxu0
      %v5894 = vadd.f32 %v4591, %v5893
      %5895 = vmatmul.bf16.gmra.mxu0 %v4745
      %v5896 = vpop.f32.mrf.mxu0
      %v5897 = vadd.f32 %v4596, %v5896
      %v5898 = vpop.f32.mrf.mxu0
      %v5899 = vadd.f32 %v4601, %v5898
      %5900 = vmatmul.bf16.gmra.mxu0 %v4747
      %v5901 = vpop.f32.mrf.mxu0
      %v5902 = vadd.f32 %v4606, %v5901
      %v5903 = vpop.f32.mrf.mxu0
      %v5904 = vadd.f32 %v4611, %v5903
      %5905 = vmatmul.bf16.gmra.mxu0 %v4749
      %v5906 = vpop.f32.mrf.mxu0
      %v5907 = vadd.f32 %v4616, %v5906
      %v5908 = vpop.f32.mrf.mxu0
      %v5909 = vadd.f32 %v4621, %v5908
      %5910 = vmatmul.bf16.gmra.mxu0 %v4751
      %v5911 = vpop.f32.mrf.mxu0
      %v5912 = vadd.f32 %v4626, %v5911
      %v5913 = vpop.f32.mrf.mxu0
      %v5914 = vadd.f32 %v4631, %v5913
      %5915 = vmatmul.bf16.gmra.mxu0 %v4753
      %v5916 = vpop.f32.mrf.mxu0
      %v5917 = vadd.f32 %v4636, %v5916
      %v5918 = vpop.f32.mrf.mxu0
      %v5919 = vadd.f32 %v4641, %v5918
      %5920 = vmatmul.bf16.gmra.mxu0 %v4755
      %v5921 = vpop.f32.mrf.mxu0
      %v5922 = vadd.f32 %v4646, %v5921
      %v5923 = vpop.f32.mrf.mxu0
      %v5924 = vadd.f32 %v4651, %v5923
      %5925 = vmatmul.bf16.gmra.mxu0 %v4757
      %v5926 = vpop.f32.mrf.mxu0
      %v5927 = vadd.f32 %v4656, %v5926
      %v5928 = vpop.f32.mrf.mxu0
      %5929 = vdwg.mxu0
      %5930 = vmatpush.bf16.msra.mxu0 0
      %5931 = vmatpush.bf16.msra.mxu0 0
      %5932 = vmatpush.bf16.msra.mxu0 0
      %5933 = vmatpush.bf16.msra.mxu0 %v4833
      %5934 = vmatpush.bf16.msra.mxu0 %v4499
      %5935 = vmatpush.bf16.msra.mxu0 %v4491
      %5936 = vmatpush.bf16.msra.mxu0 %v4483
      %5937 = vmatpush.bf16.msra.mxu0 %v4475
      %5938 = vmatmul.bf16.gmra.mxu0 %v4773
      %v5939 = vpop.f32.mrf.mxu0
      %v5940 = vadd.f32 %v5867, %v5939
      %v5941 = vpop.f32.mrf.mxu0
      %v5942 = vadd.f32 %v5869, %v5941
      %5943 = vmatmul.bf16.gmra.mxu0 %v4776
      %v5944 = vpop.f32.mrf.mxu0
      %v5945 = vadd.f32 %v5872, %v5944
      %v5946 = vpop.f32.mrf.mxu0
      %v5947 = vadd.f32 %v5874, %v5946
      %5948 = vmatmul.bf16.gmra.mxu0 %v4779
      %v5949 = vpop.f32.mrf.mxu0
      %v5950 = vadd.f32 %v5877, %v5949
      %v5951 = vpop.f32.mrf.mxu0
      %v5952 = vadd.f32 %v5879, %v5951
      %5953 = vmatmul.bf16.gmra.mxu0 %v4782
      %v5954 = vpop.f32.mrf.mxu0
      %v5955 = vadd.f32 %v5882, %v5954
      %v5956 = vpop.f32.mrf.mxu0
      %v5957 = vadd.f32 %v5884, %v5956
      %5958 = vmatmul.bf16.gmra.mxu0 %v4785
      %v5959 = vpop.f32.mrf.mxu0
      %v5960 = vadd.f32 %v5887, %v5959
      %v5961 = vpop.f32.mrf.mxu0
      %v5962 = vadd.f32 %v5889, %v5961
      %5963 = vmatmul.bf16.gmra.mxu0 %v4788
      %v5964 = vpop.f32.mrf.mxu0
      %v5965 = vadd.f32 %v5892, %v5964
      %v5966 = vpop.f32.mrf.mxu0
      %v5967 = vadd.f32 %v5894, %v5966
      %5968 = vmatmul.bf16.gmra.mxu0 %v4791
      %v5969 = vpop.f32.mrf.mxu0
      %v5970 = vadd.f32 %v5897, %v5969
      %v5971 = vpop.f32.mrf.mxu0
      %v5972 = vadd.f32 %v5899, %v5971
      %5973 = vmatmul.bf16.gmra.mxu0 %v4794
      %v5974 = vpop.f32.mrf.mxu0
      %v5975 = vadd.f32 %v5902, %v5974
      %v5976 = vpop.f32.mrf.mxu0
      %v5977 = vadd.f32 %v5904, %v5976
      %5978 = vmatmul.bf16.gmra.mxu0 %v4797
      %v5979 = vpop.f32.mrf.mxu0
      %v5980 = vadd.f32 %v5907, %v5979
      %v5981 = vpop.f32.mrf.mxu0
      %v5982 = vadd.f32 %v5909, %v5981
      %5983 = vmatmul.bf16.gmra.mxu0 %v4800
      %v5984 = vpop.f32.mrf.mxu0
      %v5985 = vadd.f32 %v5912, %v5984
      %v5986 = vpop.f32.mrf.mxu0
      %v5987 = vadd.f32 %v5914, %v5986
      %5988 = vmatmul.bf16.gmra.mxu0 %v4803
      %v5989 = vpop.f32.mrf.mxu0
      %v5990 = vadd.f32 %v5917, %v5989
      %v5991 = vpop.f32.mrf.mxu0
      %v5992 = vadd.f32 %v5919, %v5991
      %5993 = vmatmul.bf16.gmra.mxu0 %v4806
      %v5994 = vpop.f32.mrf.mxu0
      %v5995 = vadd.f32 %v5922, %v5994
      %v5996 = vpop.f32.mrf.mxu0
      %v5997 = vadd.f32 %v5924, %v5996
      %5998 = vmatmul.bf16.gmra.mxu0 %v4809
      %v5999 = vpop.f32.mrf.mxu0
      %v6000 = vadd.f32 %v5927, %v5999
      %v6001 = vpop.f32.mrf.mxu0
      %6002 = vdwg.mxu0
      %v6003 = vmax.f32 %v4918, 0.0
      %v6004 = vmax.f32 %v5064, 0.0
      %v6005 = vmax.f32 %v5210, 0.0
      %v6006 = vmax.f32 %v5356, 0.0
      %v6007 = vmax.f32 %v5502, 0.0
      %v6008 = vmax.f32 %v5648, 0.0
      %v6009 = vmax.f32 %v5794, 0.0
      %v6010 = vmax.f32 %v5940, 0.0
      %v6011 = vmax.f32 %v4920, 0.0
      %v6012 = vmax.f32 %v5066, 0.0
      %v6013 = vmax.f32 %v5212, 0.0
      %v6014 = vmax.f32 %v5358, 0.0
      %v6015 = vmax.f32 %v5504, 0.0
      %v6016 = vmax.f32 %v5650, 0.0
      %v6017 = vmax.f32 %v5796, 0.0
      %v6018 = vmax.f32 %v5942, 0.0
      %v6019 = vmax.f32 %v4923, 0.0
      %v6020 = vmax.f32 %v5069, 0.0
      %v6021 = vmax.f32 %v5215, 0.0
      %v6022 = vmax.f32 %v5361, 0.0
      %v6023 = vmax.f32 %v5507, 0.0
      %v6024 = vmax.f32 %v5653, 0.0
      %v6025 = vmax.f32 %v5799, 0.0
      %v6026 = vmax.f32 %v5945, 0.0
      %v6027 = vmax.f32 %v4925, 0.0
      %v6028 = vmax.f32 %v5071, 0.0
      %v6029 = vmax.f32 %v5217, 0.0
      %v6030 = vmax.f32 %v5363, 0.0
      %v6031 = vmax.f32 %v5509, 0.0
      %v6032 = vmax.f32 %v5655, 0.0
      %v6033 = vmax.f32 %v5801, 0.0
      %v6034 = vmax.f32 %v5947, 0.0
      %v6035 = vmax.f32 %v4928, 0.0
      %v6036 = vmax.f32 %v5074, 0.0
      %v6037 = vmax.f32 %v5220, 0.0
      %v6038 = vmax.f32 %v5366, 0.0
      %v6039 = vmax.f32 %v5512, 0.0
      %v6040 = vmax.f32 %v5658, 0.0
      %v6041 = vmax.f32 %v5804, 0.0
      %v6042 = vmax.f32 %v5950, 0.0
      %v6043 = vmax.f32 %v4930, 0.0
      %v6044 = vmax.f32 %v5076, 0.0
      %v6045 = vmax.f32 %v5222, 0.0
      %v6046 = vmax.f32 %v5368, 0.0
      %v6047 = vmax.f32 %v5514, 0.0
      %v6048 = vmax.f32 %v5660, 0.0
      %v6049 = vmax.f32 %v5806, 0.0
      %v6050 = vmax.f32 %v5952, 0.0
      %v6051 = vmax.f32 %v4933, 0.0
      %v6052 = vmax.f32 %v5079, 0.0
      %v6053 = vmax.f32 %v5225, 0.0
      %v6054 = vmax.f32 %v5371, 0.0
      %v6055 = vmax.f32 %v5517, 0.0
      %v6056 = vmax.f32 %v5663, 0.0
      %v6057 = vmax.f32 %v5809, 0.0
      %v6058 = vmax.f32 %v5955, 0.0
      %v6059 = vmax.f32 %v4935, 0.0
      %v6060 = vmax.f32 %v5081, 0.0
      %v6061 = vmax.f32 %v5227, 0.0
      %v6062 = vmax.f32 %v5373, 0.0
      %v6063 = vmax.f32 %v5519, 0.0
      %v6064 = vmax.f32 %v5665, 0.0
      %v6065 = vmax.f32 %v5811, 0.0
      %v6066 = vmax.f32 %v5957, 0.0
      %v6067 = vmax.f32 %v4938, 0.0
      %v6068 = vmax.f32 %v5084, 0.0
      %v6069 = vmax.f32 %v5230, 0.0
      %v6070 = vmax.f32 %v5376, 0.0
      %v6071 = vmax.f32 %v5522, 0.0
      %v6072 = vmax.f32 %v5668, 0.0
      %v6073 = vmax.f32 %v5814, 0.0
      %v6074 = vmax.f32 %v5960, 0.0
      %v6075 = vmax.f32 %v4940, 0.0
      %v6076 = vmax.f32 %v5086, 0.0
      %v6077 = vmax.f32 %v5232, 0.0
      %v6078 = vmax.f32 %v5378, 0.0
      %v6079 = vmax.f32 %v5524, 0.0
      %v6080 = vmax.f32 %v5670, 0.0
      %v6081 = vmax.f32 %v5816, 0.0
      %v6082 = vmax.f32 %v5962, 0.0
      %v6083 = vmax.f32 %v4943, 0.0
      %v6084 = vmax.f32 %v5089, 0.0
      %v6085 = vmax.f32 %v5235, 0.0
      %v6086 = vmax.f32 %v5381, 0.0
      %v6087 = vmax.f32 %v5527, 0.0
      %v6088 = vmax.f32 %v5673, 0.0
      %v6089 = vmax.f32 %v5819, 0.0
      %v6090 = vmax.f32 %v5965, 0.0
      %v6091 = vmax.f32 %v4945, 0.0
      %v6092 = vmax.f32 %v5091, 0.0
      %v6093 = vmax.f32 %v5237, 0.0
      %v6094 = vmax.f32 %v5383, 0.0
      %v6095 = vmax.f32 %v5529, 0.0
      %v6096 = vmax.f32 %v5675, 0.0
      %v6097 = vmax.f32 %v5821, 0.0
      %v6098 = vmax.f32 %v5967, 0.0
      %v6099 = vmax.f32 %v4948, 0.0
      %v6100 = vmax.f32 %v5094, 0.0
      %v6101 = vmax.f32 %v5240, 0.0
      %v6102 = vmax.f32 %v5386, 0.0
      %v6103 = vmax.f32 %v5532, 0.0
      %v6104 = vmax.f32 %v5678, 0.0
      %v6105 = vmax.f32 %v5824, 0.0
      %v6106 = vmax.f32 %v5970, 0.0
      %v6107 = vmax.f32 %v4950, 0.0
      %v6108 = vmax.f32 %v5096, 0.0
      %v6109 = vmax.f32 %v5242, 0.0
      %v6110 = vmax.f32 %v5388, 0.0
      %v6111 = vmax.f32 %v5534, 0.0
      %v6112 = vmax.f32 %v5680, 0.0
      %v6113 = vmax.f32 %v5826, 0.0
      %v6114 = vmax.f32 %v5972, 0.0
      %v6115 = vmax.f32 %v4953, 0.0
      %v6116 = vmax.f32 %v5099, 0.0
      %v6117 = vmax.f32 %v5245, 0.0
      %v6118 = vmax.f32 %v5391, 0.0
      %v6119 = vmax.f32 %v5537, 0.0
      %v6120 = vmax.f32 %v5683, 0.0
      %v6121 = vmax.f32 %v5829, 0.0
      %v6122 = vmax.f32 %v5975, 0.0
      %v6123 = vmax.f32 %v4955, 0.0
      %v6124 = vmax.f32 %v5101, 0.0
      %v6125 = vmax.f32 %v5247, 0.0
      %v6126 = vmax.f32 %v5393, 0.0
      %v6127 = vmax.f32 %v5539, 0.0
      %v6128 = vmax.f32 %v5685, 0.0
      %v6129 = vmax.f32 %v5831, 0.0
      %v6130 = vmax.f32 %v5977, 0.0
      %v6131 = vmax.f32 %v4958, 0.0
      %v6132 = vmax.f32 %v5104, 0.0
      %v6133 = vmax.f32 %v5250, 0.0
      %v6134 = vmax.f32 %v5396, 0.0
      %v6135 = vmax.f32 %v5542, 0.0
      %v6136 = vmax.f32 %v5688, 0.0
      %v6137 = vmax.f32 %v5834, 0.0
      %v6138 = vmax.f32 %v5980, 0.0
      %v6139 = vmax.f32 %v4960, 0.0
      %v6140 = vmax.f32 %v5106, 0.0
      %v6141 = vmax.f32 %v5252, 0.0
      %v6142 = vmax.f32 %v5398, 0.0
      %v6143 = vmax.f32 %v5544, 0.0
      %v6144 = vmax.f32 %v5690, 0.0
      %v6145 = vmax.f32 %v5836, 0.0
      %v6146 = vmax.f32 %v5982, 0.0
      %v6147 = vmax.f32 %v4963, 0.0
      %v6148 = vmax.f32 %v5109, 0.0
      %v6149 = vmax.f32 %v5255, 0.0
      %v6150 = vmax.f32 %v5401, 0.0
      %v6151 = vmax.f32 %v5547, 0.0
      %v6152 = vmax.f32 %v5693, 0.0
      %v6153 = vmax.f32 %v5839, 0.0
      %v6154 = vmax.f32 %v5985, 0.0
      %v6155 = vmax.f32 %v4965, 0.0
      %v6156 = vmax.f32 %v5111, 0.0
      %v6157 = vmax.f32 %v5257, 0.0
      %v6158 = vmax.f32 %v5403, 0.0
      %v6159 = vmax.f32 %v5549, 0.0
      %v6160 = vmax.f32 %v5695, 0.0
      %v6161 = vmax.f32 %v5841, 0.0
      %v6162 = vmax.f32 %v5987, 0.0
      %v6163 = vmax.f32 %v4968, 0.0
      %v6164 = vmax.f32 %v5114, 0.0
      %v6165 = vmax.f32 %v5260, 0.0
      %v6166 = vmax.f32 %v5406, 0.0
      %v6167 = vmax.f32 %v5552, 0.0
      %v6168 = vmax.f32 %v5698, 0.0
      %v6169 = vmax.f32 %v5844, 0.0
      %v6170 = vmax.f32 %v5990, 0.0
      %v6171 = vmax.f32 %v4970, 0.0
      %v6172 = vmax.f32 %v5116, 0.0
      %v6173 = vmax.f32 %v5262, 0.0
      %v6174 = vmax.f32 %v5408, 0.0
      %v6175 = vmax.f32 %v5554, 0.0
      %v6176 = vmax.f32 %v5700, 0.0
      %v6177 = vmax.f32 %v5846, 0.0
      %v6178 = vmax.f32 %v5992, 0.0
      %v6179 = vmax.f32 %v4973, 0.0
      %v6180 = vmax.f32 %v5119, 0.0
      %v6181 = vmax.f32 %v5265, 0.0
      %v6182 = vmax.f32 %v5411, 0.0
      %v6183 = vmax.f32 %v5557, 0.0
      %v6184 = vmax.f32 %v5703, 0.0
      %v6185 = vmax.f32 %v5849, 0.0
      %v6186 = vmax.f32 %v5995, 0.0
      %v6187 = vmax.f32 %v4975, 0.0
      %v6188 = vmax.f32 %v5121, 0.0
      %v6189 = vmax.f32 %v5267, 0.0
      %v6190 = vmax.f32 %v5413, 0.0
      %v6191 = vmax.f32 %v5559, 0.0
      %v6192 = vmax.f32 %v5705, 0.0
      %v6193 = vmax.f32 %v5851, 0.0
      %v6194 = vmax.f32 %v5997, 0.0
      %v6195 = vmax.f32 %v4978, 0.0
      %v6196 = vmax.f32 %v5124, 0.0
      %v6197 = vmax.f32 %v5270, 0.0
      %v6198 = vmax.f32 %v5416, 0.0
      %v6199 = vmax.f32 %v5562, 0.0
      %v6200 = vmax.f32 %v5708, 0.0
      %v6201 = vmax.f32 %v5854, 0.0
      %v6202 = vmax.f32 %v6000, 0.0
      %v6203 = vld [vmem:[%s6] sm:$0xff]
      %v6204 = vld [vmem:[%s6 + $0x8] sm:$0xff]
      %v6205 = vld [vmem:[%s6 + $0x10] sm:$0xff]
      %v6206 = vld [vmem:[%s6 + $0x18] sm:$0xff]
      %v6207 = vld [vmem:[%s6 + $0x20] sm:$0xff]
      %v6208 = vld [vmem:[%s6 + $0x28] sm:$0xff]
      %v6209 = vld [vmem:[%s6 + $0x30] sm:$0xff]
      %v6210 = vld [vmem:[%s6 + $0x38] sm:$0xff]
      %v6211 = vld [vmem:[%s6 + $0x40] sm:$0xff]
      %v6212 = vld [vmem:[%s6 + $0x48] sm:$0xff]
      %v6213 = vld [vmem:[%s6 + $0x50] sm:$0xff]
      %v6214 = vld [vmem:[%s6 + $0x58] sm:$0xff]
      %v6215 = vld [vmem:[%s6 + $0x60] sm:$0xff]
      %v6216 = vld [vmem:[%s6 + $0x68] sm:$0xff]
      %v6217 = vld [vmem:[%s6 + $0x70] sm:$0xff]
      %v6218 = vld [vmem:[%s6 + $0x78] sm:$0xff]
      %v6219 = vld [vmem:[%s6 + $0x80] sm:$0xff]
      %v6220 = vld [vmem:[%s6 + $0x88] sm:$0xff]
      %v6221 = vld [vmem:[%s6 + $0x90] sm:$0xff]
      %v6222 = vld [vmem:[%s6 + $0x98] sm:$0xff]
      %v6223 = vld [vmem:[%s6 + $0xa0] sm:$0xff]
      %v6224 = vld [vmem:[%s6 + $0xa8] sm:$0xff]
      %v6225 = vld [vmem:[%s6 + $0xb0] sm:$0xff]
      %v6226 = vld [vmem:[%s6 + $0xb8] sm:$0xff]
      %v6227 = vld [vmem:[%s6 + $0xc0] sm:$0xff]
      %v6228 = vpack.c.bf16 %v6011, %v6003
      %v6229 = vpack.c.bf16 %v6012, %v6004
      %v6230 = vpack.c.bf16 %v6013, %v6005
      %v6231 = vpack.c.bf16 %v6014, %v6006
      %v6232 = vpack.c.bf16 %v6015, %v6007
      %v6233 = vpack.c.bf16 %v6016, %v6008
      %v6234 = vpack.c.bf16 %v6017, %v6009
      %v6235 = vpack.c.bf16 %v6018, %v6010
      %v6236 = vpack.c.bf16 %v6027, %v6019
      %v6237 = vpack.c.bf16 %v6028, %v6020
      %v6238 = vpack.c.bf16 %v6029, %v6021
      %v6239 = vpack.c.bf16 %v6030, %v6022
      %v6240 = vpack.c.bf16 %v6031, %v6023
      %v6241 = vpack.c.bf16 %v6032, %v6024
      %v6242 = vpack.c.bf16 %v6033, %v6025
      %v6243 = vpack.c.bf16 %v6034, %v6026
      %v6244 = vpack.c.bf16 %v6043, %v6035
      %v6245 = vpack.c.bf16 %v6044, %v6036
      %v6246 = vpack.c.bf16 %v6045, %v6037
      %v6247 = vpack.c.bf16 %v6046, %v6038
      %v6248 = vpack.c.bf16 %v6047, %v6039
      %v6249 = vpack.c.bf16 %v6048, %v6040
      %v6250 = vpack.c.bf16 %v6049, %v6041
      %v6251 = vpack.c.bf16 %v6050, %v6042
      %v6252 = vpack.c.bf16 %v6059, %v6051
      %v6253 = vpack.c.bf16 %v6060, %v6052
      %v6254 = vpack.c.bf16 %v6061, %v6053
      %v6255 = vpack.c.bf16 %v6062, %v6054
      %v6256 = vpack.c.bf16 %v6063, %v6055
      %v6257 = vpack.c.bf16 %v6064, %v6056
      %v6258 = vpack.c.bf16 %v6065, %v6057
      %v6259 = vpack.c.bf16 %v6066, %v6058
      %v6260 = vpack.c.bf16 %v6075, %v6067
      %v6261 = vpack.c.bf16 %v6076, %v6068
      %v6262 = vpack.c.bf16 %v6077, %v6069
      %v6263 = vpack.c.bf16 %v6078, %v6070
      %v6264 = vpack.c.bf16 %v6079, %v6071
      %v6265 = vpack.c.bf16 %v6080, %v6072
      %v6266 = vpack.c.bf16 %v6081, %v6073
      %v6267 = vpack.c.bf16 %v6082, %v6074
      %v6268 = vpack.c.bf16 %v6091, %v6083
      %v6269 = vpack.c.bf16 %v6092, %v6084
      %v6270 = vpack.c.bf16 %v6093, %v6085
      %v6271 = vpack.c.bf16 %v6094, %v6086
      %v6272 = vpack.c.bf16 %v6095, %v6087
      %v6273 = vpack.c.bf16 %v6096, %v6088
      %v6274 = vpack.c.bf16 %v6097, %v6089
      %v6275 = vpack.c.bf16 %v6098, %v6090
      %v6276 = vpack.c.bf16 %v6107, %v6099
      %v6277 = vpack.c.bf16 %v6108, %v6100
      %v6278 = vpack.c.bf16 %v6109, %v6101
      %v6279 = vpack.c.bf16 %v6110, %v6102
      %v6280 = vpack.c.bf16 %v6111, %v6103
      %v6281 = vpack.c.bf16 %v6112, %v6104
      %v6282 = vpack.c.bf16 %v6113, %v6105
      %v6283 = vpack.c.bf16 %v6114, %v6106
      %v6284 = vpack.c.bf16 %v6123, %v6115
      %v6285 = vpack.c.bf16 %v6124, %v6116
      %v6286 = vpack.c.bf16 %v6125, %v6117
      %v6287 = vpack.c.bf16 %v6126, %v6118
      %v6288 = vpack.c.bf16 %v6127, %v6119
      %v6289 = vpack.c.bf16 %v6128, %v6120
      %v6290 = vpack.c.bf16 %v6129, %v6121
      %v6291 = vpack.c.bf16 %v6130, %v6122
      %v6292 = vpack.c.bf16 %v6139, %v6131
      %v6293 = vpack.c.bf16 %v6140, %v6132
      %v6294 = vpack.c.bf16 %v6141, %v6133
      %v6295 = vpack.c.bf16 %v6142, %v6134
      %v6296 = vpack.c.bf16 %v6143, %v6135
      %v6297 = vpack.c.bf16 %v6144, %v6136
      %v6298 = vpack.c.bf16 %v6145, %v6137
      %v6299 = vpack.c.bf16 %v6146, %v6138
      %v6300 = vpack.c.bf16 %v6155, %v6147
      %v6301 = vpack.c.bf16 %v6156, %v6148
      %v6302 = vpack.c.bf16 %v6157, %v6149
      %v6303 = vpack.c.bf16 %v6158, %v6150
      %v6304 = vpack.c.bf16 %v6159, %v6151
      %v6305 = vpack.c.bf16 %v6160, %v6152
      %v6306 = vpack.c.bf16 %v6161, %v6153
      %v6307 = vpack.c.bf16 %v6162, %v6154
      %v6308 = vpack.c.bf16 %v6171, %v6163
      %v6309 = vpack.c.bf16 %v6172, %v6164
      %v6310 = vpack.c.bf16 %v6173, %v6165
      %v6311 = vpack.c.bf16 %v6174, %v6166
      %v6312 = vpack.c.bf16 %v6175, %v6167
      %v6313 = vpack.c.bf16 %v6176, %v6168
      %v6314 = vpack.c.bf16 %v6177, %v6169
      %v6315 = vpack.c.bf16 %v6178, %v6170
      %v6316 = vpack.c.bf16 %v6187, %v6179
      %v6317 = vpack.c.bf16 %v6188, %v6180
      %v6318 = vpack.c.bf16 %v6189, %v6181
      %v6319 = vpack.c.bf16 %v6190, %v6182
      %v6320 = vpack.c.bf16 %v6191, %v6183
      %v6321 = vpack.c.bf16 %v6192, %v6184
      %v6322 = vpack.c.bf16 %v6193, %v6185
      %v6323 = vpack.c.bf16 %v6194, %v6186
      %v6324 = vpack.c.bf16 %v6195, %v6195
      %v6325 = vpack.c.bf16 %v6196, %v6196
      %v6326 = vpack.c.bf16 %v6197, %v6197
      %v6327 = vpack.c.bf16 %v6198, %v6198
      %v6328 = vpack.c.bf16 %v6199, %v6199
      %v6329 = vpack.c.bf16 %v6200, %v6200
      %v6330 = vpack.c.bf16 %v6201, %v6201
      %v6331 = vpack.c.bf16 %v6202, %v6202
      %v6332 = vld [vmem:[%s7] sm:$0xff]
      %v6333 = vld [vmem:[%s7 + $0x8] sm:$0xff]
      %v6334 = vld [vmem:[%s7 + $0x10] sm:$0xff]
      %v6335 = vld [vmem:[%s7 + $0x18] sm:$0xff]
      %v6336 = vld [vmem:[%s7 + $0x20] sm:$0xff]
      %v6337 = vld [vmem:[%s7 + $0x28] sm:$0xff]
      %v6338 = vld [vmem:[%s7 + $0x30] sm:$0xff]
      %v6339 = vld [vmem:[%s7 + $0x38] sm:$0xff]
      %v6340 = vld [vmem:[%s7 + $0x40] sm:$0xff]
      %v6341 = vld [vmem:[%s7 + $0x48] sm:$0xff]
      %v6342 = vld [vmem:[%s7 + $0x50] sm:$0xff]
      %v6343 = vld [vmem:[%s7 + $0x58] sm:$0xff]
      %v6344 = vld [vmem:[%s7 + $0x60] sm:$0xff]
      %v6345 = vld [vmem:[%s7 + $0x68] sm:$0xff]
      %v6346 = vld [vmem:[%s7 + $0x70] sm:$0xff]
      %v6347 = vld [vmem:[%s7 + $0x78] sm:$0xff]
      %v6348 = vld [vmem:[%s7 + $0x80] sm:$0xff]
      %v6349 = vld [vmem:[%s7 + $0x88] sm:$0xff]
      %v6350 = vld [vmem:[%s7 + $0x90] sm:$0xff]
      %v6351 = vld [vmem:[%s7 + $0x98] sm:$0xff]
      %v6352 = vld [vmem:[%s7 + $0xa0] sm:$0xff]
      %v6353 = vld [vmem:[%s7 + $0xa8] sm:$0xff]
      %v6354 = vld [vmem:[%s7 + $0xb0] sm:$0xff]
      %v6355 = vld [vmem:[%s7 + $0xb8] sm:$0xff]
      %v6356 = vld [vmem:[%s7 + $0xc0] sm:$0xff]
      %6358 = vset.pattern.permute.xlu0 0
      %6359 = vperm.xlu0 %6358, %v6332
      %v6360 = vpop.permute.xlu0 %6359
      %6363 = vset.pattern.permute.xlu0 0
      %6364 = vperm.xlu0 %6363, %v6333
      %v6365 = vpop.permute.xlu0 %6364
      %6368 = vset.pattern.permute.xlu0 0
      %6369 = vperm.xlu0 %6368, %v6334
      %v6370 = vpop.permute.xlu0 %6369
      %6373 = vset.pattern.permute.xlu0 0
      %6374 = vperm.xlu0 %6373, %v6335
      %v6375 = vpop.permute.xlu0 %6374
      %6378 = vset.pattern.permute.xlu0 0
      %6379 = vperm.xlu0 %6378, %v6336
      %v6380 = vpop.permute.xlu0 %6379
      %6383 = vset.pattern.permute.xlu0 0
      %6384 = vperm.xlu0 %6383, %v6337
      %v6385 = vpop.permute.xlu0 %6384
      %6388 = vset.pattern.permute.xlu0 0
      %6389 = vperm.xlu0 %6388, %v6338
      %v6390 = vpop.permute.xlu0 %6389
      %6393 = vset.pattern.permute.xlu0 0
      %6394 = vperm.xlu0 %6393, %v6339
      %v6395 = vpop.permute.xlu0 %6394
      %6398 = vset.pattern.permute.xlu0 0
      %6399 = vperm.xlu0 %6398, %v6340
      %v6400 = vpop.permute.xlu0 %6399
      %6403 = vset.pattern.permute.xlu0 0
      %6404 = vperm.xlu0 %6403, %v6341
      %v6405 = vpop.permute.xlu0 %6404
      %6408 = vset.pattern.permute.xlu0 0
      %6409 = vperm.xlu0 %6408, %v6342
      %v6410 = vpop.permute.xlu0 %6409
      %6413 = vset.pattern.permute.xlu0 0
      %6414 = vperm.xlu0 %6413, %v6343
      %v6415 = vpop.permute.xlu0 %6414
      %6418 = vset.pattern.permute.xlu0 0
      %6419 = vperm.xlu0 %6418, %v6344
      %v6420 = vpop.permute.xlu0 %6419
      %6423 = vset.pattern.permute.xlu0 0
      %6424 = vperm.xlu0 %6423, %v6345
      %v6425 = vpop.permute.xlu0 %6424
      %6428 = vset.pattern.permute.xlu0 0
      %6429 = vperm.xlu0 %6428, %v6346
      %v6430 = vpop.permute.xlu0 %6429
      %6433 = vset.pattern.permute.xlu0 0
      %6434 = vperm.xlu0 %6433, %v6347
      %v6435 = vpop.permute.xlu0 %6434
      %6438 = vset.pattern.permute.xlu0 0
      %6439 = vperm.xlu0 %6438, %v6348
      %v6440 = vpop.permute.xlu0 %6439
      %6443 = vset.pattern.permute.xlu0 0
      %6444 = vperm.xlu0 %6443, %v6349
      %v6445 = vpop.permute.xlu0 %6444
      %6448 = vset.pattern.permute.xlu0 0
      %6449 = vperm.xlu0 %6448, %v6350
      %v6450 = vpop.permute.xlu0 %6449
      %6453 = vset.pattern.permute.xlu0 0
      %6454 = vperm.xlu0 %6453, %v6351
      %v6455 = vpop.permute.xlu0 %6454
      %6458 = vset.pattern.permute.xlu0 0
      %6459 = vperm.xlu0 %6458, %v6352
      %v6460 = vpop.permute.xlu0 %6459
      %6463 = vset.pattern.permute.xlu0 0
      %6464 = vperm.xlu0 %6463, %v6353
      %v6465 = vpop.permute.xlu0 %6464
      %6468 = vset.pattern.permute.xlu0 0
      %6469 = vperm.xlu0 %6468, %v6354
      %v6470 = vpop.permute.xlu0 %6469
      %6473 = vset.pattern.permute.xlu0 0
      %6474 = vperm.xlu0 %6473, %v6355
      %v6475 = vpop.permute.xlu0 %6474
      %6478 = vset.pattern.permute.xlu0 0
      %6479 = vperm.xlu0 %6478, %v6356
      %v6480 = vpop.permute.xlu0 %6479
      %v6507 = vunpack.c.l.b16 %v6203
      %v6508 = vunpack.c.h.b16 %v6203
      %v6509 = vunpack.c.l.b16 %v6204
      %v6510 = vunpack.c.h.b16 %v6204
      %v6511 = vunpack.c.l.b16 %v6205
      %v6512 = vunpack.c.h.b16 %v6205
      %v6513 = vunpack.c.l.b16 %v6206
      %v6514 = vunpack.c.h.b16 %v6206
      %v6515 = vunpack.c.l.b16 %v6207
      %v6516 = vunpack.c.h.b16 %v6207
      %v6517 = vunpack.c.l.b16 %v6208
      %v6518 = vunpack.c.h.b16 %v6208
      %v6519 = vunpack.c.l.b16 %v6209
      %v6520 = vunpack.c.h.b16 %v6209
      %v6521 = vunpack.c.l.b16 %v6210
      %v6522 = vunpack.c.h.b16 %v6210
      %v6523 = vunpack.c.l.b16 %v6211
      %v6524 = vunpack.c.h.b16 %v6211
      %v6525 = vunpack.c.l.b16 %v6212
      %v6526 = vunpack.c.h.b16 %v6212
      %v6527 = vunpack.c.l.b16 %v6213
      %v6528 = vunpack.c.h.b16 %v6213
      %v6529 = vunpack.c.l.b16 %v6214
      %v6530 = vunpack.c.h.b16 %v6214
      %v6531 = vunpack.c.l.b16 %v6215
      %v6532 = vunpack.c.h.b16 %v6215
      %v6533 = vunpack.c.l.b16 %v6216
      %v6534 = vunpack.c.h.b16 %v6216
      %v6535 = vunpack.c.l.b16 %v6217
      %v6536 = vunpack.c.h.b16 %v6217
      %v6537 = vunpack.c.l.b16 %v6218
      %v6538 = vunpack.c.h.b16 %v6218
      %v6539 = vunpack.c.l.b16 %v6219
      %v6540 = vunpack.c.h.b16 %v6219
      %v6541 = vunpack.c.l.b16 %v6220
      %v6542 = vunpack.c.h.b16 %v6220
      %v6543 = vunpack.c.l.b16 %v6221
      %v6544 = vunpack.c.h.b16 %v6221
      %v6545 = vunpack.c.l.b16 %v6222
      %v6546 = vunpack.c.h.b16 %v6222
      %v6547 = vunpack.c.l.b16 %v6223
      %v6548 = vunpack.c.h.b16 %v6223
      %v6549 = vunpack.c.l.b16 %v6224
      %v6550 = vunpack.c.h.b16 %v6224
      %v6551 = vunpack.c.l.b16 %v6225
      %v6552 = vunpack.c.h.b16 %v6225
      %v6553 = vunpack.c.l.b16 %v6226
      %v6554 = vunpack.c.h.b16 %v6226
      %v6555 = vunpack.c.l.b16 %v6227
      %v6556 = vunpack.c.h.b16 %v6227
      %v6557 = vpack.c.b16 %v6509, %v6507
      %v6558 = vpack.c.b16 %v6510, %v6508
      %v6559 = vpack.c.b16 %v6513, %v6511
      %v6560 = vpack.c.b16 %v6514, %v6512
      %v6561 = vpack.c.b16 %v6517, %v6515
      %v6562 = vpack.c.b16 %v6518, %v6516
      %v6563 = vpack.c.b16 %v6521, %v6519
      %v6564 = vpack.c.b16 %v6522, %v6520
      %v6565 = vpack.c.b16 %v6525, %v6523
      %v6566 = vpack.c.b16 %v6526, %v6524
      %v6567 = vpack.c.b16 %v6529, %v6527
      %v6568 = vpack.c.b16 %v6530, %v6528
      %v6569 = vpack.c.b16 %v6533, %v6531
      %v6570 = vpack.c.b16 %v6534, %v6532
      %v6571 = vpack.c.b16 %v6537, %v6535
      %v6572 = vpack.c.b16 %v6538, %v6536
      %v6573 = vpack.c.b16 %v6541, %v6539
      %v6574 = vpack.c.b16 %v6542, %v6540
      %v6575 = vpack.c.b16 %v6545, %v6543
      %v6576 = vpack.c.b16 %v6546, %v6544
      %v6577 = vpack.c.b16 %v6549, %v6547
      %v6578 = vpack.c.b16 %v6550, %v6548
      %v6579 = vpack.c.b16 %v6553, %v6551
      %v6580 = vpack.c.b16 %v6554, %v6552
      %v6581 = vpack.c.b16 %v6555, %v6555
      %v6582 = vpack.c.b16 %v6556, %v6556
      %v6597 = vsel %vm2946, %v6558, 0
      %v6600 = vsel %vm2946, %v6560, 0
      %v6603 = vsel %vm2946, %v6562, 0
      %v6606 = vsel %vm2946, %v6564, 0
      %v6609 = vsel %vm2946, %v6566, 0
      %v6612 = vsel %vm2946, %v6568, 0
      %v6615 = vsel %vm2946, %v6570, 0
      %v6618 = vsel %vm2946, %v6572, 0
      %v6621 = vsel %vm2946, %v6574, 0
      %v6624 = vsel %vm2946, %v6576, 0
      %v6627 = vsel %vm2946, %v6578, 0
      %v6630 = vsel %vm2946, %v6580, 0
      %v6633 = vsel %vm2946, %v6582, 0
      %v6636 = vsel %vm2986, %v6324, 0
      %v6639 = vsel %vm2986, %v6325, 0
      %v6642 = vsel %vm2986, %v6326, 0
      %v6645 = vsel %vm2986, %v6327, 0
      %v6648 = vsel %vm2986, %v6328, 0
      %v6651 = vsel %vm2986, %v6329, 0
      %v6654 = vsel %vm2986, %v6330, 0
      %v6657 = vsel %vm2986, %v6331, 0
      %6659 = vmatpush.bf16.msra.mxu0 %v6284
      %6660 = vmatpush.bf16.msra.mxu0 %v6276
      %6661 = vmatpush.bf16.msra.mxu0 %v6268
      %6662 = vmatpush.bf16.msra.mxu0 %v6260
      %6663 = vmatpush.bf16.msra.mxu0 %v6252
      %6664 = vmatpush.bf16.msra.mxu0 %v6244
      %6665 = vmatpush.bf16.msra.mxu0 %v6236
      %6666 = vmatpush.bf16.msra.mxu0 %v6228
      %6667 = vmatmul.bf16.gmra.mxu0 %v6557
      %v6668 = vpop.f32.mrf.mxu0
      %v6669 = vadd.f32 %v6360, %v6668
      %v6670 = vpop.f32.mrf.mxu0
      %v6671 = vadd.f32 %v6365, %v6670
      %6672 = vmatmul.bf16.gmra.mxu0 %v6559
      %v6673 = vpop.f32.mrf.mxu0
      %v6674 = vadd.f32 %v6370, %v6673
      %v6675 = vpop.f32.mrf.mxu0
      %v6676 = vadd.f32 %v6375, %v6675
      %6677 = vmatmul.bf16.gmra.mxu0 %v6561
      %v6678 = vpop.f32.mrf.mxu0
      %v6679 = vadd.f32 %v6380, %v6678
      %v6680 = vpop.f32.mrf.mxu0
      %v6681 = vadd.f32 %v6385, %v6680
      %6682 = vmatmul.bf16.gmra.mxu0 %v6563
      %v6683 = vpop.f32.mrf.mxu0
      %v6684 = vadd.f32 %v6390, %v6683
      %v6685 = vpop.f32.mrf.mxu0
      %v6686 = vadd.f32 %v6395, %v6685
      %6687 = vmatmul.bf16.gmra.mxu0 %v6565
      %v6688 = vpop.f32.mrf.mxu0
      %v6689 = vadd.f32 %v6400, %v6688
      %v6690 = vpop.f32.mrf.mxu0
      %v6691 = vadd.f32 %v6405, %v6690
      %6692 = vmatmul.bf16.gmra.mxu0 %v6567
      %v6693 = vpop.f32.mrf.mxu0
      %v6694 = vadd.f32 %v6410, %v6693
      %v6695 = vpop.f32.mrf.mxu0
      %v6696 = vadd.f32 %v6415, %v6695
      %6697 = vmatmul.bf16.gmra.mxu0 %v6569
      %v6698 = vpop.f32.mrf.mxu0
      %v6699 = vadd.f32 %v6420, %v6698
      %v6700 = vpop.f32.mrf.mxu0
      %v6701 = vadd.f32 %v6425, %v6700
      %6702 = vmatmul.bf16.gmra.mxu0 %v6571
      %v6703 = vpop.f32.mrf.mxu0
      %v6704 = vadd.f32 %v6430, %v6703
      %v6705 = vpop.f32.mrf.mxu0
      %v6706 = vadd.f32 %v6435, %v6705
      %6707 = vmatmul.bf16.gmra.mxu0 %v6573
      %v6708 = vpop.f32.mrf.mxu0
      %v6709 = vadd.f32 %v6440, %v6708
      %v6710 = vpop.f32.mrf.mxu0
      %v6711 = vadd.f32 %v6445, %v6710
      %6712 = vmatmul.bf16.gmra.mxu0 %v6575
      %v6713 = vpop.f32.mrf.mxu0
      %v6714 = vadd.f32 %v6450, %v6713
      %v6715 = vpop.f32.mrf.mxu0
      %v6716 = vadd.f32 %v6455, %v6715
      %6717 = vmatmul.bf16.gmra.mxu0 %v6577
      %v6718 = vpop.f32.mrf.mxu0
      %v6719 = vadd.f32 %v6460, %v6718
      %v6720 = vpop.f32.mrf.mxu0
      %v6721 = vadd.f32 %v6465, %v6720
      %6722 = vmatmul.bf16.gmra.mxu0 %v6579
      %v6723 = vpop.f32.mrf.mxu0
      %v6724 = vadd.f32 %v6470, %v6723
      %v6725 = vpop.f32.mrf.mxu0
      %v6726 = vadd.f32 %v6475, %v6725
      %6727 = vmatmul.bf16.gmra.mxu0 %v6581
      %v6728 = vpop.f32.mrf.mxu0
      %v6729 = vadd.f32 %v6480, %v6728
      %v6730 = vpop.f32.mrf.mxu0
      %6731 = vdwg.mxu0
      %6732 = vmatpush.bf16.msra.mxu0 0
      %6733 = vmatpush.bf16.msra.mxu0 0
      %6734 = vmatpush.bf16.msra.mxu0 0
      %6735 = vmatpush.bf16.msra.mxu0 %v6636
      %6736 = vmatpush.bf16.msra.mxu0 %v6316
      %6737 = vmatpush.bf16.msra.mxu0 %v6308
      %6738 = vmatpush.bf16.msra.mxu0 %v6300
      %6739 = vmatpush.bf16.msra.mxu0 %v6292
      %6740 = vmatmul.bf16.gmra.mxu0 %v6597
      %v6741 = vpop.f32.mrf.mxu0
      %v6742 = vadd.f32 %v6669, %v6741
      %v6743 = vpop.f32.mrf.mxu0
      %v6744 = vadd.f32 %v6671, %v6743
      %6745 = vmatmul.bf16.gmra.mxu0 %v6600
      %v6746 = vpop.f32.mrf.mxu0
      %v6747 = vadd.f32 %v6674, %v6746
      %v6748 = vpop.f32.mrf.mxu0
      %v6749 = vadd.f32 %v6676, %v6748
      %6750 = vmatmul.bf16.gmra.mxu0 %v6603
      %v6751 = vpop.f32.mrf.mxu0
      %v6752 = vadd.f32 %v6679, %v6751
      %v6753 = vpop.f32.mrf.mxu0
      %v6754 = vadd.f32 %v6681, %v6753
      %6755 = vmatmul.bf16.gmra.mxu0 %v6606
      %v6756 = vpop.f32.mrf.mxu0
      %v6757 = vadd.f32 %v6684, %v6756
      %v6758 = vpop.f32.mrf.mxu0
      %v6759 = vadd.f32 %v6686, %v6758
      %6760 = vmatmul.bf16.gmra.mxu0 %v6609
      %v6761 = vpop.f32.mrf.mxu0
      %v6762 = vadd.f32 %v6689, %v6761
      %v6763 = vpop.f32.mrf.mxu0
      %v6764 = vadd.f32 %v6691, %v6763
      %6765 = vmatmul.bf16.gmra.mxu0 %v6612
      %v6766 = vpop.f32.mrf.mxu0
      %v6767 = vadd.f32 %v6694, %v6766
      %v6768 = vpop.f32.mrf.mxu0
      %v6769 = vadd.f32 %v6696, %v6768
      %6770 = vmatmul.bf16.gmra.mxu0 %v6615
      %v6771 = vpop.f32.mrf.mxu0
      %v6772 = vadd.f32 %v6699, %v6771
      %v6773 = vpop.f32.mrf.mxu0
      %v6774 = vadd.f32 %v6701, %v6773
      %6775 = vmatmul.bf16.gmra.mxu0 %v6618
      %v6776 = vpop.f32.mrf.mxu0
      %v6777 = vadd.f32 %v6704, %v6776
      %v6778 = vpop.f32.mrf.mxu0
      %v6779 = vadd.f32 %v6706, %v6778
      %6780 = vmatmul.bf16.gmra.mxu0 %v6621
      %v6781 = vpop.f32.mrf.mxu0
      %v6782 = vadd.f32 %v6709, %v6781
      %v6783 = vpop.f32.mrf.mxu0
      %v6784 = vadd.f32 %v6711, %v6783
      %6785 = vmatmul.bf16.gmra.mxu0 %v6624
      %v6786 = vpop.f32.mrf.mxu0
      %v6787 = vadd.f32 %v6714, %v6786
      %v6788 = vpop.f32.mrf.mxu0
      %v6789 = vadd.f32 %v6716, %v6788
      %6790 = vmatmul.bf16.gmra.mxu0 %v6627
      %v6791 = vpop.f32.mrf.mxu0
      %v6792 = vadd.f32 %v6719, %v6791
      %v6793 = vpop.f32.mrf.mxu0
      %v6794 = vadd.f32 %v6721, %v6793
      %6795 = vmatmul.bf16.gmra.mxu0 %v6630
      %v6796 = vpop.f32.mrf.mxu0
      %v6797 = vadd.f32 %v6724, %v6796
      %v6798 = vpop.f32.mrf.mxu0
      %v6799 = vadd.f32 %v6726, %v6798
      %6800 = vmatmul.bf16.gmra.mxu0 %v6633
      %v6801 = vpop.f32.mrf.mxu0
      %v6802 = vadd.f32 %v6729, %v6801
      %v6803 = vpop.f32.mrf.mxu0
      %6804 = vdwg.mxu0
      %6805 = vmatpush.bf16.msra.mxu0 %v6285
      %6806 = vmatpush.bf16.msra.mxu0 %v6277
      %6807 = vmatpush.bf16.msra.mxu0 %v6269
      %6808 = vmatpush.bf16.msra.mxu0 %v6261
      %6809 = vmatpush.bf16.msra.mxu0 %v6253
      %6810 = vmatpush.bf16.msra.mxu0 %v6245
      %6811 = vmatpush.bf16.msra.mxu0 %v6237
      %6812 = vmatpush.bf16.msra.mxu0 %v6229
      %6813 = vmatmul.bf16.gmra.mxu0 %v6557
      %v6814 = vpop.f32.mrf.mxu0
      %v6815 = vadd.f32 %v6360, %v6814
      %v6816 = vpop.f32.mrf.mxu0
      %v6817 = vadd.f32 %v6365, %v6816
      %6818 = vmatmul.bf16.gmra.mxu0 %v6559
      %v6819 = vpop.f32.mrf.mxu0
      %v6820 = vadd.f32 %v6370, %v6819
      %v6821 = vpop.f32.mrf.mxu0
      %v6822 = vadd.f32 %v6375, %v6821
      %6823 = vmatmul.bf16.gmra.mxu0 %v6561
      %v6824 = vpop.f32.mrf.mxu0
      %v6825 = vadd.f32 %v6380, %v6824
      %v6826 = vpop.f32.mrf.mxu0
      %v6827 = vadd.f32 %v6385, %v6826
      %6828 = vmatmul.bf16.gmra.mxu0 %v6563
      %v6829 = vpop.f32.mrf.mxu0
      %v6830 = vadd.f32 %v6390, %v6829
      %v6831 = vpop.f32.mrf.mxu0
      %v6832 = vadd.f32 %v6395, %v6831
      %6833 = vmatmul.bf16.gmra.mxu0 %v6565
      %v6834 = vpop.f32.mrf.mxu0
      %v6835 = vadd.f32 %v6400, %v6834
      %v6836 = vpop.f32.mrf.mxu0
      %v6837 = vadd.f32 %v6405, %v6836
      %6838 = vmatmul.bf16.gmra.mxu0 %v6567
      %v6839 = vpop.f32.mrf.mxu0
      %v6840 = vadd.f32 %v6410, %v6839
      %v6841 = vpop.f32.mrf.mxu0
      %v6842 = vadd.f32 %v6415, %v6841
      %6843 = vmatmul.bf16.gmra.mxu0 %v6569
      %v6844 = vpop.f32.mrf.mxu0
      %v6845 = vadd.f32 %v6420, %v6844
      %v6846 = vpop.f32.mrf.mxu0
      %v6847 = vadd.f32 %v6425, %v6846
      %6848 = vmatmul.bf16.gmra.mxu0 %v6571
      %v6849 = vpop.f32.mrf.mxu0
      %v6850 = vadd.f32 %v6430, %v6849
      %v6851 = vpop.f32.mrf.mxu0
      %v6852 = vadd.f32 %v6435, %v6851
      %6853 = vmatmul.bf16.gmra.mxu0 %v6573
      %v6854 = vpop.f32.mrf.mxu0
      %v6855 = vadd.f32 %v6440, %v6854
      %v6856 = vpop.f32.mrf.mxu0
      %v6857 = vadd.f32 %v6445, %v6856
      %6858 = vmatmul.bf16.gmra.mxu0 %v6575
      %v6859 = vpop.f32.mrf.mxu0
      %v6860 = vadd.f32 %v6450, %v6859
      %v6861 = vpop.f32.mrf.mxu0
      %v6862 = vadd.f32 %v6455, %v6861
      %6863 = vmatmul.bf16.gmra.mxu0 %v6577
      %v6864 = vpop.f32.mrf.mxu0
      %v6865 = vadd.f32 %v6460, %v6864
      %v6866 = vpop.f32.mrf.mxu0
      %v6867 = vadd.f32 %v6465, %v6866
      %6868 = vmatmul.bf16.gmra.mxu0 %v6579
      %v6869 = vpop.f32.mrf.mxu0
      %v6870 = vadd.f32 %v6470, %v6869
      %v6871 = vpop.f32.mrf.mxu0
      %v6872 = vadd.f32 %v6475, %v6871
      %6873 = vmatmul.bf16.gmra.mxu0 %v6581
      %v6874 = vpop.f32.mrf.mxu0
      %v6875 = vadd.f32 %v6480, %v6874
      %v6876 = vpop.f32.mrf.mxu0
      %6877 = vdwg.mxu0
      %6878 = vmatpush.bf16.msra.mxu0 0
      %6879 = vmatpush.bf16.msra.mxu0 0
      %6880 = vmatpush.bf16.msra.mxu0 0
      %6881 = vmatpush.bf16.msra.mxu0 %v6639
      %6882 = vmatpush.bf16.msra.mxu0 %v6317
      %6883 = vmatpush.bf16.msra.mxu0 %v6309
      %6884 = vmatpush.bf16.msra.mxu0 %v6301
      %6885 = vmatpush.bf16.msra.mxu0 %v6293
      %6886 = vmatmul.bf16.gmra.mxu0 %v6597
      %v6887 = vpop.f32.mrf.mxu0
      %v6888 = vadd.f32 %v6815, %v6887
      %v6889 = vpop.f32.mrf.mxu0
      %v6890 = vadd.f32 %v6817, %v6889
      %6891 = vmatmul.bf16.gmra.mxu0 %v6600
      %v6892 = vpop.f32.mrf.mxu0
      %v6893 = vadd.f32 %v6820, %v6892
      %v6894 = vpop.f32.mrf.mxu0
      %v6895 = vadd.f32 %v6822, %v6894
      %6896 = vmatmul.bf16.gmra.mxu0 %v6603
      %v6897 = vpop.f32.mrf.mxu0
      %v6898 = vadd.f32 %v6825, %v6897
      %v6899 = vpop.f32.mrf.mxu0
      %v6900 = vadd.f32 %v6827, %v6899
      %6901 = vmatmul.bf16.gmra.mxu0 %v6606
      %v6902 = vpop.f32.mrf.mxu0
      %v6903 = vadd.f32 %v6830, %v6902
      %v6904 = vpop.f32.mrf.mxu0
      %v6905 = vadd.f32 %v6832, %v6904
      %6906 = vmatmul.bf16.gmra.mxu0 %v6609
      %v6907 = vpop.f32.mrf.mxu0
      %v6908 = vadd.f32 %v6835, %v6907
      %v6909 = vpop.f32.mrf.mxu0
      %v6910 = vadd.f32 %v6837, %v6909
      %6911 = vmatmul.bf16.gmra.mxu0 %v6612
      %v6912 = vpop.f32.mrf.mxu0
      %v6913 = vadd.f32 %v6840, %v6912
      %v6914 = vpop.f32.mrf.mxu0
      %v6915 = vadd.f32 %v6842, %v6914
      %6916 = vmatmul.bf16.gmra.mxu0 %v6615
      %v6917 = vpop.f32.mrf.mxu0
      %v6918 = vadd.f32 %v6845, %v6917
      %v6919 = vpop.f32.mrf.mxu0
      %v6920 = vadd.f32 %v6847, %v6919
      %6921 = vmatmul.bf16.gmra.mxu0 %v6618
      %v6922 = vpop.f32.mrf.mxu0
      %v6923 = vadd.f32 %v6850, %v6922
      %v6924 = vpop.f32.mrf.mxu0
      %v6925 = vadd.f32 %v6852, %v6924
      %6926 = vmatmul.bf16.gmra.mxu0 %v6621
      %v6927 = vpop.f32.mrf.mxu0
      %v6928 = vadd.f32 %v6855, %v6927
      %v6929 = vpop.f32.mrf.mxu0
      %v6930 = vadd.f32 %v6857, %v6929
      %6931 = vmatmul.bf16.gmra.mxu0 %v6624
      %v6932 = vpop.f32.mrf.mxu0
      %v6933 = vadd.f32 %v6860, %v6932
      %v6934 = vpop.f32.mrf.mxu0
      %v6935 = vadd.f32 %v6862, %v6934
      %6936 = vmatmul.bf16.gmra.mxu0 %v6627
      %v6937 = vpop.f32.mrf.mxu0
      %v6938 = vadd.f32 %v6865, %v6937
      %v6939 = vpop.f32.mrf.mxu0
      %v6940 = vadd.f32 %v6867, %v6939
      %6941 = vmatmul.bf16.gmra.mxu0 %v6630
      %v6942 = vpop.f32.mrf.mxu0
      %v6943 = vadd.f32 %v6870, %v6942
      %v6944 = vpop.f32.mrf.mxu0
      %v6945 = vadd.f32 %v6872, %v6944
      %6946 = vmatmul.bf16.gmra.mxu0 %v6633
      %v6947 = vpop.f32.mrf.mxu0
      %v6948 = vadd.f32 %v6875, %v6947
      %v6949 = vpop.f32.mrf.mxu0
      %6950 = vdwg.mxu0
      %6951 = vmatpush.bf16.msra.mxu0 %v6286
      %6952 = vmatpush.bf16.msra.mxu0 %v6278
      %6953 = vmatpush.bf16.msra.mxu0 %v6270
      %6954 = vmatpush.bf16.msra.mxu0 %v6262
      %6955 = vmatpush.bf16.msra.mxu0 %v6254
      %6956 = vmatpush.bf16.msra.mxu0 %v6246
      %6957 = vmatpush.bf16.msra.mxu0 %v6238
      %6958 = vmatpush.bf16.msra.mxu0 %v6230
      %6959 = vmatmul.bf16.gmra.mxu0 %v6557
      %v6960 = vpop.f32.mrf.mxu0
      %v6961 = vadd.f32 %v6360, %v6960
      %v6962 = vpop.f32.mrf.mxu0
      %v6963 = vadd.f32 %v6365, %v6962
      %6964 = vmatmul.bf16.gmra.mxu0 %v6559
      %v6965 = vpop.f32.mrf.mxu0
      %v6966 = vadd.f32 %v6370, %v6965
      %v6967 = vpop.f32.mrf.mxu0
      %v6968 = vadd.f32 %v6375, %v6967
      %6969 = vmatmul.bf16.gmra.mxu0 %v6561
      %v6970 = vpop.f32.mrf.mxu0
      %v6971 = vadd.f32 %v6380, %v6970
      %v6972 = vpop.f32.mrf.mxu0
      %v6973 = vadd.f32 %v6385, %v6972
      %6974 = vmatmul.bf16.gmra.mxu0 %v6563
      %v6975 = vpop.f32.mrf.mxu0
      %v6976 = vadd.f32 %v6390, %v6975
      %v6977 = vpop.f32.mrf.mxu0
      %v6978 = vadd.f32 %v6395, %v6977
      %6979 = vmatmul.bf16.gmra.mxu0 %v6565
      %v6980 = vpop.f32.mrf.mxu0
      %v6981 = vadd.f32 %v6400, %v6980
      %v6982 = vpop.f32.mrf.mxu0
      %v6983 = vadd.f32 %v6405, %v6982
      %6984 = vmatmul.bf16.gmra.mxu0 %v6567
      %v6985 = vpop.f32.mrf.mxu0
      %v6986 = vadd.f32 %v6410, %v6985
      %v6987 = vpop.f32.mrf.mxu0
      %v6988 = vadd.f32 %v6415, %v6987
      %6989 = vmatmul.bf16.gmra.mxu0 %v6569
      %v6990 = vpop.f32.mrf.mxu0
      %v6991 = vadd.f32 %v6420, %v6990
      %v6992 = vpop.f32.mrf.mxu0
      %v6993 = vadd.f32 %v6425, %v6992
      %6994 = vmatmul.bf16.gmra.mxu0 %v6571
      %v6995 = vpop.f32.mrf.mxu0
      %v6996 = vadd.f32 %v6430, %v6995
      %v6997 = vpop.f32.mrf.mxu0
      %v6998 = vadd.f32 %v6435, %v6997
      %6999 = vmatmul.bf16.gmra.mxu0 %v6573
      %v7000 = vpop.f32.mrf.mxu0
      %v7001 = vadd.f32 %v6440, %v7000
      %v7002 = vpop.f32.mrf.mxu0
      %v7003 = vadd.f32 %v6445, %v7002
      %7004 = vmatmul.bf16.gmra.mxu0 %v6575
      %v7005 = vpop.f32.mrf.mxu0
      %v7006 = vadd.f32 %v6450, %v7005
      %v7007 = vpop.f32.mrf.mxu0
      %v7008 = vadd.f32 %v6455, %v7007
      %7009 = vmatmul.bf16.gmra.mxu0 %v6577
      %v7010 = vpop.f32.mrf.mxu0
      %v7011 = vadd.f32 %v6460, %v7010
      %v7012 = vpop.f32.mrf.mxu0
      %v7013 = vadd.f32 %v6465, %v7012
      %7014 = vmatmul.bf16.gmra.mxu0 %v6579
      %v7015 = vpop.f32.mrf.mxu0
      %v7016 = vadd.f32 %v6470, %v7015
      %v7017 = vpop.f32.mrf.mxu0
      %v7018 = vadd.f32 %v6475, %v7017
      %7019 = vmatmul.bf16.gmra.mxu0 %v6581
      %v7020 = vpop.f32.mrf.mxu0
      %v7021 = vadd.f32 %v6480, %v7020
      %v7022 = vpop.f32.mrf.mxu0
      %7023 = vdwg.mxu0
      %7024 = vmatpush.bf16.msra.mxu0 0
      %7025 = vmatpush.bf16.msra.mxu0 0
      %7026 = vmatpush.bf16.msra.mxu0 0
      %7027 = vmatpush.bf16.msra.mxu0 %v6642
      %7028 = vmatpush.bf16.msra.mxu0 %v6318
      %7029 = vmatpush.bf16.msra.mxu0 %v6310
      %7030 = vmatpush.bf16.msra.mxu0 %v6302
      %7031 = vmatpush.bf16.msra.mxu0 %v6294
      %7032 = vmatmul.bf16.gmra.mxu0 %v6597
      %v7033 = vpop.f32.mrf.mxu0
      %v7034 = vadd.f32 %v6961, %v7033
      %v7035 = vpop.f32.mrf.mxu0
      %v7036 = vadd.f32 %v6963, %v7035
      %7037 = vmatmul.bf16.gmra.mxu0 %v6600
      %v7038 = vpop.f32.mrf.mxu0
      %v7039 = vadd.f32 %v6966, %v7038
      %v7040 = vpop.f32.mrf.mxu0
      %v7041 = vadd.f32 %v6968, %v7040
      %7042 = vmatmul.bf16.gmra.mxu0 %v6603
      %v7043 = vpop.f32.mrf.mxu0
      %v7044 = vadd.f32 %v6971, %v7043
      %v7045 = vpop.f32.mrf.mxu0
      %v7046 = vadd.f32 %v6973, %v7045
      %7047 = vmatmul.bf16.gmra.mxu0 %v6606
      %v7048 = vpop.f32.mrf.mxu0
      %v7049 = vadd.f32 %v6976, %v7048
      %v7050 = vpop.f32.mrf.mxu0
      %v7051 = vadd.f32 %v6978, %v7050
      %7052 = vmatmul.bf16.gmra.mxu0 %v6609
      %v7053 = vpop.f32.mrf.mxu0
      %v7054 = vadd.f32 %v6981, %v7053
      %v7055 = vpop.f32.mrf.mxu0
      %v7056 = vadd.f32 %v6983, %v7055
      %7057 = vmatmul.bf16.gmra.mxu0 %v6612
      %v7058 = vpop.f32.mrf.mxu0
      %v7059 = vadd.f32 %v6986, %v7058
      %v7060 = vpop.f32.mrf.mxu0
      %v7061 = vadd.f32 %v6988, %v7060
      %7062 = vmatmul.bf16.gmra.mxu0 %v6615
      %v7063 = vpop.f32.mrf.mxu0
      %v7064 = vadd.f32 %v6991, %v7063
      %v7065 = vpop.f32.mrf.mxu0
      %v7066 = vadd.f32 %v6993, %v7065
      %7067 = vmatmul.bf16.gmra.mxu0 %v6618
      %v7068 = vpop.f32.mrf.mxu0
      %v7069 = vadd.f32 %v6996, %v7068
      %v7070 = vpop.f32.mrf.mxu0
      %v7071 = vadd.f32 %v6998, %v7070
      %7072 = vmatmul.bf16.gmra.mxu0 %v6621
      %v7073 = vpop.f32.mrf.mxu0
      %v7074 = vadd.f32 %v7001, %v7073
      %v7075 = vpop.f32.mrf.mxu0
      %v7076 = vadd.f32 %v7003, %v7075
      %7077 = vmatmul.bf16.gmra.mxu0 %v6624
      %v7078 = vpop.f32.mrf.mxu0
      %v7079 = vadd.f32 %v7006, %v7078
      %v7080 = vpop.f32.mrf.mxu0
      %v7081 = vadd.f32 %v7008, %v7080
      %7082 = vmatmul.bf16.gmra.mxu0 %v6627
      %v7083 = vpop.f32.mrf.mxu0
      %v7084 = vadd.f32 %v7011, %v7083
      %v7085 = vpop.f32.mrf.mxu0
      %v7086 = vadd.f32 %v7013, %v7085
      %7087 = vmatmul.bf16.gmra.mxu0 %v6630
      %v7088 = vpop.f32.mrf.mxu0
      %v7089 = vadd.f32 %v7016, %v7088
      %v7090 = vpop.f32.mrf.mxu0
      %v7091 = vadd.f32 %v7018, %v7090
      %7092 = vmatmul.bf16.gmra.mxu0 %v6633
      %v7093 = vpop.f32.mrf.mxu0
      %v7094 = vadd.f32 %v7021, %v7093
      %v7095 = vpop.f32.mrf.mxu0
      %7096 = vdwg.mxu0
      %7097 = vmatpush.bf16.msra.mxu0 %v6287
      %7098 = vmatpush.bf16.msra.mxu0 %v6279
      %7099 = vmatpush.bf16.msra.mxu0 %v6271
      %7100 = vmatpush.bf16.msra.mxu0 %v6263
      %7101 = vmatpush.bf16.msra.mxu0 %v6255
      %7102 = vmatpush.bf16.msra.mxu0 %v6247
      %7103 = vmatpush.bf16.msra.mxu0 %v6239
      %7104 = vmatpush.bf16.msra.mxu0 %v6231
      %7105 = vmatmul.bf16.gmra.mxu0 %v6557
      %v7106 = vpop.f32.mrf.mxu0
      %v7107 = vadd.f32 %v6360, %v7106
      %v7108 = vpop.f32.mrf.mxu0
      %v7109 = vadd.f32 %v6365, %v7108
      %7110 = vmatmul.bf16.gmra.mxu0 %v6559
      %v7111 = vpop.f32.mrf.mxu0
      %v7112 = vadd.f32 %v6370, %v7111
      %v7113 = vpop.f32.mrf.mxu0
      %v7114 = vadd.f32 %v6375, %v7113
      %7115 = vmatmul.bf16.gmra.mxu0 %v6561
      %v7116 = vpop.f32.mrf.mxu0
      %v7117 = vadd.f32 %v6380, %v7116
      %v7118 = vpop.f32.mrf.mxu0
      %v7119 = vadd.f32 %v6385, %v7118
      %7120 = vmatmul.bf16.gmra.mxu0 %v6563
      %v7121 = vpop.f32.mrf.mxu0
      %v7122 = vadd.f32 %v6390, %v7121
      %v7123 = vpop.f32.mrf.mxu0
      %v7124 = vadd.f32 %v6395, %v7123
      %7125 = vmatmul.bf16.gmra.mxu0 %v6565
      %v7126 = vpop.f32.mrf.mxu0
      %v7127 = vadd.f32 %v6400, %v7126
      %v7128 = vpop.f32.mrf.mxu0
      %v7129 = vadd.f32 %v6405, %v7128
      %7130 = vmatmul.bf16.gmra.mxu0 %v6567
      %v7131 = vpop.f32.mrf.mxu0
      %v7132 = vadd.f32 %v6410, %v7131
      %v7133 = vpop.f32.mrf.mxu0
      %v7134 = vadd.f32 %v6415, %v7133
      %7135 = vmatmul.bf16.gmra.mxu0 %v6569
      %v7136 = vpop.f32.mrf.mxu0
      %v7137 = vadd.f32 %v6420, %v7136
      %v7138 = vpop.f32.mrf.mxu0
      %v7139 = vadd.f32 %v6425, %v7138
      %7140 = vmatmul.bf16.gmra.mxu0 %v6571
      %v7141 = vpop.f32.mrf.mxu0
      %v7142 = vadd.f32 %v6430, %v7141
      %v7143 = vpop.f32.mrf.mxu0
      %v7144 = vadd.f32 %v6435, %v7143
      %7145 = vmatmul.bf16.gmra.mxu0 %v6573
      %v7146 = vpop.f32.mrf.mxu0
      %v7147 = vadd.f32 %v6440, %v7146
      %v7148 = vpop.f32.mrf.mxu0
      %v7149 = vadd.f32 %v6445, %v7148
      %7150 = vmatmul.bf16.gmra.mxu0 %v6575
      %v7151 = vpop.f32.mrf.mxu0
      %v7152 = vadd.f32 %v6450, %v7151
      %v7153 = vpop.f32.mrf.mxu0
      %v7154 = vadd.f32 %v6455, %v7153
      %7155 = vmatmul.bf16.gmra.mxu0 %v6577
      %v7156 = vpop.f32.mrf.mxu0
      %v7157 = vadd.f32 %v6460, %v7156
      %v7158 = vpop.f32.mrf.mxu0
      %v7159 = vadd.f32 %v6465, %v7158
      %7160 = vmatmul.bf16.gmra.mxu0 %v6579
      %v7161 = vpop.f32.mrf.mxu0
      %v7162 = vadd.f32 %v6470, %v7161
      %v7163 = vpop.f32.mrf.mxu0
      %v7164 = vadd.f32 %v6475, %v7163
      %7165 = vmatmul.bf16.gmra.mxu0 %v6581
      %v7166 = vpop.f32.mrf.mxu0
      %v7167 = vadd.f32 %v6480, %v7166
      %v7168 = vpop.f32.mrf.mxu0
      %7169 = vdwg.mxu0
      %7170 = vmatpush.bf16.msra.mxu0 0
      %7171 = vmatpush.bf16.msra.mxu0 0
      %7172 = vmatpush.bf16.msra.mxu0 0
      %7173 = vmatpush.bf16.msra.mxu0 %v6645
      %7174 = vmatpush.bf16.msra.mxu0 %v6319
      %7175 = vmatpush.bf16.msra.mxu0 %v6311
      %7176 = vmatpush.bf16.msra.mxu0 %v6303
      %7177 = vmatpush.bf16.msra.mxu0 %v6295
      %7178 = vmatmul.bf16.gmra.mxu0 %v6597
      %v7179 = vpop.f32.mrf.mxu0
      %v7180 = vadd.f32 %v7107, %v7179
      %v7181 = vpop.f32.mrf.mxu0
      %v7182 = vadd.f32 %v7109, %v7181
      %7183 = vmatmul.bf16.gmra.mxu0 %v6600
      %v7184 = vpop.f32.mrf.mxu0
      %v7185 = vadd.f32 %v7112, %v7184
      %v7186 = vpop.f32.mrf.mxu0
      %v7187 = vadd.f32 %v7114, %v7186
      %7188 = vmatmul.bf16.gmra.mxu0 %v6603
      %v7189 = vpop.f32.mrf.mxu0
      %v7190 = vadd.f32 %v7117, %v7189
      %v7191 = vpop.f32.mrf.mxu0
      %v7192 = vadd.f32 %v7119, %v7191
      %7193 = vmatmul.bf16.gmra.mxu0 %v6606
      %v7194 = vpop.f32.mrf.mxu0
      %v7195 = vadd.f32 %v7122, %v7194
      %v7196 = vpop.f32.mrf.mxu0
      %v7197 = vadd.f32 %v7124, %v7196
      %7198 = vmatmul.bf16.gmra.mxu0 %v6609
      %v7199 = vpop.f32.mrf.mxu0
      %v7200 = vadd.f32 %v7127, %v7199
      %v7201 = vpop.f32.mrf.mxu0
      %v7202 = vadd.f32 %v7129, %v7201
      %7203 = vmatmul.bf16.gmra.mxu0 %v6612
      %v7204 = vpop.f32.mrf.mxu0
      %v7205 = vadd.f32 %v7132, %v7204
      %v7206 = vpop.f32.mrf.mxu0
      %v7207 = vadd.f32 %v7134, %v7206
      %7208 = vmatmul.bf16.gmra.mxu0 %v6615
      %v7209 = vpop.f32.mrf.mxu0
      %v7210 = vadd.f32 %v7137, %v7209
      %v7211 = vpop.f32.mrf.mxu0
      %v7212 = vadd.f32 %v7139, %v7211
      %7213 = vmatmul.bf16.gmra.mxu0 %v6618
      %v7214 = vpop.f32.mrf.mxu0
      %v7215 = vadd.f32 %v7142, %v7214
      %v7216 = vpop.f32.mrf.mxu0
      %v7217 = vadd.f32 %v7144, %v7216
      %7218 = vmatmul.bf16.gmra.mxu0 %v6621
      %v7219 = vpop.f32.mrf.mxu0
      %v7220 = vadd.f32 %v7147, %v7219
      %v7221 = vpop.f32.mrf.mxu0
      %v7222 = vadd.f32 %v7149, %v7221
      %7223 = vmatmul.bf16.gmra.mxu0 %v6624
      %v7224 = vpop.f32.mrf.mxu0
      %v7225 = vadd.f32 %v7152, %v7224
      %v7226 = vpop.f32.mrf.mxu0
      %v7227 = vadd.f32 %v7154, %v7226
      %7228 = vmatmul.bf16.gmra.mxu0 %v6627
      %v7229 = vpop.f32.mrf.mxu0
      %v7230 = vadd.f32 %v7157, %v7229
      %v7231 = vpop.f32.mrf.mxu0
      %v7232 = vadd.f32 %v7159, %v7231
      %7233 = vmatmul.bf16.gmra.mxu0 %v6630
      %v7234 = vpop.f32.mrf.mxu0
      %v7235 = vadd.f32 %v7162, %v7234
      %v7236 = vpop.f32.mrf.mxu0
      %v7237 = vadd.f32 %v7164, %v7236
      %7238 = vmatmul.bf16.gmra.mxu0 %v6633
      %v7239 = vpop.f32.mrf.mxu0
      %v7240 = vadd.f32 %v7167, %v7239
      %v7241 = vpop.f32.mrf.mxu0
      %7242 = vdwg.mxu0
      %7243 = vmatpush.bf16.msra.mxu0 %v6288
      %7244 = vmatpush.bf16.msra.mxu0 %v6280
      %7245 = vmatpush.bf16.msra.mxu0 %v6272
      %7246 = vmatpush.bf16.msra.mxu0 %v6264
      %7247 = vmatpush.bf16.msra.mxu0 %v6256
      %7248 = vmatpush.bf16.msra.mxu0 %v6248
      %7249 = vmatpush.bf16.msra.mxu0 %v6240
      %7250 = vmatpush.bf16.msra.mxu0 %v6232
      %7251 = vmatmul.bf16.gmra.mxu0 %v6557
      %v7252 = vpop.f32.mrf.mxu0
      %v7253 = vadd.f32 %v6360, %v7252
      %v7254 = vpop.f32.mrf.mxu0
      %v7255 = vadd.f32 %v6365, %v7254
      %7256 = vmatmul.bf16.gmra.mxu0 %v6559
      %v7257 = vpop.f32.mrf.mxu0
      %v7258 = vadd.f32 %v6370, %v7257
      %v7259 = vpop.f32.mrf.mxu0
      %v7260 = vadd.f32 %v6375, %v7259
      %7261 = vmatmul.bf16.gmra.mxu0 %v6561
      %v7262 = vpop.f32.mrf.mxu0
      %v7263 = vadd.f32 %v6380, %v7262
      %v7264 = vpop.f32.mrf.mxu0
      %v7265 = vadd.f32 %v6385, %v7264
      %7266 = vmatmul.bf16.gmra.mxu0 %v6563
      %v7267 = vpop.f32.mrf.mxu0
      %v7268 = vadd.f32 %v6390, %v7267
      %v7269 = vpop.f32.mrf.mxu0
      %v7270 = vadd.f32 %v6395, %v7269
      %7271 = vmatmul.bf16.gmra.mxu0 %v6565
      %v7272 = vpop.f32.mrf.mxu0
      %v7273 = vadd.f32 %v6400, %v7272
      %v7274 = vpop.f32.mrf.mxu0
      %v7275 = vadd.f32 %v6405, %v7274
      %7276 = vmatmul.bf16.gmra.mxu0 %v6567
      %v7277 = vpop.f32.mrf.mxu0
      %v7278 = vadd.f32 %v6410, %v7277
      %v7279 = vpop.f32.mrf.mxu0
      %v7280 = vadd.f32 %v6415, %v7279
      %7281 = vmatmul.bf16.gmra.mxu0 %v6569
      %v7282 = vpop.f32.mrf.mxu0
      %v7283 = vadd.f32 %v6420, %v7282
      %v7284 = vpop.f32.mrf.mxu0
      %v7285 = vadd.f32 %v6425, %v7284
      %7286 = vmatmul.bf16.gmra.mxu0 %v6571
      %v7287 = vpop.f32.mrf.mxu0
      %v7288 = vadd.f32 %v6430, %v7287
      %v7289 = vpop.f32.mrf.mxu0
      %v7290 = vadd.f32 %v6435, %v7289
      %7291 = vmatmul.bf16.gmra.mxu0 %v6573
      %v7292 = vpop.f32.mrf.mxu0
      %v7293 = vadd.f32 %v6440, %v7292
      %v7294 = vpop.f32.mrf.mxu0
      %v7295 = vadd.f32 %v6445, %v7294
      %7296 = vmatmul.bf16.gmra.mxu0 %v6575
      %v7297 = vpop.f32.mrf.mxu0
      %v7298 = vadd.f32 %v6450, %v7297
      %v7299 = vpop.f32.mrf.mxu0
      %v7300 = vadd.f32 %v6455, %v7299
      %7301 = vmatmul.bf16.gmra.mxu0 %v6577
      %v7302 = vpop.f32.mrf.mxu0
      %v7303 = vadd.f32 %v6460, %v7302
      %v7304 = vpop.f32.mrf.mxu0
      %v7305 = vadd.f32 %v6465, %v7304
      %7306 = vmatmul.bf16.gmra.mxu0 %v6579
      %v7307 = vpop.f32.mrf.mxu0
      %v7308 = vadd.f32 %v6470, %v7307
      %v7309 = vpop.f32.mrf.mxu0
      %v7310 = vadd.f32 %v6475, %v7309
      %7311 = vmatmul.bf16.gmra.mxu0 %v6581
      %v7312 = vpop.f32.mrf.mxu0
      %v7313 = vadd.f32 %v6480, %v7312
      %v7314 = vpop.f32.mrf.mxu0
      %7315 = vdwg.mxu0
      %7316 = vmatpush.bf16.msra.mxu0 0
      %7317 = vmatpush.bf16.msra.mxu0 0
      %7318 = vmatpush.bf16.msra.mxu0 0
      %7319 = vmatpush.bf16.msra.mxu0 %v6648
      %7320 = vmatpush.bf16.msra.mxu0 %v6320
      %7321 = vmatpush.bf16.msra.mxu0 %v6312
      %7322 = vmatpush.bf16.msra.mxu0 %v6304
      %7323 = vmatpush.bf16.msra.mxu0 %v6296
      %7324 = vmatmul.bf16.gmra.mxu0 %v6597
      %v7325 = vpop.f32.mrf.mxu0
      %v7326 = vadd.f32 %v7253, %v7325
      %v7327 = vpop.f32.mrf.mxu0
      %v7328 = vadd.f32 %v7255, %v7327
      %7329 = vmatmul.bf16.gmra.mxu0 %v6600
      %v7330 = vpop.f32.mrf.mxu0
      %v7331 = vadd.f32 %v7258, %v7330
      %v7332 = vpop.f32.mrf.mxu0
      %v7333 = vadd.f32 %v7260, %v7332
      %7334 = vmatmul.bf16.gmra.mxu0 %v6603
      %v7335 = vpop.f32.mrf.mxu0
      %v7336 = vadd.f32 %v7263, %v7335
      %v7337 = vpop.f32.mrf.mxu0
      %v7338 = vadd.f32 %v7265, %v7337
      %7339 = vmatmul.bf16.gmra.mxu0 %v6606
      %v7340 = vpop.f32.mrf.mxu0
      %v7341 = vadd.f32 %v7268, %v7340
      %v7342 = vpop.f32.mrf.mxu0
      %v7343 = vadd.f32 %v7270, %v7342
      %7344 = vmatmul.bf16.gmra.mxu0 %v6609
      %v7345 = vpop.f32.mrf.mxu0
      %v7346 = vadd.f32 %v7273, %v7345
      %v7347 = vpop.f32.mrf.mxu0
      %v7348 = vadd.f32 %v7275, %v7347
      %7349 = vmatmul.bf16.gmra.mxu0 %v6612
      %v7350 = vpop.f32.mrf.mxu0
      %v7351 = vadd.f32 %v7278, %v7350
      %v7352 = vpop.f32.mrf.mxu0
      %v7353 = vadd.f32 %v7280, %v7352
      %7354 = vmatmul.bf16.gmra.mxu0 %v6615
      %v7355 = vpop.f32.mrf.mxu0
      %v7356 = vadd.f32 %v7283, %v7355
      %v7357 = vpop.f32.mrf.mxu0
      %v7358 = vadd.f32 %v7285, %v7357
      %7359 = vmatmul.bf16.gmra.mxu0 %v6618
      %v7360 = vpop.f32.mrf.mxu0
      %v7361 = vadd.f32 %v7288, %v7360
      %v7362 = vpop.f32.mrf.mxu0
      %v7363 = vadd.f32 %v7290, %v7362
      %7364 = vmatmul.bf16.gmra.mxu0 %v6621
      %v7365 = vpop.f32.mrf.mxu0
      %v7366 = vadd.f32 %v7293, %v7365
      %v7367 = vpop.f32.mrf.mxu0
      %v7368 = vadd.f32 %v7295, %v7367
      %7369 = vmatmul.bf16.gmra.mxu0 %v6624
      %v7370 = vpop.f32.mrf.mxu0
      %v7371 = vadd.f32 %v7298, %v7370
      %v7372 = vpop.f32.mrf.mxu0
      %v7373 = vadd.f32 %v7300, %v7372
      %7374 = vmatmul.bf16.gmra.mxu0 %v6627
      %v7375 = vpop.f32.mrf.mxu0
      %v7376 = vadd.f32 %v7303, %v7375
      %v7377 = vpop.f32.mrf.mxu0
      %v7378 = vadd.f32 %v7305, %v7377
      %7379 = vmatmul.bf16.gmra.mxu0 %v6630
      %v7380 = vpop.f32.mrf.mxu0
      %v7381 = vadd.f32 %v7308, %v7380
      %v7382 = vpop.f32.mrf.mxu0
      %v7383 = vadd.f32 %v7310, %v7382
      %7384 = vmatmul.bf16.gmra.mxu0 %v6633
      %v7385 = vpop.f32.mrf.mxu0
      %v7386 = vadd.f32 %v7313, %v7385
      %v7387 = vpop.f32.mrf.mxu0
      %7388 = vdwg.mxu0
      %7389 = vmatpush.bf16.msra.mxu0 %v6289
      %7390 = vmatpush.bf16.msra.mxu0 %v6281
      %7391 = vmatpush.bf16.msra.mxu0 %v6273
      %7392 = vmatpush.bf16.msra.mxu0 %v6265
      %7393 = vmatpush.bf16.msra.mxu0 %v6257
      %7394 = vmatpush.bf16.msra.mxu0 %v6249
      %7395 = vmatpush.bf16.msra.mxu0 %v6241
      %7396 = vmatpush.bf16.msra.mxu0 %v6233
      %7397 = vmatmul.bf16.gmra.mxu0 %v6557
      %v7398 = vpop.f32.mrf.mxu0
      %v7399 = vadd.f32 %v6360, %v7398
      %v7400 = vpop.f32.mrf.mxu0
      %v7401 = vadd.f32 %v6365, %v7400
      %7402 = vmatmul.bf16.gmra.mxu0 %v6559
      %v7403 = vpop.f32.mrf.mxu0
      %v7404 = vadd.f32 %v6370, %v7403
      %v7405 = vpop.f32.mrf.mxu0
      %v7406 = vadd.f32 %v6375, %v7405
      %7407 = vmatmul.bf16.gmra.mxu0 %v6561
      %v7408 = vpop.f32.mrf.mxu0
      %v7409 = vadd.f32 %v6380, %v7408
      %v7410 = vpop.f32.mrf.mxu0
      %v7411 = vadd.f32 %v6385, %v7410
      %7412 = vmatmul.bf16.gmra.mxu0 %v6563
      %v7413 = vpop.f32.mrf.mxu0
      %v7414 = vadd.f32 %v6390, %v7413
      %v7415 = vpop.f32.mrf.mxu0
      %v7416 = vadd.f32 %v6395, %v7415
      %7417 = vmatmul.bf16.gmra.mxu0 %v6565
      %v7418 = vpop.f32.mrf.mxu0
      %v7419 = vadd.f32 %v6400, %v7418
      %v7420 = vpop.f32.mrf.mxu0
      %v7421 = vadd.f32 %v6405, %v7420
      %7422 = vmatmul.bf16.gmra.mxu0 %v6567
      %v7423 = vpop.f32.mrf.mxu0
      %v7424 = vadd.f32 %v6410, %v7423
      %v7425 = vpop.f32.mrf.mxu0
      %v7426 = vadd.f32 %v6415, %v7425
      %7427 = vmatmul.bf16.gmra.mxu0 %v6569
      %v7428 = vpop.f32.mrf.mxu0
      %v7429 = vadd.f32 %v6420, %v7428
      %v7430 = vpop.f32.mrf.mxu0
      %v7431 = vadd.f32 %v6425, %v7430
      %7432 = vmatmul.bf16.gmra.mxu0 %v6571
      %v7433 = vpop.f32.mrf.mxu0
      %v7434 = vadd.f32 %v6430, %v7433
      %v7435 = vpop.f32.mrf.mxu0
      %v7436 = vadd.f32 %v6435, %v7435
      %7437 = vmatmul.bf16.gmra.mxu0 %v6573
      %v7438 = vpop.f32.mrf.mxu0
      %v7439 = vadd.f32 %v6440, %v7438
      %v7440 = vpop.f32.mrf.mxu0
      %v7441 = vadd.f32 %v6445, %v7440
      %7442 = vmatmul.bf16.gmra.mxu0 %v6575
      %v7443 = vpop.f32.mrf.mxu0
      %v7444 = vadd.f32 %v6450, %v7443
      %v7445 = vpop.f32.mrf.mxu0
      %v7446 = vadd.f32 %v6455, %v7445
      %7447 = vmatmul.bf16.gmra.mxu0 %v6577
      %v7448 = vpop.f32.mrf.mxu0
      %v7449 = vadd.f32 %v6460, %v7448
      %v7450 = vpop.f32.mrf.mxu0
      %v7451 = vadd.f32 %v6465, %v7450
      %7452 = vmatmul.bf16.gmra.mxu0 %v6579
      %v7453 = vpop.f32.mrf.mxu0
      %v7454 = vadd.f32 %v6470, %v7453
      %v7455 = vpop.f32.mrf.mxu0
      %v7456 = vadd.f32 %v6475, %v7455
      %7457 = vmatmul.bf16.gmra.mxu0 %v6581
      %v7458 = vpop.f32.mrf.mxu0
      %v7459 = vadd.f32 %v6480, %v7458
      %v7460 = vpop.f32.mrf.mxu0
      %7461 = vdwg.mxu0
      %7462 = vmatpush.bf16.msra.mxu0 0
      %7463 = vmatpush.bf16.msra.mxu0 0
      %7464 = vmatpush.bf16.msra.mxu0 0
      %7465 = vmatpush.bf16.msra.mxu0 %v6651
      %7466 = vmatpush.bf16.msra.mxu0 %v6321
      %7467 = vmatpush.bf16.msra.mxu0 %v6313
      %7468 = vmatpush.bf16.msra.mxu0 %v6305
      %7469 = vmatpush.bf16.msra.mxu0 %v6297
      %7470 = vmatmul.bf16.gmra.mxu0 %v6597
      %v7471 = vpop.f32.mrf.mxu0
      %v7472 = vadd.f32 %v7399, %v7471
      %v7473 = vpop.f32.mrf.mxu0
      %v7474 = vadd.f32 %v7401, %v7473
      %7475 = vmatmul.bf16.gmra.mxu0 %v6600
      %v7476 = vpop.f32.mrf.mxu0
      %v7477 = vadd.f32 %v7404, %v7476
      %v7478 = vpop.f32.mrf.mxu0
      %v7479 = vadd.f32 %v7406, %v7478
      %7480 = vmatmul.bf16.gmra.mxu0 %v6603
      %v7481 = vpop.f32.mrf.mxu0
      %v7482 = vadd.f32 %v7409, %v7481
      %v7483 = vpop.f32.mrf.mxu0
      %v7484 = vadd.f32 %v7411, %v7483
      %7485 = vmatmul.bf16.gmra.mxu0 %v6606
      %v7486 = vpop.f32.mrf.mxu0
      %v7487 = vadd.f32 %v7414, %v7486
      %v7488 = vpop.f32.mrf.mxu0
      %v7489 = vadd.f32 %v7416, %v7488
      %7490 = vmatmul.bf16.gmra.mxu0 %v6609
      %v7491 = vpop.f32.mrf.mxu0
      %v7492 = vadd.f32 %v7419, %v7491
      %v7493 = vpop.f32.mrf.mxu0
      %v7494 = vadd.f32 %v7421, %v7493
      %7495 = vmatmul.bf16.gmra.mxu0 %v6612
      %v7496 = vpop.f32.mrf.mxu0
      %v7497 = vadd.f32 %v7424, %v7496
      %v7498 = vpop.f32.mrf.mxu0
      %v7499 = vadd.f32 %v7426, %v7498
      %7500 = vmatmul.bf16.gmra.mxu0 %v6615
      %v7501 = vpop.f32.mrf.mxu0
      %v7502 = vadd.f32 %v7429, %v7501
      %v7503 = vpop.f32.mrf.mxu0
      %v7504 = vadd.f32 %v7431, %v7503
      %7505 = vmatmul.bf16.gmra.mxu0 %v6618
      %v7506 = vpop.f32.mrf.mxu0
      %v7507 = vadd.f32 %v7434, %v7506
      %v7508 = vpop.f32.mrf.mxu0
      %v7509 = vadd.f32 %v7436, %v7508
      %7510 = vmatmul.bf16.gmra.mxu0 %v6621
      %v7511 = vpop.f32.mrf.mxu0
      %v7512 = vadd.f32 %v7439, %v7511
      %v7513 = vpop.f32.mrf.mxu0
      %v7514 = vadd.f32 %v7441, %v7513
      %7515 = vmatmul.bf16.gmra.mxu0 %v6624
      %v7516 = vpop.f32.mrf.mxu0
      %v7517 = vadd.f32 %v7444, %v7516
      %v7518 = vpop.f32.mrf.mxu0
      %v7519 = vadd.f32 %v7446, %v7518
      %7520 = vmatmul.bf16.gmra.mxu0 %v6627
      %v7521 = vpop.f32.mrf.mxu0
      %v7522 = vadd.f32 %v7449, %v7521
      %v7523 = vpop.f32.mrf.mxu0
      %v7524 = vadd.f32 %v7451, %v7523
      %7525 = vmatmul.bf16.gmra.mxu0 %v6630
      %v7526 = vpop.f32.mrf.mxu0
      %v7527 = vadd.f32 %v7454, %v7526
      %v7528 = vpop.f32.mrf.mxu0
      %v7529 = vadd.f32 %v7456, %v7528
      %7530 = vmatmul.bf16.gmra.mxu0 %v6633
      %v7531 = vpop.f32.mrf.mxu0
      %v7532 = vadd.f32 %v7459, %v7531
      %v7533 = vpop.f32.mrf.mxu0
      %7534 = vdwg.mxu0
      %7535 = vmatpush.bf16.msra.mxu0 %v6290
      %7536 = vmatpush.bf16.msra.mxu0 %v6282
      %7537 = vmatpush.bf16.msra.mxu0 %v6274
      %7538 = vmatpush.bf16.msra.mxu0 %v6266
      %7539 = vmatpush.bf16.msra.mxu0 %v6258
      %7540 = vmatpush.bf16.msra.mxu0 %v6250
      %7541 = vmatpush.bf16.msra.mxu0 %v6242
      %7542 = vmatpush.bf16.msra.mxu0 %v6234
      %7543 = vmatmul.bf16.gmra.mxu0 %v6557
      %v7544 = vpop.f32.mrf.mxu0
      %v7545 = vadd.f32 %v6360, %v7544
      %v7546 = vpop.f32.mrf.mxu0
      %v7547 = vadd.f32 %v6365, %v7546
      %7548 = vmatmul.bf16.gmra.mxu0 %v6559
      %v7549 = vpop.f32.mrf.mxu0
      %v7550 = vadd.f32 %v6370, %v7549
      %v7551 = vpop.f32.mrf.mxu0
      %v7552 = vadd.f32 %v6375, %v7551
      %7553 = vmatmul.bf16.gmra.mxu0 %v6561
      %v7554 = vpop.f32.mrf.mxu0
      %v7555 = vadd.f32 %v6380, %v7554
      %v7556 = vpop.f32.mrf.mxu0
      %v7557 = vadd.f32 %v6385, %v7556
      %7558 = vmatmul.bf16.gmra.mxu0 %v6563
      %v7559 = vpop.f32.mrf.mxu0
      %v7560 = vadd.f32 %v6390, %v7559
      %v7561 = vpop.f32.mrf.mxu0
      %v7562 = vadd.f32 %v6395, %v7561
      %7563 = vmatmul.bf16.gmra.mxu0 %v6565
      %v7564 = vpop.f32.mrf.mxu0
      %v7565 = vadd.f32 %v6400, %v7564
      %v7566 = vpop.f32.mrf.mxu0
      %v7567 = vadd.f32 %v6405, %v7566
      %7568 = vmatmul.bf16.gmra.mxu0 %v6567
      %v7569 = vpop.f32.mrf.mxu0
      %v7570 = vadd.f32 %v6410, %v7569
      %v7571 = vpop.f32.mrf.mxu0
      %v7572 = vadd.f32 %v6415, %v7571
      %7573 = vmatmul.bf16.gmra.mxu0 %v6569
      %v7574 = vpop.f32.mrf.mxu0
      %v7575 = vadd.f32 %v6420, %v7574
      %v7576 = vpop.f32.mrf.mxu0
      %v7577 = vadd.f32 %v6425, %v7576
      %7578 = vmatmul.bf16.gmra.mxu0 %v6571
      %v7579 = vpop.f32.mrf.mxu0
      %v7580 = vadd.f32 %v6430, %v7579
      %v7581 = vpop.f32.mrf.mxu0
      %v7582 = vadd.f32 %v6435, %v7581
      %7583 = vmatmul.bf16.gmra.mxu0 %v6573
      %v7584 = vpop.f32.mrf.mxu0
      %v7585 = vadd.f32 %v6440, %v7584
      %v7586 = vpop.f32.mrf.mxu0
      %v7587 = vadd.f32 %v6445, %v7586
      %7588 = vmatmul.bf16.gmra.mxu0 %v6575
      %v7589 = vpop.f32.mrf.mxu0
      %v7590 = vadd.f32 %v6450, %v7589
      %v7591 = vpop.f32.mrf.mxu0
      %v7592 = vadd.f32 %v6455, %v7591
      %7593 = vmatmul.bf16.gmra.mxu0 %v6577
      %v7594 = vpop.f32.mrf.mxu0
      %v7595 = vadd.f32 %v6460, %v7594
      %v7596 = vpop.f32.mrf.mxu0
      %v7597 = vadd.f32 %v6465, %v7596
      %7598 = vmatmul.bf16.gmra.mxu0 %v6579
      %v7599 = vpop.f32.mrf.mxu0
      %v7600 = vadd.f32 %v6470, %v7599
      %v7601 = vpop.f32.mrf.mxu0
      %v7602 = vadd.f32 %v6475, %v7601
      %7603 = vmatmul.bf16.gmra.mxu0 %v6581
      %v7604 = vpop.f32.mrf.mxu0
      %v7605 = vadd.f32 %v6480, %v7604
      %v7606 = vpop.f32.mrf.mxu0
      %7607 = vdwg.mxu0
      %7608 = vmatpush.bf16.msra.mxu0 0
      %7609 = vmatpush.bf16.msra.mxu0 0
      %7610 = vmatpush.bf16.msra.mxu0 0
      %7611 = vmatpush.bf16.msra.mxu0 %v6654
      %7612 = vmatpush.bf16.msra.mxu0 %v6322
      %7613 = vmatpush.bf16.msra.mxu0 %v6314
      %7614 = vmatpush.bf16.msra.mxu0 %v6306
      %7615 = vmatpush.bf16.msra.mxu0 %v6298
      %7616 = vmatmul.bf16.gmra.mxu0 %v6597
      %v7617 = vpop.f32.mrf.mxu0
      %v7618 = vadd.f32 %v7545, %v7617
      %v7619 = vpop.f32.mrf.mxu0
      %v7620 = vadd.f32 %v7547, %v7619
      %7621 = vmatmul.bf16.gmra.mxu0 %v6600
      %v7622 = vpop.f32.mrf.mxu0
      %v7623 = vadd.f32 %v7550, %v7622
      %v7624 = vpop.f32.mrf.mxu0
      %v7625 = vadd.f32 %v7552, %v7624
      %7626 = vmatmul.bf16.gmra.mxu0 %v6603
      %v7627 = vpop.f32.mrf.mxu0
      %v7628 = vadd.f32 %v7555, %v7627
      %v7629 = vpop.f32.mrf.mxu0
      %v7630 = vadd.f32 %v7557, %v7629
      %7631 = vmatmul.bf16.gmra.mxu0 %v6606
      %v7632 = vpop.f32.mrf.mxu0
      %v7633 = vadd.f32 %v7560, %v7632
      %v7634 = vpop.f32.mrf.mxu0
      %v7635 = vadd.f32 %v7562, %v7634
      %7636 = vmatmul.bf16.gmra.mxu0 %v6609
      %v7637 = vpop.f32.mrf.mxu0
      %v7638 = vadd.f32 %v7565, %v7637
      %v7639 = vpop.f32.mrf.mxu0
      %v7640 = vadd.f32 %v7567, %v7639
      %7641 = vmatmul.bf16.gmra.mxu0 %v6612
      %v7642 = vpop.f32.mrf.mxu0
      %v7643 = vadd.f32 %v7570, %v7642
      %v7644 = vpop.f32.mrf.mxu0
      %v7645 = vadd.f32 %v7572, %v7644
      %7646 = vmatmul.bf16.gmra.mxu0 %v6615
      %v7647 = vpop.f32.mrf.mxu0
      %v7648 = vadd.f32 %v7575, %v7647
      %v7649 = vpop.f32.mrf.mxu0
      %v7650 = vadd.f32 %v7577, %v7649
      %7651 = vmatmul.bf16.gmra.mxu0 %v6618
      %v7652 = vpop.f32.mrf.mxu0
      %v7653 = vadd.f32 %v7580, %v7652
      %v7654 = vpop.f32.mrf.mxu0
      %v7655 = vadd.f32 %v7582, %v7654
      %7656 = vmatmul.bf16.gmra.mxu0 %v6621
      %v7657 = vpop.f32.mrf.mxu0
      %v7658 = vadd.f32 %v7585, %v7657
      %v7659 = vpop.f32.mrf.mxu0
      %v7660 = vadd.f32 %v7587, %v7659
      %7661 = vmatmul.bf16.gmra.mxu0 %v6624
      %v7662 = vpop.f32.mrf.mxu0
      %v7663 = vadd.f32 %v7590, %v7662
      %v7664 = vpop.f32.mrf.mxu0
      %v7665 = vadd.f32 %v7592, %v7664
      %7666 = vmatmul.bf16.gmra.mxu0 %v6627
      %v7667 = vpop.f32.mrf.mxu0
      %v7668 = vadd.f32 %v7595, %v7667
      %v7669 = vpop.f32.mrf.mxu0
      %v7670 = vadd.f32 %v7597, %v7669
      %7671 = vmatmul.bf16.gmra.mxu0 %v6630
      %v7672 = vpop.f32.mrf.mxu0
      %v7673 = vadd.f32 %v7600, %v7672
      %v7674 = vpop.f32.mrf.mxu0
      %v7675 = vadd.f32 %v7602, %v7674
      %7676 = vmatmul.bf16.gmra.mxu0 %v6633
      %v7677 = vpop.f32.mrf.mxu0
      %v7678 = vadd.f32 %v7605, %v7677
      %v7679 = vpop.f32.mrf.mxu0
      %7680 = vdwg.mxu0
      %7681 = vmatpush.bf16.msra.mxu0 %v6291
      %7682 = vmatpush.bf16.msra.mxu0 %v6283
      %7683 = vmatpush.bf16.msra.mxu0 %v6275
      %7684 = vmatpush.bf16.msra.mxu0 %v6267
      %7685 = vmatpush.bf16.msra.mxu0 %v6259
      %7686 = vmatpush.bf16.msra.mxu0 %v6251
      %7687 = vmatpush.bf16.msra.mxu0 %v6243
      %7688 = vmatpush.bf16.msra.mxu0 %v6235
      %7689 = vmatmul.bf16.gmra.mxu0 %v6557
      %v7690 = vpop.f32.mrf.mxu0
      %v7691 = vadd.f32 %v6360, %v7690
      %v7692 = vpop.f32.mrf.mxu0
      %v7693 = vadd.f32 %v6365, %v7692
      %7694 = vmatmul.bf16.gmra.mxu0 %v6559
      %v7695 = vpop.f32.mrf.mxu0
      %v7696 = vadd.f32 %v6370, %v7695
      %v7697 = vpop.f32.mrf.mxu0
      %v7698 = vadd.f32 %v6375, %v7697
      %7699 = vmatmul.bf16.gmra.mxu0 %v6561
      %v7700 = vpop.f32.mrf.mxu0
      %v7701 = vadd.f32 %v6380, %v7700
      %v7702 = vpop.f32.mrf.mxu0
      %v7703 = vadd.f32 %v6385, %v7702
      %7704 = vmatmul.bf16.gmra.mxu0 %v6563
      %v7705 = vpop.f32.mrf.mxu0
      %v7706 = vadd.f32 %v6390, %v7705
      %v7707 = vpop.f32.mrf.mxu0
      %v7708 = vadd.f32 %v6395, %v7707
      %7709 = vmatmul.bf16.gmra.mxu0 %v6565
      %v7710 = vpop.f32.mrf.mxu0
      %v7711 = vadd.f32 %v6400, %v7710
      %v7712 = vpop.f32.mrf.mxu0
      %v7713 = vadd.f32 %v6405, %v7712
      %7714 = vmatmul.bf16.gmra.mxu0 %v6567
      %v7715 = vpop.f32.mrf.mxu0
      %v7716 = vadd.f32 %v6410, %v7715
      %v7717 = vpop.f32.mrf.mxu0
      %v7718 = vadd.f32 %v6415, %v7717
      %7719 = vmatmul.bf16.gmra.mxu0 %v6569
      %v7720 = vpop.f32.mrf.mxu0
      %v7721 = vadd.f32 %v6420, %v7720
      %v7722 = vpop.f32.mrf.mxu0
      %v7723 = vadd.f32 %v6425, %v7722
      %7724 = vmatmul.bf16.gmra.mxu0 %v6571
      %v7725 = vpop.f32.mrf.mxu0
      %v7726 = vadd.f32 %v6430, %v7725
      %v7727 = vpop.f32.mrf.mxu0
      %v7728 = vadd.f32 %v6435, %v7727
      %7729 = vmatmul.bf16.gmra.mxu0 %v6573
      %v7730 = vpop.f32.mrf.mxu0
      %v7731 = vadd.f32 %v6440, %v7730
      %v7732 = vpop.f32.mrf.mxu0
      %v7733 = vadd.f32 %v6445, %v7732
      %7734 = vmatmul.bf16.gmra.mxu0 %v6575
      %v7735 = vpop.f32.mrf.mxu0
      %v7736 = vadd.f32 %v6450, %v7735
      %v7737 = vpop.f32.mrf.mxu0
      %v7738 = vadd.f32 %v6455, %v7737
      %7739 = vmatmul.bf16.gmra.mxu0 %v6577
      %v7740 = vpop.f32.mrf.mxu0
      %v7741 = vadd.f32 %v6460, %v7740
      %v7742 = vpop.f32.mrf.mxu0
      %v7743 = vadd.f32 %v6465, %v7742
      %7744 = vmatmul.bf16.gmra.mxu0 %v6579
      %v7745 = vpop.f32.mrf.mxu0
      %v7746 = vadd.f32 %v6470, %v7745
      %v7747 = vpop.f32.mrf.mxu0
      %v7748 = vadd.f32 %v6475, %v7747
      %7749 = vmatmul.bf16.gmra.mxu0 %v6581
      %v7750 = vpop.f32.mrf.mxu0
      %v7751 = vadd.f32 %v6480, %v7750
      %v7752 = vpop.f32.mrf.mxu0
      %7753 = vdwg.mxu0
      %7754 = vmatpush.bf16.msra.mxu0 0
      %7755 = vmatpush.bf16.msra.mxu0 0
      %7756 = vmatpush.bf16.msra.mxu0 0
      %7757 = vmatpush.bf16.msra.mxu0 %v6657
      %7758 = vmatpush.bf16.msra.mxu0 %v6323
      %7759 = vmatpush.bf16.msra.mxu0 %v6315
      %7760 = vmatpush.bf16.msra.mxu0 %v6307
      %7761 = vmatpush.bf16.msra.mxu0 %v6299
      %7762 = vmatmul.bf16.gmra.mxu0 %v6597
      %v7763 = vpop.f32.mrf.mxu0
      %v7764 = vadd.f32 %v7691, %v7763
      %v7765 = vpop.f32.mrf.mxu0
      %v7766 = vadd.f32 %v7693, %v7765
      %7767 = vmatmul.bf16.gmra.mxu0 %v6600
      %v7768 = vpop.f32.mrf.mxu0
      %v7769 = vadd.f32 %v7696, %v7768
      %v7770 = vpop.f32.mrf.mxu0
      %v7771 = vadd.f32 %v7698, %v7770
      %7772 = vmatmul.bf16.gmra.mxu0 %v6603
      %v7773 = vpop.f32.mrf.mxu0
      %v7774 = vadd.f32 %v7701, %v7773
      %v7775 = vpop.f32.mrf.mxu0
      %v7776 = vadd.f32 %v7703, %v7775
      %7777 = vmatmul.bf16.gmra.mxu0 %v6606
      %v7778 = vpop.f32.mrf.mxu0
      %v7779 = vadd.f32 %v7706, %v7778
      %v7780 = vpop.f32.mrf.mxu0
      %v7781 = vadd.f32 %v7708, %v7780
      %7782 = vmatmul.bf16.gmra.mxu0 %v6609
      %v7783 = vpop.f32.mrf.mxu0
      %v7784 = vadd.f32 %v7711, %v7783
      %v7785 = vpop.f32.mrf.mxu0
      %v7786 = vadd.f32 %v7713, %v7785
      %7787 = vmatmul.bf16.gmra.mxu0 %v6612
      %v7788 = vpop.f32.mrf.mxu0
      %v7789 = vadd.f32 %v7716, %v7788
      %v7790 = vpop.f32.mrf.mxu0
      %v7791 = vadd.f32 %v7718, %v7790
      %7792 = vmatmul.bf16.gmra.mxu0 %v6615
      %v7793 = vpop.f32.mrf.mxu0
      %v7794 = vadd.f32 %v7721, %v7793
      %v7795 = vpop.f32.mrf.mxu0
      %v7796 = vadd.f32 %v7723, %v7795
      %7797 = vmatmul.bf16.gmra.mxu0 %v6618
      %v7798 = vpop.f32.mrf.mxu0
      %v7799 = vadd.f32 %v7726, %v7798
      %v7800 = vpop.f32.mrf.mxu0
      %v7801 = vadd.f32 %v7728, %v7800
      %7802 = vmatmul.bf16.gmra.mxu0 %v6621
      %v7803 = vpop.f32.mrf.mxu0
      %v7804 = vadd.f32 %v7731, %v7803
      %v7805 = vpop.f32.mrf.mxu0
      %v7806 = vadd.f32 %v7733, %v7805
      %7807 = vmatmul.bf16.gmra.mxu0 %v6624
      %v7808 = vpop.f32.mrf.mxu0
      %v7809 = vadd.f32 %v7736, %v7808
      %v7810 = vpop.f32.mrf.mxu0
      %v7811 = vadd.f32 %v7738, %v7810
      %7812 = vmatmul.bf16.gmra.mxu0 %v6627
      %v7813 = vpop.f32.mrf.mxu0
      %v7814 = vadd.f32 %v7741, %v7813
      %v7815 = vpop.f32.mrf.mxu0
      %v7816 = vadd.f32 %v7743, %v7815
      %7817 = vmatmul.bf16.gmra.mxu0 %v6630
      %v7818 = vpop.f32.mrf.mxu0
      %v7819 = vadd.f32 %v7746, %v7818
      %v7820 = vpop.f32.mrf.mxu0
      %v7821 = vadd.f32 %v7748, %v7820
      %7822 = vmatmul.bf16.gmra.mxu0 %v6633
      %v7823 = vpop.f32.mrf.mxu0
      %v7824 = vadd.f32 %v7751, %v7823
      %v7825 = vpop.f32.mrf.mxu0
      %7826 = vdwg.mxu0
      %v7827 = vmax.f32 %v6742, 0.0
      %v7828 = vmax.f32 %v6888, 0.0
      %v7829 = vmax.f32 %v7034, 0.0
      %v7830 = vmax.f32 %v7180, 0.0
      %v7831 = vmax.f32 %v7326, 0.0
      %v7832 = vmax.f32 %v7472, 0.0
      %v7833 = vmax.f32 %v7618, 0.0
      %v7834 = vmax.f32 %v7764, 0.0
      %v7835 = vmax.f32 %v6744, 0.0
      %v7836 = vmax.f32 %v6890, 0.0
      %v7837 = vmax.f32 %v7036, 0.0
      %v7838 = vmax.f32 %v7182, 0.0
      %v7839 = vmax.f32 %v7328, 0.0
      %v7840 = vmax.f32 %v7474, 0.0
      %v7841 = vmax.f32 %v7620, 0.0
      %v7842 = vmax.f32 %v7766, 0.0
      %v7843 = vmax.f32 %v6747, 0.0
      %v7844 = vmax.f32 %v6893, 0.0
      %v7845 = vmax.f32 %v7039, 0.0
      %v7846 = vmax.f32 %v7185, 0.0
      %v7847 = vmax.f32 %v7331, 0.0
      %v7848 = vmax.f32 %v7477, 0.0
      %v7849 = vmax.f32 %v7623, 0.0
      %v7850 = vmax.f32 %v7769, 0.0
      %v7851 = vmax.f32 %v6749, 0.0
      %v7852 = vmax.f32 %v6895, 0.0
      %v7853 = vmax.f32 %v7041, 0.0
      %v7854 = vmax.f32 %v7187, 0.0
      %v7855 = vmax.f32 %v7333, 0.0
      %v7856 = vmax.f32 %v7479, 0.0
      %v7857 = vmax.f32 %v7625, 0.0
      %v7858 = vmax.f32 %v7771, 0.0
      %v7859 = vmax.f32 %v6752, 0.0
      %v7860 = vmax.f32 %v6898, 0.0
      %v7861 = vmax.f32 %v7044, 0.0
      %v7862 = vmax.f32 %v7190, 0.0
      %v7863 = vmax.f32 %v7336, 0.0
      %v7864 = vmax.f32 %v7482, 0.0
      %v7865 = vmax.f32 %v7628, 0.0
      %v7866 = vmax.f32 %v7774, 0.0
      %v7867 = vmax.f32 %v6754, 0.0
      %v7868 = vmax.f32 %v6900, 0.0
      %v7869 = vmax.f32 %v7046, 0.0
      %v7870 = vmax.f32 %v7192, 0.0
      %v7871 = vmax.f32 %v7338, 0.0
      %v7872 = vmax.f32 %v7484, 0.0
      %v7873 = vmax.f32 %v7630, 0.0
      %v7874 = vmax.f32 %v7776, 0.0
      %v7875 = vmax.f32 %v6757, 0.0
      %v7876 = vmax.f32 %v6903, 0.0
      %v7877 = vmax.f32 %v7049, 0.0
      %v7878 = vmax.f32 %v7195, 0.0
      %v7879 = vmax.f32 %v7341, 0.0
      %v7880 = vmax.f32 %v7487, 0.0
      %v7881 = vmax.f32 %v7633, 0.0
      %v7882 = vmax.f32 %v7779, 0.0
      %v7883 = vmax.f32 %v6759, 0.0
      %v7884 = vmax.f32 %v6905, 0.0
      %v7885 = vmax.f32 %v7051, 0.0
      %v7886 = vmax.f32 %v7197, 0.0
      %v7887 = vmax.f32 %v7343, 0.0
      %v7888 = vmax.f32 %v7489, 0.0
      %v7889 = vmax.f32 %v7635, 0.0
      %v7890 = vmax.f32 %v7781, 0.0
      %v7891 = vmax.f32 %v6762, 0.0
      %v7892 = vmax.f32 %v6908, 0.0
      %v7893 = vmax.f32 %v7054, 0.0
      %v7894 = vmax.f32 %v7200, 0.0
      %v7895 = vmax.f32 %v7346, 0.0
      %v7896 = vmax.f32 %v7492, 0.0
      %v7897 = vmax.f32 %v7638, 0.0
      %v7898 = vmax.f32 %v7784, 0.0
      %v7899 = vmax.f32 %v6764, 0.0
      %v7900 = vmax.f32 %v6910, 0.0
      %v7901 = vmax.f32 %v7056, 0.0
      %v7902 = vmax.f32 %v7202, 0.0
      %v7903 = vmax.f32 %v7348, 0.0
      %v7904 = vmax.f32 %v7494, 0.0
      %v7905 = vmax.f32 %v7640, 0.0
      %v7906 = vmax.f32 %v7786, 0.0
      %v7907 = vmax.f32 %v6767, 0.0
      %v7908 = vmax.f32 %v6913, 0.0
      %v7909 = vmax.f32 %v7059, 0.0
      %v7910 = vmax.f32 %v7205, 0.0
      %v7911 = vmax.f32 %v7351, 0.0
      %v7912 = vmax.f32 %v7497, 0.0
      %v7913 = vmax.f32 %v7643, 0.0
      %v7914 = vmax.f32 %v7789, 0.0
      %v7915 = vmax.f32 %v6769, 0.0
      %v7916 = vmax.f32 %v6915, 0.0
      %v7917 = vmax.f32 %v7061, 0.0
      %v7918 = vmax.f32 %v7207, 0.0
      %v7919 = vmax.f32 %v7353, 0.0
      %v7920 = vmax.f32 %v7499, 0.0
      %v7921 = vmax.f32 %v7645, 0.0
      %v7922 = vmax.f32 %v7791, 0.0
      %v7923 = vmax.f32 %v6772, 0.0
      %v7924 = vmax.f32 %v6918, 0.0
      %v7925 = vmax.f32 %v7064, 0.0
      %v7926 = vmax.f32 %v7210, 0.0
      %v7927 = vmax.f32 %v7356, 0.0
      %v7928 = vmax.f32 %v7502, 0.0
      %v7929 = vmax.f32 %v7648, 0.0
      %v7930 = vmax.f32 %v7794, 0.0
      %v7931 = vmax.f32 %v6774, 0.0
      %v7932 = vmax.f32 %v6920, 0.0
      %v7933 = vmax.f32 %v7066, 0.0
      %v7934 = vmax.f32 %v7212, 0.0
      %v7935 = vmax.f32 %v7358, 0.0
      %v7936 = vmax.f32 %v7504, 0.0
      %v7937 = vmax.f32 %v7650, 0.0
      %v7938 = vmax.f32 %v7796, 0.0
      %v7939 = vmax.f32 %v6777, 0.0
      %v7940 = vmax.f32 %v6923, 0.0
      %v7941 = vmax.f32 %v7069, 0.0
      %v7942 = vmax.f32 %v7215, 0.0
      %v7943 = vmax.f32 %v7361, 0.0
      %v7944 = vmax.f32 %v7507, 0.0
      %v7945 = vmax.f32 %v7653, 0.0
      %v7946 = vmax.f32 %v7799, 0.0
      %v7947 = vmax.f32 %v6779, 0.0
      %v7948 = vmax.f32 %v6925, 0.0
      %v7949 = vmax.f32 %v7071, 0.0
      %v7950 = vmax.f32 %v7217, 0.0
      %v7951 = vmax.f32 %v7363, 0.0
      %v7952 = vmax.f32 %v7509, 0.0
      %v7953 = vmax.f32 %v7655, 0.0
      %v7954 = vmax.f32 %v7801, 0.0
      %v7955 = vmax.f32 %v6782, 0.0
      %v7956 = vmax.f32 %v6928, 0.0
      %v7957 = vmax.f32 %v7074, 0.0
      %v7958 = vmax.f32 %v7220, 0.0
      %v7959 = vmax.f32 %v7366, 0.0
      %v7960 = vmax.f32 %v7512, 0.0
      %v7961 = vmax.f32 %v7658, 0.0
      %v7962 = vmax.f32 %v7804, 0.0
      %v7963 = vmax.f32 %v6784, 0.0
      %v7964 = vmax.f32 %v6930, 0.0
      %v7965 = vmax.f32 %v7076, 0.0
      %v7966 = vmax.f32 %v7222, 0.0
      %v7967 = vmax.f32 %v7368, 0.0
      %v7968 = vmax.f32 %v7514, 0.0
      %v7969 = vmax.f32 %v7660, 0.0
      %v7970 = vmax.f32 %v7806, 0.0
      %v7971 = vmax.f32 %v6787, 0.0
      %v7972 = vmax.f32 %v6933, 0.0
      %v7973 = vmax.f32 %v7079, 0.0
      %v7974 = vmax.f32 %v7225, 0.0
      %v7975 = vmax.f32 %v7371, 0.0
      %v7976 = vmax.f32 %v7517, 0.0
      %v7977 = vmax.f32 %v7663, 0.0
      %v7978 = vmax.f32 %v7809, 0.0
      %v7979 = vmax.f32 %v6789, 0.0
      %v7980 = vmax.f32 %v6935, 0.0
      %v7981 = vmax.f32 %v7081, 0.0
      %v7982 = vmax.f32 %v7227, 0.0
      %v7983 = vmax.f32 %v7373, 0.0
      %v7984 = vmax.f32 %v7519, 0.0
      %v7985 = vmax.f32 %v7665, 0.0
      %v7986 = vmax.f32 %v7811, 0.0
      %v7987 = vmax.f32 %v6792, 0.0
      %v7988 = vmax.f32 %v6938, 0.0
      %v7989 = vmax.f32 %v7084, 0.0
      %v7990 = vmax.f32 %v7230, 0.0
      %v7991 = vmax.f32 %v7376, 0.0
      %v7992 = vmax.f32 %v7522, 0.0
      %v7993 = vmax.f32 %v7668, 0.0
      %v7994 = vmax.f32 %v7814, 0.0
      %v7995 = vmax.f32 %v6794, 0.0
      %v7996 = vmax.f32 %v6940, 0.0
      %v7997 = vmax.f32 %v7086, 0.0
      %v7998 = vmax.f32 %v7232, 0.0
      %v7999 = vmax.f32 %v7378, 0.0
      %v8000 = vmax.f32 %v7524, 0.0
      %v8001 = vmax.f32 %v7670, 0.0
      %v8002 = vmax.f32 %v7816, 0.0
      %v8003 = vmax.f32 %v6797, 0.0
      %v8004 = vmax.f32 %v6943, 0.0
      %v8005 = vmax.f32 %v7089, 0.0
      %v8006 = vmax.f32 %v7235, 0.0
      %v8007 = vmax.f32 %v7381, 0.0
      %v8008 = vmax.f32 %v7527, 0.0
      %v8009 = vmax.f32 %v7673, 0.0
      %v8010 = vmax.f32 %v7819, 0.0
      %v8011 = vmax.f32 %v6799, 0.0
      %v8012 = vmax.f32 %v6945, 0.0
      %v8013 = vmax.f32 %v7091, 0.0
      %v8014 = vmax.f32 %v7237, 0.0
      %v8015 = vmax.f32 %v7383, 0.0
      %v8016 = vmax.f32 %v7529, 0.0
      %v8017 = vmax.f32 %v7675, 0.0
      %v8018 = vmax.f32 %v7821, 0.0
      %v8019 = vmax.f32 %v6802, 0.0
      %v8020 = vmax.f32 %v6948, 0.0
      %v8021 = vmax.f32 %v7094, 0.0
      %v8022 = vmax.f32 %v7240, 0.0
      %v8023 = vmax.f32 %v7386, 0.0
      %v8024 = vmax.f32 %v7532, 0.0
      %v8025 = vmax.f32 %v7678, 0.0
      %v8026 = vmax.f32 %v7824, 0.0
      %v8027 = vld [vmem:[%s8] sm:$0xff]
      %v8028 = vld [vmem:[%s8 + $0x8] sm:$0xff]
      %v8029 = vld [vmem:[%s8 + $0x10] sm:$0xff]
      %v8030 = vld [vmem:[%s8 + $0x18] sm:$0xff]
      %v8031 = vld [vmem:[%s8 + $0x20] sm:$0xff]
      %v8032 = vld [vmem:[%s8 + $0x28] sm:$0xff]
      %v8033 = vld [vmem:[%s8 + $0x30] sm:$0xff]
      %v8034 = vld [vmem:[%s8 + $0x38] sm:$0xff]
      %v8035 = vld [vmem:[%s8 + $0x40] sm:$0xff]
      %v8036 = vld [vmem:[%s8 + $0x48] sm:$0xff]
      %v8037 = vld [vmem:[%s8 + $0x50] sm:$0xff]
      %v8038 = vld [vmem:[%s8 + $0x58] sm:$0xff]
      %v8039 = vld [vmem:[%s8 + $0x60] sm:$0xff]
      %v8040 = vld [vmem:[%s8 + $0x68] sm:$0xff]
      %v8041 = vld [vmem:[%s8 + $0x70] sm:$0xff]
      %v8042 = vld [vmem:[%s8 + $0x78] sm:$0xff]
      %v8043 = vld [vmem:[%s8 + $0x80] sm:$0xff]
      %v8044 = vld [vmem:[%s8 + $0x88] sm:$0xff]
      %v8045 = vld [vmem:[%s8 + $0x90] sm:$0xff]
      %v8046 = vld [vmem:[%s8 + $0x98] sm:$0xff]
      %v8047 = vld [vmem:[%s8 + $0xa0] sm:$0xff]
      %v8048 = vld [vmem:[%s8 + $0xa8] sm:$0xff]
      %v8049 = vld [vmem:[%s8 + $0xb0] sm:$0xff]
      %v8050 = vld [vmem:[%s8 + $0xb8] sm:$0xff]
      %v8051 = vld [vmem:[%s8 + $0xc0] sm:$0xff]
      %8053 = vset.pattern.permute.xlu0 0
      %8054 = vperm.xlu0 %8053, %v8027
      %v8055 = vpop.permute.xlu0 %8054
      %8058 = vset.pattern.permute.xlu0 0
      %8059 = vperm.xlu0 %8058, %v8028
      %v8060 = vpop.permute.xlu0 %8059
      %8063 = vset.pattern.permute.xlu0 0
      %8064 = vperm.xlu0 %8063, %v8029
      %v8065 = vpop.permute.xlu0 %8064
      %8068 = vset.pattern.permute.xlu0 0
      %8069 = vperm.xlu0 %8068, %v8030
      %v8070 = vpop.permute.xlu0 %8069
      %8073 = vset.pattern.permute.xlu0 0
      %8074 = vperm.xlu0 %8073, %v8031
      %v8075 = vpop.permute.xlu0 %8074
      %8078 = vset.pattern.permute.xlu0 0
      %8079 = vperm.xlu0 %8078, %v8032
      %v8080 = vpop.permute.xlu0 %8079
      %8083 = vset.pattern.permute.xlu0 0
      %8084 = vperm.xlu0 %8083, %v8033
      %v8085 = vpop.permute.xlu0 %8084
      %8088 = vset.pattern.permute.xlu0 0
      %8089 = vperm.xlu0 %8088, %v8034
      %v8090 = vpop.permute.xlu0 %8089
      %8093 = vset.pattern.permute.xlu0 0
      %8094 = vperm.xlu0 %8093, %v8035
      %v8095 = vpop.permute.xlu0 %8094
      %8098 = vset.pattern.permute.xlu0 0
      %8099 = vperm.xlu0 %8098, %v8036
      %v8100 = vpop.permute.xlu0 %8099
      %8103 = vset.pattern.permute.xlu0 0
      %8104 = vperm.xlu0 %8103, %v8037
      %v8105 = vpop.permute.xlu0 %8104
      %8108 = vset.pattern.permute.xlu0 0
      %8109 = vperm.xlu0 %8108, %v8038
      %v8110 = vpop.permute.xlu0 %8109
      %8113 = vset.pattern.permute.xlu0 0
      %8114 = vperm.xlu0 %8113, %v8039
      %v8115 = vpop.permute.xlu0 %8114
      %8118 = vset.pattern.permute.xlu0 0
      %8119 = vperm.xlu0 %8118, %v8040
      %v8120 = vpop.permute.xlu0 %8119
      %8123 = vset.pattern.permute.xlu0 0
      %8124 = vperm.xlu0 %8123, %v8041
      %v8125 = vpop.permute.xlu0 %8124
      %8128 = vset.pattern.permute.xlu0 0
      %8129 = vperm.xlu0 %8128, %v8042
      %v8130 = vpop.permute.xlu0 %8129
      %8133 = vset.pattern.permute.xlu0 0
      %8134 = vperm.xlu0 %8133, %v8043
      %v8135 = vpop.permute.xlu0 %8134
      %8138 = vset.pattern.permute.xlu0 0
      %8139 = vperm.xlu0 %8138, %v8044
      %v8140 = vpop.permute.xlu0 %8139
      %8143 = vset.pattern.permute.xlu0 0
      %8144 = vperm.xlu0 %8143, %v8045
      %v8145 = vpop.permute.xlu0 %8144
      %8148 = vset.pattern.permute.xlu0 0
      %8149 = vperm.xlu0 %8148, %v8046
      %v8150 = vpop.permute.xlu0 %8149
      %8153 = vset.pattern.permute.xlu0 0
      %8154 = vperm.xlu0 %8153, %v8047
      %v8155 = vpop.permute.xlu0 %8154
      %8158 = vset.pattern.permute.xlu0 0
      %8159 = vperm.xlu0 %8158, %v8048
      %v8160 = vpop.permute.xlu0 %8159
      %8163 = vset.pattern.permute.xlu0 0
      %8164 = vperm.xlu0 %8163, %v8049
      %v8165 = vpop.permute.xlu0 %8164
      %8168 = vset.pattern.permute.xlu0 0
      %8169 = vperm.xlu0 %8168, %v8050
      %v8170 = vpop.permute.xlu0 %8169
      %8173 = vset.pattern.permute.xlu0 0
      %8174 = vperm.xlu0 %8173, %v8051
      %v8175 = vpop.permute.xlu0 %8174
      %v8177 = vmul.f32 %v8055, %v7827
      %v8178 = vmul.f32 %v8055, %v7828
      %v8179 = vmul.f32 %v8055, %v7829
      %v8180 = vmul.f32 %v8055, %v7830
      %v8181 = vmul.f32 %v8055, %v7831
      %v8182 = vmul.f32 %v8055, %v7832
      %v8183 = vmul.f32 %v8055, %v7833
      %v8184 = vmul.f32 %v8055, %v7834
      %v8185 = vmul.f32 %v8060, %v7835
      %v8186 = vmul.f32 %v8060, %v7836
      %v8187 = vmul.f32 %v8060, %v7837
      %v8188 = vmul.f32 %v8060, %v7838
      %v8189 = vmul.f32 %v8060, %v7839
      %v8190 = vmul.f32 %v8060, %v7840
      %v8191 = vmul.f32 %v8060, %v7841
      %v8192 = vmul.f32 %v8060, %v7842
      %v8193 = vmul.f32 %v8065, %v7843
      %v8194 = vmul.f32 %v8065, %v7844
      %v8195 = vmul.f32 %v8065, %v7845
      %v8196 = vmul.f32 %v8065, %v7846
      %v8197 = vmul.f32 %v8065, %v7847
      %v8198 = vmul.f32 %v8065, %v7848
      %v8199 = vmul.f32 %v8065, %v7849
      %v8200 = vmul.f32 %v8065, %v7850
      %v8201 = vmul.f32 %v8070, %v7851
      %v8202 = vmul.f32 %v8070, %v7852
      %v8203 = vmul.f32 %v8070, %v7853
      %v8204 = vmul.f32 %v8070, %v7854
      %v8205 = vmul.f32 %v8070, %v7855
      %v8206 = vmul.f32 %v8070, %v7856
      %v8207 = vmul.f32 %v8070, %v7857
      %v8208 = vmul.f32 %v8070, %v7858
      %v8209 = vmul.f32 %v8075, %v7859
      %v8210 = vmul.f32 %v8075, %v7860
      %v8211 = vmul.f32 %v8075, %v7861
      %v8212 = vmul.f32 %v8075, %v7862
      %v8213 = vmul.f32 %v8075, %v7863
      %v8214 = vmul.f32 %v8075, %v7864
      %v8215 = vmul.f32 %v8075, %v7865
      %v8216 = vmul.f32 %v8075, %v7866
      %v8217 = vmul.f32 %v8080, %v7867
      %v8218 = vmul.f32 %v8080, %v7868
      %v8219 = vmul.f32 %v8080, %v7869
      %v8220 = vmul.f32 %v8080, %v7870
      %v8221 = vmul.f32 %v8080, %v7871
      %v8222 = vmul.f32 %v8080, %v7872
      %v8223 = vmul.f32 %v8080, %v7873
      %v8224 = vmul.f32 %v8080, %v7874
      %v8225 = vmul.f32 %v8085, %v7875
      %v8226 = vmul.f32 %v8085, %v7876
      %v8227 = vmul.f32 %v8085, %v7877
      %v8228 = vmul.f32 %v8085, %v7878
      %v8229 = vmul.f32 %v8085, %v7879
      %v8230 = vmul.f32 %v8085, %v7880
      %v8231 = vmul.f32 %v8085, %v7881
      %v8232 = vmul.f32 %v8085, %v7882
      %v8233 = vmul.f32 %v8090, %v7883
      %v8234 = vmul.f32 %v8090, %v7884
      %v8235 = vmul.f32 %v8090, %v7885
      %v8236 = vmul.f32 %v8090, %v7886
      %v8237 = vmul.f32 %v8090, %v7887
      %v8238 = vmul.f32 %v8090, %v7888
      %v8239 = vmul.f32 %v8090, %v7889
      %v8240 = vmul.f32 %v8090, %v7890
      %v8241 = vmul.f32 %v8095, %v7891
      %v8242 = vmul.f32 %v8095, %v7892
      %v8243 = vmul.f32 %v8095, %v7893
      %v8244 = vmul.f32 %v8095, %v7894
      %v8245 = vmul.f32 %v8095, %v7895
      %v8246 = vmul.f32 %v8095, %v7896
      %v8247 = vmul.f32 %v8095, %v7897
      %v8248 = vmul.f32 %v8095, %v7898
      %v8249 = vmul.f32 %v8100, %v7899
      %v8250 = vmul.f32 %v8100, %v7900
      %v8251 = vmul.f32 %v8100, %v7901
      %v8252 = vmul.f32 %v8100, %v7902
      %v8253 = vmul.f32 %v8100, %v7903
      %v8254 = vmul.f32 %v8100, %v7904
      %v8255 = vmul.f32 %v8100, %v7905
      %v8256 = vmul.f32 %v8100, %v7906
      %v8257 = vmul.f32 %v8105, %v7907
      %v8258 = vmul.f32 %v8105, %v7908
      %v8259 = vmul.f32 %v8105, %v7909
      %v8260 = vmul.f32 %v8105, %v7910
      %v8261 = vmul.f32 %v8105, %v7911
      %v8262 = vmul.f32 %v8105, %v7912
      %v8263 = vmul.f32 %v8105, %v7913
      %v8264 = vmul.f32 %v8105, %v7914
      %v8265 = vmul.f32 %v8110, %v7915
      %v8266 = vmul.f32 %v8110, %v7916
      %v8267 = vmul.f32 %v8110, %v7917
      %v8268 = vmul.f32 %v8110, %v7918
      %v8269 = vmul.f32 %v8110, %v7919
      %v8270 = vmul.f32 %v8110, %v7920
      %v8271 = vmul.f32 %v8110, %v7921
      %v8272 = vmul.f32 %v8110, %v7922
      %v8273 = vmul.f32 %v8115, %v7923
      %v8274 = vmul.f32 %v8115, %v7924
      %v8275 = vmul.f32 %v8115, %v7925
      %v8276 = vmul.f32 %v8115, %v7926
      %v8277 = vmul.f32 %v8115, %v7927
      %v8278 = vmul.f32 %v8115, %v7928
      %v8279 = vmul.f32 %v8115, %v7929
      %v8280 = vmul.f32 %v8115, %v7930
      %v8281 = vmul.f32 %v8120, %v7931
      %v8282 = vmul.f32 %v8120, %v7932
      %v8283 = vmul.f32 %v8120, %v7933
      %v8284 = vmul.f32 %v8120, %v7934
      %v8285 = vmul.f32 %v8120, %v7935
      %v8286 = vmul.f32 %v8120, %v7936
      %v8287 = vmul.f32 %v8120, %v7937
      %v8288 = vmul.f32 %v8120, %v7938
      %v8289 = vmul.f32 %v8125, %v7939
      %v8290 = vmul.f32 %v8125, %v7940
      %v8291 = vmul.f32 %v8125, %v7941
      %v8292 = vmul.f32 %v8125, %v7942
      %v8293 = vmul.f32 %v8125, %v7943
      %v8294 = vmul.f32 %v8125, %v7944
      %v8295 = vmul.f32 %v8125, %v7945
      %v8296 = vmul.f32 %v8125, %v7946
      %v8297 = vmul.f32 %v8130, %v7947
      %v8298 = vmul.f32 %v8130, %v7948
      %v8299 = vmul.f32 %v8130, %v7949
      %v8300 = vmul.f32 %v8130, %v7950
      %v8301 = vmul.f32 %v8130, %v7951
      %v8302 = vmul.f32 %v8130, %v7952
      %v8303 = vmul.f32 %v8130, %v7953
      %v8304 = vmul.f32 %v8130, %v7954
      %v8305 = vmul.f32 %v8135, %v7955
      %v8306 = vmul.f32 %v8135, %v7956
      %v8307 = vmul.f32 %v8135, %v7957
      %v8308 = vmul.f32 %v8135, %v7958
      %v8309 = vmul.f32 %v8135, %v7959
      %v8310 = vmul.f32 %v8135, %v7960
      %v8311 = vmul.f32 %v8135, %v7961
      %v8312 = vmul.f32 %v8135, %v7962
      %v8313 = vmul.f32 %v8140, %v7963
      %v8314 = vmul.f32 %v8140, %v7964
      %v8315 = vmul.f32 %v8140, %v7965
      %v8316 = vmul.f32 %v8140, %v7966
      %v8317 = vmul.f32 %v8140, %v7967
      %v8318 = vmul.f32 %v8140, %v7968
      %v8319 = vmul.f32 %v8140, %v7969
      %v8320 = vmul.f32 %v8140, %v7970
      %v8321 = vmul.f32 %v8145, %v7971
      %v8322 = vmul.f32 %v8145, %v7972
      %v8323 = vmul.f32 %v8145, %v7973
      %v8324 = vmul.f32 %v8145, %v7974
      %v8325 = vmul.f32 %v8145, %v7975
      %v8326 = vmul.f32 %v8145, %v7976
      %v8327 = vmul.f32 %v8145, %v7977
      %v8328 = vmul.f32 %v8145, %v7978
      %v8329 = vmul.f32 %v8150, %v7979
      %v8330 = vmul.f32 %v8150, %v7980
      %v8331 = vmul.f32 %v8150, %v7981
      %v8332 = vmul.f32 %v8150, %v7982
      %v8333 = vmul.f32 %v8150, %v7983
      %v8334 = vmul.f32 %v8150, %v7984
      %v8335 = vmul.f32 %v8150, %v7985
      %v8336 = vmul.f32 %v8150, %v7986
      %v8337 = vmul.f32 %v8155, %v7987
      %v8338 = vmul.f32 %v8155, %v7988
      %v8339 = vmul.f32 %v8155, %v7989
      %v8340 = vmul.f32 %v8155, %v7990
      %v8341 = vmul.f32 %v8155, %v7991
      %v8342 = vmul.f32 %v8155, %v7992
      %v8343 = vmul.f32 %v8155, %v7993
      %v8344 = vmul.f32 %v8155, %v7994
      %v8345 = vmul.f32 %v8160, %v7995
      %v8346 = vmul.f32 %v8160, %v7996
      %v8347 = vmul.f32 %v8160, %v7997
      %v8348 = vmul.f32 %v8160, %v7998
      %v8349 = vmul.f32 %v8160, %v7999
      %v8350 = vmul.f32 %v8160, %v8000
      %v8351 = vmul.f32 %v8160, %v8001
      %v8352 = vmul.f32 %v8160, %v8002
      %v8353 = vmul.f32 %v8165, %v8003
      %v8354 = vmul.f32 %v8165, %v8004
      %v8355 = vmul.f32 %v8165, %v8005
      %v8356 = vmul.f32 %v8165, %v8006
      %v8357 = vmul.f32 %v8165, %v8007
      %v8358 = vmul.f32 %v8165, %v8008
      %v8359 = vmul.f32 %v8165, %v8009
      %v8360 = vmul.f32 %v8165, %v8010
      %v8361 = vmul.f32 %v8170, %v8011
      %v8362 = vmul.f32 %v8170, %v8012
      %v8363 = vmul.f32 %v8170, %v8013
      %v8364 = vmul.f32 %v8170, %v8014
      %v8365 = vmul.f32 %v8170, %v8015
      %v8366 = vmul.f32 %v8170, %v8016
      %v8367 = vmul.f32 %v8170, %v8017
      %v8368 = vmul.f32 %v8170, %v8018
      %v8369 = vmul.f32 %v8175, %v8019
      %v8370 = vmul.f32 %v8175, %v8020
      %v8371 = vmul.f32 %v8175, %v8021
      %v8372 = vmul.f32 %v8175, %v8022
      %v8373 = vmul.f32 %v8175, %v8023
      %v8374 = vmul.f32 %v8175, %v8024
      %v8375 = vmul.f32 %v8175, %v8025
      %v8376 = vmul.f32 %v8175, %v8026
      %v8377 = vadd.f32 %v8177, %v8185
      %v8378 = vadd.f32 %v8377, %v8193
      %v8379 = vadd.f32 %v8378, %v8201
      %v8380 = vadd.f32 %v8379, %v8209
      %v8381 = vadd.f32 %v8380, %v8217
      %v8382 = vadd.f32 %v8381, %v8225
      %v8383 = vadd.f32 %v8382, %v8233
      %v8384 = vadd.f32 %v8383, %v8241
      %v8385 = vadd.f32 %v8384, %v8249
      %v8386 = vadd.f32 %v8385, %v8257
      %v8387 = vadd.f32 %v8386, %v8265
      %v8388 = vadd.f32 %v8387, %v8273
      %v8389 = vadd.f32 %v8388, %v8281
      %v8390 = vadd.f32 %v8389, %v8289
      %v8391 = vadd.f32 %v8390, %v8297
      %v8392 = vadd.f32 %v8391, %v8305
      %v8393 = vadd.f32 %v8392, %v8313
      %v8394 = vadd.f32 %v8393, %v8321
      %v8395 = vadd.f32 %v8394, %v8329
      %v8396 = vadd.f32 %v8395, %v8337
      %v8397 = vadd.f32 %v8396, %v8345
      %v8398 = vadd.f32 %v8397, %v8353
      %v8399 = vadd.f32 %v8398, %v8361
      %v8400 = vadd.f32 %v8399, %v8369
      %v8401 = vrot.slane %v8400, 4
      %v8402 = vadd.f32 %v8400, %v8401
      %v8403 = vrot.slane %v8402, 2
      %v8404 = vadd.f32 %v8402, %v8403
      %v8405 = vrot.slane %v8404, 1
      %v8406 = vadd.f32 %v8404, %v8405
      %v8407 = vadd.f32 %v8178, %v8186
      %v8408 = vadd.f32 %v8407, %v8194
      %v8409 = vadd.f32 %v8408, %v8202
      %v8410 = vadd.f32 %v8409, %v8210
      %v8411 = vadd.f32 %v8410, %v8218
      %v8412 = vadd.f32 %v8411, %v8226
      %v8413 = vadd.f32 %v8412, %v8234
      %v8414 = vadd.f32 %v8413, %v8242
      %v8415 = vadd.f32 %v8414, %v8250
      %v8416 = vadd.f32 %v8415, %v8258
      %v8417 = vadd.f32 %v8416, %v8266
      %v8418 = vadd.f32 %v8417, %v8274
      %v8419 = vadd.f32 %v8418, %v8282
      %v8420 = vadd.f32 %v8419, %v8290
      %v8421 = vadd.f32 %v8420, %v8298
      %v8422 = vadd.f32 %v8421, %v8306
      %v8423 = vadd.f32 %v8422, %v8314
      %v8424 = vadd.f32 %v8423, %v8322
      %v8425 = vadd.f32 %v8424, %v8330
      %v8426 = vadd.f32 %v8425, %v8338
      %v8427 = vadd.f32 %v8426, %v8346
      %v8428 = vadd.f32 %v8427, %v8354
      %v8429 = vadd.f32 %v8428, %v8362
      %v8430 = vadd.f32 %v8429, %v8370
      %v8431 = vrot.slane %v8430, 4
      %v8432 = vadd.f32 %v8430, %v8431
      %v8433 = vrot.slane %v8432, 2
      %v8434 = vadd.f32 %v8432, %v8433
      %v8435 = vrot.slane %v8434, 1
      %v8436 = vadd.f32 %v8434, %v8435
      %v8437 = vadd.f32 %v8179, %v8187
      %v8438 = vadd.f32 %v8437, %v8195
      %v8439 = vadd.f32 %v8438, %v8203
      %v8440 = vadd.f32 %v8439, %v8211
      %v8441 = vadd.f32 %v8440, %v8219
      %v8442 = vadd.f32 %v8441, %v8227
      %v8443 = vadd.f32 %v8442, %v8235
      %v8444 = vadd.f32 %v8443, %v8243
      %v8445 = vadd.f32 %v8444, %v8251
      %v8446 = vadd.f32 %v8445, %v8259
      %v8447 = vadd.f32 %v8446, %v8267
      %v8448 = vadd.f32 %v8447, %v8275
      %v8449 = vadd.f32 %v8448, %v8283
      %v8450 = vadd.f32 %v8449, %v8291
      %v8451 = vadd.f32 %v8450, %v8299
      %v8452 = vadd.f32 %v8451, %v8307
      %v8453 = vadd.f32 %v8452, %v8315
      %v8454 = vadd.f32 %v8453, %v8323
      %v8455 = vadd.f32 %v8454, %v8331
      %v8456 = vadd.f32 %v8455, %v8339
      %v8457 = vadd.f32 %v8456, %v8347
      %v8458 = vadd.f32 %v8457, %v8355
      %v8459 = vadd.f32 %v8458, %v8363
      %v8460 = vadd.f32 %v8459, %v8371
      %v8461 = vrot.slane %v8460, 4
      %v8462 = vadd.f32 %v8460, %v8461
      %v8463 = vrot.slane %v8462, 2
      %v8464 = vadd.f32 %v8462, %v8463
      %v8465 = vrot.slane %v8464, 1
      %v8466 = vadd.f32 %v8464, %v8465
      %v8467 = vadd.f32 %v8180, %v8188
      %v8468 = vadd.f32 %v8467, %v8196
      %v8469 = vadd.f32 %v8468, %v8204
      %v8470 = vadd.f32 %v8469, %v8212
      %v8471 = vadd.f32 %v8470, %v8220
      %v8472 = vadd.f32 %v8471, %v8228
      %v8473 = vadd.f32 %v8472, %v8236
      %v8474 = vadd.f32 %v8473, %v8244
      %v8475 = vadd.f32 %v8474, %v8252
      %v8476 = vadd.f32 %v8475, %v8260
      %v8477 = vadd.f32 %v8476, %v8268
      %v8478 = vadd.f32 %v8477, %v8276
      %v8479 = vadd.f32 %v8478, %v8284
      %v8480 = vadd.f32 %v8479, %v8292
      %v8481 = vadd.f32 %v8480, %v8300
      %v8482 = vadd.f32 %v8481, %v8308
      %v8483 = vadd.f32 %v8482, %v8316
      %v8484 = vadd.f32 %v8483, %v8324
      %v8485 = vadd.f32 %v8484, %v8332
      %v8486 = vadd.f32 %v8485, %v8340
      %v8487 = vadd.f32 %v8486, %v8348
      %v8488 = vadd.f32 %v8487, %v8356
      %v8489 = vadd.f32 %v8488, %v8364
      %v8490 = vadd.f32 %v8489, %v8372
      %v8491 = vrot.slane %v8490, 4
      %v8492 = vadd.f32 %v8490, %v8491
      %v8493 = vrot.slane %v8492, 2
      %v8494 = vadd.f32 %v8492, %v8493
      %v8495 = vrot.slane %v8494, 1
      %v8496 = vadd.f32 %v8494, %v8495
      %v8497 = vadd.f32 %v8181, %v8189
      %v8498 = vadd.f32 %v8497, %v8197
      %v8499 = vadd.f32 %v8498, %v8205
      %v8500 = vadd.f32 %v8499, %v8213
      %v8501 = vadd.f32 %v8500, %v8221
      %v8502 = vadd.f32 %v8501, %v8229
      %v8503 = vadd.f32 %v8502, %v8237
      %v8504 = vadd.f32 %v8503, %v8245
      %v8505 = vadd.f32 %v8504, %v8253
      %v8506 = vadd.f32 %v8505, %v8261
      %v8507 = vadd.f32 %v8506, %v8269
      %v8508 = vadd.f32 %v8507, %v8277
      %v8509 = vadd.f32 %v8508, %v8285
      %v8510 = vadd.f32 %v8509, %v8293
      %v8511 = vadd.f32 %v8510, %v8301
      %v8512 = vadd.f32 %v8511, %v8309
      %v8513 = vadd.f32 %v8512, %v8317
      %v8514 = vadd.f32 %v8513, %v8325
      %v8515 = vadd.f32 %v8514, %v8333
      %v8516 = vadd.f32 %v8515, %v8341
      %v8517 = vadd.f32 %v8516, %v8349
      %v8518 = vadd.f32 %v8517, %v8357
      %v8519 = vadd.f32 %v8518, %v8365
      %v8520 = vadd.f32 %v8519, %v8373
      %v8521 = vrot.slane %v8520, 4
      %v8522 = vadd.f32 %v8520, %v8521
      %v8523 = vrot.slane %v8522, 2
      %v8524 = vadd.f32 %v8522, %v8523
      %v8525 = vrot.slane %v8524, 1
      %v8526 = vadd.f32 %v8524, %v8525
      %v8527 = vadd.f32 %v8182, %v8190
      %v8528 = vadd.f32 %v8527, %v8198
      %v8529 = vadd.f32 %v8528, %v8206
      %v8530 = vadd.f32 %v8529, %v8214
      %v8531 = vadd.f32 %v8530, %v8222
      %v8532 = vadd.f32 %v8531, %v8230
      %v8533 = vadd.f32 %v8532, %v8238
      %v8534 = vadd.f32 %v8533, %v8246
      %v8535 = vadd.f32 %v8534, %v8254
      %v8536 = vadd.f32 %v8535, %v8262
      %v8537 = vadd.f32 %v8536, %v8270
      %v8538 = vadd.f32 %v8537, %v8278
      %v8539 = vadd.f32 %v8538, %v8286
      %v8540 = vadd.f32 %v8539, %v8294
      %v8541 = vadd.f32 %v8540, %v8302
      %v8542 = vadd.f32 %v8541, %v8310
      %v8543 = vadd.f32 %v8542, %v8318
      %v8544 = vadd.f32 %v8543, %v8326
      %v8545 = vadd.f32 %v8544, %v8334
      %v8546 = vadd.f32 %v8545, %v8342
      %v8547 = vadd.f32 %v8546, %v8350
      %v8548 = vadd.f32 %v8547, %v8358
      %v8549 = vadd.f32 %v8548, %v8366
      %v8550 = vadd.f32 %v8549, %v8374
      %v8551 = vrot.slane %v8550, 4
      %v8552 = vadd.f32 %v8550, %v8551
      %v8553 = vrot.slane %v8552, 2
      %v8554 = vadd.f32 %v8552, %v8553
      %v8555 = vrot.slane %v8554, 1
      %v8556 = vadd.f32 %v8554, %v8555
      %v8557 = vadd.f32 %v8183, %v8191
      %v8558 = vadd.f32 %v8557, %v8199
      %v8559 = vadd.f32 %v8558, %v8207
      %v8560 = vadd.f32 %v8559, %v8215
      %v8561 = vadd.f32 %v8560, %v8223
      %v8562 = vadd.f32 %v8561, %v8231
      %v8563 = vadd.f32 %v8562, %v8239
      %v8564 = vadd.f32 %v8563, %v8247
      %v8565 = vadd.f32 %v8564, %v8255
      %v8566 = vadd.f32 %v8565, %v8263
      %v8567 = vadd.f32 %v8566, %v8271
      %v8568 = vadd.f32 %v8567, %v8279
      %v8569 = vadd.f32 %v8568, %v8287
      %v8570 = vadd.f32 %v8569, %v8295
      %v8571 = vadd.f32 %v8570, %v8303
      %v8572 = vadd.f32 %v8571, %v8311
      %v8573 = vadd.f32 %v8572, %v8319
      %v8574 = vadd.f32 %v8573, %v8327
      %v8575 = vadd.f32 %v8574, %v8335
      %v8576 = vadd.f32 %v8575, %v8343
      %v8577 = vadd.f32 %v8576, %v8351
      %v8578 = vadd.f32 %v8577, %v8359
      %v8579 = vadd.f32 %v8578, %v8367
      %v8580 = vadd.f32 %v8579, %v8375
      %v8581 = vrot.slane %v8580, 4
      %v8582 = vadd.f32 %v8580, %v8581
      %v8583 = vrot.slane %v8582, 2
      %v8584 = vadd.f32 %v8582, %v8583
      %v8585 = vrot.slane %v8584, 1
      %v8586 = vadd.f32 %v8584, %v8585
      %v8587 = vadd.f32 %v8184, %v8192
      %v8588 = vadd.f32 %v8587, %v8200
      %v8589 = vadd.f32 %v8588, %v8208
      %v8590 = vadd.f32 %v8589, %v8216
      %v8591 = vadd.f32 %v8590, %v8224
      %v8592 = vadd.f32 %v8591, %v8232
      %v8593 = vadd.f32 %v8592, %v8240
      %v8594 = vadd.f32 %v8593, %v8248
      %v8595 = vadd.f32 %v8594, %v8256
      %v8596 = vadd.f32 %v8595, %v8264
      %v8597 = vadd.f32 %v8596, %v8272
      %v8598 = vadd.f32 %v8597, %v8280
      %v8599 = vadd.f32 %v8598, %v8288
      %v8600 = vadd.f32 %v8599, %v8296
      %v8601 = vadd.f32 %v8600, %v8304
      %v8602 = vadd.f32 %v8601, %v8312
      %v8603 = vadd.f32 %v8602, %v8320
      %v8604 = vadd.f32 %v8603, %v8328
      %v8605 = vadd.f32 %v8604, %v8336
      %v8606 = vadd.f32 %v8605, %v8344
      %v8607 = vadd.f32 %v8606, %v8352
      %v8608 = vadd.f32 %v8607, %v8360
      %v8609 = vadd.f32 %v8608, %v8368
      %v8610 = vadd.f32 %v8609, %v8376
      %v8611 = vrot.slane %v8610, 4
      %v8612 = vadd.f32 %v8610, %v8611
      %v8613 = vrot.slane %v8612, 2
      %v8614 = vadd.f32 %v8612, %v8613
      %v8615 = vrot.slane %v8614, 1
      %v8616 = vadd.f32 %v8614, %v8615
      %v8617 = vld [vmem:[#allocation7] sm:$0x1]
      %8619 = vset.pattern.permute.xlu0 0
      %8620 = vperm.xlu0 %8619, %v8617
      %v8621 = vpop.permute.xlu0 %8620
      %v8623 = vperm.slane %v8621, 0
      %v8624 = vadd.f32 %v8406, %v8623
      %v8625 = vadd.f32 %v8436, %v8623
      %v8626 = vadd.f32 %v8466, %v8623
      %v8627 = vadd.f32 %v8496, %v8623
      %v8628 = vadd.f32 %v8526, %v8623
      %v8629 = vadd.f32 %v8556, %v8623
      %v8630 = vadd.f32 %v8586, %v8623
      %v8631 = vadd.f32 %v8616, %v8623
      %v8632 = vsub.f32 0.0, %v8624
      %v8633 = vsub.f32 0.0, %v8625
      %v8634 = vsub.f32 0.0, %v8626
      %v8635 = vsub.f32 0.0, %v8627
      %v8636 = vsub.f32 0.0, %v8628
      %v8637 = vsub.f32 0.0, %v8629
      %v8638 = vsub.f32 0.0, %v8630
      %v8639 = vsub.f32 0.0, %v8631
      %v8640 = vmul.f32 %v8632, 1.442695
      %v8641 = vpow.pop %v8640
      %v8642 = vmul.f32 %v8633, 1.442695
      %v8643 = vpow.pop %v8642
      %v8644 = vmul.f32 %v8634, 1.442695
      %v8645 = vpow.pop %v8644
      %v8646 = vmul.f32 %v8635, 1.442695
      %v8647 = vpow.pop %v8646
      %v8648 = vmul.f32 %v8636, 1.442695
      %v8649 = vpow.pop %v8648
      %v8650 = vmul.f32 %v8637, 1.442695
      %v8651 = vpow.pop %v8650
      %v8652 = vmul.f32 %v8638, 1.442695
      %v8653 = vpow.pop %v8652
      %v8654 = vmul.f32 %v8639, 1.442695
      %v8655 = vpow.pop %v8654
      %v8656 = vadd.f32 %v8641, 1.0
      %v8657 = vadd.f32 %v8643, 1.0
      %v8658 = vadd.f32 %v8645, 1.0
      %v8659 = vadd.f32 %v8647, 1.0
      %v8660 = vadd.f32 %v8649, 1.0
      %v8661 = vadd.f32 %v8651, 1.0
      %v8662 = vadd.f32 %v8653, 1.0
      %v8663 = vadd.f32 %v8655, 1.0
      %v8664 = vrcp.pop %v8656
      %v8665 = vrcp.pop %v8657
      %v8666 = vrcp.pop %v8658
      %v8667 = vrcp.pop %v8659
      %v8668 = vrcp.pop %v8660
      %v8669 = vrcp.pop %v8661
      %v8670 = vrcp.pop %v8662
      %v8671 = vrcp.pop %v8663
      %v8680 = vrot.slane %v8665, 7
      %v8681 = vrot.slane %v8666, 6
      %v8682 = vrot.slane %v8667, 5
      %v8683 = vrot.slane %v8668, 4
      %v8684 = vrot.slane %v8669, 3
      %v8685 = vrot.slane %v8670, 2
      %v8686 = vrot.slane %v8671, 1
      %vm8687 = vcmask 1040384
      %v8688 = vsel %vm8687, %v8664, %v8680
      %vm8689 = vcmask 1042434
      %v8690 = vsel %vm8689, %v8681, %v8682
      %vm8691 = vcmask 1041408
      %v8692 = vsel %vm8691, %v8688, %v8690
      %vm8693 = vcmask 1044484
      %v8694 = vsel %vm8693, %v8683, %v8684
      %vm8695 = vcmask 1046534
      %v8696 = vsel %vm8695, %v8685, %v8686
      %vm8697 = vcmask 1045508
      %v8698 = vsel %vm8697, %v8694, %v8696
      %v8699 = vsel %vm2986, %v8692, %v8698
      %8701 = vst [vmem:[%s410] sm:$0xff] %v8699
      %s8702 = smul.u32 8, %s26
      %p8703 = scmp.lt.s32.totalorder %s8702, 15
      %s8704 = scalar_select %p8703, %s8702, 15
      %s8705 = scalar_lea.vmem %s12, %s8704
      // Predicated region
      $region65: #{continuous_occupancy_map_forward.2} parent=63 // pred_check
        %p8706 = pneg %p280
      $region66: #{continuous_occupancy_map_forward.2} parent=63 // pred_check_branch
        %8708 = sbr.rel (%p8706) target = $region68
      $region67: #{continuous_occupancy_map_forward.2} parent=63 // pred_region
        %s8709 = smul.u32 8, %s26
      $region68: #{continuous_occupancy_map_forward.2} parent=63 // pred_fallthru
        _
    $region64: #{continuous_occupancy_map_forward.2} parent=5 // pred_fallthru
      _
    %p8710 = scmp.le.s32.totalorder 2, %s21
    // Predicated region
    $region69: #{continuous_occupancy_map_forward.2} parent=5 // pred_check
      %p8711 = pneg %p8710
    $region70: #{continuous_occupancy_map_forward.2} parent=5 // pred_check_branch
      %8713 = sbr.rel (%p8711) target = $region72
    $region71: #{continuous_occupancy_map_forward.2} parent=5 // pred_region
      %s8714 = ssub.s32 %s21, 2
      // Predicated region
      $region73: #{continuous_occupancy_map_forward.2} parent=71 // pred_check
        %p8715 = pneg %p286
      $region74: #{continuous_occupancy_map_forward.2} parent=71 // pred_check_branch
        %8717 = sbr.rel (%p8715) target = $region76
      $region75: #{continuous_occupancy_map_forward.2} parent=71 // pred_region
        %s8718 = smul.u32 8, %s27
        %p8719 = scmp.lt.s32.totalorder %s8718, 15
        %s8720 = scalar_select %p8719, %s8718, 15
        %s8721 = scalar_lea.vmem %s12, %s8720
      $region76: #{continuous_occupancy_map_forward.2} parent=71 // pred_fallthru
        _
    $region72: #{continuous_occupancy_map_forward.2} parent=5 // pred_fallthru
      _
  $region6: #{continuous_occupancy_map_forward.2} parent=0 // loop_footer
    %s25 = sadd.s32 1, %s21
  $region7: #{continuous_occupancy_map_forward.2} parent=0 // loop_footer_branch
    %20 = sbr.rel target = $region3
  $region8: #{continuous_occupancy_map_forward.2} parent=0 // loop_exit
    _

</llo_original>
